<compile_context>
chip_gen: v6e
topology: v6e:2x2x1
jax: 0.10.0
libtpu: 0.0.40
codegen_flags: <defaults>
</compile_context>

<pallas_src>
import functools
import numpy as np
import jax
import jax.numpy as jnp
from jax.experimental import pallas as pl
from jax.experimental.pallas import tpu as pltpu

_SQRT2_INV = 0.7071067811865476


def _gelu(x):
    # exact (erf) GELU, matching torch.nn.GELU() default
    return 0.5 * x * (1.0 + jax.lax.erf(x * _SQRT2_INV))


# ---------------------------------------------------------------------------
# constant 0/1 shift matrices (host-built, tiny: at most 64x64).
#   (S[t] @ x)  ==  x spatially shifted by (dy, dx) on the HxW grid flattened
#   row-major to [H*W, C], with out-of-range positions zeroed.
# ---------------------------------------------------------------------------

def _shift_matrix(H, W, dy, dx):
    m = np.zeros((H * W, H * W), np.float32)
    for i in range(H):
        for j in range(W):
            ii, jj = i + dy, j + dx
            if 0 <= ii < H and 0 <= jj < W:
                m[i * W + j, ii * W + jj] = 1.0
    return m


def _conv3x3_shift_mats(H, W):
    # tap order t = 3*ky + kx, shift (dy, dx) = (ky-1, kx-1)  (padding=1 "same" conv)
    return jnp.asarray(np.stack([_shift_matrix(H, W, ky - 1, kx - 1)
                                 for ky in range(3) for kx in range(3)]))


def _up_shift_mats(H, W):
    # shifts (dy, dx) in {0,1}^2, index 2*dy + dx
    return jnp.asarray(np.stack([_shift_matrix(H, W, dy, dx)
                                 for dy in range(2) for dx in range(2)]))


# ConvTranspose2d(k=3, s=2, p=1, output_padding=1) sub-pixel decomposition:
# output pixel (2i+py, 2j+px) only receives these taps (k = kernel index, d = input offset):
#   parity 0 -> (k=1, d=0);   parity 1 -> (k=2, d=0), (k=0, d=+1)
_UP_TAPS = {0: ((1, 0),), 1: ((2, 0), (0, 1))}


# ---------------------------------------------------------------------------
# Pallas kernels
# ---------------------------------------------------------------------------

def _core_kernel(xp_ref, s3_ref, dw_ref, db_ref, rw1_ref, rb1_ref,
                 rw2_ref, rb2_ref, se1_ref, se2_ref, o_ref,
                 *, num_blocks, hw, c):
    """Down conv (4x4/s4, from pre-packed patches) + GELU, then 6 fused ResBlocks."""
    # ---- down conv: [HW, 16*C] @ [16*C, C] ----
    x = jnp.dot(xp_ref[0], dw_ref[...], preferred_element_type=jnp.float32)
    x = _gelu(x + db_ref[...])

    def conv3x3(inp, w_ref, blk):
        acc = jnp.zeros((hw, c), jnp.float32)
        for t in range(9):
            xs = inp if t == 4 else jnp.dot(
                s3_ref[t], inp, preferred_element_type=jnp.float32)
            acc = acc + jnp.dot(xs, w_ref[blk * 9 + t],
                                preferred_element_type=jnp.float32)
        return acc

    def resblock(blk, xc):
        h = _gelu(conv3x3(xc, rw1_ref, blk) + rb1_ref[blk])
        h = conv3x3(h, rw2_ref, blk) + rb2_ref[blk]
        # ---- squeeze & excitation (tiny MLP kept on the VPU) ----
        pooled = jnp.mean(h, axis=0, keepdims=True)                        # [1, C]
        w1 = se1_ref[blk]                                                  # [Cr, C]
        w2 = se2_ref[blk]                                                  # [Cr, C] (= torch W2.T)
        hidden = _gelu(jnp.sum(pooled * w1, axis=1, keepdims=True))        # [Cr, 1]
        gate = jax.nn.sigmoid(jnp.sum(hidden * w2, axis=0, keepdims=True)) # [1, C]
        return h * gate + xc

    x = jax.lax.fori_loop(0, num_blocks, resblock, x)
    o_ref[0] = x.astype(o_ref.dtype)


def _up_kernel(x_ref, s_ref, w_ref, b_ref, *rest, has_skip):
    """ConvTranspose2d(3x3, s=2, p=1, op=1) + GELU via 4-phase sub-pixel decomposition.

    Emits phase-major output [4, H*W, C] (phase = 2*py + px); the wrapper interleaves it
    back to the (2H, 2W) grid with a pure reshape/transpose. If has_skip, a phase-major
    skip tensor is added after the GELU (fuses the block's outer residual).
    """
    if has_skip:
        skip_ref, o_ref = rest
    else:
        (o_ref,) = rest

    x = x_ref[0]                                   # [HW, C]
    bias = b_ref[...]                              # [1, C]
    shifted = {
        (0, 0): x,
        (0, 1): jnp.dot(s_ref[1], x, preferred_element_type=jnp.float32),
        (1, 0): jnp.dot(s_ref[2], x, preferred_element_type=jnp.float32),
        (1, 1): jnp.dot(s_ref[3], x, preferred_element_type=jnp.float32),
    }
    for py in (0, 1):
        for px in (0, 1):
            acc = jnp.zeros_like(x)
            for ky, dy in _UP_TAPS[py]:
                for kx, dx in _UP_TAPS[px]:
                    acc = acc + jnp.dot(shifted[(dy, dx)], w_ref[3 * ky + kx],
                                        preferred_element_type=jnp.float32)
            y = _gelu(acc + bias)
            if has_skip:
                y = y + skip_ref[0, 2 * py + px]
            o_ref[0, 2 * py + px] = y.astype(o_ref.dtype)


# ---------------------------------------------------------------------------
# pallas_call wrappers
# ---------------------------------------------------------------------------

def _full_spec(arr):
    nd = arr.ndim
    return pl.BlockSpec(arr.shape, lambda *_: (0,) * nd)


_COMPILER_PARAMS = pltpu.CompilerParams(
    dimension_semantics=("parallel",),          # batch splits across v7x's 2 TensorCores
    vmem_limit_bytes=32 * 1024 * 1024,
)


def _core_call(xp, s3, dw, db, rw1, rb1, rw2, rb2, se1, se2, *, num_blocks):
    N, HW, K = xp.shape
    C = dw.shape[1]
    kernel = functools.partial(_core_kernel, num_blocks=num_blocks, hw=HW, c=C)
    return pl.pallas_call(
        kernel,
        out_shape=jax.ShapeDtypeStruct((N, HW, C), jnp.float32),
        grid=(N,),
        in_specs=[pl.BlockSpec((1, HW, K), lambda b: (b, 0, 0)),
                  _full_spec(s3), _full_spec(dw), _full_spec(db),
                  _full_spec(rw1), _full_spec(rb1),
                  _full_spec(rw2), _full_spec(rb2),
                  _full_spec(se1), _full_spec(se2)],
        out_specs=pl.BlockSpec((1, HW, C), lambda b: (b, 0, 0)),
        compiler_params=_COMPILER_PARAMS,
    )(xp, s3, dw, db, rw1, rb1, rw2, rb2, se1, se2)


def _up_call(x, smat, w, bias, skip=None):
    N, HW, C = x.shape
    has_skip = skip is not None
    kernel = functools.partial(_up_kernel, has_skip=has_skip)
    in_specs = [pl.BlockSpec((1, HW, C), lambda b: (b, 0, 0)),
                _full_spec(smat), _full_spec(w), _full_spec(bias)]
    args = [x, smat, w, bias]
    if has_skip:
        in_specs.append(pl.BlockSpec((1, 4, HW, C), lambda b: (b, 0, 0, 0)))
        args.append(skip)
    return pl.pallas_call(
        kernel,
        out_shape=jax.ShapeDtypeStruct((N, 4, HW, C), jnp.float32),
        grid=(N,),
        in_specs=in_specs,
        out_specs=pl.BlockSpec((1, 4, HW, C), lambda b: (b, 0, 0, 0)),
        compiler_params=_COMPILER_PARAMS,
    )(*args)


# ---------------------------------------------------------------------------
# layout-only glue (plain XLA reshapes/transposes, no compute)
# ---------------------------------------------------------------------------

def _interleave_phases(ph, H, W):
    # ph: [N, 4, H*W, C] phase-major (phase = 2*py + px) -> [N, (2H)*(2W), C] row-major
    N, _, _, C = ph.shape
    z = ph.reshape(N, 2, 2, H, W, C).transpose(0, 3, 1, 4, 2, 5)
    return z.reshape(N, 4 * H * W, C)


def _to_phases(x, H, W):
    # x: [N, 2H, 2W, C] -> phase-major [N, 4, H*W, C]
    N, _, _, C = x.shape
    z = x.reshape(N, H, 2, W, 2, C).transpose(0, 2, 4, 1, 3, 5)
    return z.reshape(N, 4, H * W, C)


# ---------------------------------------------------------------------------
# parameters (created in torch layouts, converted to kernel layouts)
# ---------------------------------------------------------------------------

def init_params(key, C=32, reduction=16, num_resblocks=6):
    Cr = max(C // reduction, 1)
    keys = iter(jax.random.split(key, 8 + 8 * num_resblocks))

    def w(shape, fan_in):
        return jax.random.normal(next(keys), shape, jnp.float32) / np.sqrt(fan_in)

    def b(shape):
        return jax.random.normal(next(keys), shape, jnp.float32) * 0.01

    p = {"num_resblocks": num_resblocks}

    # down: torch Conv2d weight [Cout, Cin, 4, 4] -> [(ky*4+kx)*Cin + ci, co]
    wd = w((C, C, 4, 4), 16 * C)
    p["down_w"] = wd.transpose(2, 3, 1, 0).reshape(16 * C, C)
    p["down_b"] = b((1, C))

    rw1, rb1, rw2, rb2, se1, se2 = [], [], [], [], [], []
    for _ in range(num_resblocks):
        w1 = w((C, C, 3, 3), 9 * C)          # torch [Cout, Cin, 3, 3]
        w2 = w((C, C, 3, 3), 9 * C)
        rw1.append(w1.transpose(2, 3, 1, 0).reshape(9, C, C))   # [tap=3ky+kx, Cin, Cout]
        rw2.append(w2.transpose(2, 3, 1, 0).reshape(9, C, C))
        rb1.append(b((1, C)))
        rb2.append(b((1, C)))
        se1.append(w((Cr, C), C))            # torch Linear(C, Cr).weight, used as-is [Cr, C]
        se2.append(w((C, Cr), Cr).T)         # torch Linear(Cr, C).weight, stored as [Cr, C]
    p["rw1"] = jnp.concatenate(rw1, axis=0)  # [nb*9, C, C]
    p["rw2"] = jnp.concatenate(rw2, axis=0)
    p["rb1"] = jnp.stack(rb1)                # [nb, 1, C]
    p["rb2"] = jnp.stack(rb2)
    p["se1"] = jnp.stack(se1)                # [nb, Cr, C]
    p["se2"] = jnp.stack(se2)                # [nb, Cr, C]

    # up: torch ConvTranspose2d weight [Cin, Cout, 3, 3] -> [tap=3ky+kx, Cin, Cout]
    for name in ("up1", "up2"):
        wt = w((C, C, 3, 3), 9 * C)
        p[name + "_w"] = wt.transpose(2, 3, 0, 1).reshape(9, C, C)
        p[name + "_b"] = b((1, C))
    return p


# ---------------------------------------------------------------------------
# forward
# ---------------------------------------------------------------------------

def double_cone_forward(x_nchw, params):
    N, C, H, W = x_nchw.shape
    Hd, Wd = H // 4, W // 4            # after the 4x4/s4 down conv
    H1, W1 = 2 * Hd, 2 * Wd            # after up1

    x = jnp.transpose(x_nchw, (0, 2, 3, 1)).astype(jnp.float32)   # NHWC

    # pack non-overlapping 4x4 patches for the down conv (pure layout, no expansion)
    xp = (x.reshape(N, Hd, 4, Wd, 4, C)
           .transpose(0, 1, 3, 2, 4, 5)
           .reshape(N, Hd * Wd, 16 * C))

    s3 = _conv3x3_shift_mats(Hd, Wd)
    s_up1 = _up_shift_mats(Hd, Wd)
    s_up2 = _up_shift_mats(H1, W1)

    # 1+2) down conv + GELU + 6 ResBlocks, fully fused in one kernel
    mid = _core_call(xp, s3, params["down_w"], params["down_b"],
                     params["rw1"], params["rb1"], params["rw2"], params["rb2"],
                     params["se1"], params["se2"],
                     num_blocks=params["num_resblocks"])          # [N, Hd*Wd, C]

    # 3) up1 (+GELU), phase-major output, then interleave to the (2Hd, 2Wd) grid
    u1 = _interleave_phases(
        _up_call(mid, s_up1, params["up1_w"], params["up1_b"]), Hd, Wd)  # [N, H1*W1, C]

    # 4) up2 (+GELU) with the block's outer skip-add fused in-kernel
    skip_ph = _to_phases(x, H1, W1)                               # [N, 4, H1*W1, C]
    u2 = _interleave_phases(
        _up_call(u1, s_up2, params["up2_w"], params["up2_b"], skip=skip_ph),
        H1, W1)                                                   # [N, H*W, C]

    y = u2.reshape(N, H, W, C)
    return jnp.transpose(y, (0, 3, 1, 2))                         # back to NCHW


# ---------------------------------------------------------------------------

if __name__ == "__main__":
    B, C, H, W = 2, 32, 16, 16     # C=32 so the SE bottleneck is 32 // 16 = 2
    key = jax.random.PRNGKey(0)
    kp, kx = jax.random.split(key)
    params = init_params(kp, C=C, reduction=16, num_resblocks=6)
    x = jax.random.normal(kx, (B, C, H, W), jnp.float32)

    fwd = jax.jit(lambda inp: double_cone_forward(inp, params))
    out = jax.block_until_ready(fwd(x))

    assert out.shape == (B, C, H, W), out.shape
    assert bool(jnp.all(jnp.isfinite(out)))
    print("KERNEL_OK")
</pallas_src>

<mosaic_0001>
module attributes {stable_mosaic.version = 11 : i64} {
  func.func @_core_kernel(%arg0: i32, %arg1: memref<1x16x512xf32, #tpu.memory_space<vmem>>, %arg2: memref<9x16x16xf32, #tpu.memory_space<vmem>>, %arg3: memref<512x32xf32, #tpu.memory_space<vmem>>, %arg4: memref<1x32xf32, #tpu.memory_space<vmem>>, %arg5: memref<54x32x32xf32, #tpu.memory_space<vmem>>, %arg6: memref<6x1x32xf32, #tpu.memory_space<vmem>>, %arg7: memref<54x32x32xf32, #tpu.memory_space<vmem>>, %arg8: memref<6x1x32xf32, #tpu.memory_space<vmem>>, %arg9: memref<6x2x32xf32, #tpu.memory_space<vmem>>, %arg10: memref<6x2x32xf32, #tpu.memory_space<vmem>>, %arg11: memref<1x16x32xf32, #tpu.memory_space<vmem>>) attributes {dimension_semantics = [#tpu.dimension_semantics<parallel>], iteration_bounds = array<i64: 2>, scalar_prefetch = 0 : i64, scratch_operands = 0 : i64, tpu.core_type = #tpu.core_type<tc>, window_params = [{transform_indices = @transform_0, window_bounds = array<i64: 1, 16, 512>}, {pipeline_mode = #tpu.pipeline_mode<synchronous>, transform_indices = @transform_1, window_bounds = array<i64: 9, 16, 16>}, {pipeline_mode = #tpu.pipeline_mode<synchronous>, transform_indices = @transform_2, window_bounds = array<i64: 512, 32>}, {pipeline_mode = #tpu.pipeline_mode<synchronous>, transform_indices = @transform_3, window_bounds = array<i64: 1, 32>}, {pipeline_mode = #tpu.pipeline_mode<synchronous>, transform_indices = @transform_4, window_bounds = array<i64: 54, 32, 32>}, {pipeline_mode = #tpu.pipeline_mode<synchronous>, transform_indices = @transform_5, window_bounds = array<i64: 6, 1, 32>}, {pipeline_mode = #tpu.pipeline_mode<synchronous>, transform_indices = @transform_6, window_bounds = array<i64: 54, 32, 32>}, {pipeline_mode = #tpu.pipeline_mode<synchronous>, transform_indices = @transform_7, window_bounds = array<i64: 6, 1, 32>}, {pipeline_mode = #tpu.pipeline_mode<synchronous>, transform_indices = @transform_8, window_bounds = array<i64: 6, 2, 32>}, {pipeline_mode = #tpu.pipeline_mode<synchronous>, transform_indices = @transform_9, window_bounds = array<i64: 6, 2, 32>}, {transform_indices = @transform_10, window_bounds = array<i64: 1, 16, 32>}]} {
    %c0 = arith.constant 0 : index
    %c0_0 = arith.constant 0 : index
    %c0_1 = arith.constant 0 : index
    %0 = vector.load %arg1[%c0, %c0_0, %c0_1] : memref<1x16x512xf32, #tpu.memory_space<vmem>>, vector<1x16x512xf32>
    %1 = vector.shape_cast %0 : vector<1x16x512xf32> to vector<16x512xf32>
    %c0_2 = arith.constant 0 : index
    %c0_3 = arith.constant 0 : index
    %2 = vector.load %arg3[%c0_2, %c0_3] : memref<512x32xf32, #tpu.memory_space<vmem>>, vector<512x32xf32>
    %cst = arith.constant dense<0.000000e+00> : vector<16x32xf32>
    %3 = tpu.matmul %1, %2, %cst {dimension_numbers = #tpu.dot_dimension_numbers<[1], [0], [0], [1], [0, 0, 1, 1], [], []>} : vector<16x512xf32>, vector<512x32xf32>, vector<16x32xf32> -> vector<16x32xf32>
    %c0_4 = arith.constant 0 : index
    %c0_5 = arith.constant 0 : index
    %4 = vector.load %arg4[%c0_4, %c0_5] : memref<1x32xf32, #tpu.memory_space<vmem>>, vector<1x32xf32>
    %5 = vector.broadcast %4 : vector<1x32xf32> to vector<16x32xf32>
    %6 = arith.addf %3, %5 : vector<16x32xf32>
    %cst_6 = arith.constant 5.000000e-01 : f32
    %7 = vector.broadcast %cst_6 : f32 to vector<16x32xf32>
    %8 = arith.mulf %7, %6 : vector<16x32xf32>
    %cst_7 = arith.constant 0.707106769 : f32
    %9 = vector.broadcast %cst_7 : f32 to vector<16x32xf32>
    %10 = arith.mulf %6, %9 : vector<16x32xf32>
    %11 = math.erf %10 : vector<16x32xf32>
    %cst_8 = arith.constant 1.000000e+00 : f32
    %12 = vector.broadcast %cst_8 : f32 to vector<16x32xf32>
    %13 = arith.addf %12, %11 : vector<16x32xf32>
    %14 = arith.mulf %8, %13 : vector<16x32xf32>
    %c0_i32 = arith.constant 0 : i32
    %c6_i32 = arith.constant 6 : i32
    %15 = arith.addi %c0_i32, %c6_i32 : i32
    %c1_i32 = arith.constant 1 : i32
    %16 = scf.for %arg12 = %c0_i32 to %15 step %c1_i32 iter_args(%arg13 = %14) -> (vector<16x32xf32>)  : i32 {
      %cst_13 = arith.constant 0.000000e+00 : f32
      %20 = vector.broadcast %cst_13 : f32 to vector<16x32xf32>
      %c0_14 = arith.constant 0 : index
      %c0_15 = arith.constant 0 : index
      %c0_16 = arith.constant 0 : index
      %21 = vector.load %arg2[%c0_14, %c0_15, %c0_16] : memref<9x16x16xf32, #tpu.memory_space<vmem>>, vector<1x16x16xf32>
      %22 = vector.shape_cast %21 : vector<1x16x16xf32> to vector<16x16xf32>
      %cst_17 = arith.constant dense<0.000000e+00> : vector<16x32xf32>
      %23 = tpu.matmul %22, %arg13, %cst_17 {dimension_numbers = #tpu.dot_dimension_numbers<[1], [0], [0], [1], [0, 0, 1, 1], [], []>} : vector<16x16xf32>, vector<16x32xf32>, vector<16x32xf32> -> vector<16x32xf32>
      %c9_i32 = arith.constant 9 : i32
      %24 = arith.muli %arg12, %c9_i32 : i32
      %c0_i32_18 = arith.constant 0 : i32
      %25 = arith.addi %24, %c0_i32_18 : i32
      %26 = arith.index_cast %25 : i32 to index
      %c0_19 = arith.constant 0 : index
      %c0_20 = arith.constant 0 : index
      %27 = vector.load %arg5[%26, %c0_19, %c0_20] : memref<54x32x32xf32, #tpu.memory_space<vmem>>, vector<1x32x32xf32>
      %28 = vector.shape_cast %27 : vector<1x32x32xf32> to vector<32x32xf32>
      %cst_21 = arith.constant dense<0.000000e+00> : vector<16x32xf32>
      %29 = tpu.matmul %23, %28, %cst_21 {dimension_numbers = #tpu.dot_dimension_numbers<[1], [0], [0], [1], [0, 0, 1, 1], [], []>} : vector<16x32xf32>, vector<32x32xf32>, vector<16x32xf32> -> vector<16x32xf32>
      %30 = arith.addf %20, %29 : vector<16x32xf32>
      %c1 = arith.constant 1 : index
      %c0_22 = arith.constant 0 : index
      %c0_23 = arith.constant 0 : index
      %31 = vector.load %arg2[%c1, %c0_22, %c0_23] : memref<9x16x16xf32, #tpu.memory_space<vmem>>, vector<1x16x16xf32>
      %32 = vector.shape_cast %31 : vector<1x16x16xf32> to vector<16x16xf32>
      %cst_24 = arith.constant dense<0.000000e+00> : vector<16x32xf32>
      %33 = tpu.matmul %32, %arg13, %cst_24 {dimension_numbers = #tpu.dot_dimension_numbers<[1], [0], [0], [1], [0, 0, 1, 1], [], []>} : vector<16x16xf32>, vector<16x32xf32>, vector<16x32xf32> -> vector<16x32xf32>
      %c9_i32_25 = arith.constant 9 : i32
      %34 = arith.muli %arg12, %c9_i32_25 : i32
      %c1_i32_26 = arith.constant 1 : i32
      %35 = arith.addi %34, %c1_i32_26 : i32
      %36 = arith.index_cast %35 : i32 to index
      %c0_27 = arith.constant 0 : index
      %c0_28 = arith.constant 0 : index
      %37 = vector.load %arg5[%36, %c0_27, %c0_28] : memref<54x32x32xf32, #tpu.memory_space<vmem>>, vector<1x32x32xf32>
      %38 = vector.shape_cast %37 : vector<1x32x32xf32> to vector<32x32xf32>
      %cst_29 = arith.constant dense<0.000000e+00> : vector<16x32xf32>
      %39 = tpu.matmul %33, %38, %cst_29 {dimension_numbers = #tpu.dot_dimension_numbers<[1], [0], [0], [1], [0, 0, 1, 1], [], []>} : vector<16x32xf32>, vector<32x32xf32>, vector<16x32xf32> -> vector<16x32xf32>
      %40 = arith.addf %30, %39 : vector<16x32xf32>
      %c2 = arith.constant 2 : index
      %c0_30 = arith.constant 0 : index
      %c0_31 = arith.constant 0 : index
      %41 = vector.load %arg2[%c2, %c0_30, %c0_31] : memref<9x16x16xf32, #tpu.memory_space<vmem>>, vector<1x16x16xf32>
      %42 = vector.shape_cast %41 : vector<1x16x16xf32> to vector<16x16xf32>
      %cst_32 = arith.constant dense<0.000000e+00> : vector<16x32xf32>
      %43 = tpu.matmul %42, %arg13, %cst_32 {dimension_numbers = #tpu.dot_dimension_numbers<[1], [0], [0], [1], [0, 0, 1, 1], [], []>} : vector<16x16xf32>, vector<16x32xf32>, vector<16x32xf32> -> vector<16x32xf32>
      %c9_i32_33 = arith.constant 9 : i32
      %44 = arith.muli %arg12, %c9_i32_33 : i32
      %c2_i32 = arith.constant 2 : i32
      %45 = arith.addi %44, %c2_i32 : i32
      %46 = arith.index_cast %45 : i32 to index
      %c0_34 = arith.constant 0 : index
      %c0_35 = arith.constant 0 : index
      %47 = vector.load %arg5[%46, %c0_34, %c0_35] : memref<54x32x32xf32, #tpu.memory_space<vmem>>, vector<1x32x32xf32>
      %48 = vector.shape_cast %47 : vector<1x32x32xf32> to vector<32x32xf32>
      %cst_36 = arith.constant dense<0.000000e+00> : vector<16x32xf32>
      %49 = tpu.matmul %43, %48, %cst_36 {dimension_numbers = #tpu.dot_dimension_numbers<[1], [0], [0], [1], [0, 0, 1, 1], [], []>} : vector<16x32xf32>, vector<32x32xf32>, vector<16x32xf32> -> vector<16x32xf32>
      %50 = arith.addf %40, %49 : vector<16x32xf32>
      %c3 = arith.constant 3 : index
      %c0_37 = arith.constant 0 : index
      %c0_38 = arith.constant 0 : index
      %51 = vector.load %arg2[%c3, %c0_37, %c0_38] : memref<9x16x16xf32, #tpu.memory_space<vmem>>, vector<1x16x16xf32>
      %52 = vector.shape_cast %51 : vector<1x16x16xf32> to vector<16x16xf32>
      %cst_39 = arith.constant dense<0.000000e+00> : vector<16x32xf32>
      %53 = tpu.matmul %52, %arg13, %cst_39 {dimension_numbers = #tpu.dot_dimension_numbers<[1], [0], [0], [1], [0, 0, 1, 1], [], []>} : vector<16x16xf32>, vector<16x32xf32>, vector<16x32xf32> -> vector<16x32xf32>
      %c9_i32_40 = arith.constant 9 : i32
      %54 = arith.muli %arg12, %c9_i32_40 : i32
      %c3_i32 = arith.constant 3 : i32
      %55 = arith.addi %54, %c3_i32 : i32
      %56 = arith.index_cast %55 : i32 to index
      %c0_41 = arith.constant 0 : index
      %c0_42 = arith.constant 0 : index
      %57 = vector.load %arg5[%56, %c0_41, %c0_42] : memref<54x32x32xf32, #tpu.memory_space<vmem>>, vector<1x32x32xf32>
      %58 = vector.shape_cast %57 : vector<1x32x32xf32> to vector<32x32xf32>
      %cst_43 = arith.constant dense<0.000000e+00> : vector<16x32xf32>
      %59 = tpu.matmul %53, %58, %cst_43 {dimension_numbers = #tpu.dot_dimension_numbers<[1], [0], [0], [1], [0, 0, 1, 1], [], []>} : vector<16x32xf32>, vector<32x32xf32>, vector<16x32xf32> -> vector<16x32xf32>
      %60 = arith.addf %50, %59 : vector<16x32xf32>
      %c9_i32_44 = arith.constant 9 : i32
      %61 = arith.muli %arg12, %c9_i32_44 : i32
      %c4_i32 = arith.constant 4 : i32
      %62 = arith.addi %61, %c4_i32 : i32
      %63 = arith.index_cast %62 : i32 to index
      %c0_45 = arith.constant 0 : index
      %c0_46 = arith.constant 0 : index
      %64 = vector.load %arg5[%63, %c0_45, %c0_46] : memref<54x32x32xf32, #tpu.memory_space<vmem>>, vector<1x32x32xf32>
      %65 = vector.shape_cast %64 : vector<1x32x32xf32> to vector<32x32xf32>
      %cst_47 = arith.constant dense<0.000000e+00> : vector<16x32xf32>
      %66 = tpu.matmul %arg13, %65, %cst_47 {dimension_numbers = #tpu.dot_dimension_numbers<[1], [0], [0], [1], [0, 0, 1, 1], [], []>} : vector<16x32xf32>, vector<32x32xf32>, vector<16x32xf32> -> vector<16x32xf32>
      %67 = arith.addf %60, %66 : vector<16x32xf32>
      %c5 = arith.constant 5 : index
      %c0_48 = arith.constant 0 : index
      %c0_49 = arith.constant 0 : index
      %68 = vector.load %arg2[%c5, %c0_48, %c0_49] : memref<9x16x16xf32, #tpu.memory_space<vmem>>, vector<1x16x16xf32>
      %69 = vector.shape_cast %68 : vector<1x16x16xf32> to vector<16x16xf32>
      %cst_50 = arith.constant dense<0.000000e+00> : vector<16x32xf32>
      %70 = tpu.matmul %69, %arg13, %cst_50 {dimension_numbers = #tpu.dot_dimension_numbers<[1], [0], [0], [1], [0, 0, 1, 1], [], []>} : vector<16x16xf32>, vector<16x32xf32>, vector<16x32xf32> -> vector<16x32xf32>
      %c9_i32_51 = arith.constant 9 : i32
      %71 = arith.muli %arg12, %c9_i32_51 : i32
      %c5_i32 = arith.constant 5 : i32
      %72 = arith.addi %71, %c5_i32 : i32
      %73 = arith.index_cast %72 : i32 to index
      %c0_52 = arith.constant 0 : index
      %c0_53 = arith.constant 0 : index
      %74 = vector.load %arg5[%73, %c0_52, %c0_53] : memref<54x32x32xf32, #tpu.memory_space<vmem>>, vector<1x32x32xf32>
      %75 = vector.shape_cast %74 : vector<1x32x32xf32> to vector<32x32xf32>
      %cst_54 = arith.constant dense<0.000000e+00> : vector<16x32xf32>
      %76 = tpu.matmul %70, %75, %cst_54 {dimension_numbers = #tpu.dot_dimension_numbers<[1], [0], [0], [1], [0, 0, 1, 1], [], []>} : vector<16x32xf32>, vector<32x32xf32>, vector<16x32xf32> -> vector<16x32xf32>
      %77 = arith.addf %67, %76 : vector<16x32xf32>
      %c6 = arith.constant 6 : index
      %c0_55 = arith.constant 0 : index
      %c0_56 = arith.constant 0 : index
      %78 = vector.load %arg2[%c6, %c0_55, %c0_56] : memref<9x16x16xf32, #tpu.memory_space<vmem>>, vector<1x16x16xf32>
      %79 = vector.shape_cast %78 : vector<1x16x16xf32> to vector<16x16xf32>
      %cst_57 = arith.constant dense<0.000000e+00> : vector<16x32xf32>
      %80 = tpu.matmul %79, %arg13, %cst_57 {dimension_numbers = #tpu.dot_dimension_numbers<[1], [0], [0], [1], [0, 0, 1, 1], [], []>} : vector<16x16xf32>, vector<16x32xf32>, vector<16x32xf32> -> vector<16x32xf32>
      %c9_i32_58 = arith.constant 9 : i32
      %81 = arith.muli %arg12, %c9_i32_58 : i32
      %c6_i32_59 = arith.constant 6 : i32
      %82 = arith.addi %81, %c6_i32_59 : i32
      %83 = arith.index_cast %82 : i32 to index
      %c0_60 = arith.constant 0 : index
      %c0_61 = arith.constant 0 : index
      %84 = vector.load %arg5[%83, %c0_60, %c0_61] : memref<54x32x32xf32, #tpu.memory_space<vmem>>, vector<1x32x32xf32>
      %85 = vector.shape_cast %84 : vector<1x32x32xf32> to vector<32x32xf32>
      %cst_62 = arith.constant dense<0.000000e+00> : vector<16x32xf32>
      %86 = tpu.matmul %80, %85, %cst_62 {dimension_numbers = #tpu.dot_dimension_numbers<[1], [0], [0], [1], [0, 0, 1, 1], [], []>} : vector<16x32xf32>, vector<32x32xf32>, vector<16x32xf32> -> vector<16x32xf32>
      %87 = arith.addf %77, %86 : vector<16x32xf32>
      %c7 = arith.constant 7 : index
      %c0_63 = arith.constant 0 : index
      %c0_64 = arith.constant 0 : index
      %88 = vector.load %arg2[%c7, %c0_63, %c0_64] : memref<9x16x16xf32, #tpu.memory_space<vmem>>, vector<1x16x16xf32>
      %89 = vector.shape_cast %88 : vector<1x16x16xf32> to vector<16x16xf32>
      %cst_65 = arith.constant dense<0.000000e+00> : vector<16x32xf32>
      %90 = tpu.matmul %89, %arg13, %cst_65 {dimension_numbers = #tpu.dot_dimension_numbers<[1], [0], [0], [1], [0, 0, 1, 1], [], []>} : vector<16x16xf32>, vector<16x32xf32>, vector<16x32xf32> -> vector<16x32xf32>
      %c9_i32_66 = arith.constant 9 : i32
      %91 = arith.muli %arg12, %c9_i32_66 : i32
      %c7_i32 = arith.constant 7 : i32
      %92 = arith.addi %91, %c7_i32 : i32
      %93 = arith.index_cast %92 : i32 to index
      %c0_67 = arith.constant 0 : index
      %c0_68 = arith.constant 0 : index
      %94 = vector.load %arg5[%93, %c0_67, %c0_68] : memref<54x32x32xf32, #tpu.memory_space<vmem>>, vector<1x32x32xf32>
      %95 = vector.shape_cast %94 : vector<1x32x32xf32> to vector<32x32xf32>
      %cst_69 = arith.constant dense<0.000000e+00> : vector<16x32xf32>
      %96 = tpu.matmul %90, %95, %cst_69 {dimension_numbers = #tpu.dot_dimension_numbers<[1], [0], [0], [1], [0, 0, 1, 1], [], []>} : vector<16x32xf32>, vector<32x32xf32>, vector<16x32xf32> -> vector<16x32xf32>
      %97 = arith.addf %87, %96 : vector<16x32xf32>
      %c8 = arith.constant 8 : index
      %c0_70 = arith.constant 0 : index
      %c0_71 = arith.constant 0 : index
      %98 = vector.load %arg2[%c8, %c0_70, %c0_71] : memref<9x16x16xf32, #tpu.memory_space<vmem>>, vector<1x16x16xf32>
      %99 = vector.shape_cast %98 : vector<1x16x16xf32> to vector<16x16xf32>
      %cst_72 = arith.constant dense<0.000000e+00> : vector<16x32xf32>
      %100 = tpu.matmul %99, %arg13, %cst_72 {dimension_numbers = #tpu.dot_dimension_numbers<[1], [0], [0], [1], [0, 0, 1, 1], [], []>} : vector<16x16xf32>, vector<16x32xf32>, vector<16x32xf32> -> vector<16x32xf32>
      %c9_i32_73 = arith.constant 9 : i32
      %101 = arith.muli %arg12, %c9_i32_73 : i32
      %c8_i32 = arith.constant 8 : i32
      %102 = arith.addi %101, %c8_i32 : i32
      %103 = arith.index_cast %102 : i32 to index
      %c0_74 = arith.constant 0 : index
      %c0_75 = arith.constant 0 : index
      %104 = vector.load %arg5[%103, %c0_74, %c0_75] : memref<54x32x32xf32, #tpu.memory_space<vmem>>, vector<1x32x32xf32>
      %105 = vector.shape_cast %104 : vector<1x32x32xf32> to vector<32x32xf32>
      %cst_76 = arith.constant dense<0.000000e+00> : vector<16x32xf32>
      %106 = tpu.matmul %100, %105, %cst_76 {dimension_numbers = #tpu.dot_dimension_numbers<[1], [0], [0], [1], [0, 0, 1, 1], [], []>} : vector<16x32xf32>, vector<32x32xf32>, vector<16x32xf32> -> vector<16x32xf32>
      %107 = arith.addf %97, %106 : vector<16x32xf32>
      %108 = arith.index_cast %arg12 : i32 to index
      %c0_77 = arith.constant 0 : index
      %c0_78 = arith.constant 0 : index
      %109 = vector.load %arg6[%108, %c0_77, %c0_78] : memref<6x1x32xf32, #tpu.memory_space<vmem>>, vector<1x1x32xf32>
      %110 = vector.shape_cast %109 : vector<1x1x32xf32> to vector<1x32xf32>
      %111 = vector.broadcast %110 : vector<1x32xf32> to vector<16x32xf32>
      %112 = arith.addf %107, %111 : vector<16x32xf32>
      %cst_79 = arith.constant 5.000000e-01 : f32
      %113 = vector.broadcast %cst_79 : f32 to vector<16x32xf32>
      %114 = arith.mulf %113, %112 : vector<16x32xf32>
      %cst_80 = arith.constant 0.707106769 : f32
      %115 = vector.broadcast %cst_80 : f32 to vector<16x32xf32>
      %116 = arith.mulf %112, %115 : vector<16x32xf32>
      %117 = math.erf %116 : vector<16x32xf32>
      %cst_81 = arith.constant 1.000000e+00 : f32
      %118 = vector.broadcast %cst_81 : f32 to vector<16x32xf32>
      %119 = arith.addf %118, %117 : vector<16x32xf32>
      %120 = arith.mulf %114, %119 : vector<16x32xf32>
      %cst_82 = arith.constant 0.000000e+00 : f32
      %121 = vector.broadcast %cst_82 : f32 to vector<16x32xf32>
      %c0_83 = arith.constant 0 : index
      %c0_84 = arith.constant 0 : index
      %c0_85 = arith.constant 0 : index
      %122 = vector.load %arg2[%c0_83, %c0_84, %c0_85] : memref<9x16x16xf32, #tpu.memory_space<vmem>>, vector<1x16x16xf32>
      %123 = vector.shape_cast %122 : vector<1x16x16xf32> to vector<16x16xf32>
      %cst_86 = arith.constant dense<0.000000e+00> : vector<16x32xf32>
      %124 = tpu.matmul %123, %120, %cst_86 {dimension_numbers = #tpu.dot_dimension_numbers<[1], [0], [0], [1], [0, 0, 1, 1], [], []>} : vector<16x16xf32>, vector<16x32xf32>, vector<16x32xf32> -> vector<16x32xf32>
      %c9_i32_87 = arith.constant 9 : i32
      %125 = arith.muli %arg12, %c9_i32_87 : i32
      %c0_i32_88 = arith.constant 0 : i32
      %126 = arith.addi %125, %c0_i32_88 : i32
      %127 = arith.index_cast %126 : i32 to index
      %c0_89 = arith.constant 0 : index
      %c0_90 = arith.constant 0 : index
      %128 = vector.load %arg7[%127, %c0_89, %c0_90] : memref<54x32x32xf32, #tpu.memory_space<vmem>>, vector<1x32x32xf32>
      %129 = vector.shape_cast %128 : vector<1x32x32xf32> to vector<32x32xf32>
      %cst_91 = arith.constant dense<0.000000e+00> : vector<16x32xf32>
      %130 = tpu.matmul %124, %129, %cst_91 {dimension_numbers = #tpu.dot_dimension_numbers<[1], [0], [0], [1], [0, 0, 1, 1], [], []>} : vector<16x32xf32>, vector<32x32xf32>, vector<16x32xf32> -> vector<16x32xf32>
      %131 = arith.addf %121, %130 : vector<16x32xf32>
      %c1_92 = arith.constant 1 : index
      %c0_93 = arith.constant 0 : index
      %c0_94 = arith.constant 0 : index
      %132 = vector.load %arg2[%c1_92, %c0_93, %c0_94] : memref<9x16x16xf32, #tpu.memory_space<vmem>>, vector<1x16x16xf32>
      %133 = vector.shape_cast %132 : vector<1x16x16xf32> to vector<16x16xf32>
      %cst_95 = arith.constant dense<0.000000e+00> : vector<16x32xf32>
      %134 = tpu.matmul %133, %120, %cst_95 {dimension_numbers = #tpu.dot_dimension_numbers<[1], [0], [0], [1], [0, 0, 1, 1], [], []>} : vector<16x16xf32>, vector<16x32xf32>, vector<16x32xf32> -> vector<16x32xf32>
      %c9_i32_96 = arith.constant 9 : i32
      %135 = arith.muli %arg12, %c9_i32_96 : i32
      %c1_i32_97 = arith.constant 1 : i32
      %136 = arith.addi %135, %c1_i32_97 : i32
      %137 = arith.index_cast %136 : i32 to index
      %c0_98 = arith.constant 0 : index
      %c0_99 = arith.constant 0 : index
      %138 = vector.load %arg7[%137, %c0_98, %c0_99] : memref<54x32x32xf32, #tpu.memory_space<vmem>>, vector<1x32x32xf32>
      %139 = vector.shape_cast %138 : vector<1x32x32xf32> to vector<32x32xf32>
      %cst_100 = arith.constant dense<0.000000e+00> : vector<16x32xf32>
      %140 = tpu.matmul %134, %139, %cst_100 {dimension_numbers = #tpu.dot_dimension_numbers<[1], [0], [0], [1], [0, 0, 1, 1], [], []>} : vector<16x32xf32>, vector<32x32xf32>, vector<16x32xf32> -> vector<16x32xf32>
      %141 = arith.addf %131, %140 : vector<16x32xf32>
      %c2_101 = arith.constant 2 : index
      %c0_102 = arith.constant 0 : index
      %c0_103 = arith.constant 0 : index
      %142 = vector.load %arg2[%c2_101, %c0_102, %c0_103] : memref<9x16x16xf32, #tpu.memory_space<vmem>>, vector<1x16x16xf32>
      %143 = vector.shape_cast %142 : vector<1x16x16xf32> to vector<16x16xf32>
      %cst_104 = arith.constant dense<0.000000e+00> : vector<16x32xf32>
      %144 = tpu.matmul %143, %120, %cst_104 {dimension_numbers = #tpu.dot_dimension_numbers<[1], [0], [0], [1], [0, 0, 1, 1], [], []>} : vector<16x16xf32>, vector<16x32xf32>, vector<16x32xf32> -> vector<16x32xf32>
      %c9_i32_105 = arith.constant 9 : i32
      %145 = arith.muli %arg12, %c9_i32_105 : i32
      %c2_i32_106 = arith.constant 2 : i32
      %146 = arith.addi %145, %c2_i32_106 : i32
      %147 = arith.index_cast %146 : i32 to index
      %c0_107 = arith.constant 0 : index
      %c0_108 = arith.constant 0 : index
      %148 = vector.load %arg7[%147, %c0_107, %c0_108] : memref<54x32x32xf32, #tpu.memory_space<vmem>>, vector<1x32x32xf32>
      %149 = vector.shape_cast %148 : vector<1x32x32xf32> to vector<32x32xf32>
      %cst_109 = arith.constant dense<0.000000e+00> : vector<16x32xf32>
      %150 = tpu.matmul %144, %149, %cst_109 {dimension_numbers = #tpu.dot_dimension_numbers<[1], [0], [0], [1], [0, 0, 1, 1], [], []>} : vector<16x32xf32>, vector<32x32xf32>, vector<16x32xf32> -> vector<16x32xf32>
      %151 = arith.addf %141, %150 : vector<16x32xf32>
      %c3_110 = arith.constant 3 : index
      %c0_111 = arith.constant 0 : index
      %c0_112 = arith.constant 0 : index
      %152 = vector.load %arg2[%c3_110, %c0_111, %c0_112] : memref<9x16x16xf32, #tpu.memory_space<vmem>>, vector<1x16x16xf32>
      %153 = vector.shape_cast %152 : vector<1x16x16xf32> to vector<16x16xf32>
      %cst_113 = arith.constant dense<0.000000e+00> : vector<16x32xf32>
      %154 = tpu.matmul %153, %120, %cst_113 {dimension_numbers = #tpu.dot_dimension_numbers<[1], [0], [0], [1], [0, 0, 1, 1], [], []>} : vector<16x16xf32>, vector<16x32xf32>, vector<16x32xf32> -> vector<16x32xf32>
      %c9_i32_114 = arith.constant 9 : i32
      %155 = arith.muli %arg12, %c9_i32_114 : i32
      %c3_i32_115 = arith.constant 3 : i32
      %156 = arith.addi %155, %c3_i32_115 : i32
      %157 = arith.index_cast %156 : i32 to index
      %c0_116 = arith.constant 0 : index
      %c0_117 = arith.constant 0 : index
      %158 = vector.load %arg7[%157, %c0_116, %c0_117] : memref<54x32x32xf32, #tpu.memory_space<vmem>>, vector<1x32x32xf32>
      %159 = vector.shape_cast %158 : vector<1x32x32xf32> to vector<32x32xf32>
      %cst_118 = arith.constant dense<0.000000e+00> : vector<16x32xf32>
      %160 = tpu.matmul %154, %159, %cst_118 {dimension_numbers = #tpu.dot_dimension_numbers<[1], [0], [0], [1], [0, 0, 1, 1], [], []>} : vector<16x32xf32>, vector<32x32xf32>, vector<16x32xf32> -> vector<16x32xf32>
      %161 = arith.addf %151, %160 : vector<16x32xf32>
      %c9_i32_119 = arith.constant 9 : i32
      %162 = arith.muli %arg12, %c9_i32_119 : i32
      %c4_i32_120 = arith.constant 4 : i32
      %163 = arith.addi %162, %c4_i32_120 : i32
      %164 = arith.index_cast %163 : i32 to index
      %c0_121 = arith.constant 0 : index
      %c0_122 = arith.constant 0 : index
      %165 = vector.load %arg7[%164, %c0_121, %c0_122] : memref<54x32x32xf32, #tpu.memory_space<vmem>>, vector<1x32x32xf32>
      %166 = vector.shape_cast %165 : vector<1x32x32xf32> to vector<32x32xf32>
      %cst_123 = arith.constant dense<0.000000e+00> : vector<16x32xf32>
      %167 = tpu.matmul %120, %166, %cst_123 {dimension_numbers = #tpu.dot_dimension_numbers<[1], [0], [0], [1], [0, 0, 1, 1], [], []>} : vector<16x32xf32>, vector<32x32xf32>, vector<16x32xf32> -> vector<16x32xf32>
      %168 = arith.addf %161, %167 : vector<16x32xf32>
      %c5_124 = arith.constant 5 : index
      %c0_125 = arith.constant 0 : index
      %c0_126 = arith.constant 0 : index
      %169 = vector.load %arg2[%c5_124, %c0_125, %c0_126] : memref<9x16x16xf32, #tpu.memory_space<vmem>>, vector<1x16x16xf32>
      %170 = vector.shape_cast %169 : vector<1x16x16xf32> to vector<16x16xf32>
      %cst_127 = arith.constant dense<0.000000e+00> : vector<16x32xf32>
      %171 = tpu.matmul %170, %120, %cst_127 {dimension_numbers = #tpu.dot_dimension_numbers<[1], [0], [0], [1], [0, 0, 1, 1], [], []>} : vector<16x16xf32>, vector<16x32xf32>, vector<16x32xf32> -> vector<16x32xf32>
      %c9_i32_128 = arith.constant 9 : i32
      %172 = arith.muli %arg12, %c9_i32_128 : i32
      %c5_i32_129 = arith.constant 5 : i32
      %173 = arith.addi %172, %c5_i32_129 : i32
      %174 = arith.index_cast %173 : i32 to index
      %c0_130 = arith.constant 0 : index
      %c0_131 = arith.constant 0 : index
      %175 = vector.load %arg7[%174, %c0_130, %c0_131] : memref<54x32x32xf32, #tpu.memory_space<vmem>>, vector<1x32x32xf32>
      %176 = vector.shape_cast %175 : vector<1x32x32xf32> to vector<32x32xf32>
      %cst_132 = arith.constant dense<0.000000e+00> : vector<16x32xf32>
      %177 = tpu.matmul %171, %176, %cst_132 {dimension_numbers = #tpu.dot_dimension_numbers<[1], [0], [0], [1], [0, 0, 1, 1], [], []>} : vector<16x32xf32>, vector<32x32xf32>, vector<16x32xf32> -> vector<16x32xf32>
      %178 = arith.addf %168, %177 : vector<16x32xf32>
      %c6_133 = arith.constant 6 : index
      %c0_134 = arith.constant 0 : index
      %c0_135 = arith.constant 0 : index
      %179 = vector.load %arg2[%c6_133, %c0_134, %c0_135] : memref<9x16x16xf32, #tpu.memory_space<vmem>>, vector<1x16x16xf32>
      %180 = vector.shape_cast %179 : vector<1x16x16xf32> to vector<16x16xf32>
      %cst_136 = arith.constant dense<0.000000e+00> : vector<16x32xf32>
      %181 = tpu.matmul %180, %120, %cst_136 {dimension_numbers = #tpu.dot_dimension_numbers<[1], [0], [0], [1], [0, 0, 1, 1], [], []>} : vector<16x16xf32>, vector<16x32xf32>, vector<16x32xf32> -> vector<16x32xf32>
      %c9_i32_137 = arith.constant 9 : i32
      %182 = arith.muli %arg12, %c9_i32_137 : i32
      %c6_i32_138 = arith.constant 6 : i32
      %183 = arith.addi %182, %c6_i32_138 : i32
      %184 = arith.index_cast %183 : i32 to index
      %c0_139 = arith.constant 0 : index
      %c0_140 = arith.constant 0 : index
      %185 = vector.load %arg7[%184, %c0_139, %c0_140] : memref<54x32x32xf32, #tpu.memory_space<vmem>>, vector<1x32x32xf32>
      %186 = vector.shape_cast %185 : vector<1x32x32xf32> to vector<32x32xf32>
      %cst_141 = arith.constant dense<0.000000e+00> : vector<16x32xf32>
      %187 = tpu.matmul %181, %186, %cst_141 {dimension_numbers = #tpu.dot_dimension_numbers<[1], [0], [0], [1], [0, 0, 1, 1], [], []>} : vector<16x32xf32>, vector<32x32xf32>, vector<16x32xf32> -> vector<16x32xf32>
      %188 = arith.addf %178, %187 : vector<16x32xf32>
      %c7_142 = arith.constant 7 : index
      %c0_143 = arith.constant 0 : index
      %c0_144 = arith.constant 0 : index
      %189 = vector.load %arg2[%c7_142, %c0_143, %c0_144] : memref<9x16x16xf32, #tpu.memory_space<vmem>>, vector<1x16x16xf32>
      %190 = vector.shape_cast %189 : vector<1x16x16xf32> to vector<16x16xf32>
      %cst_145 = arith.constant dense<0.000000e+00> : vector<16x32xf32>
      %191 = tpu.matmul %190, %120, %cst_145 {dimension_numbers = #tpu.dot_dimension_numbers<[1], [0], [0], [1], [0, 0, 1, 1], [], []>} : vector<16x16xf32>, vector<16x32xf32>, vector<16x32xf32> -> vector<16x32xf32>
      %c9_i32_146 = arith.constant 9 : i32
      %192 = arith.muli %arg12, %c9_i32_146 : i32
      %c7_i32_147 = arith.constant 7 : i32
      %193 = arith.addi %192, %c7_i32_147 : i32
      %194 = arith.index_cast %193 : i32 to index
      %c0_148 = arith.constant 0 : index
      %c0_149 = arith.constant 0 : index
      %195 = vector.load %arg7[%194, %c0_148, %c0_149] : memref<54x32x32xf32, #tpu.memory_space<vmem>>, vector<1x32x32xf32>
      %196 = vector.shape_cast %195 : vector<1x32x32xf32> to vector<32x32xf32>
      %cst_150 = arith.constant dense<0.000000e+00> : vector<16x32xf32>
      %197 = tpu.matmul %191, %196, %cst_150 {dimension_numbers = #tpu.dot_dimension_numbers<[1], [0], [0], [1], [0, 0, 1, 1], [], []>} : vector<16x32xf32>, vector<32x32xf32>, vector<16x32xf32> -> vector<16x32xf32>
      %198 = arith.addf %188, %197 : vector<16x32xf32>
      %c8_151 = arith.constant 8 : index
      %c0_152 = arith.constant 0 : index
      %c0_153 = arith.constant 0 : index
      %199 = vector.load %arg2[%c8_151, %c0_152, %c0_153] : memref<9x16x16xf32, #tpu.memory_space<vmem>>, vector<1x16x16xf32>
      %200 = vector.shape_cast %199 : vector<1x16x16xf32> to vector<16x16xf32>
      %cst_154 = arith.constant dense<0.000000e+00> : vector<16x32xf32>
      %201 = tpu.matmul %200, %120, %cst_154 {dimension_numbers = #tpu.dot_dimension_numbers<[1], [0], [0], [1], [0, 0, 1, 1], [], []>} : vector<16x16xf32>, vector<16x32xf32>, vector<16x32xf32> -> vector<16x32xf32>
      %c9_i32_155 = arith.constant 9 : i32
      %202 = arith.muli %arg12, %c9_i32_155 : i32
      %c8_i32_156 = arith.constant 8 : i32
      %203 = arith.addi %202, %c8_i32_156 : i32
      %204 = arith.index_cast %203 : i32 to index
      %c0_157 = arith.constant 0 : index
      %c0_158 = arith.constant 0 : index
      %205 = vector.load %arg7[%204, %c0_157, %c0_158] : memref<54x32x32xf32, #tpu.memory_space<vmem>>, vector<1x32x32xf32>
      %206 = vector.shape_cast %205 : vector<1x32x32xf32> to vector<32x32xf32>
      %cst_159 = arith.constant dense<0.000000e+00> : vector<16x32xf32>
      %207 = tpu.matmul %201, %206, %cst_159 {dimension_numbers = #tpu.dot_dimension_numbers<[1], [0], [0], [1], [0, 0, 1, 1], [], []>} : vector<16x32xf32>, vector<32x32xf32>, vector<16x32xf32> -> vector<16x32xf32>
      %208 = arith.addf %198, %207 : vector<16x32xf32>
      %209 = arith.index_cast %arg12 : i32 to index
      %c0_160 = arith.constant 0 : index
      %c0_161 = arith.constant 0 : index
      %210 = vector.load %arg8[%209, %c0_160, %c0_161] : memref<6x1x32xf32, #tpu.memory_space<vmem>>, vector<1x1x32xf32>
      %211 = vector.shape_cast %210 : vector<1x1x32xf32> to vector<1x32xf32>
      %212 = vector.broadcast %211 : vector<1x32xf32> to vector<16x32xf32>
      %213 = arith.addf %208, %212 : vector<16x32xf32>
      %cst_162 = arith.constant dense<0.000000e+00> : vector<32xf32>
      %214 = vector.multi_reduction <add>, %213, %cst_162 [0] : vector<16x32xf32> to vector<32xf32>
      %215 = vector.shape_cast %214 : vector<32xf32> to vector<1x32xf32>
      %cst_163 = arith.constant 1.600000e+01 : f32
      %216 = vector.broadcast %cst_163 : f32 to vector<1x32xf32>
      %217 = arith.divf %215, %216 : vector<1x32xf32>
      %218 = arith.index_cast %arg12 : i32 to index
      %c0_164 = arith.constant 0 : index
      %c0_165 = arith.constant 0 : index
      %219 = vector.load %arg9[%218, %c0_164, %c0_165] : memref<6x2x32xf32, #tpu.memory_space<vmem>>, vector<1x2x32xf32>
      %220 = vector.shape_cast %219 : vector<1x2x32xf32> to vector<2x32xf32>
      %221 = arith.index_cast %arg12 : i32 to index
      %c0_166 = arith.constant 0 : index
      %c0_167 = arith.constant 0 : index
      %222 = vector.load %arg10[%221, %c0_166, %c0_167] : memref<6x2x32xf32, #tpu.memory_space<vmem>>, vector<1x2x32xf32>
      %223 = vector.shape_cast %222 : vector<1x2x32xf32> to vector<2x32xf32>
      %224 = vector.broadcast %217 : vector<1x32xf32> to vector<2x32xf32>
      %225 = arith.mulf %224, %220 : vector<2x32xf32>
      %cst_168 = arith.constant dense<0.000000e+00> : vector<2xf32>
      %226 = vector.multi_reduction <add>, %225, %cst_168 [1] : vector<2x32xf32> to vector<2xf32>
      %227 = vector.shape_cast %226 : vector<2xf32> to vector<2x1xf32>
      %cst_169 = arith.constant 5.000000e-01 : f32
      %228 = vector.broadcast %cst_169 : f32 to vector<2x1xf32>
      %229 = arith.mulf %228, %227 : vector<2x1xf32>
      %cst_170 = arith.constant 0.707106769 : f32
      %230 = vector.broadcast %cst_170 : f32 to vector<2x1xf32>
      %231 = arith.mulf %227, %230 : vector<2x1xf32>
      %232 = math.erf %231 : vector<2x1xf32>
      %cst_171 = arith.constant 1.000000e+00 : f32
      %233 = vector.broadcast %cst_171 : f32 to vector<2x1xf32>
      %234 = arith.addf %233, %232 : vector<2x1xf32>
      %235 = arith.mulf %229, %234 : vector<2x1xf32>
      %236 = vector.broadcast %235 : vector<2x1xf32> to vector<2x32xf32>
      %237 = arith.mulf %236, %223 : vector<2x32xf32>
      %cst_172 = arith.constant dense<0.000000e+00> : vector<32xf32>
      %238 = vector.multi_reduction <add>, %237, %cst_172 [0] : vector<2x32xf32> to vector<32xf32>
      %239 = vector.shape_cast %238 : vector<32xf32> to vector<1x32xf32>
      %240 = arith.negf %239 : vector<1x32xf32>
      %241 = math.exp %240 : vector<1x32xf32>
      %cst_173 = arith.constant 1.000000e+00 : f32
      %242 = vector.broadcast %cst_173 : f32 to vector<1x32xf32>
      %243 = arith.addf %242, %241 : vector<1x32xf32>
      %244 = arith.divf %242, %243 : vector<1x32xf32>
      %245 = vector.broadcast %244 : vector<1x32xf32> to vector<16x32xf32>
      %246 = arith.mulf %213, %245 : vector<16x32xf32>
      %247 = arith.addf %246, %arg13 : vector<16x32xf32>
      scf.yield %247 : vector<16x32xf32>
    }
    %c6_i32_9 = arith.constant 6 : i32
    %c0_10 = arith.constant 0 : index
    %c0_11 = arith.constant 0 : index
    %c0_12 = arith.constant 0 : index
    %17 = vector.load %arg11[%c0_10, %c0_11, %c0_12] : memref<1x16x32xf32, #tpu.memory_space<vmem>>, vector<1x16x32xf32>
    %18 = vector.shape_cast %17 : vector<1x16x32xf32> to vector<16x32xf32>
    %19 = vector.shape_cast %16 : vector<16x32xf32> to vector<1x16x32xf32>
    tpu.vector_store %arg11[%c0_10, %c0_11, %c0_12], %19 {strides = array<i32>} : memref<1x16x32xf32, #tpu.memory_space<vmem>>, vector<1x16x32xf32>,
    return
  }
  func.func @transform_0(%arg0: i32) -> (i32, i32, i32) {
    %c0_i32 = arith.constant 0 : i32
    %c0_i32_0 = arith.constant 0 : i32
    %c0_i32_1 = arith.constant 0 : i32
    return %arg0, %c0_i32, %c0_i32_0 : i32, i32, i32
  }
  func.func @transform_1(%arg0: i32) -> (i32, i32, i32) {
    %c0_i32 = arith.constant 0 : i32
    %c0_i32_0 = arith.constant 0 : i32
    %c0_i32_1 = arith.constant 0 : i32
    %c0_i32_2 = arith.constant 0 : i32
    return %c0_i32, %c0_i32_0, %c0_i32_1 : i32, i32, i32
  }
  func.func @transform_2(%arg0: i32) -> (i32, i32) {
    %c0_i32 = arith.constant 0 : i32
    %c0_i32_0 = arith.constant 0 : i32
    %c0_i32_1 = arith.constant 0 : i32
    return %c0_i32, %c0_i32_0 : i32, i32
  }
  func.func @transform_3(%arg0: i32) -> (i32, i32) {
    %c0_i32 = arith.constant 0 : i32
    %c0_i32_0 = arith.constant 0 : i32
    %c0_i32_1 = arith.constant 0 : i32
    return %c0_i32, %c0_i32_0 : i32, i32
  }
  func.func @transform_4(%arg0: i32) -> (i32, i32, i32) {
    %c0_i32 = arith.constant 0 : i32
    %c0_i32_0 = arith.constant 0 : i32
    %c0_i32_1 = arith.constant 0 : i32
    %c0_i32_2 = arith.constant 0 : i32
    return %c0_i32, %c0_i32_0, %c0_i32_1 : i32, i32, i32
  }
  func.func @transform_5(%arg0: i32) -> (i32, i32, i32) {
    %c0_i32 = arith.constant 0 : i32
    %c0_i32_0 = arith.constant 0 : i32
    %c0_i32_1 = arith.constant 0 : i32
    %c0_i32_2 = arith.constant 0 : i32
    return %c0_i32, %c0_i32_0, %c0_i32_1 : i32, i32, i32
  }
  func.func @transform_6(%arg0: i32) -> (i32, i32, i32) {
    %c0_i32 = arith.constant 0 : i32
    %c0_i32_0 = arith.constant 0 : i32
    %c0_i32_1 = arith.constant 0 : i32
    %c0_i32_2 = arith.constant 0 : i32
    return %c0_i32, %c0_i32_0, %c0_i32_1 : i32, i32, i32
  }
  func.func @transform_7(%arg0: i32) -> (i32, i32, i32) {
    %c0_i32 = arith.constant 0 : i32
    %c0_i32_0 = arith.constant 0 : i32
    %c0_i32_1 = arith.constant 0 : i32
    %c0_i32_2 = arith.constant 0 : i32
    return %c0_i32, %c0_i32_0, %c0_i32_1 : i32, i32, i32
  }
  func.func @transform_8(%arg0: i32) -> (i32, i32, i32) {
    %c0_i32 = arith.constant 0 : i32
    %c0_i32_0 = arith.constant 0 : i32
    %c0_i32_1 = arith.constant 0 : i32
    %c0_i32_2 = arith.constant 0 : i32
    return %c0_i32, %c0_i32_0, %c0_i32_1 : i32, i32, i32
  }
  func.func @transform_9(%arg0: i32) -> (i32, i32, i32) {
    %c0_i32 = arith.constant 0 : i32
    %c0_i32_0 = arith.constant 0 : i32
    %c0_i32_1 = arith.constant 0 : i32
    %c0_i32_2 = arith.constant 0 : i32
    return %c0_i32, %c0_i32_0, %c0_i32_1 : i32, i32, i32
  }
  func.func @transform_10(%arg0: i32) -> (i32, i32, i32) {
    %c0_i32 = arith.constant 0 : i32
    %c0_i32_0 = arith.constant 0 : i32
    %c0_i32_1 = arith.constant 0 : i32
    return %arg0, %c0_i32, %c0_i32_0 : i32, i32, i32
  }
}

module attributes {stable_mosaic.version = 11 : i64} {
  func.func @_up_kernel(%arg0: i32, %arg1: memref<1x16x32xf32, #tpu.memory_space<vmem>>, %arg2: memref<4x16x16xf32, #tpu.memory_space<vmem>>, %arg3: memref<9x32x32xf32, #tpu.memory_space<vmem>>, %arg4: memref<1x32xf32, #tpu.memory_space<vmem>>, %arg5: memref<1x4x16x32xf32, #tpu.memory_space<vmem>>) attributes {dimension_semantics = [#tpu.dimension_semantics<parallel>], iteration_bounds = array<i64: 2>, scalar_prefetch = 0 : i64, scratch_operands = 0 : i64, tpu.core_type = #tpu.core_type<tc>, window_params = [{transform_indices = @transform_0, window_bounds = array<i64: 1, 16, 32>}, {pipeline_mode = #tpu.pipeline_mode<synchronous>, transform_indices = @transform_1, window_bounds = array<i64: 4, 16, 16>}, {pipeline_mode = #tpu.pipeline_mode<synchronous>, transform_indices = @transform_2, window_bounds = array<i64: 9, 32, 32>}, {pipeline_mode = #tpu.pipeline_mode<synchronous>, transform_indices = @transform_3, window_bounds = array<i64: 1, 32>}, {transform_indices = @transform_4, window_bounds = array<i64: 1, 4, 16, 32>}]} {
    %c0 = arith.constant 0 : index
    %c0_0 = arith.constant 0 : index
    %c0_1 = arith.constant 0 : index
    %0 = vector.load %arg1[%c0, %c0_0, %c0_1] : memref<1x16x32xf32, #tpu.memory_space<vmem>>, vector<1x16x32xf32>
    %1 = vector.shape_cast %0 : vector<1x16x32xf32> to vector<16x32xf32>
    %c0_2 = arith.constant 0 : index
    %c0_3 = arith.constant 0 : index
    %2 = vector.load %arg4[%c0_2, %c0_3] : memref<1x32xf32, #tpu.memory_space<vmem>>, vector<1x32xf32>
    %c1 = arith.constant 1 : index
    %c0_4 = arith.constant 0 : index
    %c0_5 = arith.constant 0 : index
    %3 = vector.load %arg2[%c1, %c0_4, %c0_5] : memref<4x16x16xf32, #tpu.memory_space<vmem>>, vector<1x16x16xf32>
    %4 = vector.shape_cast %3 : vector<1x16x16xf32> to vector<16x16xf32>
    %cst = arith.constant dense<0.000000e+00> : vector<16x32xf32>
    %5 = tpu.matmul %4, %1, %cst {dimension_numbers = #tpu.dot_dimension_numbers<[1], [0], [0], [1], [0, 0, 1, 1], [], []>} : vector<16x16xf32>, vector<16x32xf32>, vector<16x32xf32> -> vector<16x32xf32>
    %c2 = arith.constant 2 : index
    %c0_6 = arith.constant 0 : index
    %c0_7 = arith.constant 0 : index
    %6 = vector.load %arg2[%c2, %c0_6, %c0_7] : memref<4x16x16xf32, #tpu.memory_space<vmem>>, vector<1x16x16xf32>
    %7 = vector.shape_cast %6 : vector<1x16x16xf32> to vector<16x16xf32>
    %cst_8 = arith.constant dense<0.000000e+00> : vector<16x32xf32>
    %8 = tpu.matmul %7, %1, %cst_8 {dimension_numbers = #tpu.dot_dimension_numbers<[1], [0], [0], [1], [0, 0, 1, 1], [], []>} : vector<16x16xf32>, vector<16x32xf32>, vector<16x32xf32> -> vector<16x32xf32>
    %c3 = arith.constant 3 : index
    %c0_9 = arith.constant 0 : index
    %c0_10 = arith.constant 0 : index
    %9 = vector.load %arg2[%c3, %c0_9, %c0_10] : memref<4x16x16xf32, #tpu.memory_space<vmem>>, vector<1x16x16xf32>
    %10 = vector.shape_cast %9 : vector<1x16x16xf32> to vector<16x16xf32>
    %cst_11 = arith.constant dense<0.000000e+00> : vector<16x32xf32>
    %11 = tpu.matmul %10, %1, %cst_11 {dimension_numbers = #tpu.dot_dimension_numbers<[1], [0], [0], [1], [0, 0, 1, 1], [], []>} : vector<16x16xf32>, vector<16x32xf32>, vector<16x32xf32> -> vector<16x32xf32>
    %cst_12 = arith.constant 0.000000e+00 : f32
    %12 = vector.broadcast %cst_12 : f32 to vector<16x32xf32>
    %c4 = arith.constant 4 : index
    %c0_13 = arith.constant 0 : index
    %c0_14 = arith.constant 0 : index
    %13 = vector.load %arg3[%c4, %c0_13, %c0_14] : memref<9x32x32xf32, #tpu.memory_space<vmem>>, vector<1x32x32xf32>
    %14 = vector.shape_cast %13 : vector<1x32x32xf32> to vector<32x32xf32>
    %cst_15 = arith.constant dense<0.000000e+00> : vector<16x32xf32>
    %15 = tpu.matmul %1, %14, %cst_15 {dimension_numbers = #tpu.dot_dimension_numbers<[1], [0], [0], [1], [0, 0, 1, 1], [], []>} : vector<16x32xf32>, vector<32x32xf32>, vector<16x32xf32> -> vector<16x32xf32>
    %16 = arith.addf %12, %15 : vector<16x32xf32>
    %17 = vector.broadcast %2 : vector<1x32xf32> to vector<16x32xf32>
    %18 = arith.addf %16, %17 : vector<16x32xf32>
    %cst_16 = arith.constant 5.000000e-01 : f32
    %19 = vector.broadcast %cst_16 : f32 to vector<16x32xf32>
    %20 = arith.mulf %19, %18 : vector<16x32xf32>
    %cst_17 = arith.constant 0.707106769 : f32
    %21 = vector.broadcast %cst_17 : f32 to vector<16x32xf32>
    %22 = arith.mulf %18, %21 : vector<16x32xf32>
    %23 = math.erf %22 : vector<16x32xf32>
    %cst_18 = arith.constant 1.000000e+00 : f32
    %24 = vector.broadcast %cst_18 : f32 to vector<16x32xf32>
    %25 = arith.addf %24, %23 : vector<16x32xf32>
    %26 = arith.mulf %20, %25 : vector<16x32xf32>
    %c0_19 = arith.constant 0 : index
    %c0_20 = arith.constant 0 : index
    %c0_21 = arith.constant 0 : index
    %c0_22 = arith.constant 0 : index
    %27 = vector.load %arg5[%c0_19, %c0_20, %c0_21, %c0_22] : memref<1x4x16x32xf32, #tpu.memory_space<vmem>>, vector<1x1x16x32xf32>
    %28 = vector.shape_cast %27 : vector<1x1x16x32xf32> to vector<16x32xf32>
    %29 = vector.shape_cast %26 : vector<16x32xf32> to vector<1x1x16x32xf32>
    tpu.vector_store %arg5[%c0_19, %c0_20, %c0_21, %c0_22], %29 {strides = array<i32>} : memref<1x4x16x32xf32, #tpu.memory_space<vmem>>, vector<1x1x16x32xf32>,
    %cst_23 = arith.constant 0.000000e+00 : f32
    %30 = vector.broadcast %cst_23 : f32 to vector<16x32xf32>
    %c5 = arith.constant 5 : index
    %c0_24 = arith.constant 0 : index
    %c0_25 = arith.constant 0 : index
    %31 = vector.load %arg3[%c5, %c0_24, %c0_25] : memref<9x32x32xf32, #tpu.memory_space<vmem>>, vector<1x32x32xf32>
    %32 = vector.shape_cast %31 : vector<1x32x32xf32> to vector<32x32xf32>
    %cst_26 = arith.constant dense<0.000000e+00> : vector<16x32xf32>
    %33 = tpu.matmul %1, %32, %cst_26 {dimension_numbers = #tpu.dot_dimension_numbers<[1], [0], [0], [1], [0, 0, 1, 1], [], []>} : vector<16x32xf32>, vector<32x32xf32>, vector<16x32xf32> -> vector<16x32xf32>
    %34 = arith.addf %30, %33 : vector<16x32xf32>
    %c3_27 = arith.constant 3 : index
    %c0_28 = arith.constant 0 : index
    %c0_29 = arith.constant 0 : index
    %35 = vector.load %arg3[%c3_27, %c0_28, %c0_29] : memref<9x32x32xf32, #tpu.memory_space<vmem>>, vector<1x32x32xf32>
    %36 = vector.shape_cast %35 : vector<1x32x32xf32> to vector<32x32xf32>
    %cst_30 = arith.constant dense<0.000000e+00> : vector<16x32xf32>
    %37 = tpu.matmul %5, %36, %cst_30 {dimension_numbers = #tpu.dot_dimension_numbers<[1], [0], [0], [1], [0, 0, 1, 1], [], []>} : vector<16x32xf32>, vector<32x32xf32>, vector<16x32xf32> -> vector<16x32xf32>
    %38 = arith.addf %34, %37 : vector<16x32xf32>
    %39 = vector.broadcast %2 : vector<1x32xf32> to vector<16x32xf32>
    %40 = arith.addf %38, %39 : vector<16x32xf32>
    %cst_31 = arith.constant 5.000000e-01 : f32
    %41 = vector.broadcast %cst_31 : f32 to vector<16x32xf32>
    %42 = arith.mulf %41, %40 : vector<16x32xf32>
    %cst_32 = arith.constant 0.707106769 : f32
    %43 = vector.broadcast %cst_32 : f32 to vector<16x32xf32>
    %44 = arith.mulf %40, %43 : vector<16x32xf32>
    %45 = math.erf %44 : vector<16x32xf32>
    %cst_33 = arith.constant 1.000000e+00 : f32
    %46 = vector.broadcast %cst_33 : f32 to vector<16x32xf32>
    %47 = arith.addf %46, %45 : vector<16x32xf32>
    %48 = arith.mulf %42, %47 : vector<16x32xf32>
    %c0_34 = arith.constant 0 : index
    %c1_35 = arith.constant 1 : index
    %c0_36 = arith.constant 0 : index
    %c0_37 = arith.constant 0 : index
    %49 = vector.load %arg5[%c0_34, %c1_35, %c0_36, %c0_37] : memref<1x4x16x32xf32, #tpu.memory_space<vmem>>, vector<1x1x16x32xf32>
    %50 = vector.shape_cast %49 : vector<1x1x16x32xf32> to vector<16x32xf32>
    %51 = vector.shape_cast %48 : vector<16x32xf32> to vector<1x1x16x32xf32>
    tpu.vector_store %arg5[%c0_34, %c1_35, %c0_36, %c0_37], %51 {strides = array<i32>} : memref<1x4x16x32xf32, #tpu.memory_space<vmem>>, vector<1x1x16x32xf32>,
    %cst_38 = arith.constant 0.000000e+00 : f32
    %52 = vector.broadcast %cst_38 : f32 to vector<16x32xf32>
    %c7 = arith.constant 7 : index
    %c0_39 = arith.constant 0 : index
    %c0_40 = arith.constant 0 : index
    %53 = vector.load %arg3[%c7, %c0_39, %c0_40] : memref<9x32x32xf32, #tpu.memory_space<vmem>>, vector<1x32x32xf32>
    %54 = vector.shape_cast %53 : vector<1x32x32xf32> to vector<32x32xf32>
    %cst_41 = arith.constant dense<0.000000e+00> : vector<16x32xf32>
    %55 = tpu.matmul %1, %54, %cst_41 {dimension_numbers = #tpu.dot_dimension_numbers<[1], [0], [0], [1], [0, 0, 1, 1], [], []>} : vector<16x32xf32>, vector<32x32xf32>, vector<16x32xf32> -> vector<16x32xf32>
    %56 = arith.addf %52, %55 : vector<16x32xf32>
    %c1_42 = arith.constant 1 : index
    %c0_43 = arith.constant 0 : index
    %c0_44 = arith.constant 0 : index
    %57 = vector.load %arg3[%c1_42, %c0_43, %c0_44] : memref<9x32x32xf32, #tpu.memory_space<vmem>>, vector<1x32x32xf32>
    %58 = vector.shape_cast %57 : vector<1x32x32xf32> to vector<32x32xf32>
    %cst_45 = arith.constant dense<0.000000e+00> : vector<16x32xf32>
    %59 = tpu.matmul %8, %58, %cst_45 {dimension_numbers = #tpu.dot_dimension_numbers<[1], [0], [0], [1], [0, 0, 1, 1], [], []>} : vector<16x32xf32>, vector<32x32xf32>, vector<16x32xf32> -> vector<16x32xf32>
    %60 = arith.addf %56, %59 : vector<16x32xf32>
    %61 = vector.broadcast %2 : vector<1x32xf32> to vector<16x32xf32>
    %62 = arith.addf %60, %61 : vector<16x32xf32>
    %cst_46 = arith.constant 5.000000e-01 : f32
    %63 = vector.broadcast %cst_46 : f32 to vector<16x32xf32>
    %64 = arith.mulf %63, %62 : vector<16x32xf32>
    %cst_47 = arith.constant 0.707106769 : f32
    %65 = vector.broadcast %cst_47 : f32 to vector<16x32xf32>
    %66 = arith.mulf %62, %65 : vector<16x32xf32>
    %67 = math.erf %66 : vector<16x32xf32>
    %cst_48 = arith.constant 1.000000e+00 : f32
    %68 = vector.broadcast %cst_48 : f32 to vector<16x32xf32>
    %69 = arith.addf %68, %67 : vector<16x32xf32>
    %70 = arith.mulf %64, %69 : vector<16x32xf32>
    %c0_49 = arith.constant 0 : index
    %c2_50 = arith.constant 2 : index
    %c0_51 = arith.constant 0 : index
    %c0_52 = arith.constant 0 : index
    %71 = vector.load %arg5[%c0_49, %c2_50, %c0_51, %c0_52] : memref<1x4x16x32xf32, #tpu.memory_space<vmem>>, vector<1x1x16x32xf32>
    %72 = vector.shape_cast %71 : vector<1x1x16x32xf32> to vector<16x32xf32>
    %73 = vector.shape_cast %70 : vector<16x32xf32> to vector<1x1x16x32xf32>
    tpu.vector_store %arg5[%c0_49, %c2_50, %c0_51, %c0_52], %73 {strides = array<i32>} : memref<1x4x16x32xf32, #tpu.memory_space<vmem>>, vector<1x1x16x32xf32>,
    %cst_53 = arith.constant 0.000000e+00 : f32
    %74 = vector.broadcast %cst_53 : f32 to vector<16x32xf32>
    %c8 = arith.constant 8 : index
    %c0_54 = arith.constant 0 : index
    %c0_55 = arith.constant 0 : index
    %75 = vector.load %arg3[%c8, %c0_54, %c0_55] : memref<9x32x32xf32, #tpu.memory_space<vmem>>, vector<1x32x32xf32>
    %76 = vector.shape_cast %75 : vector<1x32x32xf32> to vector<32x32xf32>
    %cst_56 = arith.constant dense<0.000000e+00> : vector<16x32xf32>
    %77 = tpu.matmul %1, %76, %cst_56 {dimension_numbers = #tpu.dot_dimension_numbers<[1], [0], [0], [1], [0, 0, 1, 1], [], []>} : vector<16x32xf32>, vector<32x32xf32>, vector<16x32xf32> -> vector<16x32xf32>
    %78 = arith.addf %74, %77 : vector<16x32xf32>
    %c6 = arith.constant 6 : index
    %c0_57 = arith.constant 0 : index
    %c0_58 = arith.constant 0 : index
    %79 = vector.load %arg3[%c6, %c0_57, %c0_58] : memref<9x32x32xf32, #tpu.memory_space<vmem>>, vector<1x32x32xf32>
    %80 = vector.shape_cast %79 : vector<1x32x32xf32> to vector<32x32xf32>
    %cst_59 = arith.constant dense<0.000000e+00> : vector<16x32xf32>
    %81 = tpu.matmul %5, %80, %cst_59 {dimension_numbers = #tpu.dot_dimension_numbers<[1], [0], [0], [1], [0, 0, 1, 1], [], []>} : vector<16x32xf32>, vector<32x32xf32>, vector<16x32xf32> -> vector<16x32xf32>
    %82 = arith.addf %78, %81 : vector<16x32xf32>
    %c2_60 = arith.constant 2 : index
    %c0_61 = arith.constant 0 : index
    %c0_62 = arith.constant 0 : index
    %83 = vector.load %arg3[%c2_60, %c0_61, %c0_62] : memref<9x32x32xf32, #tpu.memory_space<vmem>>, vector<1x32x32xf32>
    %84 = vector.shape_cast %83 : vector<1x32x32xf32> to vector<32x32xf32>
    %cst_63 = arith.constant dense<0.000000e+00> : vector<16x32xf32>
    %85 = tpu.matmul %8, %84, %cst_63 {dimension_numbers = #tpu.dot_dimension_numbers<[1], [0], [0], [1], [0, 0, 1, 1], [], []>} : vector<16x32xf32>, vector<32x32xf32>, vector<16x32xf32> -> vector<16x32xf32>
    %86 = arith.addf %82, %85 : vector<16x32xf32>
    %c0_64 = arith.constant 0 : index
    %c0_65 = arith.constant 0 : index
    %c0_66 = arith.constant 0 : index
    %87 = vector.load %arg3[%c0_64, %c0_65, %c0_66] : memref<9x32x32xf32, #tpu.memory_space<vmem>>, vector<1x32x32xf32>
    %88 = vector.shape_cast %87 : vector<1x32x32xf32> to vector<32x32xf32>
    %cst_67 = arith.constant dense<0.000000e+00> : vector<16x32xf32>
    %89 = tpu.matmul %11, %88, %cst_67 {dimension_numbers = #tpu.dot_dimension_numbers<[1], [0], [0], [1], [0, 0, 1, 1], [], []>} : vector<16x32xf32>, vector<32x32xf32>, vector<16x32xf32> -> vector<16x32xf32>
    %90 = arith.addf %86, %89 : vector<16x32xf32>
    %91 = vector.broadcast %2 : vector<1x32xf32> to vector<16x32xf32>
    %92 = arith.addf %90, %91 : vector<16x32xf32>
    %cst_68 = arith.constant 5.000000e-01 : f32
    %93 = vector.broadcast %cst_68 : f32 to vector<16x32xf32>
    %94 = arith.mulf %93, %92 : vector<16x32xf32>
    %cst_69 = arith.constant 0.707106769 : f32
    %95 = vector.broadcast %cst_69 : f32 to vector<16x32xf32>
    %96 = arith.mulf %92, %95 : vector<16x32xf32>
    %97 = math.erf %96 : vector<16x32xf32>
    %cst_70 = arith.constant 1.000000e+00 : f32
    %98 = vector.broadcast %cst_70 : f32 to vector<16x32xf32>
    %99 = arith.addf %98, %97 : vector<16x32xf32>
    %100 = arith.mulf %94, %99 : vector<16x32xf32>
    %c0_71 = arith.constant 0 : index
    %c3_72 = arith.constant 3 : index
    %c0_73 = arith.constant 0 : index
    %c0_74 = arith.constant 0 : index
    %101 = vector.load %arg5[%c0_71, %c3_72, %c0_73, %c0_74] : memref<1x4x16x32xf32, #tpu.memory_space<vmem>>, vector<1x1x16x32xf32>
    %102 = vector.shape_cast %101 : vector<1x1x16x32xf32> to vector<16x32xf32>
    %103 = vector.shape_cast %100 : vector<16x32xf32> to vector<1x1x16x32xf32>
    tpu.vector_store %arg5[%c0_71, %c3_72, %c0_73, %c0_74], %103 {strides = array<i32>} : memref<1x4x16x32xf32, #tpu.memory_space<vmem>>, vector<1x1x16x32xf32>,
    return
  }
  func.func @transform_0(%arg0: i32) -> (i32, i32, i32) {
    %c0_i32 = arith.constant 0 : i32
    %c0_i32_0 = arith.constant 0 : i32
    %c0_i32_1 = arith.constant 0 : i32
    return %arg0, %c0_i32, %c0_i32_0 : i32, i32, i32
  }
  func.func @transform_1(%arg0: i32) -> (i32, i32, i32) {
    %c0_i32 = arith.constant 0 : i32
    %c0_i32_0 = arith.constant 0 : i32
    %c0_i32_1 = arith.constant 0 : i32
    %c0_i32_2 = arith.constant 0 : i32
    return %c0_i32, %c0_i32_0, %c0_i32_1 : i32, i32, i32
  }
  func.func @transform_2(%arg0: i32) -> (i32, i32, i32) {
    %c0_i32 = arith.constant 0 : i32
    %c0_i32_0 = arith.constant 0 : i32
    %c0_i32_1 = arith.constant 0 : i32
    %c0_i32_2 = arith.constant 0 : i32
    return %c0_i32, %c0_i32_0, %c0_i32_1 : i32, i32, i32
  }
  func.func @transform_3(%arg0: i32) -> (i32, i32) {
    %c0_i32 = arith.constant 0 : i32
    %c0_i32_0 = arith.constant 0 : i32
    %c0_i32_1 = arith.constant 0 : i32
    return %c0_i32, %c0_i32_0 : i32, i32
  }
  func.func @transform_4(%arg0: i32) -> (i32, i32, i32, i32) {
    %c0_i32 = arith.constant 0 : i32
    %c0_i32_0 = arith.constant 0 : i32
    %c0_i32_1 = arith.constant 0 : i32
    %c0_i32_2 = arith.constant 0 : i32
    return %arg0, %c0_i32, %c0_i32_0, %c0_i32_1 : i32, i32, i32, i32
  }
}

module attributes {stable_mosaic.version = 11 : i64} {
  func.func @_up_kernel(%arg0: i32, %arg1: memref<1x64x32xf32, #tpu.memory_space<vmem>>, %arg2: memref<4x64x64xf32, #tpu.memory_space<vmem>>, %arg3: memref<9x32x32xf32, #tpu.memory_space<vmem>>, %arg4: memref<1x32xf32, #tpu.memory_space<vmem>>, %arg5: memref<1x4x64x32xf32, #tpu.memory_space<vmem>>, %arg6: memref<1x4x64x32xf32, #tpu.memory_space<vmem>>) attributes {dimension_semantics = [#tpu.dimension_semantics<parallel>], iteration_bounds = array<i64: 2>, scalar_prefetch = 0 : i64, scratch_operands = 0 : i64, tpu.core_type = #tpu.core_type<tc>, window_params = [{transform_indices = @transform_0, window_bounds = array<i64: 1, 64, 32>}, {pipeline_mode = #tpu.pipeline_mode<synchronous>, transform_indices = @transform_1, window_bounds = array<i64: 4, 64, 64>}, {pipeline_mode = #tpu.pipeline_mode<synchronous>, transform_indices = @transform_2, window_bounds = array<i64: 9, 32, 32>}, {pipeline_mode = #tpu.pipeline_mode<synchronous>, transform_indices = @transform_3, window_bounds = array<i64: 1, 32>}, {transform_indices = @transform_4, window_bounds = array<i64: 1, 4, 64, 32>}, {transform_indices = @transform_5, window_bounds = array<i64: 1, 4, 64, 32>}]} {
    %c0 = arith.constant 0 : index
    %c0_0 = arith.constant 0 : index
    %c0_1 = arith.constant 0 : index
    %0 = vector.load %arg1[%c0, %c0_0, %c0_1] : memref<1x64x32xf32, #tpu.memory_space<vmem>>, vector<1x64x32xf32>
    %1 = vector.shape_cast %0 : vector<1x64x32xf32> to vector<64x32xf32>
    %c0_2 = arith.constant 0 : index
    %c0_3 = arith.constant 0 : index
    %2 = vector.load %arg4[%c0_2, %c0_3] : memref<1x32xf32, #tpu.memory_space<vmem>>, vector<1x32xf32>
    %c1 = arith.constant 1 : index
    %c0_4 = arith.constant 0 : index
    %c0_5 = arith.constant 0 : index
    %3 = vector.load %arg2[%c1, %c0_4, %c0_5] : memref<4x64x64xf32, #tpu.memory_space<vmem>>, vector<1x64x64xf32>
    %4 = vector.shape_cast %3 : vector<1x64x64xf32> to vector<64x64xf32>
    %cst = arith.constant dense<0.000000e+00> : vector<64x32xf32>
    %5 = tpu.matmul %4, %1, %cst {dimension_numbers = #tpu.dot_dimension_numbers<[1], [0], [0], [1], [0, 0, 1, 1], [], []>} : vector<64x64xf32>, vector<64x32xf32>, vector<64x32xf32> -> vector<64x32xf32>
    %c2 = arith.constant 2 : index
    %c0_6 = arith.constant 0 : index
    %c0_7 = arith.constant 0 : index
    %6 = vector.load %arg2[%c2, %c0_6, %c0_7] : memref<4x64x64xf32, #tpu.memory_space<vmem>>, vector<1x64x64xf32>
    %7 = vector.shape_cast %6 : vector<1x64x64xf32> to vector<64x64xf32>
    %cst_8 = arith.constant dense<0.000000e+00> : vector<64x32xf32>
    %8 = tpu.matmul %7, %1, %cst_8 {dimension_numbers = #tpu.dot_dimension_numbers<[1], [0], [0], [1], [0, 0, 1, 1], [], []>} : vector<64x64xf32>, vector<64x32xf32>, vector<64x32xf32> -> vector<64x32xf32>
    %c3 = arith.constant 3 : index
    %c0_9 = arith.constant 0 : index
    %c0_10 = arith.constant 0 : index
    %9 = vector.load %arg2[%c3, %c0_9, %c0_10] : memref<4x64x64xf32, #tpu.memory_space<vmem>>, vector<1x64x64xf32>
    %10 = vector.shape_cast %9 : vector<1x64x64xf32> to vector<64x64xf32>
    %cst_11 = arith.constant dense<0.000000e+00> : vector<64x32xf32>
    %11 = tpu.matmul %10, %1, %cst_11 {dimension_numbers = #tpu.dot_dimension_numbers<[1], [0], [0], [1], [0, 0, 1, 1], [], []>} : vector<64x64xf32>, vector<64x32xf32>, vector<64x32xf32> -> vector<64x32xf32>
    %cst_12 = arith.constant 0.000000e+00 : f32
    %12 = vector.broadcast %cst_12 : f32 to vector<64x32xf32>
    %c4 = arith.constant 4 : index
    %c0_13 = arith.constant 0 : index
    %c0_14 = arith.constant 0 : index
    %13 = vector.load %arg3[%c4, %c0_13, %c0_14] : memref<9x32x32xf32, #tpu.memory_space<vmem>>, vector<1x32x32xf32>
    %14 = vector.shape_cast %13 : vector<1x32x32xf32> to vector<32x32xf32>
    %cst_15 = arith.constant dense<0.000000e+00> : vector<64x32xf32>
    %15 = tpu.matmul %1, %14, %cst_15 {dimension_numbers = #tpu.dot_dimension_numbers<[1], [0], [0], [1], [0, 0, 1, 1], [], []>} : vector<64x32xf32>, vector<32x32xf32>, vector<64x32xf32> -> vector<64x32xf32>
    %16 = arith.addf %12, %15 : vector<64x32xf32>
    %17 = vector.broadcast %2 : vector<1x32xf32> to vector<64x32xf32>
    %18 = arith.addf %16, %17 : vector<64x32xf32>
    %cst_16 = arith.constant 5.000000e-01 : f32
    %19 = vector.broadcast %cst_16 : f32 to vector<64x32xf32>
    %20 = arith.mulf %19, %18 : vector<64x32xf32>
    %cst_17 = arith.constant 0.707106769 : f32
    %21 = vector.broadcast %cst_17 : f32 to vector<64x32xf32>
    %22 = arith.mulf %18, %21 : vector<64x32xf32>
    %23 = math.erf %22 : vector<64x32xf32>
    %cst_18 = arith.constant 1.000000e+00 : f32
    %24 = vector.broadcast %cst_18 : f32 to vector<64x32xf32>
    %25 = arith.addf %24, %23 : vector<64x32xf32>
    %26 = arith.mulf %20, %25 : vector<64x32xf32>
    %c0_19 = arith.constant 0 : index
    %c0_20 = arith.constant 0 : index
    %c0_21 = arith.constant 0 : index
    %c0_22 = arith.constant 0 : index
    %27 = vector.load %arg5[%c0_19, %c0_20, %c0_21, %c0_22] : memref<1x4x64x32xf32, #tpu.memory_space<vmem>>, vector<1x1x64x32xf32>
    %28 = vector.shape_cast %27 : vector<1x1x64x32xf32> to vector<64x32xf32>
    %29 = arith.addf %26, %28 : vector<64x32xf32>
    %c0_23 = arith.constant 0 : index
    %c0_24 = arith.constant 0 : index
    %c0_25 = arith.constant 0 : index
    %c0_26 = arith.constant 0 : index
    %30 = vector.load %arg6[%c0_23, %c0_24, %c0_25, %c0_26] : memref<1x4x64x32xf32, #tpu.memory_space<vmem>>, vector<1x1x64x32xf32>
    %31 = vector.shape_cast %30 : vector<1x1x64x32xf32> to vector<64x32xf32>
    %32 = vector.shape_cast %29 : vector<64x32xf32> to vector<1x1x64x32xf32>
    tpu.vector_store %arg6[%c0_23, %c0_24, %c0_25, %c0_26], %32 {strides = array<i32>} : memref<1x4x64x32xf32, #tpu.memory_space<vmem>>, vector<1x1x64x32xf32>,
    %cst_27 = arith.constant 0.000000e+00 : f32
    %33 = vector.broadcast %cst_27 : f32 to vector<64x32xf32>
    %c5 = arith.constant 5 : index
    %c0_28 = arith.constant 0 : index
    %c0_29 = arith.constant 0 : index
    %34 = vector.load %arg3[%c5, %c0_28, %c0_29] : memref<9x32x32xf32, #tpu.memory_space<vmem>>, vector<1x32x32xf32>
    %35 = vector.shape_cast %34 : vector<1x32x32xf32> to vector<32x32xf32>
    %cst_30 = arith.constant dense<0.000000e+00> : vector<64x32xf32>
    %36 = tpu.matmul %1, %35, %cst_30 {dimension_numbers = #tpu.dot_dimension_numbers<[1], [0], [0], [1], [0, 0, 1, 1], [], []>} : vector<64x32xf32>, vector<32x32xf32>, vector<64x32xf32> -> vector<64x32xf32>
    %37 = arith.addf %33, %36 : vector<64x32xf32>
    %c3_31 = arith.constant 3 : index
    %c0_32 = arith.constant 0 : index
    %c0_33 = arith.constant 0 : index
    %38 = vector.load %arg3[%c3_31, %c0_32, %c0_33] : memref<9x32x32xf32, #tpu.memory_space<vmem>>, vector<1x32x32xf32>
    %39 = vector.shape_cast %38 : vector<1x32x32xf32> to vector<32x32xf32>
    %cst_34 = arith.constant dense<0.000000e+00> : vector<64x32xf32>
    %40 = tpu.matmul %5, %39, %cst_34 {dimension_numbers = #tpu.dot_dimension_numbers<[1], [0], [0], [1], [0, 0, 1, 1], [], []>} : vector<64x32xf32>, vector<32x32xf32>, vector<64x32xf32> -> vector<64x32xf32>
    %41 = arith.addf %37, %40 : vector<64x32xf32>
    %42 = vector.broadcast %2 : vector<1x32xf32> to vector<64x32xf32>
    %43 = arith.addf %41, %42 : vector<64x32xf32>
    %cst_35 = arith.constant 5.000000e-01 : f32
    %44 = vector.broadcast %cst_35 : f32 to vector<64x32xf32>
    %45 = arith.mulf %44, %43 : vector<64x32xf32>
    %cst_36 = arith.constant 0.707106769 : f32
    %46 = vector.broadcast %cst_36 : f32 to vector<64x32xf32>
    %47 = arith.mulf %43, %46 : vector<64x32xf32>
    %48 = math.erf %47 : vector<64x32xf32>
    %cst_37 = arith.constant 1.000000e+00 : f32
    %49 = vector.broadcast %cst_37 : f32 to vector<64x32xf32>
    %50 = arith.addf %49, %48 : vector<64x32xf32>
    %51 = arith.mulf %45, %50 : vector<64x32xf32>
    %c0_38 = arith.constant 0 : index
    %c1_39 = arith.constant 1 : index
    %c0_40 = arith.constant 0 : index
    %c0_41 = arith.constant 0 : index
    %52 = vector.load %arg5[%c0_38, %c1_39, %c0_40, %c0_41] : memref<1x4x64x32xf32, #tpu.memory_space<vmem>>, vector<1x1x64x32xf32>
    %53 = vector.shape_cast %52 : vector<1x1x64x32xf32> to vector<64x32xf32>
    %54 = arith.addf %51, %53 : vector<64x32xf32>
    %c0_42 = arith.constant 0 : index
    %c1_43 = arith.constant 1 : index
    %c0_44 = arith.constant 0 : index
    %c0_45 = arith.constant 0 : index
    %55 = vector.load %arg6[%c0_42, %c1_43, %c0_44, %c0_45] : memref<1x4x64x32xf32, #tpu.memory_space<vmem>>, vector<1x1x64x32xf32>
    %56 = vector.shape_cast %55 : vector<1x1x64x32xf32> to vector<64x32xf32>
    %57 = vector.shape_cast %54 : vector<64x32xf32> to vector<1x1x64x32xf32>
    tpu.vector_store %arg6[%c0_42, %c1_43, %c0_44, %c0_45], %57 {strides = array<i32>} : memref<1x4x64x32xf32, #tpu.memory_space<vmem>>, vector<1x1x64x32xf32>,
    %cst_46 = arith.constant 0.000000e+00 : f32
    %58 = vector.broadcast %cst_46 : f32 to vector<64x32xf32>
    %c7 = arith.constant 7 : index
    %c0_47 = arith.constant 0 : index
    %c0_48 = arith.constant 0 : index
    %59 = vector.load %arg3[%c7, %c0_47, %c0_48] : memref<9x32x32xf32, #tpu.memory_space<vmem>>, vector<1x32x32xf32>
    %60 = vector.shape_cast %59 : vector<1x32x32xf32> to vector<32x32xf32>
    %cst_49 = arith.constant dense<0.000000e+00> : vector<64x32xf32>
    %61 = tpu.matmul %1, %60, %cst_49 {dimension_numbers = #tpu.dot_dimension_numbers<[1], [0], [0], [1], [0, 0, 1, 1], [], []>} : vector<64x32xf32>, vector<32x32xf32>, vector<64x32xf32> -> vector<64x32xf32>
    %62 = arith.addf %58, %61 : vector<64x32xf32>
    %c1_50 = arith.constant 1 : index
    %c0_51 = arith.constant 0 : index
    %c0_52 = arith.constant 0 : index
    %63 = vector.load %arg3[%c1_50, %c0_51, %c0_52] : memref<9x32x32xf32, #tpu.memory_space<vmem>>, vector<1x32x32xf32>
    %64 = vector.shape_cast %63 : vector<1x32x32xf32> to vector<32x32xf32>
    %cst_53 = arith.constant dense<0.000000e+00> : vector<64x32xf32>
    %65 = tpu.matmul %8, %64, %cst_53 {dimension_numbers = #tpu.dot_dimension_numbers<[1], [0], [0], [1], [0, 0, 1, 1], [], []>} : vector<64x32xf32>, vector<32x32xf32>, vector<64x32xf32> -> vector<64x32xf32>
    %66 = arith.addf %62, %65 : vector<64x32xf32>
    %67 = vector.broadcast %2 : vector<1x32xf32> to vector<64x32xf32>
    %68 = arith.addf %66, %67 : vector<64x32xf32>
    %cst_54 = arith.constant 5.000000e-01 : f32
    %69 = vector.broadcast %cst_54 : f32 to vector<64x32xf32>
    %70 = arith.mulf %69, %68 : vector<64x32xf32>
    %cst_55 = arith.constant 0.707106769 : f32
    %71 = vector.broadcast %cst_55 : f32 to vector<64x32xf32>
    %72 = arith.mulf %68, %71 : vector<64x32xf32>
    %73 = math.erf %72 : vector<64x32xf32>
    %cst_56 = arith.constant 1.000000e+00 : f32
    %74 = vector.broadcast %cst_56 : f32 to vector<64x32xf32>
    %75 = arith.addf %74, %73 : vector<64x32xf32>
    %76 = arith.mulf %70, %75 : vector<64x32xf32>
    %c0_57 = arith.constant 0 : index
    %c2_58 = arith.constant 2 : index
    %c0_59 = arith.constant 0 : index
    %c0_60 = arith.constant 0 : index
    %77 = vector.load %arg5[%c0_57, %c2_58, %c0_59, %c0_60] : memref<1x4x64x32xf32, #tpu.memory_space<vmem>>, vector<1x1x64x32xf32>
    %78 = vector.shape_cast %77 : vector<1x1x64x32xf32> to vector<64x32xf32>
    %79 = arith.addf %76, %78 : vector<64x32xf32>
    %c0_61 = arith.constant 0 : index
    %c2_62 = arith.constant 2 : index
    %c0_63 = arith.constant 0 : index
    %c0_64 = arith.constant 0 : index
    %80 = vector.load %arg6[%c0_61, %c2_62, %c0_63, %c0_64] : memref<1x4x64x32xf32, #tpu.memory_space<vmem>>, vector<1x1x64x32xf32>
    %81 = vector.shape_cast %80 : vector<1x1x64x32xf32> to vector<64x32xf32>
    %82 = vector.shape_cast %79 : vector<64x32xf32> to vector<1x1x64x32xf32>
    tpu.vector_store %arg6[%c0_61, %c2_62, %c0_63, %c0_64], %82 {strides = array<i32>} : memref<1x4x64x32xf32, #tpu.memory_space<vmem>>, vector<1x1x64x32xf32>,
    %cst_65 = arith.constant 0.000000e+00 : f32
    %83 = vector.broadcast %cst_65 : f32 to vector<64x32xf32>
    %c8 = arith.constant 8 : index
    %c0_66 = arith.constant 0 : index
    %c0_67 = arith.constant 0 : index
    %84 = vector.load %arg3[%c8, %c0_66, %c0_67] : memref<9x32x32xf32, #tpu.memory_space<vmem>>, vector<1x32x32xf32>
    %85 = vector.shape_cast %84 : vector<1x32x32xf32> to vector<32x32xf32>
    %cst_68 = arith.constant dense<0.000000e+00> : vector<64x32xf32>
    %86 = tpu.matmul %1, %85, %cst_68 {dimension_numbers = #tpu.dot_dimension_numbers<[1], [0], [0], [1], [0, 0, 1, 1], [], []>} : vector<64x32xf32>, vector<32x32xf32>, vector<64x32xf32> -> vector<64x32xf32>
    %87 = arith.addf %83, %86 : vector<64x32xf32>
    %c6 = arith.constant 6 : index
    %c0_69 = arith.constant 0 : index
    %c0_70 = arith.constant 0 : index
    %88 = vector.load %arg3[%c6, %c0_69, %c0_70] : memref<9x32x32xf32, #tpu.memory_space<vmem>>, vector<1x32x32xf32>
    %89 = vector.shape_cast %88 : vector<1x32x32xf32> to vector<32x32xf32>
    %cst_71 = arith.constant dense<0.000000e+00> : vector<64x32xf32>
    %90 = tpu.matmul %5, %89, %cst_71 {dimension_numbers = #tpu.dot_dimension_numbers<[1], [0], [0], [1], [0, 0, 1, 1], [], []>} : vector<64x32xf32>, vector<32x32xf32>, vector<64x32xf32> -> vector<64x32xf32>
    %91 = arith.addf %87, %90 : vector<64x32xf32>
    %c2_72 = arith.constant 2 : index
    %c0_73 = arith.constant 0 : index
    %c0_74 = arith.constant 0 : index
    %92 = vector.load %arg3[%c2_72, %c0_73, %c0_74] : memref<9x32x32xf32, #tpu.memory_space<vmem>>, vector<1x32x32xf32>
    %93 = vector.shape_cast %92 : vector<1x32x32xf32> to vector<32x32xf32>
    %cst_75 = arith.constant dense<0.000000e+00> : vector<64x32xf32>
    %94 = tpu.matmul %8, %93, %cst_75 {dimension_numbers = #tpu.dot_dimension_numbers<[1], [0], [0], [1], [0, 0, 1, 1], [], []>} : vector<64x32xf32>, vector<32x32xf32>, vector<64x32xf32> -> vector<64x32xf32>
    %95 = arith.addf %91, %94 : vector<64x32xf32>
    %c0_76 = arith.constant 0 : index
    %c0_77 = arith.constant 0 : index
    %c0_78 = arith.constant 0 : index
    %96 = vector.load %arg3[%c0_76, %c0_77, %c0_78] : memref<9x32x32xf32, #tpu.memory_space<vmem>>, vector<1x32x32xf32>
    %97 = vector.shape_cast %96 : vector<1x32x32xf32> to vector<32x32xf32>
    %cst_79 = arith.constant dense<0.000000e+00> : vector<64x32xf32>
    %98 = tpu.matmul %11, %97, %cst_79 {dimension_numbers = #tpu.dot_dimension_numbers<[1], [0], [0], [1], [0, 0, 1, 1], [], []>} : vector<64x32xf32>, vector<32x32xf32>, vector<64x32xf32> -> vector<64x32xf32>
    %99 = arith.addf %95, %98 : vector<64x32xf32>
    %100 = vector.broadcast %2 : vector<1x32xf32> to vector<64x32xf32>
    %101 = arith.addf %99, %100 : vector<64x32xf32>
    %cst_80 = arith.constant 5.000000e-01 : f32
    %102 = vector.broadcast %cst_80 : f32 to vector<64x32xf32>
    %103 = arith.mulf %102, %101 : vector<64x32xf32>
    %cst_81 = arith.constant 0.707106769 : f32
    %104 = vector.broadcast %cst_81 : f32 to vector<64x32xf32>
    %105 = arith.mulf %101, %104 : vector<64x32xf32>
    %106 = math.erf %105 : vector<64x32xf32>
    %cst_82 = arith.constant 1.000000e+00 : f32
    %107 = vector.broadcast %cst_82 : f32 to vector<64x32xf32>
    %108 = arith.addf %107, %106 : vector<64x32xf32>
    %109 = arith.mulf %103, %108 : vector<64x32xf32>
    %c0_83 = arith.constant 0 : index
    %c3_84 = arith.constant 3 : index
    %c0_85 = arith.constant 0 : index
    %c0_86 = arith.constant 0 : index
    %110 = vector.load %arg5[%c0_83, %c3_84, %c0_85, %c0_86] : memref<1x4x64x32xf32, #tpu.memory_space<vmem>>, vector<1x1x64x32xf32>
    %111 = vector.shape_cast %110 : vector<1x1x64x32xf32> to vector<64x32xf32>
    %112 = arith.addf %109, %111 : vector<64x32xf32>
    %c0_87 = arith.constant 0 : index
    %c3_88 = arith.constant 3 : index
    %c0_89 = arith.constant 0 : index
    %c0_90 = arith.constant 0 : index
    %113 = vector.load %arg6[%c0_87, %c3_88, %c0_89, %c0_90] : memref<1x4x64x32xf32, #tpu.memory_space<vmem>>, vector<1x1x64x32xf32>
    %114 = vector.shape_cast %113 : vector<1x1x64x32xf32> to vector<64x32xf32>
    %115 = vector.shape_cast %112 : vector<64x32xf32> to vector<1x1x64x32xf32>
    tpu.vector_store %arg6[%c0_87, %c3_88, %c0_89, %c0_90], %115 {strides = array<i32>} : memref<1x4x64x32xf32, #tpu.memory_space<vmem>>, vector<1x1x64x32xf32>,
    return
  }
  func.func @transform_0(%arg0: i32) -> (i32, i32, i32) {
    %c0_i32 = arith.constant 0 : i32
    %c0_i32_0 = arith.constant 0 : i32
    %c0_i32_1 = arith.constant 0 : i32
    return %arg0, %c0_i32, %c0_i32_0 : i32, i32, i32
  }
  func.func @transform_1(%arg0: i32) -> (i32, i32, i32) {
    %c0_i32 = arith.constant 0 : i32
    %c0_i32_0 = arith.constant 0 : i32
    %c0_i32_1 = arith.constant 0 : i32
    %c0_i32_2 = arith.constant 0 : i32
    return %c0_i32, %c0_i32_0, %c0_i32_1 : i32, i32, i32
  }
  func.func @transform_2(%arg0: i32) -> (i32, i32, i32) {
    %c0_i32 = arith.constant 0 : i32
    %c0_i32_0 = arith.constant 0 : i32
    %c0_i32_1 = arith.constant 0 : i32
    %c0_i32_2 = arith.constant 0 : i32
    return %c0_i32, %c0_i32_0, %c0_i32_1 : i32, i32, i32
  }
  func.func @transform_3(%arg0: i32) -> (i32, i32) {
    %c0_i32 = arith.constant 0 : i32
    %c0_i32_0 = arith.constant 0 : i32
    %c0_i32_1 = arith.constant 0 : i32
    return %c0_i32, %c0_i32_0 : i32, i32
  }
  func.func @transform_4(%arg0: i32) -> (i32, i32, i32, i32) {
    %c0_i32 = arith.constant 0 : i32
    %c0_i32_0 = arith.constant 0 : i32
    %c0_i32_1 = arith.constant 0 : i32
    %c0_i32_2 = arith.constant 0 : i32
    return %arg0, %c0_i32, %c0_i32_0, %c0_i32_1 : i32, i32, i32, i32
  }
  func.func @transform_5(%arg0: i32) -> (i32, i32, i32, i32) {
    %c0_i32 = arith.constant 0 : i32
    %c0_i32_0 = arith.constant 0 : i32
    %c0_i32_1 = arith.constant 0 : i32
    %c0_i32_2 = arith.constant 0 : i32
    return %arg0, %c0_i32, %c0_i32_0, %c0_i32_1 : i32, i32, i32, i32
  }
}

</mosaic_0001>

<llo_original>
// kernel: _lambda_.4
$region0: #{_lambda_.4}
  #allocation0 [shape = 'u32[]', space=smem, size = 0x4, offset = 0x4, fixed_abs, tag = 'smem constant byte address 0x4 - core index']
  #allocation1 [shape = 'u32[144,128]{1,0:T(1,128)}', space=vmem, size = 0x12000, scoped, tag = 'internal scratch']
  %s0 = inlined_call_operand.vmem [shape: f32[2,16,32], index: 0, kind: input, shape index: {}]
  %s1 = inlined_call_operand.vmem [shape: f32[4,16,16], index: 1, kind: input, shape index: {}]
  %s2 = inlined_call_operand.vmem [shape: f32[9,32,32], index: 2, kind: input, shape index: {}]
  %s3 = inlined_call_operand.vmem [shape: f32[1,32], index: 3, kind: input, shape index: {}]
  %s4 = inlined_call_operand.vmem [shape: f32[2,4,16,32], index: 4, kind: output, shape index: {}]
  %s5 = sld [smem:[#allocation0]]
  $region49: #{_lambda_.4} parent=0
    _
  %s7 = ssub.s32 1, %s5
  %s8 = scalar_select 0, %s7, %s5
  loop: start=0, step=1, limit=4
  $region2: #{_lambda_.4} parent=0 // loop_pre_header
    _
  $region3: #{_lambda_.4} parent=0 // loop_header
    %s10 = sphi 0, %s14
    %p11 = scmp.ge.s32.totalorder %s10, 4
    %s20 = sphi 0, %s22
    %s23 = sphi 0, %s20
    %s24 = sphi 0, %s23
    %s40 = sphi 0, %s24
    %s44 = sphi 0, %s44
    %s46 = sphi 0, %s44
    %s47 = sphi 0, %s46
    %s61 = sphi 0, %s47
    %s65 = sphi 0, %s65
    %s67 = sphi 0, %s65
    %s68 = sphi 0, %s67
    %s82 = sphi 0, %s68
    %s86 = sphi 0, %s86
    %s88 = sphi 0, %s86
    %s89 = sphi 0, %s88
    %s103 = sphi 0, %s89
    %s109 = sphi 0, %s111
    %s112 = sphi 0, %s109
    %s113 = sphi 0, %s112
    %s129 = sphi 0, %s113
  $region4: #{_lambda_.4} parent=0 // loop_header_branch
    %13 = sbr.rel (%p11) target = $region8
  $region5: #{_lambda_.4} parent=0 // loop_body
    %s15 = ssub.s32 %s10, 1
    %s16 = ssub.s32 %s10, 2
    %s17 = sadd.s32 %s10, 1
    %s18 = ssub.s32 %s10, %s17
    %p19 = scmp.eq.s32.totalorder %s18, 0
    %s21 = sadd.s32 %s20, 1
    %s22 = scalar_select %p19, %s20, %s21
    %p25 = pneg %p19
    %p26 = scmp.eq.s32.totalorder %s10, 1
    %p27 = por %p25, %p26
    %p28 = scmp.ne.s32.totalorder %s20, %s23
    %p29 = scmp.eq.s32.totalorder %s10, 0
    %p30 = por %p28, %p29
    %p31 = scmp.ne.s32.totalorder %s20, %s23
    %p32 = scmp.eq.s32.totalorder %s15, 1
    %p33 = por %p31, %p32
    %p34 = scmp.ne.s32.totalorder %s23, %s24
    %p35 = scmp.eq.s32.totalorder %s15, 0
    %p36 = por %p34, %p35
    %p37 = scmp.ne.s32.totalorder %s23, %s24
    %p38 = scmp.eq.s32.totalorder %s16, 1
    %p39 = por %p37, %p38
    %p41 = scmp.ne.s32.totalorder %s24, %s40
    %p42 = scmp.eq.s32.totalorder %s16, 0
    %p43 = por %p41, %p42
    %s45 = sadd.s32 %s44, 1
    %p48 = scmp.eq.s32.totalorder %s10, 1
    %p49 = scmp.ne.s32.totalorder %s44, %s46
    %p50 = scmp.eq.s32.totalorder %s10, 0
    %p51 = por %p49, %p50
    %p52 = scmp.ne.s32.totalorder %s44, %s46
    %p53 = scmp.eq.s32.totalorder %s15, 1
    %p54 = por %p52, %p53
    %p55 = scmp.ne.s32.totalorder %s46, %s47
    %p56 = scmp.eq.s32.totalorder %s15, 0
    %p57 = por %p55, %p56
    %p58 = scmp.ne.s32.totalorder %s46, %s47
    %p59 = scmp.eq.s32.totalorder %s16, 1
    %p60 = por %p58, %p59
    %p62 = scmp.ne.s32.totalorder %s47, %s61
    %p63 = scmp.eq.s32.totalorder %s16, 0
    %p64 = por %p62, %p63
    %s66 = sadd.s32 %s65, 1
    %p69 = scmp.eq.s32.totalorder %s10, 1
    %p70 = scmp.ne.s32.totalorder %s65, %s67
    %p71 = scmp.eq.s32.totalorder %s10, 0
    %p72 = por %p70, %p71
    %p73 = scmp.ne.s32.totalorder %s65, %s67
    %p74 = scmp.eq.s32.totalorder %s15, 1
    %p75 = por %p73, %p74
    %p76 = scmp.ne.s32.totalorder %s67, %s68
    %p77 = scmp.eq.s32.totalorder %s15, 0
    %p78 = por %p76, %p77
    %p79 = scmp.ne.s32.totalorder %s67, %s68
    %p80 = scmp.eq.s32.totalorder %s16, 1
    %p81 = por %p79, %p80
    %p83 = scmp.ne.s32.totalorder %s68, %s82
    %p84 = scmp.eq.s32.totalorder %s16, 0
    %p85 = por %p83, %p84
    %s87 = sadd.s32 %s86, 1
    %p90 = scmp.eq.s32.totalorder %s10, 1
    %p91 = scmp.ne.s32.totalorder %s86, %s88
    %p92 = scmp.eq.s32.totalorder %s10, 0
    %p93 = por %p91, %p92
    %p94 = scmp.ne.s32.totalorder %s86, %s88
    %p95 = scmp.eq.s32.totalorder %s15, 1
    %p96 = por %p94, %p95
    %p97 = scmp.ne.s32.totalorder %s88, %s89
    %p98 = scmp.eq.s32.totalorder %s15, 0
    %p99 = por %p97, %p98
    %p100 = scmp.ne.s32.totalorder %s88, %s89
    %p101 = scmp.eq.s32.totalorder %s16, 1
    %p102 = por %p100, %p101
    %p104 = scmp.ne.s32.totalorder %s89, %s103
    %p105 = scmp.eq.s32.totalorder %s16, 0
    %p106 = por %p104, %p105
    %s107 = ssub.s32 %s10, %s17
    %p108 = scmp.eq.s32.totalorder %s107, 0
    %s110 = sadd.s32 %s109, 1
    %s111 = scalar_select %p108, %s109, %s110
    %p114 = pneg %p108
    %p115 = scmp.eq.s32.totalorder %s10, 1
    %p116 = por %p114, %p115
    %p117 = scmp.ne.s32.totalorder %s109, %s112
    %p118 = scmp.eq.s32.totalorder %s10, 0
    %p119 = por %p117, %p118
    %p120 = scmp.ne.s32.totalorder %s109, %s112
    %p121 = scmp.eq.s32.totalorder %s15, 1
    %p122 = por %p120, %p121
    %p123 = scmp.ne.s32.totalorder %s112, %s113
    %p124 = scmp.eq.s32.totalorder %s15, 0
    %p125 = por %p123, %p124
    %p126 = scmp.ne.s32.totalorder %s112, %s113
    %p127 = scmp.eq.s32.totalorder %s16, 1
    %p128 = por %p126, %p127
    %p130 = scmp.ne.s32.totalorder %s113, %s129
    %p131 = scmp.eq.s32.totalorder %s16, 0
    %p132 = por %p130, %p131
    %p133 = scmp.le.s32.totalorder 1, %s10
    %p134 = scmp.lt.s32.totalorder %s10, 3
    %p135 = pnand %p133, %p134
    %p136 = pneg %p135
    // Predicated region
    $region9: #{_lambda_.4} parent=5 // pred_check
      _
    $region10: #{_lambda_.4} parent=5 // pred_check_branch
      %138 = sbr.rel (%p135) target = $region12
    $region11: #{_lambda_.4} parent=5 // pred_region
      %s139 = ssub.s32 %s10, 1
      // Predicated region
      $region13: #{_lambda_.4} parent=11 // pred_check
        %p140 = pneg %p57
      $region14: #{_lambda_.4} parent=11 // pred_check_branch
        %142 = sbr.rel (%p140) target = $region16
      $region15: #{_lambda_.4} parent=11 // pred_region
        _
      $region16: #{_lambda_.4} parent=11 // pred_fallthru
        _
      // Predicated region
      $region17: #{_lambda_.4} parent=11 // pred_check
        %p143 = pneg %p78
      $region18: #{_lambda_.4} parent=11 // pred_check_branch
        %145 = sbr.rel (%p143) target = $region20
      $region19: #{_lambda_.4} parent=11 // pred_region
        _
      $region20: #{_lambda_.4} parent=11 // pred_fallthru
        _
      // Predicated region
      $region21: #{_lambda_.4} parent=11 // pred_check
        %p146 = pneg %p99
      $region22: #{_lambda_.4} parent=11 // pred_check_branch
        %148 = sbr.rel (%p146) target = $region24
      $region23: #{_lambda_.4} parent=11 // pred_region
        _
      $region24: #{_lambda_.4} parent=11 // pred_fallthru
        _
    $region12: #{_lambda_.4} parent=5 // pred_fallthru
      _
    %p149 = scmp.lt.s32.totalorder %s10, 2
    // Predicated region
    $region25: #{_lambda_.4} parent=5 // pred_check
      %p150 = pneg %p149
    $region26: #{_lambda_.4} parent=5 // pred_check_branch
      %152 = sbr.rel (%p150) target = $region28
    $region27: #{_lambda_.4} parent=5 // pred_region
      // Predicated region
      $region29: #{_lambda_.4} parent=27 // pred_check
        %p153 = pneg %p30
      $region30: #{_lambda_.4} parent=27 // pred_check_branch
        %155 = sbr.rel (%p153) target = $region32
      $region31: #{_lambda_.4} parent=27 // pred_region
        %p156 = scmp.lt.s32.totalorder %s10, 1
        %s157 = scalar_select %p156, %s10, 1
        %s158 = smul.addr %s157, 2
        %s159 = smul.addr %s158, 8
        %s160 = scalar_lea.vmem %s0, %s159
      $region32: #{_lambda_.4} parent=27 // pred_fallthru
        _
    $region28: #{_lambda_.4} parent=5 // pred_fallthru
      _
    %p161 = scmp.le.s32.totalorder 1, %s10
    %p162 = scmp.lt.s32.totalorder %s10, 3
    %p163 = pnand %p161, %p162
    %p164 = pneg %p163
    // Predicated region
    $region33: #{_lambda_.4} parent=5 // pred_check
      _
    $region34: #{_lambda_.4} parent=5 // pred_check_branch
      %166 = sbr.rel (%p163) target = $region36
    $region35: #{_lambda_.4} parent=5 // pred_region
      %s167 = ssub.s32 %s10, 1
      %p168 = scmp.lt.s32.totalorder %s15, 1
      %s169 = scalar_select %p168, %s15, 1
      %s170 = smul.addr %s169, 2
      %s171 = smul.addr %s170, 8
      %s172 = scalar_lea.vmem %s0, %s171
      %p173 = pneg %p36
      %p174 = pneg %p33
      %p175 = pneg %p57
      %p176 = pneg %p54
      %p177 = pneg %p78
      %p178 = pneg %p75
      %p179 = pneg %p99
      %p180 = pneg %p96
      %p181 = pneg %p125
      %p182 = pneg %p122
      %p183 = scmp.lt.s32.totalorder %s15, 1
      %s184 = scalar_select %p183, %s15, 1
      %s185 = smul.addr %s184, 8
      %s186 = smul.addr %s185, 8
      %s187 = scalar_lea.vmem %s4, %s186
      %p188 = scmp.lt.s32.totalorder %s15, 1
      %s189 = scalar_select %p188, %s15, 1
      %s190 = smul.addr %s189, 2
      %s191 = smul.addr %s190, 8
      %s192 = scalar_lea.vmem %s0, %s191
      %p193 = scmp.lt.s32.totalorder %s15, 1
      %s194 = scalar_select %p193, %s15, 1
      %s195 = smul.addr %s194, 8
      %s196 = smul.addr %s195, 8
      %s197 = scalar_lea.vmem %s4, %s196
      %v198 = vld [vmem:[%s192] sm:$0xff]
      %v199 = vld [vmem:[%s192 + $0x8] sm:$0xff]
      %v200 = vld [vmem:[%s3] sm:$0x1]
      %s201 = scalar_lea.vmem %s1, 16
      %v202 = vld [vmem:[%s201] sm:$0xff]
      %v203 = vld [vmem:[%s201 + $0x8] sm:$0xff]
      %vm204 = vcmask 130048
      %v206 = vsel %vm204, %v202, 0
      %v209 = vsel %vm204, %v203, 0
      %211 = vmatprep.subr.mxu0 0.0
      %212 = vmatpush1.msra.mxu0 0.0
      %213 = vmatprep.subr.mxu0 0.0
      %214 = vmatpush1.msra.mxu0 0.0
      %215 = vmatprep.subr.mxu0 0.0
      %216 = vmatpush1.msra.mxu0 0.0
      %217 = vmatprep.subr.mxu0 0.0
      %218 = vmatpush1.msra.mxu0 0.0
      %219 = vmatprep.subr.mxu0 0.0
      %220 = vmatpush1.msra.mxu0 0.0
      %221 = vmatprep.subr.mxu0 0.0
      %222 = vmatpush1.msra.mxu0 0.0
      %223 = vmatprep.subr.mxu0 0.0
      %224 = vmatpush1.msra.mxu0 0.0
      %225 = vmatprep.subr.mxu0 0.0
      %226 = vmatpush1.msra.mxu0 0.0
      %227 = vmatprep.subr.mxu0 0.0
      %228 = vmatpush1.msra.mxu0 0.0
      %229 = vmatprep.subr.mxu0 0.0
      %230 = vmatpush1.msra.mxu0 0.0
      %231 = vmatprep.subr.mxu0 0.0
      %232 = vmatpush1.msra.mxu0 0.0
      %233 = vmatprep.subr.mxu0 0.0
      %234 = vmatpush1.msra.mxu0 0.0
      %235 = vmatprep.subr.mxu0 0.0
      %236 = vmatpush1.msra.mxu0 0.0
      %237 = vmatprep.subr.mxu0 0.0
      %238 = vmatpush1.msra.mxu0 0.0
      %239 = vmatprep.subr.mxu0 0.0
      %240 = vmatpush1.msra.mxu0 %v199
      %241 = vmatprep.subr.mxu0 0.0
      %242 = vmatpush1.msra.mxu0 %v198
      %243 = vmatprep.subr.mxu0 0.0
      %244 = vmatpush2.msra.mxu0 0.0
      %245 = vmatprep.subr.mxu0 0.0
      %246 = vmatpush2.msra.mxu0 0.0
      %247 = vmatprep.subr.mxu0 0.0
      %248 = vmatpush2.msra.mxu0 0.0
      %249 = vmatprep.subr.mxu0 0.0
      %250 = vmatpush2.msra.mxu0 0.0
      %251 = vmatprep.subr.mxu0 0.0
      %252 = vmatpush2.msra.mxu0 0.0
      %253 = vmatprep.subr.mxu0 0.0
      %254 = vmatpush2.msra.mxu0 0.0
      %255 = vmatprep.subr.mxu0 0.0
      %256 = vmatpush2.msra.mxu0 0.0
      %257 = vmatprep.subr.mxu0 0.0
      %258 = vmatpush2.msra.mxu0 0.0
      %259 = vmatprep.subr.mxu0 0.0
      %260 = vmatpush2.msra.mxu0 0.0
      %261 = vmatprep.subr.mxu0 0.0
      %262 = vmatpush2.msra.mxu0 0.0
      %263 = vmatprep.subr.mxu0 0.0
      %264 = vmatpush2.msra.mxu0 0.0
      %265 = vmatprep.subr.mxu0 0.0
      %266 = vmatpush2.msra.mxu0 0.0
      %267 = vmatprep.subr.mxu0 0.0
      %268 = vmatpush2.msra.mxu0 0.0
      %269 = vmatprep.subr.mxu0 0.0
      %270 = vmatpush2.msra.mxu0 0.0
      %271 = vmatprep.subr.mxu0 0.0
      %272 = vmatpush2.msra.mxu0 0.0
      %273 = vmatprep.subr.mxu0 0.0
      %274 = vmatpush2.msra.mxu0 0.0
      %275 = vmatprep.mubr.f32.mxu0 0.0
      %276 = vmatmul.mubr.f32.gmra.mxu0 %v206
      %v277 = vpop.f32.mrf.mxu0
      %v278 = vadd.f32 0.0, %v277
      %v279 = vpop.f32.mrf.mxu0
      %280 = vmatprep.mubr.f32.mxu0 0.0
      %281 = vmatmul.mubr.f32.gmra.mxu0 %v209
      %v282 = vpop.f32.mrf.mxu0
      %v283 = vadd.f32 0.0, %v282
      %v284 = vpop.f32.mrf.mxu0
      %285 = vdwg.mxu0
      %s286 = scalar_lea.vmem %s1, 32
      %v287 = vld [vmem:[%s286] sm:$0xff]
      %v288 = vld [vmem:[%s286 + $0x8] sm:$0xff]
      %v290 = vsel %vm204, %v287, 0
      %v293 = vsel %vm204, %v288, 0
      %295 = vmatprep.subr.mxu0 0.0
      %296 = vmatpush1.msra.mxu0 0.0
      %297 = vmatprep.subr.mxu0 0.0
      %298 = vmatpush1.msra.mxu0 0.0
      %299 = vmatprep.subr.mxu0 0.0
      %300 = vmatpush1.msra.mxu0 0.0
      %301 = vmatprep.subr.mxu0 0.0
      %302 = vmatpush1.msra.mxu0 0.0
      %303 = vmatprep.subr.mxu0 0.0
      %304 = vmatpush1.msra.mxu0 0.0
      %305 = vmatprep.subr.mxu0 0.0
      %306 = vmatpush1.msra.mxu0 0.0
      %307 = vmatprep.subr.mxu0 0.0
      %308 = vmatpush1.msra.mxu0 0.0
      %309 = vmatprep.subr.mxu0 0.0
      %310 = vmatpush1.msra.mxu0 0.0
      %311 = vmatprep.subr.mxu0 0.0
      %312 = vmatpush1.msra.mxu0 0.0
      %313 = vmatprep.subr.mxu0 0.0
      %314 = vmatpush1.msra.mxu0 0.0
      %315 = vmatprep.subr.mxu0 0.0
      %316 = vmatpush1.msra.mxu0 0.0
      %317 = vmatprep.subr.mxu0 0.0
      %318 = vmatpush1.msra.mxu0 0.0
      %319 = vmatprep.subr.mxu0 0.0
      %320 = vmatpush1.msra.mxu0 0.0
      %321 = vmatprep.subr.mxu0 0.0
      %322 = vmatpush1.msra.mxu0 0.0
      %323 = vmatprep.subr.mxu0 0.0
      %324 = vmatpush1.msra.mxu0 %v199
      %325 = vmatprep.subr.mxu0 0.0
      %326 = vmatpush1.msra.mxu0 %v198
      %327 = vmatprep.subr.mxu0 0.0
      %328 = vmatpush2.msra.mxu0 0.0
      %329 = vmatprep.subr.mxu0 0.0
      %330 = vmatpush2.msra.mxu0 0.0
      %331 = vmatprep.subr.mxu0 0.0
      %332 = vmatpush2.msra.mxu0 0.0
      %333 = vmatprep.subr.mxu0 0.0
      %334 = vmatpush2.msra.mxu0 0.0
      %335 = vmatprep.subr.mxu0 0.0
      %336 = vmatpush2.msra.mxu0 0.0
      %337 = vmatprep.subr.mxu0 0.0
      %338 = vmatpush2.msra.mxu0 0.0
      %339 = vmatprep.subr.mxu0 0.0
      %340 = vmatpush2.msra.mxu0 0.0
      %341 = vmatprep.subr.mxu0 0.0
      %342 = vmatpush2.msra.mxu0 0.0
      %343 = vmatprep.subr.mxu0 0.0
      %344 = vmatpush2.msra.mxu0 0.0
      %345 = vmatprep.subr.mxu0 0.0
      %346 = vmatpush2.msra.mxu0 0.0
      %347 = vmatprep.subr.mxu0 0.0
      %348 = vmatpush2.msra.mxu0 0.0
      %349 = vmatprep.subr.mxu0 0.0
      %350 = vmatpush2.msra.mxu0 0.0
      %351 = vmatprep.subr.mxu0 0.0
      %352 = vmatpush2.msra.mxu0 0.0
      %353 = vmatprep.subr.mxu0 0.0
      %354 = vmatpush2.msra.mxu0 0.0
      %355 = vmatprep.subr.mxu0 0.0
      %356 = vmatpush2.msra.mxu0 0.0
      %357 = vmatprep.subr.mxu0 0.0
      %358 = vmatpush2.msra.mxu0 0.0
      %359 = vmatprep.mubr.f32.mxu0 0.0
      %360 = vmatmul.mubr.f32.gmra.mxu0 %v290
      %v361 = vpop.f32.mrf.mxu0
      %v362 = vadd.f32 0.0, %v361
      %v363 = vpop.f32.mrf.mxu0
      %364 = vmatprep.mubr.f32.mxu0 0.0
      %365 = vmatmul.mubr.f32.gmra.mxu0 %v293
      %v366 = vpop.f32.mrf.mxu0
      %v367 = vadd.f32 0.0, %v366
      %v368 = vpop.f32.mrf.mxu0
      %369 = vdwg.mxu0
      %s370 = scalar_lea.vmem %s1, 48
      %v371 = vld [vmem:[%s370] sm:$0xff]
      %v372 = vld [vmem:[%s370 + $0x8] sm:$0xff]
      %v374 = vsel %vm204, %v371, 0
      %v377 = vsel %vm204, %v372, 0
      %379 = vmatprep.subr.mxu0 0.0
      %380 = vmatpush1.msra.mxu0 0.0
      %381 = vmatprep.subr.mxu0 0.0
      %382 = vmatpush1.msra.mxu0 0.0
      %383 = vmatprep.subr.mxu0 0.0
      %384 = vmatpush1.msra.mxu0 0.0
      %385 = vmatprep.subr.mxu0 0.0
      %386 = vmatpush1.msra.mxu0 0.0
      %387 = vmatprep.subr.mxu0 0.0
      %388 = vmatpush1.msra.mxu0 0.0
      %389 = vmatprep.subr.mxu0 0.0
      %390 = vmatpush1.msra.mxu0 0.0
      %391 = vmatprep.subr.mxu0 0.0
      %392 = vmatpush1.msra.mxu0 0.0
      %393 = vmatprep.subr.mxu0 0.0
      %394 = vmatpush1.msra.mxu0 0.0
      %395 = vmatprep.subr.mxu0 0.0
      %396 = vmatpush1.msra.mxu0 0.0
      %397 = vmatprep.subr.mxu0 0.0
      %398 = vmatpush1.msra.mxu0 0.0
      %399 = vmatprep.subr.mxu0 0.0
      %400 = vmatpush1.msra.mxu0 0.0
      %401 = vmatprep.subr.mxu0 0.0
      %402 = vmatpush1.msra.mxu0 0.0
      %403 = vmatprep.subr.mxu0 0.0
      %404 = vmatpush1.msra.mxu0 0.0
      %405 = vmatprep.subr.mxu0 0.0
      %406 = vmatpush1.msra.mxu0 0.0
      %407 = vmatprep.subr.mxu0 0.0
      %408 = vmatpush1.msra.mxu0 %v199
      %409 = vmatprep.subr.mxu0 0.0
      %410 = vmatpush1.msra.mxu0 %v198
      %411 = vmatprep.subr.mxu0 0.0
      %412 = vmatpush2.msra.mxu0 0.0
      %413 = vmatprep.subr.mxu0 0.0
      %414 = vmatpush2.msra.mxu0 0.0
      %415 = vmatprep.subr.mxu0 0.0
      %416 = vmatpush2.msra.mxu0 0.0
      %417 = vmatprep.subr.mxu0 0.0
      %418 = vmatpush2.msra.mxu0 0.0
      %419 = vmatprep.subr.mxu0 0.0
      %420 = vmatpush2.msra.mxu0 0.0
      %421 = vmatprep.subr.mxu0 0.0
      %422 = vmatpush2.msra.mxu0 0.0
      %423 = vmatprep.subr.mxu0 0.0
      %424 = vmatpush2.msra.mxu0 0.0
      %425 = vmatprep.subr.mxu0 0.0
      %426 = vmatpush2.msra.mxu0 0.0
      %427 = vmatprep.subr.mxu0 0.0
      %428 = vmatpush2.msra.mxu0 0.0
      %429 = vmatprep.subr.mxu0 0.0
      %430 = vmatpush2.msra.mxu0 0.0
      %431 = vmatprep.subr.mxu0 0.0
      %432 = vmatpush2.msra.mxu0 0.0
      %433 = vmatprep.subr.mxu0 0.0
      %434 = vmatpush2.msra.mxu0 0.0
      %435 = vmatprep.subr.mxu0 0.0
      %436 = vmatpush2.msra.mxu0 0.0
      %437 = vmatprep.subr.mxu0 0.0
      %438 = vmatpush2.msra.mxu0 0.0
      %439 = vmatprep.subr.mxu0 0.0
      %440 = vmatpush2.msra.mxu0 0.0
      %441 = vmatprep.subr.mxu0 0.0
      %442 = vmatpush2.msra.mxu0 0.0
      %443 = vmatprep.mubr.f32.mxu0 0.0
      %444 = vmatmul.mubr.f32.gmra.mxu0 %v374
      %v445 = vpop.f32.mrf.mxu0
      %v446 = vadd.f32 0.0, %v445
      %v447 = vpop.f32.mrf.mxu0
      %448 = vmatprep.mubr.f32.mxu0 0.0
      %449 = vmatmul.mubr.f32.gmra.mxu0 %v377
      %v450 = vpop.f32.mrf.mxu0
      %v451 = vadd.f32 0.0, %v450
      %v452 = vpop.f32.mrf.mxu0
      %453 = vdwg.mxu0
      %s454 = scalar_lea.vmem %s2, 128
      %v455 = vld [vmem:[%s454] sm:$0xff]
      %v456 = vld [vmem:[%s454 + $0x8] sm:$0xff]
      %v457 = vld [vmem:[%s454 + $0x10] sm:$0xff]
      %v458 = vld [vmem:[%s454 + $0x18] sm:$0xff]
      %v460 = vlaneseq
      %v461 = vshrl.u32 %v460, 7
      %v462 = vsub.s32 0, %v461
      %v463 = vrot.slane %v200, %v462
      %vm465 = vcmask 261120
      %v467 = vsel %vm465, %v198, 0
      %v470 = vsel %vm465, %v199, 0
      %472 = vmatprep.subr.mxu0 0.0
      %473 = vmatpush1.msra.mxu0 0.0
      %474 = vmatprep.subr.mxu0 0.0
      %475 = vmatpush1.msra.mxu0 0.0
      %476 = vmatprep.subr.mxu0 0.0
      %477 = vmatpush1.msra.mxu0 0.0
      %478 = vmatprep.subr.mxu0 0.0
      %479 = vmatpush1.msra.mxu0 0.0
      %480 = vmatprep.subr.mxu0 0.0
      %481 = vmatpush1.msra.mxu0 0.0
      %482 = vmatprep.subr.mxu0 0.0
      %483 = vmatpush1.msra.mxu0 0.0
      %484 = vmatprep.subr.mxu0 0.0
      %485 = vmatpush1.msra.mxu0 0.0
      %486 = vmatprep.subr.mxu0 0.0
      %487 = vmatpush1.msra.mxu0 0.0
      %488 = vmatprep.subr.mxu0 0.0
      %489 = vmatpush1.msra.mxu0 0.0
      %490 = vmatprep.subr.mxu0 0.0
      %491 = vmatpush1.msra.mxu0 0.0
      %492 = vmatprep.subr.mxu0 0.0
      %493 = vmatpush1.msra.mxu0 0.0
      %494 = vmatprep.subr.mxu0 0.0
      %495 = vmatpush1.msra.mxu0 0.0
      %496 = vmatprep.subr.mxu0 0.0
      %497 = vmatpush1.msra.mxu0 %v458
      %498 = vmatprep.subr.mxu0 0.0
      %499 = vmatpush1.msra.mxu0 %v457
      %500 = vmatprep.subr.mxu0 0.0
      %501 = vmatpush1.msra.mxu0 %v456
      %502 = vmatprep.subr.mxu0 0.0
      %503 = vmatpush1.msra.mxu0 %v455
      %504 = vmatprep.subr.mxu0 0.0
      %505 = vmatpush2.msra.mxu0 0.0
      %506 = vmatprep.subr.mxu0 0.0
      %507 = vmatpush2.msra.mxu0 0.0
      %508 = vmatprep.subr.mxu0 0.0
      %509 = vmatpush2.msra.mxu0 0.0
      %510 = vmatprep.subr.mxu0 0.0
      %511 = vmatpush2.msra.mxu0 0.0
      %512 = vmatprep.subr.mxu0 0.0
      %513 = vmatpush2.msra.mxu0 0.0
      %514 = vmatprep.subr.mxu0 0.0
      %515 = vmatpush2.msra.mxu0 0.0
      %516 = vmatprep.subr.mxu0 0.0
      %517 = vmatpush2.msra.mxu0 0.0
      %518 = vmatprep.subr.mxu0 0.0
      %519 = vmatpush2.msra.mxu0 0.0
      %520 = vmatprep.subr.mxu0 0.0
      %521 = vmatpush2.msra.mxu0 0.0
      %522 = vmatprep.subr.mxu0 0.0
      %523 = vmatpush2.msra.mxu0 0.0
      %524 = vmatprep.subr.mxu0 0.0
      %525 = vmatpush2.msra.mxu0 0.0
      %526 = vmatprep.subr.mxu0 0.0
      %527 = vmatpush2.msra.mxu0 0.0
      %528 = vmatprep.subr.mxu0 0.0
      %529 = vmatpush2.msra.mxu0 0.0
      %530 = vmatprep.subr.mxu0 0.0
      %531 = vmatpush2.msra.mxu0 0.0
      %532 = vmatprep.subr.mxu0 0.0
      %533 = vmatpush2.msra.mxu0 0.0
      %534 = vmatprep.subr.mxu0 0.0
      %535 = vmatpush2.msra.mxu0 0.0
      %536 = vmatprep.mubr.f32.mxu0 0.0
      %537 = vmatmul.mubr.f32.gmra.mxu0 %v467
      %v538 = vpop.f32.mrf.mxu0
      %v539 = vadd.f32 %v463, %v538
      %v540 = vpop.f32.mrf.mxu0
      %541 = vmatprep.mubr.f32.mxu0 0.0
      %542 = vmatmul.mubr.f32.gmra.mxu0 %v470
      %v543 = vpop.f32.mrf.mxu0
      %v544 = vadd.f32 %v463, %v543
      %v545 = vpop.f32.mrf.mxu0
      %546 = vdwg.mxu0
      %v547 = vmul.f32 %v539, 0.5
      %v548 = vmul.f32 %v544, 0.5
      %v549 = vmul.f32 %v539, 0.70710677
      %v550 = vmul.f32 %v544, 0.70710677
      %v551 = verf.f32.pop %v549
      %v552 = verf.f32.pop %v550
      %v553 = vadd.f32 %v551, 1.0
      %v554 = vadd.f32 %v552, 1.0
      %v555 = vmul.f32 %v547, %v553
      %v556 = vmul.f32 %v548, %v554
      %557 = vst.msk [vmem:[%s197] sm:$0xff] %vm465, %v555
      %558 = vst.msk [vmem:[%s197 + $0x8] sm:$0xff] %vm465, %v556
      %s559 = scalar_lea.vmem %s2, 160
      %v560 = vld [vmem:[%s559] sm:$0xff]
      %v561 = vld [vmem:[%s559 + $0x8] sm:$0xff]
      %v562 = vld [vmem:[%s559 + $0x10] sm:$0xff]
      %v563 = vld [vmem:[%s559 + $0x18] sm:$0xff]
      %s564 = scalar_lea.vmem %s2, 96
      %v565 = vld [vmem:[%s564] sm:$0xff]
      %v566 = vld [vmem:[%s564 + $0x8] sm:$0xff]
      %v567 = vld [vmem:[%s564 + $0x10] sm:$0xff]
      %v568 = vld [vmem:[%s564 + $0x18] sm:$0xff]
      %v570 = vsel %vm465, %v278, 0
      %v573 = vsel %vm465, %v283, 0
      %575 = vmatprep.subr.mxu0 0.0
      %576 = vmatpush1.msra.mxu0 0.0
      %577 = vmatprep.subr.mxu0 0.0
      %578 = vmatpush1.msra.mxu0 0.0
      %579 = vmatprep.subr.mxu0 0.0
      %580 = vmatpush1.msra.mxu0 0.0
      %581 = vmatprep.subr.mxu0 0.0
      %582 = vmatpush1.msra.mxu0 0.0
      %583 = vmatprep.subr.mxu0 0.0
      %584 = vmatpush1.msra.mxu0 0.0
      %585 = vmatprep.subr.mxu0 0.0
      %586 = vmatpush1.msra.mxu0 0.0
      %587 = vmatprep.subr.mxu0 0.0
      %588 = vmatpush1.msra.mxu0 0.0
      %589 = vmatprep.subr.mxu0 0.0
      %590 = vmatpush1.msra.mxu0 0.0
      %591 = vmatprep.subr.mxu0 0.0
      %592 = vmatpush1.msra.mxu0 0.0
      %593 = vmatprep.subr.mxu0 0.0
      %594 = vmatpush1.msra.mxu0 0.0
      %595 = vmatprep.subr.mxu0 0.0
      %596 = vmatpush1.msra.mxu0 0.0
      %597 = vmatprep.subr.mxu0 0.0
      %598 = vmatpush1.msra.mxu0 0.0
      %599 = vmatprep.subr.mxu0 0.0
      %600 = vmatpush1.msra.mxu0 %v568
      %601 = vmatprep.subr.mxu0 0.0
      %602 = vmatpush1.msra.mxu0 %v567
      %603 = vmatprep.subr.mxu0 0.0
      %604 = vmatpush1.msra.mxu0 %v566
      %605 = vmatprep.subr.mxu0 0.0
      %606 = vmatpush1.msra.mxu0 %v565
      %607 = vmatprep.subr.mxu0 0.0
      %608 = vmatpush2.msra.mxu0 0.0
      %609 = vmatprep.subr.mxu0 0.0
      %610 = vmatpush2.msra.mxu0 0.0
      %611 = vmatprep.subr.mxu0 0.0
      %612 = vmatpush2.msra.mxu0 0.0
      %613 = vmatprep.subr.mxu0 0.0
      %614 = vmatpush2.msra.mxu0 0.0
      %615 = vmatprep.subr.mxu0 0.0
      %616 = vmatpush2.msra.mxu0 0.0
      %617 = vmatprep.subr.mxu0 0.0
      %618 = vmatpush2.msra.mxu0 0.0
      %619 = vmatprep.subr.mxu0 0.0
      %620 = vmatpush2.msra.mxu0 0.0
      %621 = vmatprep.subr.mxu0 0.0
      %622 = vmatpush2.msra.mxu0 0.0
      %623 = vmatprep.subr.mxu0 0.0
      %624 = vmatpush2.msra.mxu0 0.0
      %625 = vmatprep.subr.mxu0 0.0
      %626 = vmatpush2.msra.mxu0 0.0
      %627 = vmatprep.subr.mxu0 0.0
      %628 = vmatpush2.msra.mxu0 0.0
      %629 = vmatprep.subr.mxu0 0.0
      %630 = vmatpush2.msra.mxu0 0.0
      %631 = vmatprep.subr.mxu0 0.0
      %632 = vmatpush2.msra.mxu0 0.0
      %633 = vmatprep.subr.mxu0 0.0
      %634 = vmatpush2.msra.mxu0 0.0
      %635 = vmatprep.subr.mxu0 0.0
      %636 = vmatpush2.msra.mxu0 0.0
      %637 = vmatprep.subr.mxu0 0.0
      %638 = vmatpush2.msra.mxu0 0.0
      %639 = vmatprep.mubr.f32.mxu0 0.0
      %640 = vmatmul.mubr.f32.gmra.mxu0 %v570
      %v641 = vpop.f32.mrf.mxu0
      %v642 = vadd.f32 0.0, %v641
      %v643 = vpop.f32.mrf.mxu0
      %644 = vmatprep.mubr.f32.mxu0 0.0
      %645 = vmatmul.mubr.f32.gmra.mxu0 %v573
      %v646 = vpop.f32.mrf.mxu0
      %v647 = vadd.f32 0.0, %v646
      %v648 = vpop.f32.mrf.mxu0
      %649 = vdwg.mxu0
      %650 = vmatprep.subr.mxu0 0.0
      %651 = vmatpush1.msra.mxu0 0.0
      %652 = vmatprep.subr.mxu0 0.0
      %653 = vmatpush1.msra.mxu0 0.0
      %654 = vmatprep.subr.mxu0 0.0
      %655 = vmatpush1.msra.mxu0 0.0
      %656 = vmatprep.subr.mxu0 0.0
      %657 = vmatpush1.msra.mxu0 0.0
      %658 = vmatprep.subr.mxu0 0.0
      %659 = vmatpush1.msra.mxu0 0.0
      %660 = vmatprep.subr.mxu0 0.0
      %661 = vmatpush1.msra.mxu0 0.0
      %662 = vmatprep.subr.mxu0 0.0
      %663 = vmatpush1.msra.mxu0 0.0
      %664 = vmatprep.subr.mxu0 0.0
      %665 = vmatpush1.msra.mxu0 0.0
      %666 = vmatprep.subr.mxu0 0.0
      %667 = vmatpush1.msra.mxu0 0.0
      %668 = vmatprep.subr.mxu0 0.0
      %669 = vmatpush1.msra.mxu0 0.0
      %670 = vmatprep.subr.mxu0 0.0
      %671 = vmatpush1.msra.mxu0 0.0
      %672 = vmatprep.subr.mxu0 0.0
      %673 = vmatpush1.msra.mxu0 0.0
      %674 = vmatprep.subr.mxu0 0.0
      %675 = vmatpush1.msra.mxu0 %v563
      %676 = vmatprep.subr.mxu0 0.0
      %677 = vmatpush1.msra.mxu0 %v562
      %678 = vmatprep.subr.mxu0 0.0
      %679 = vmatpush1.msra.mxu0 %v561
      %680 = vmatprep.subr.mxu0 0.0
      %681 = vmatpush1.msra.mxu0 %v560
      %682 = vmatprep.subr.mxu0 0.0
      %683 = vmatpush2.msra.mxu0 0.0
      %684 = vmatprep.subr.mxu0 0.0
      %685 = vmatpush2.msra.mxu0 0.0
      %686 = vmatprep.subr.mxu0 0.0
      %687 = vmatpush2.msra.mxu0 0.0
      %688 = vmatprep.subr.mxu0 0.0
      %689 = vmatpush2.msra.mxu0 0.0
      %690 = vmatprep.subr.mxu0 0.0
      %691 = vmatpush2.msra.mxu0 0.0
      %692 = vmatprep.subr.mxu0 0.0
      %693 = vmatpush2.msra.mxu0 0.0
      %694 = vmatprep.subr.mxu0 0.0
      %695 = vmatpush2.msra.mxu0 0.0
      %696 = vmatprep.subr.mxu0 0.0
      %697 = vmatpush2.msra.mxu0 0.0
      %698 = vmatprep.subr.mxu0 0.0
      %699 = vmatpush2.msra.mxu0 0.0
      %700 = vmatprep.subr.mxu0 0.0
      %701 = vmatpush2.msra.mxu0 0.0
      %702 = vmatprep.subr.mxu0 0.0
      %703 = vmatpush2.msra.mxu0 0.0
      %704 = vmatprep.subr.mxu0 0.0
      %705 = vmatpush2.msra.mxu0 0.0
      %706 = vmatprep.subr.mxu0 0.0
      %707 = vmatpush2.msra.mxu0 0.0
      %708 = vmatprep.subr.mxu0 0.0
      %709 = vmatpush2.msra.mxu0 0.0
      %710 = vmatprep.subr.mxu0 0.0
      %711 = vmatpush2.msra.mxu0 0.0
      %712 = vmatprep.subr.mxu0 0.0
      %713 = vmatpush2.msra.mxu0 0.0
      %714 = vmatprep.mubr.f32.mxu0 0.0
      %715 = vmatmul.mubr.f32.gmra.mxu0 %v467
      %v716 = vpop.f32.mrf.mxu0
      %v717 = vadd.f32 %v642, %v716
      %v718 = vpop.f32.mrf.mxu0
      %719 = vmatprep.mubr.f32.mxu0 0.0
      %720 = vmatmul.mubr.f32.gmra.mxu0 %v470
      %v721 = vpop.f32.mrf.mxu0
      %v722 = vadd.f32 %v647, %v721
      %v723 = vpop.f32.mrf.mxu0
      %724 = vdwg.mxu0
      %v725 = vadd.f32 %v717, %v463
      %v726 = vadd.f32 %v722, %v463
      %v727 = vmul.f32 %v725, 0.5
      %v728 = vmul.f32 %v726, 0.5
      %v729 = vmul.f32 %v725, 0.70710677
      %v730 = vmul.f32 %v726, 0.70710677
      %v731 = verf.f32.pop %v729
      %v732 = verf.f32.pop %v730
      %v733 = vadd.f32 %v731, 1.0
      %v734 = vadd.f32 %v732, 1.0
      %v735 = vmul.f32 %v727, %v733
      %v736 = vmul.f32 %v728, %v734
      %s737 = scalar_lea.vmem %s197, 16
      %738 = vst.msk [vmem:[%s737] sm:$0xff] %vm465, %v735
      %739 = vst.msk [vmem:[%s737 + $0x8] sm:$0xff] %vm465, %v736
      %s740 = scalar_lea.vmem %s2, 224
      %v741 = vld [vmem:[%s740] sm:$0xff]
      %v742 = vld [vmem:[%s740 + $0x8] sm:$0xff]
      %v743 = vld [vmem:[%s740 + $0x10] sm:$0xff]
      %v744 = vld [vmem:[%s740 + $0x18] sm:$0xff]
      %s745 = scalar_lea.vmem %s2, 32
      %v746 = vld [vmem:[%s745] sm:$0xff]
      %v747 = vld [vmem:[%s745 + $0x8] sm:$0xff]
      %v748 = vld [vmem:[%s745 + $0x10] sm:$0xff]
      %v749 = vld [vmem:[%s745 + $0x18] sm:$0xff]
      %v751 = vsel %vm465, %v362, 0
      %v754 = vsel %vm465, %v367, 0
      %756 = vmatprep.subr.mxu0 0.0
      %757 = vmatpush1.msra.mxu0 0.0
      %758 = vmatprep.subr.mxu0 0.0
      %759 = vmatpush1.msra.mxu0 0.0
      %760 = vmatprep.subr.mxu0 0.0
      %761 = vmatpush1.msra.mxu0 0.0
      %762 = vmatprep.subr.mxu0 0.0
      %763 = vmatpush1.msra.mxu0 0.0
      %764 = vmatprep.subr.mxu0 0.0
      %765 = vmatpush1.msra.mxu0 0.0
      %766 = vmatprep.subr.mxu0 0.0
      %767 = vmatpush1.msra.mxu0 0.0
      %768 = vmatprep.subr.mxu0 0.0
      %769 = vmatpush1.msra.mxu0 0.0
      %770 = vmatprep.subr.mxu0 0.0
      %771 = vmatpush1.msra.mxu0 0.0
      %772 = vmatprep.subr.mxu0 0.0
      %773 = vmatpush1.msra.mxu0 0.0
      %774 = vmatprep.subr.mxu0 0.0
      %775 = vmatpush1.msra.mxu0 0.0
      %776 = vmatprep.subr.mxu0 0.0
      %777 = vmatpush1.msra.mxu0 0.0
      %778 = vmatprep.subr.mxu0 0.0
      %779 = vmatpush1.msra.mxu0 0.0
      %780 = vmatprep.subr.mxu0 0.0
      %781 = vmatpush1.msra.mxu0 %v749
      %782 = vmatprep.subr.mxu0 0.0
      %783 = vmatpush1.msra.mxu0 %v748
      %784 = vmatprep.subr.mxu0 0.0
      %785 = vmatpush1.msra.mxu0 %v747
      %786 = vmatprep.subr.mxu0 0.0
      %787 = vmatpush1.msra.mxu0 %v746
      %788 = vmatprep.subr.mxu0 0.0
      %789 = vmatpush2.msra.mxu0 0.0
      %790 = vmatprep.subr.mxu0 0.0
      %791 = vmatpush2.msra.mxu0 0.0
      %792 = vmatprep.subr.mxu0 0.0
      %793 = vmatpush2.msra.mxu0 0.0
      %794 = vmatprep.subr.mxu0 0.0
      %795 = vmatpush2.msra.mxu0 0.0
      %796 = vmatprep.subr.mxu0 0.0
      %797 = vmatpush2.msra.mxu0 0.0
      %798 = vmatprep.subr.mxu0 0.0
      %799 = vmatpush2.msra.mxu0 0.0
      %800 = vmatprep.subr.mxu0 0.0
      %801 = vmatpush2.msra.mxu0 0.0
      %802 = vmatprep.subr.mxu0 0.0
      %803 = vmatpush2.msra.mxu0 0.0
      %804 = vmatprep.subr.mxu0 0.0
      %805 = vmatpush2.msra.mxu0 0.0
      %806 = vmatprep.subr.mxu0 0.0
      %807 = vmatpush2.msra.mxu0 0.0
      %808 = vmatprep.subr.mxu0 0.0
      %809 = vmatpush2.msra.mxu0 0.0
      %810 = vmatprep.subr.mxu0 0.0
      %811 = vmatpush2.msra.mxu0 0.0
      %812 = vmatprep.subr.mxu0 0.0
      %813 = vmatpush2.msra.mxu0 0.0
      %814 = vmatprep.subr.mxu0 0.0
      %815 = vmatpush2.msra.mxu0 0.0
      %816 = vmatprep.subr.mxu0 0.0
      %817 = vmatpush2.msra.mxu0 0.0
      %818 = vmatprep.subr.mxu0 0.0
      %819 = vmatpush2.msra.mxu0 0.0
      %820 = vmatprep.mubr.f32.mxu0 0.0
      %821 = vmatmul.mubr.f32.gmra.mxu0 %v751
      %v822 = vpop.f32.mrf.mxu0
      %v823 = vadd.f32 0.0, %v822
      %v824 = vpop.f32.mrf.mxu0
      %825 = vmatprep.mubr.f32.mxu0 0.0
      %826 = vmatmul.mubr.f32.gmra.mxu0 %v754
      %v827 = vpop.f32.mrf.mxu0
      %v828 = vadd.f32 0.0, %v827
      %v829 = vpop.f32.mrf.mxu0
      %830 = vdwg.mxu0
      %831 = vmatprep.subr.mxu0 0.0
      %832 = vmatpush1.msra.mxu0 0.0
      %833 = vmatprep.subr.mxu0 0.0
      %834 = vmatpush1.msra.mxu0 0.0
      %835 = vmatprep.subr.mxu0 0.0
      %836 = vmatpush1.msra.mxu0 0.0
      %837 = vmatprep.subr.mxu0 0.0
      %838 = vmatpush1.msra.mxu0 0.0
      %839 = vmatprep.subr.mxu0 0.0
      %840 = vmatpush1.msra.mxu0 0.0
      %841 = vmatprep.subr.mxu0 0.0
      %842 = vmatpush1.msra.mxu0 0.0
      %843 = vmatprep.subr.mxu0 0.0
      %844 = vmatpush1.msra.mxu0 0.0
      %845 = vmatprep.subr.mxu0 0.0
      %846 = vmatpush1.msra.mxu0 0.0
      %847 = vmatprep.subr.mxu0 0.0
      %848 = vmatpush1.msra.mxu0 0.0
      %849 = vmatprep.subr.mxu0 0.0
      %850 = vmatpush1.msra.mxu0 0.0
      %851 = vmatprep.subr.mxu0 0.0
      %852 = vmatpush1.msra.mxu0 0.0
      %853 = vmatprep.subr.mxu0 0.0
      %854 = vmatpush1.msra.mxu0 0.0
      %855 = vmatprep.subr.mxu0 0.0
      %856 = vmatpush1.msra.mxu0 %v744
      %857 = vmatprep.subr.mxu0 0.0
      %858 = vmatpush1.msra.mxu0 %v743
      %859 = vmatprep.subr.mxu0 0.0
      %860 = vmatpush1.msra.mxu0 %v742
      %861 = vmatprep.subr.mxu0 0.0
      %862 = vmatpush1.msra.mxu0 %v741
      %863 = vmatprep.subr.mxu0 0.0
      %864 = vmatpush2.msra.mxu0 0.0
      %865 = vmatprep.subr.mxu0 0.0
      %866 = vmatpush2.msra.mxu0 0.0
      %867 = vmatprep.subr.mxu0 0.0
      %868 = vmatpush2.msra.mxu0 0.0
      %869 = vmatprep.subr.mxu0 0.0
      %870 = vmatpush2.msra.mxu0 0.0
      %871 = vmatprep.subr.mxu0 0.0
      %872 = vmatpush2.msra.mxu0 0.0
      %873 = vmatprep.subr.mxu0 0.0
      %874 = vmatpush2.msra.mxu0 0.0
      %875 = vmatprep.subr.mxu0 0.0
      %876 = vmatpush2.msra.mxu0 0.0
      %877 = vmatprep.subr.mxu0 0.0
      %878 = vmatpush2.msra.mxu0 0.0
      %879 = vmatprep.subr.mxu0 0.0
      %880 = vmatpush2.msra.mxu0 0.0
      %881 = vmatprep.subr.mxu0 0.0
      %882 = vmatpush2.msra.mxu0 0.0
      %883 = vmatprep.subr.mxu0 0.0
      %884 = vmatpush2.msra.mxu0 0.0
      %885 = vmatprep.subr.mxu0 0.0
      %886 = vmatpush2.msra.mxu0 0.0
      %887 = vmatprep.subr.mxu0 0.0
      %888 = vmatpush2.msra.mxu0 0.0
      %889 = vmatprep.subr.mxu0 0.0
      %890 = vmatpush2.msra.mxu0 0.0
      %891 = vmatprep.subr.mxu0 0.0
      %892 = vmatpush2.msra.mxu0 0.0
      %893 = vmatprep.subr.mxu0 0.0
      %894 = vmatpush2.msra.mxu0 0.0
      %895 = vmatprep.mubr.f32.mxu0 0.0
      %896 = vmatmul.mubr.f32.gmra.mxu0 %v467
      %v897 = vpop.f32.mrf.mxu0
      %v898 = vadd.f32 %v823, %v897
      %v899 = vpop.f32.mrf.mxu0
      %900 = vmatprep.mubr.f32.mxu0 0.0
      %901 = vmatmul.mubr.f32.gmra.mxu0 %v470
      %v902 = vpop.f32.mrf.mxu0
      %v903 = vadd.f32 %v828, %v902
      %v904 = vpop.f32.mrf.mxu0
      %905 = vdwg.mxu0
      %v906 = vadd.f32 %v898, %v463
      %v907 = vadd.f32 %v903, %v463
      %v908 = vmul.f32 %v906, 0.5
      %v909 = vmul.f32 %v907, 0.5
      %v910 = vmul.f32 %v906, 0.70710677
      %v911 = vmul.f32 %v907, 0.70710677
      %v912 = verf.f32.pop %v910
      %v913 = verf.f32.pop %v911
      %v914 = vadd.f32 %v912, 1.0
      %v915 = vadd.f32 %v913, 1.0
      %v916 = vmul.f32 %v908, %v914
      %v917 = vmul.f32 %v909, %v915
      %s918 = scalar_lea.vmem %s197, 32
      %919 = vst.msk [vmem:[%s918] sm:$0xff] %vm465, %v916
      %920 = vst.msk [vmem:[%s918 + $0x8] sm:$0xff] %vm465, %v917
      %s921 = scalar_lea.vmem %s2, 256
      %v922 = vld [vmem:[%s921] sm:$0xff]
      %v923 = vld [vmem:[%s921 + $0x8] sm:$0xff]
      %v924 = vld [vmem:[%s921 + $0x10] sm:$0xff]
      %v925 = vld [vmem:[%s921 + $0x18] sm:$0xff]
      %s926 = scalar_lea.vmem %s2, 192
      %v927 = vld [vmem:[%s926] sm:$0xff]
      %v928 = vld [vmem:[%s926 + $0x8] sm:$0xff]
      %v929 = vld [vmem:[%s926 + $0x10] sm:$0xff]
      %v930 = vld [vmem:[%s926 + $0x18] sm:$0xff]
      %931 = vmatprep.subr.mxu0 0.0
      %932 = vmatpush1.msra.mxu0 0.0
      %933 = vmatprep.subr.mxu0 0.0
      %934 = vmatpush1.msra.mxu0 0.0
      %935 = vmatprep.subr.mxu0 0.0
      %936 = vmatpush1.msra.mxu0 0.0
      %937 = vmatprep.subr.mxu0 0.0
      %938 = vmatpush1.msra.mxu0 0.0
      %939 = vmatprep.subr.mxu0 0.0
      %940 = vmatpush1.msra.mxu0 0.0
      %941 = vmatprep.subr.mxu0 0.0
      %942 = vmatpush1.msra.mxu0 0.0
      %943 = vmatprep.subr.mxu0 0.0
      %944 = vmatpush1.msra.mxu0 0.0
      %945 = vmatprep.subr.mxu0 0.0
      %946 = vmatpush1.msra.mxu0 0.0
      %947 = vmatprep.subr.mxu0 0.0
      %948 = vmatpush1.msra.mxu0 0.0
      %949 = vmatprep.subr.mxu0 0.0
      %950 = vmatpush1.msra.mxu0 0.0
      %951 = vmatprep.subr.mxu0 0.0
      %952 = vmatpush1.msra.mxu0 0.0
      %953 = vmatprep.subr.mxu0 0.0
      %954 = vmatpush1.msra.mxu0 0.0
      %955 = vmatprep.subr.mxu0 0.0
      %956 = vmatpush1.msra.mxu0 %v930
      %957 = vmatprep.subr.mxu0 0.0
      %958 = vmatpush1.msra.mxu0 %v929
      %959 = vmatprep.subr.mxu0 0.0
      %960 = vmatpush1.msra.mxu0 %v928
      %961 = vmatprep.subr.mxu0 0.0
      %962 = vmatpush1.msra.mxu0 %v927
      %963 = vmatprep.subr.mxu0 0.0
      %964 = vmatpush2.msra.mxu0 0.0
      %965 = vmatprep.subr.mxu0 0.0
      %966 = vmatpush2.msra.mxu0 0.0
      %967 = vmatprep.subr.mxu0 0.0
      %968 = vmatpush2.msra.mxu0 0.0
      %969 = vmatprep.subr.mxu0 0.0
      %970 = vmatpush2.msra.mxu0 0.0
      %971 = vmatprep.subr.mxu0 0.0
      %972 = vmatpush2.msra.mxu0 0.0
      %973 = vmatprep.subr.mxu0 0.0
      %974 = vmatpush2.msra.mxu0 0.0
      %975 = vmatprep.subr.mxu0 0.0
      %976 = vmatpush2.msra.mxu0 0.0
      %977 = vmatprep.subr.mxu0 0.0
      %978 = vmatpush2.msra.mxu0 0.0
      %979 = vmatprep.subr.mxu0 0.0
      %980 = vmatpush2.msra.mxu0 0.0
      %981 = vmatprep.subr.mxu0 0.0
      %982 = vmatpush2.msra.mxu0 0.0
      %983 = vmatprep.subr.mxu0 0.0
      %984 = vmatpush2.msra.mxu0 0.0
      %985 = vmatprep.subr.mxu0 0.0
      %986 = vmatpush2.msra.mxu0 0.0
      %987 = vmatprep.subr.mxu0 0.0
      %988 = vmatpush2.msra.mxu0 0.0
      %989 = vmatprep.subr.mxu0 0.0
      %990 = vmatpush2.msra.mxu0 0.0
      %991 = vmatprep.subr.mxu0 0.0
      %992 = vmatpush2.msra.mxu0 0.0
      %993 = vmatprep.subr.mxu0 0.0
      %994 = vmatpush2.msra.mxu0 0.0
      %995 = vmatprep.mubr.f32.mxu0 0.0
      %996 = vmatmul.mubr.f32.gmra.mxu0 %v570
      %v997 = vpop.f32.mrf.mxu0
      %v998 = vadd.f32 0.0, %v997
      %v999 = vpop.f32.mrf.mxu0
      %1000 = vmatprep.mubr.f32.mxu0 0.0
      %1001 = vmatmul.mubr.f32.gmra.mxu0 %v573
      %v1002 = vpop.f32.mrf.mxu0
      %v1003 = vadd.f32 0.0, %v1002
      %v1004 = vpop.f32.mrf.mxu0
      %1005 = vdwg.mxu0
      %1006 = vmatprep.subr.mxu0 0.0
      %1007 = vmatpush1.msra.mxu0 0.0
      %1008 = vmatprep.subr.mxu0 0.0
      %1009 = vmatpush1.msra.mxu0 0.0
      %1010 = vmatprep.subr.mxu0 0.0
      %1011 = vmatpush1.msra.mxu0 0.0
      %1012 = vmatprep.subr.mxu0 0.0
      %1013 = vmatpush1.msra.mxu0 0.0
      %1014 = vmatprep.subr.mxu0 0.0
      %1015 = vmatpush1.msra.mxu0 0.0
      %1016 = vmatprep.subr.mxu0 0.0
      %1017 = vmatpush1.msra.mxu0 0.0
      %1018 = vmatprep.subr.mxu0 0.0
      %1019 = vmatpush1.msra.mxu0 0.0
      %1020 = vmatprep.subr.mxu0 0.0
      %1021 = vmatpush1.msra.mxu0 0.0
      %1022 = vmatprep.subr.mxu0 0.0
      %1023 = vmatpush1.msra.mxu0 0.0
      %1024 = vmatprep.subr.mxu0 0.0
      %1025 = vmatpush1.msra.mxu0 0.0
      %1026 = vmatprep.subr.mxu0 0.0
      %1027 = vmatpush1.msra.mxu0 0.0
      %1028 = vmatprep.subr.mxu0 0.0
      %1029 = vmatpush1.msra.mxu0 0.0
      %1030 = vmatprep.subr.mxu0 0.0
      %1031 = vmatpush1.msra.mxu0 %v925
      %1032 = vmatprep.subr.mxu0 0.0
      %1033 = vmatpush1.msra.mxu0 %v924
      %1034 = vmatprep.subr.mxu0 0.0
      %1035 = vmatpush1.msra.mxu0 %v923
      %1036 = vmatprep.subr.mxu0 0.0
      %1037 = vmatpush1.msra.mxu0 %v922
      %1038 = vmatprep.subr.mxu0 0.0
      %1039 = vmatpush2.msra.mxu0 0.0
      %1040 = vmatprep.subr.mxu0 0.0
      %1041 = vmatpush2.msra.mxu0 0.0
      %1042 = vmatprep.subr.mxu0 0.0
      %1043 = vmatpush2.msra.mxu0 0.0
      %1044 = vmatprep.subr.mxu0 0.0
      %1045 = vmatpush2.msra.mxu0 0.0
      %1046 = vmatprep.subr.mxu0 0.0
      %1047 = vmatpush2.msra.mxu0 0.0
      %1048 = vmatprep.subr.mxu0 0.0
      %1049 = vmatpush2.msra.mxu0 0.0
      %1050 = vmatprep.subr.mxu0 0.0
      %1051 = vmatpush2.msra.mxu0 0.0
      %1052 = vmatprep.subr.mxu0 0.0
      %1053 = vmatpush2.msra.mxu0 0.0
      %1054 = vmatprep.subr.mxu0 0.0
      %1055 = vmatpush2.msra.mxu0 0.0
      %1056 = vmatprep.subr.mxu0 0.0
      %1057 = vmatpush2.msra.mxu0 0.0
      %1058 = vmatprep.subr.mxu0 0.0
      %1059 = vmatpush2.msra.mxu0 0.0
      %1060 = vmatprep.subr.mxu0 0.0
      %1061 = vmatpush2.msra.mxu0 0.0
      %1062 = vmatprep.subr.mxu0 0.0
      %1063 = vmatpush2.msra.mxu0 0.0
      %1064 = vmatprep.subr.mxu0 0.0
      %1065 = vmatpush2.msra.mxu0 0.0
      %1066 = vmatprep.subr.mxu0 0.0
      %1067 = vmatpush2.msra.mxu0 0.0
      %1068 = vmatprep.subr.mxu0 0.0
      %1069 = vmatpush2.msra.mxu0 0.0
      %1070 = vmatprep.mubr.f32.mxu0 0.0
      %1071 = vmatmul.mubr.f32.gmra.mxu0 %v467
      %v1072 = vpop.f32.mrf.mxu0
      %v1073 = vadd.f32 %v998, %v1072
      %v1074 = vpop.f32.mrf.mxu0
      %1075 = vmatprep.mubr.f32.mxu0 0.0
      %1076 = vmatmul.mubr.f32.gmra.mxu0 %v470
      %v1077 = vpop.f32.mrf.mxu0
      %v1078 = vadd.f32 %v1003, %v1077
      %v1079 = vpop.f32.mrf.mxu0
      %1080 = vdwg.mxu0
      %s1081 = scalar_lea.vmem %s2, 64
      %v1082 = vld [vmem:[%s1081] sm:$0xff]
      %v1083 = vld [vmem:[%s1081 + $0x8] sm:$0xff]
      %v1084 = vld [vmem:[%s1081 + $0x10] sm:$0xff]
      %v1085 = vld [vmem:[%s1081 + $0x18] sm:$0xff]
      %1086 = vmatprep.subr.mxu0 0.0
      %1087 = vmatpush1.msra.mxu0 0.0
      %1088 = vmatprep.subr.mxu0 0.0
      %1089 = vmatpush1.msra.mxu0 0.0
      %1090 = vmatprep.subr.mxu0 0.0
      %1091 = vmatpush1.msra.mxu0 0.0
      %1092 = vmatprep.subr.mxu0 0.0
      %1093 = vmatpush1.msra.mxu0 0.0
      %1094 = vmatprep.subr.mxu0 0.0
      %1095 = vmatpush1.msra.mxu0 0.0
      %1096 = vmatprep.subr.mxu0 0.0
      %1097 = vmatpush1.msra.mxu0 0.0
      %1098 = vmatprep.subr.mxu0 0.0
      %1099 = vmatpush1.msra.mxu0 0.0
      %1100 = vmatprep.subr.mxu0 0.0
      %1101 = vmatpush1.msra.mxu0 0.0
      %1102 = vmatprep.subr.mxu0 0.0
      %1103 = vmatpush1.msra.mxu0 0.0
      %1104 = vmatprep.subr.mxu0 0.0
      %1105 = vmatpush1.msra.mxu0 0.0
      %1106 = vmatprep.subr.mxu0 0.0
      %1107 = vmatpush1.msra.mxu0 0.0
      %1108 = vmatprep.subr.mxu0 0.0
      %1109 = vmatpush1.msra.mxu0 0.0
      %1110 = vmatprep.subr.mxu0 0.0
      %1111 = vmatpush1.msra.mxu0 %v1085
      %1112 = vmatprep.subr.mxu0 0.0
      %1113 = vmatpush1.msra.mxu0 %v1084
      %1114 = vmatprep.subr.mxu0 0.0
      %1115 = vmatpush1.msra.mxu0 %v1083
      %1116 = vmatprep.subr.mxu0 0.0
      %1117 = vmatpush1.msra.mxu0 %v1082
      %1118 = vmatprep.subr.mxu0 0.0
      %1119 = vmatpush2.msra.mxu0 0.0
      %1120 = vmatprep.subr.mxu0 0.0
      %1121 = vmatpush2.msra.mxu0 0.0
      %1122 = vmatprep.subr.mxu0 0.0
      %1123 = vmatpush2.msra.mxu0 0.0
      %1124 = vmatprep.subr.mxu0 0.0
      %1125 = vmatpush2.msra.mxu0 0.0
      %1126 = vmatprep.subr.mxu0 0.0
      %1127 = vmatpush2.msra.mxu0 0.0
      %1128 = vmatprep.subr.mxu0 0.0
      %1129 = vmatpush2.msra.mxu0 0.0
      %1130 = vmatprep.subr.mxu0 0.0
      %1131 = vmatpush2.msra.mxu0 0.0
      %1132 = vmatprep.subr.mxu0 0.0
      %1133 = vmatpush2.msra.mxu0 0.0
      %1134 = vmatprep.subr.mxu0 0.0
      %1135 = vmatpush2.msra.mxu0 0.0
      %1136 = vmatprep.subr.mxu0 0.0
      %1137 = vmatpush2.msra.mxu0 0.0
      %1138 = vmatprep.subr.mxu0 0.0
      %1139 = vmatpush2.msra.mxu0 0.0
      %1140 = vmatprep.subr.mxu0 0.0
      %1141 = vmatpush2.msra.mxu0 0.0
      %1142 = vmatprep.subr.mxu0 0.0
      %1143 = vmatpush2.msra.mxu0 0.0
      %1144 = vmatprep.subr.mxu0 0.0
      %1145 = vmatpush2.msra.mxu0 0.0
      %1146 = vmatprep.subr.mxu0 0.0
      %1147 = vmatpush2.msra.mxu0 0.0
      %1148 = vmatprep.subr.mxu0 0.0
      %1149 = vmatpush2.msra.mxu0 0.0
      %1150 = vmatprep.mubr.f32.mxu0 0.0
      %1151 = vmatmul.mubr.f32.gmra.mxu0 %v751
      %v1152 = vpop.f32.mrf.mxu0
      %v1153 = vadd.f32 0.0, %v1152
      %v1154 = vpop.f32.mrf.mxu0
      %1155 = vmatprep.mubr.f32.mxu0 0.0
      %1156 = vmatmul.mubr.f32.gmra.mxu0 %v754
      %v1157 = vpop.f32.mrf.mxu0
      %v1158 = vadd.f32 0.0, %v1157
      %v1159 = vpop.f32.mrf.mxu0
      %1160 = vdwg.mxu0
      %v1161 = vadd.f32 %v1073, %v1153
      %v1162 = vadd.f32 %v1078, %v1158
      %v1163 = vld [vmem:[%s2] sm:$0xff]
      %v1164 = vld [vmem:[%s2 + $0x8] sm:$0xff]
      %v1165 = vld [vmem:[%s2 + $0x10] sm:$0xff]
      %v1166 = vld [vmem:[%s2 + $0x18] sm:$0xff]
      %v1168 = vsel %vm465, %v446, 0
      %v1171 = vsel %vm465, %v451, 0
      %1173 = vmatprep.subr.mxu0 0.0
      %1174 = vmatpush1.msra.mxu0 0.0
      %1175 = vmatprep.subr.mxu0 0.0
      %1176 = vmatpush1.msra.mxu0 0.0
      %1177 = vmatprep.subr.mxu0 0.0
      %1178 = vmatpush1.msra.mxu0 0.0
      %1179 = vmatprep.subr.mxu0 0.0
      %1180 = vmatpush1.msra.mxu0 0.0
      %1181 = vmatprep.subr.mxu0 0.0
      %1182 = vmatpush1.msra.mxu0 0.0
      %1183 = vmatprep.subr.mxu0 0.0
      %1184 = vmatpush1.msra.mxu0 0.0
      %1185 = vmatprep.subr.mxu0 0.0
      %1186 = vmatpush1.msra.mxu0 0.0
      %1187 = vmatprep.subr.mxu0 0.0
      %1188 = vmatpush1.msra.mxu0 0.0
      %1189 = vmatprep.subr.mxu0 0.0
      %1190 = vmatpush1.msra.mxu0 0.0
      %1191 = vmatprep.subr.mxu0 0.0
      %1192 = vmatpush1.msra.mxu0 0.0
      %1193 = vmatprep.subr.mxu0 0.0
      %1194 = vmatpush1.msra.mxu0 0.0
      %1195 = vmatprep.subr.mxu0 0.0
      %1196 = vmatpush1.msra.mxu0 0.0
      %1197 = vmatprep.subr.mxu0 0.0
      %1198 = vmatpush1.msra.mxu0 %v1166
      %1199 = vmatprep.subr.mxu0 0.0
      %1200 = vmatpush1.msra.mxu0 %v1165
      %1201 = vmatprep.subr.mxu0 0.0
      %1202 = vmatpush1.msra.mxu0 %v1164
      %1203 = vmatprep.subr.mxu0 0.0
      %1204 = vmatpush1.msra.mxu0 %v1163
      %1205 = vmatprep.subr.mxu0 0.0
      %1206 = vmatpush2.msra.mxu0 0.0
      %1207 = vmatprep.subr.mxu0 0.0
      %1208 = vmatpush2.msra.mxu0 0.0
      %1209 = vmatprep.subr.mxu0 0.0
      %1210 = vmatpush2.msra.mxu0 0.0
      %1211 = vmatprep.subr.mxu0 0.0
      %1212 = vmatpush2.msra.mxu0 0.0
      %1213 = vmatprep.subr.mxu0 0.0
      %1214 = vmatpush2.msra.mxu0 0.0
      %1215 = vmatprep.subr.mxu0 0.0
      %1216 = vmatpush2.msra.mxu0 0.0
      %1217 = vmatprep.subr.mxu0 0.0
      %1218 = vmatpush2.msra.mxu0 0.0
      %1219 = vmatprep.subr.mxu0 0.0
      %1220 = vmatpush2.msra.mxu0 0.0
      %1221 = vmatprep.subr.mxu0 0.0
      %1222 = vmatpush2.msra.mxu0 0.0
      %1223 = vmatprep.subr.mxu0 0.0
      %1224 = vmatpush2.msra.mxu0 0.0
      %1225 = vmatprep.subr.mxu0 0.0
      %1226 = vmatpush2.msra.mxu0 0.0
      %1227 = vmatprep.subr.mxu0 0.0
      %1228 = vmatpush2.msra.mxu0 0.0
      %1229 = vmatprep.subr.mxu0 0.0
      %1230 = vmatpush2.msra.mxu0 0.0
      %1231 = vmatprep.subr.mxu0 0.0
      %1232 = vmatpush2.msra.mxu0 0.0
      %1233 = vmatprep.subr.mxu0 0.0
      %1234 = vmatpush2.msra.mxu0 0.0
      %1235 = vmatprep.subr.mxu0 0.0
      %1236 = vmatpush2.msra.mxu0 0.0
      %1237 = vmatprep.mubr.f32.mxu0 0.0
      %1238 = vmatmul.mubr.f32.gmra.mxu0 %v1168
      %v1239 = vpop.f32.mrf.mxu0
      %v1240 = vadd.f32 0.0, %v1239
      %v1241 = vpop.f32.mrf.mxu0
      %1242 = vmatprep.mubr.f32.mxu0 0.0
      %1243 = vmatmul.mubr.f32.gmra.mxu0 %v1171
      %v1244 = vpop.f32.mrf.mxu0
      %v1245 = vadd.f32 0.0, %v1244
      %v1246 = vpop.f32.mrf.mxu0
      %1247 = vdwg.mxu0
      %v1248 = vadd.f32 %v1161, %v1240
      %v1249 = vadd.f32 %v1162, %v1245
      %v1250 = vadd.f32 %v1248, %v463
      %v1251 = vadd.f32 %v1249, %v463
      %v1252 = vmul.f32 %v1250, 0.5
      %v1253 = vmul.f32 %v1251, 0.5
      %v1254 = vmul.f32 %v1250, 0.70710677
      %v1255 = vmul.f32 %v1251, 0.70710677
      %v1256 = verf.f32.pop %v1254
      %v1257 = verf.f32.pop %v1255
      %v1258 = vadd.f32 %v1256, 1.0
      %v1259 = vadd.f32 %v1257, 1.0
      %v1260 = vmul.f32 %v1252, %v1258
      %v1261 = vmul.f32 %v1253, %v1259
      %s1262 = scalar_lea.vmem %s197, 48
      %1263 = vst.msk [vmem:[%s1262] sm:$0xff] %vm465, %v1260
      %1264 = vst.msk [vmem:[%s1262 + $0x8] sm:$0xff] %vm465, %v1261
      %p1265 = scmp.lt.s32.totalorder %s15, 1
      %s1266 = scalar_select %p1265, %s15, 1
      %s1267 = smul.addr %s1266, 8
      %s1268 = smul.addr %s1267, 8
      %s1269 = scalar_lea.vmem %s4, %s1268
      // Predicated region
      $region37: #{_lambda_.4} parent=35 // pred_check
        %p1270 = pneg %p122
      $region38: #{_lambda_.4} parent=35 // pred_check_branch
        %1272 = sbr.rel (%p1270) target = $region40
      $region39: #{_lambda_.4} parent=35 // pred_region
        _
      $region40: #{_lambda_.4} parent=35 // pred_fallthru
        _
    $region36: #{_lambda_.4} parent=5 // pred_fallthru
      _
    %p1273 = scmp.le.s32.totalorder 2, %s10
    // Predicated region
    $region41: #{_lambda_.4} parent=5 // pred_check
      %p1274 = pneg %p1273
    $region42: #{_lambda_.4} parent=5 // pred_check_branch
      %1276 = sbr.rel (%p1274) target = $region44
    $region43: #{_lambda_.4} parent=5 // pred_region
      %s1277 = ssub.s32 %s10, 2
      // Predicated region
      $region45: #{_lambda_.4} parent=43 // pred_check
        %p1278 = pneg %p128
      $region46: #{_lambda_.4} parent=43 // pred_check_branch
        %1280 = sbr.rel (%p1278) target = $region48
      $region47: #{_lambda_.4} parent=43 // pred_region
        %p1281 = scmp.lt.s32.totalorder %s16, 1
        %s1282 = scalar_select %p1281, %s16, 1
        %s1283 = smul.addr %s1282, 8
        %s1284 = smul.addr %s1283, 8
        %s1285 = scalar_lea.vmem %s4, %s1284
      $region48: #{_lambda_.4} parent=43 // pred_fallthru
        _
    $region44: #{_lambda_.4} parent=5 // pred_fallthru
      _
  $region6: #{_lambda_.4} parent=0 // loop_footer
    %s14 = sadd.s32 1, %s10
  $region7: #{_lambda_.4} parent=0 // loop_footer_branch
    %9 = sbr.rel target = $region3
  $region8: #{_lambda_.4} parent=0 // loop_exit
    _

// kernel: _lambda_.5
$region0: #{_lambda_.5}
  #allocation0 [shape = 'u32[]', space=smem, size = 0x4, offset = 0x4, fixed_abs, tag = 'smem constant byte address 0x4 - core index']
  #allocation1 [shape = 'u32[144,128]{1,0:T(1,128)}', space=vmem, size = 0x12000, scoped, tag = 'internal scratch']
  %s0 = inlined_call_operand.vmem [shape: f32[2,64,32], index: 0, kind: input, shape index: {}]
  %s1 = inlined_call_operand.vmem [shape: f32[4,64,64], index: 1, kind: input, shape index: {}]
  %s2 = inlined_call_operand.vmem [shape: f32[9,32,32], index: 2, kind: input, shape index: {}]
  %s3 = inlined_call_operand.vmem [shape: f32[1,32], index: 3, kind: input, shape index: {}]
  %s4 = inlined_call_operand.vmem [shape: f32[2,4,64,32], index: 4, kind: input, shape index: {}]
  %s5 = inlined_call_operand.vmem [shape: f32[2,4,64,32], index: 5, kind: output, shape index: {}]
  %s6 = sld [smem:[#allocation0]]
  $region53: #{_lambda_.5} parent=0
    _
  %s8 = ssub.s32 1, %s6
  %s9 = scalar_select 0, %s8, %s6
  loop: start=0, step=1, limit=4
  $region2: #{_lambda_.5} parent=0 // loop_pre_header
    _
  $region3: #{_lambda_.5} parent=0 // loop_header
    %s11 = sphi 0, %s15
    %p12 = scmp.ge.s32.totalorder %s11, 4
    %s21 = sphi 0, %s23
    %s24 = sphi 0, %s21
    %s25 = sphi 0, %s24
    %s41 = sphi 0, %s25
    %s45 = sphi 0, %s45
    %s47 = sphi 0, %s45
    %s48 = sphi 0, %s47
    %s62 = sphi 0, %s48
    %s66 = sphi 0, %s66
    %s68 = sphi 0, %s66
    %s69 = sphi 0, %s68
    %s83 = sphi 0, %s69
    %s87 = sphi 0, %s87
    %s89 = sphi 0, %s87
    %s90 = sphi 0, %s89
    %s104 = sphi 0, %s90
    %s110 = sphi 0, %s112
    %s113 = sphi 0, %s110
    %s114 = sphi 0, %s113
    %s130 = sphi 0, %s114
    %s136 = sphi 0, %s138
    %s139 = sphi 0, %s136
    %s140 = sphi 0, %s139
    %s156 = sphi 0, %s140
  $region4: #{_lambda_.5} parent=0 // loop_header_branch
    %14 = sbr.rel (%p12) target = $region8
  $region5: #{_lambda_.5} parent=0 // loop_body
    %s16 = ssub.s32 %s11, 1
    %s17 = ssub.s32 %s11, 2
    %s18 = sadd.s32 %s11, 1
    %s19 = ssub.s32 %s11, %s18
    %p20 = scmp.eq.s32.totalorder %s19, 0
    %s22 = sadd.s32 %s21, 1
    %s23 = scalar_select %p20, %s21, %s22
    %p26 = pneg %p20
    %p27 = scmp.eq.s32.totalorder %s11, 1
    %p28 = por %p26, %p27
    %p29 = scmp.ne.s32.totalorder %s21, %s24
    %p30 = scmp.eq.s32.totalorder %s11, 0
    %p31 = por %p29, %p30
    %p32 = scmp.ne.s32.totalorder %s21, %s24
    %p33 = scmp.eq.s32.totalorder %s16, 1
    %p34 = por %p32, %p33
    %p35 = scmp.ne.s32.totalorder %s24, %s25
    %p36 = scmp.eq.s32.totalorder %s16, 0
    %p37 = por %p35, %p36
    %p38 = scmp.ne.s32.totalorder %s24, %s25
    %p39 = scmp.eq.s32.totalorder %s17, 1
    %p40 = por %p38, %p39
    %p42 = scmp.ne.s32.totalorder %s25, %s41
    %p43 = scmp.eq.s32.totalorder %s17, 0
    %p44 = por %p42, %p43
    %s46 = sadd.s32 %s45, 1
    %p49 = scmp.eq.s32.totalorder %s11, 1
    %p50 = scmp.ne.s32.totalorder %s45, %s47
    %p51 = scmp.eq.s32.totalorder %s11, 0
    %p52 = por %p50, %p51
    %p53 = scmp.ne.s32.totalorder %s45, %s47
    %p54 = scmp.eq.s32.totalorder %s16, 1
    %p55 = por %p53, %p54
    %p56 = scmp.ne.s32.totalorder %s47, %s48
    %p57 = scmp.eq.s32.totalorder %s16, 0
    %p58 = por %p56, %p57
    %p59 = scmp.ne.s32.totalorder %s47, %s48
    %p60 = scmp.eq.s32.totalorder %s17, 1
    %p61 = por %p59, %p60
    %p63 = scmp.ne.s32.totalorder %s48, %s62
    %p64 = scmp.eq.s32.totalorder %s17, 0
    %p65 = por %p63, %p64
    %s67 = sadd.s32 %s66, 1
    %p70 = scmp.eq.s32.totalorder %s11, 1
    %p71 = scmp.ne.s32.totalorder %s66, %s68
    %p72 = scmp.eq.s32.totalorder %s11, 0
    %p73 = por %p71, %p72
    %p74 = scmp.ne.s32.totalorder %s66, %s68
    %p75 = scmp.eq.s32.totalorder %s16, 1
    %p76 = por %p74, %p75
    %p77 = scmp.ne.s32.totalorder %s68, %s69
    %p78 = scmp.eq.s32.totalorder %s16, 0
    %p79 = por %p77, %p78
    %p80 = scmp.ne.s32.totalorder %s68, %s69
    %p81 = scmp.eq.s32.totalorder %s17, 1
    %p82 = por %p80, %p81
    %p84 = scmp.ne.s32.totalorder %s69, %s83
    %p85 = scmp.eq.s32.totalorder %s17, 0
    %p86 = por %p84, %p85
    %s88 = sadd.s32 %s87, 1
    %p91 = scmp.eq.s32.totalorder %s11, 1
    %p92 = scmp.ne.s32.totalorder %s87, %s89
    %p93 = scmp.eq.s32.totalorder %s11, 0
    %p94 = por %p92, %p93
    %p95 = scmp.ne.s32.totalorder %s87, %s89
    %p96 = scmp.eq.s32.totalorder %s16, 1
    %p97 = por %p95, %p96
    %p98 = scmp.ne.s32.totalorder %s89, %s90
    %p99 = scmp.eq.s32.totalorder %s16, 0
    %p100 = por %p98, %p99
    %p101 = scmp.ne.s32.totalorder %s89, %s90
    %p102 = scmp.eq.s32.totalorder %s17, 1
    %p103 = por %p101, %p102
    %p105 = scmp.ne.s32.totalorder %s90, %s104
    %p106 = scmp.eq.s32.totalorder %s17, 0
    %p107 = por %p105, %p106
    %s108 = ssub.s32 %s11, %s18
    %p109 = scmp.eq.s32.totalorder %s108, 0
    %s111 = sadd.s32 %s110, 1
    %s112 = scalar_select %p109, %s110, %s111
    %p115 = pneg %p109
    %p116 = scmp.eq.s32.totalorder %s11, 1
    %p117 = por %p115, %p116
    %p118 = scmp.ne.s32.totalorder %s110, %s113
    %p119 = scmp.eq.s32.totalorder %s11, 0
    %p120 = por %p118, %p119
    %p121 = scmp.ne.s32.totalorder %s110, %s113
    %p122 = scmp.eq.s32.totalorder %s16, 1
    %p123 = por %p121, %p122
    %p124 = scmp.ne.s32.totalorder %s113, %s114
    %p125 = scmp.eq.s32.totalorder %s16, 0
    %p126 = por %p124, %p125
    %p127 = scmp.ne.s32.totalorder %s113, %s114
    %p128 = scmp.eq.s32.totalorder %s17, 1
    %p129 = por %p127, %p128
    %p131 = scmp.ne.s32.totalorder %s114, %s130
    %p132 = scmp.eq.s32.totalorder %s17, 0
    %p133 = por %p131, %p132
    %s134 = ssub.s32 %s11, %s18
    %p135 = scmp.eq.s32.totalorder %s134, 0
    %s137 = sadd.s32 %s136, 1
    %s138 = scalar_select %p135, %s136, %s137
    %p141 = pneg %p135
    %p142 = scmp.eq.s32.totalorder %s11, 1
    %p143 = por %p141, %p142
    %p144 = scmp.ne.s32.totalorder %s136, %s139
    %p145 = scmp.eq.s32.totalorder %s11, 0
    %p146 = por %p144, %p145
    %p147 = scmp.ne.s32.totalorder %s136, %s139
    %p148 = scmp.eq.s32.totalorder %s16, 1
    %p149 = por %p147, %p148
    %p150 = scmp.ne.s32.totalorder %s139, %s140
    %p151 = scmp.eq.s32.totalorder %s16, 0
    %p152 = por %p150, %p151
    %p153 = scmp.ne.s32.totalorder %s139, %s140
    %p154 = scmp.eq.s32.totalorder %s17, 1
    %p155 = por %p153, %p154
    %p157 = scmp.ne.s32.totalorder %s140, %s156
    %p158 = scmp.eq.s32.totalorder %s17, 0
    %p159 = por %p157, %p158
    %p160 = scmp.le.s32.totalorder 1, %s11
    %p161 = scmp.lt.s32.totalorder %s11, 3
    %p162 = pnand %p160, %p161
    %p163 = pneg %p162
    // Predicated region
    $region9: #{_lambda_.5} parent=5 // pred_check
      _
    $region10: #{_lambda_.5} parent=5 // pred_check_branch
      %165 = sbr.rel (%p162) target = $region12
    $region11: #{_lambda_.5} parent=5 // pred_region
      %s166 = ssub.s32 %s11, 1
      // Predicated region
      $region13: #{_lambda_.5} parent=11 // pred_check
        %p167 = pneg %p58
      $region14: #{_lambda_.5} parent=11 // pred_check_branch
        %169 = sbr.rel (%p167) target = $region16
      $region15: #{_lambda_.5} parent=11 // pred_region
        _
      $region16: #{_lambda_.5} parent=11 // pred_fallthru
        _
      // Predicated region
      $region17: #{_lambda_.5} parent=11 // pred_check
        %p170 = pneg %p79
      $region18: #{_lambda_.5} parent=11 // pred_check_branch
        %172 = sbr.rel (%p170) target = $region20
      $region19: #{_lambda_.5} parent=11 // pred_region
        _
      $region20: #{_lambda_.5} parent=11 // pred_fallthru
        _
      // Predicated region
      $region21: #{_lambda_.5} parent=11 // pred_check
        %p173 = pneg %p100
      $region22: #{_lambda_.5} parent=11 // pred_check_branch
        %175 = sbr.rel (%p173) target = $region24
      $region23: #{_lambda_.5} parent=11 // pred_region
        _
      $region24: #{_lambda_.5} parent=11 // pred_fallthru
        _
    $region12: #{_lambda_.5} parent=5 // pred_fallthru
      _
    %p176 = scmp.lt.s32.totalorder %s11, 2
    // Predicated region
    $region25: #{_lambda_.5} parent=5 // pred_check
      %p177 = pneg %p176
    $region26: #{_lambda_.5} parent=5 // pred_check_branch
      %179 = sbr.rel (%p177) target = $region28
    $region27: #{_lambda_.5} parent=5 // pred_region
      // Predicated region
      $region29: #{_lambda_.5} parent=27 // pred_check
        %p180 = pneg %p31
      $region30: #{_lambda_.5} parent=27 // pred_check_branch
        %182 = sbr.rel (%p180) target = $region32
      $region31: #{_lambda_.5} parent=27 // pred_region
        %p183 = scmp.lt.s32.totalorder %s11, 1
        %s184 = scalar_select %p183, %s11, 1
        %s185 = smul.addr %s184, 8
        %s186 = smul.addr %s185, 8
        %s187 = scalar_lea.vmem %s0, %s186
      $region32: #{_lambda_.5} parent=27 // pred_fallthru
        _
      // Predicated region
      $region33: #{_lambda_.5} parent=27 // pred_check
        %p188 = pneg %p120
      $region34: #{_lambda_.5} parent=27 // pred_check_branch
        %190 = sbr.rel (%p188) target = $region36
      $region35: #{_lambda_.5} parent=27 // pred_region
        %p191 = scmp.lt.s32.totalorder %s11, 1
        %s192 = scalar_select %p191, %s11, 1
        %s193 = smul.addr %s192, 32
        %s194 = smul.addr %s193, 8
        %s195 = scalar_lea.vmem %s4, %s194
      $region36: #{_lambda_.5} parent=27 // pred_fallthru
        _
    $region28: #{_lambda_.5} parent=5 // pred_fallthru
      _
    %p196 = scmp.le.s32.totalorder 1, %s11
    %p197 = scmp.lt.s32.totalorder %s11, 3
    %p198 = pnand %p196, %p197
    %p199 = pneg %p198
    // Predicated region
    $region37: #{_lambda_.5} parent=5 // pred_check
      _
    $region38: #{_lambda_.5} parent=5 // pred_check_branch
      %201 = sbr.rel (%p198) target = $region40
    $region39: #{_lambda_.5} parent=5 // pred_region
      %s202 = ssub.s32 %s11, 1
      %p203 = scmp.lt.s32.totalorder %s16, 1
      %s204 = scalar_select %p203, %s16, 1
      %s205 = smul.addr %s204, 8
      %s206 = smul.addr %s205, 8
      %s207 = scalar_lea.vmem %s0, %s206
      %p208 = pneg %p37
      %p209 = pneg %p34
      %p210 = pneg %p58
      %p211 = pneg %p55
      %p212 = pneg %p79
      %p213 = pneg %p76
      %p214 = pneg %p100
      %p215 = pneg %p97
      %p216 = scmp.lt.s32.totalorder %s16, 1
      %s217 = scalar_select %p216, %s16, 1
      %s218 = smul.addr %s217, 32
      %s219 = smul.addr %s218, 8
      %s220 = scalar_lea.vmem %s4, %s219
      %p221 = pneg %p126
      %p222 = pneg %p123
      %p223 = pneg %p152
      %p224 = pneg %p149
      %p225 = scmp.lt.s32.totalorder %s16, 1
      %s226 = scalar_select %p225, %s16, 1
      %s227 = smul.addr %s226, 32
      %s228 = smul.addr %s227, 8
      %s229 = scalar_lea.vmem %s5, %s228
      %p230 = scmp.lt.s32.totalorder %s16, 1
      %s231 = scalar_select %p230, %s16, 1
      %s232 = smul.addr %s231, 8
      %s233 = smul.addr %s232, 8
      %s234 = scalar_lea.vmem %s0, %s233
      %p235 = scmp.lt.s32.totalorder %s16, 1
      %s236 = scalar_select %p235, %s16, 1
      %s237 = smul.addr %s236, 32
      %s238 = smul.addr %s237, 8
      %s239 = scalar_lea.vmem %s4, %s238
      %p240 = scmp.lt.s32.totalorder %s16, 1
      %s241 = scalar_select %p240, %s16, 1
      %s242 = smul.addr %s241, 32
      %s243 = smul.addr %s242, 8
      %s244 = scalar_lea.vmem %s5, %s243
      %v245 = vld [vmem:[%s234] sm:$0xff]
      %v246 = vld [vmem:[%s234 + $0x8] sm:$0xff]
      %v247 = vld [vmem:[%s234 + $0x10] sm:$0xff]
      %v248 = vld [vmem:[%s234 + $0x18] sm:$0xff]
      %v249 = vld [vmem:[%s234 + $0x20] sm:$0xff]
      %v250 = vld [vmem:[%s234 + $0x28] sm:$0xff]
      %v251 = vld [vmem:[%s234 + $0x30] sm:$0xff]
      %v252 = vld [vmem:[%s234 + $0x38] sm:$0xff]
      %v253 = vld [vmem:[%s3] sm:$0x1]
      %s254 = scalar_lea.vmem %s1, 64
      %v255 = vld [vmem:[%s254] sm:$0xff]
      %v256 = vld [vmem:[%s254 + $0x8] sm:$0xff]
      %v257 = vld [vmem:[%s254 + $0x10] sm:$0xff]
      %v258 = vld [vmem:[%s254 + $0x18] sm:$0xff]
      %v259 = vld [vmem:[%s254 + $0x20] sm:$0xff]
      %v260 = vld [vmem:[%s254 + $0x28] sm:$0xff]
      %v261 = vld [vmem:[%s254 + $0x30] sm:$0xff]
      %v262 = vld [vmem:[%s254 + $0x38] sm:$0xff]
      %vm263 = vcmask 523264
      %v265 = vsel %vm263, %v255, 0
      %v268 = vsel %vm263, %v256, 0
      %v271 = vsel %vm263, %v257, 0
      %v274 = vsel %vm263, %v258, 0
      %v277 = vsel %vm263, %v259, 0
      %v280 = vsel %vm263, %v260, 0
      %v283 = vsel %vm263, %v261, 0
      %v286 = vsel %vm263, %v262, 0
      %288 = vmatprep.subr.mxu0 0.0
      %289 = vmatpush1.msra.mxu0 0.0
      %290 = vmatprep.subr.mxu0 0.0
      %291 = vmatpush1.msra.mxu0 0.0
      %292 = vmatprep.subr.mxu0 0.0
      %293 = vmatpush1.msra.mxu0 0.0
      %294 = vmatprep.subr.mxu0 0.0
      %295 = vmatpush1.msra.mxu0 0.0
      %296 = vmatprep.subr.mxu0 0.0
      %297 = vmatpush1.msra.mxu0 0.0
      %298 = vmatprep.subr.mxu0 0.0
      %299 = vmatpush1.msra.mxu0 0.0
      %300 = vmatprep.subr.mxu0 0.0
      %301 = vmatpush1.msra.mxu0 0.0
      %302 = vmatprep.subr.mxu0 0.0
      %303 = vmatpush1.msra.mxu0 0.0
      %304 = vmatprep.subr.mxu0 0.0
      %305 = vmatpush1.msra.mxu0 %v252
      %306 = vmatprep.subr.mxu0 0.0
      %307 = vmatpush1.msra.mxu0 %v251
      %308 = vmatprep.subr.mxu0 0.0
      %309 = vmatpush1.msra.mxu0 %v250
      %310 = vmatprep.subr.mxu0 0.0
      %311 = vmatpush1.msra.mxu0 %v249
      %312 = vmatprep.subr.mxu0 0.0
      %313 = vmatpush1.msra.mxu0 %v248
      %314 = vmatprep.subr.mxu0 0.0
      %315 = vmatpush1.msra.mxu0 %v247
      %316 = vmatprep.subr.mxu0 0.0
      %317 = vmatpush1.msra.mxu0 %v246
      %318 = vmatprep.subr.mxu0 0.0
      %319 = vmatpush1.msra.mxu0 %v245
      %320 = vmatprep.subr.mxu0 0.0
      %321 = vmatpush2.msra.mxu0 0.0
      %322 = vmatprep.subr.mxu0 0.0
      %323 = vmatpush2.msra.mxu0 0.0
      %324 = vmatprep.subr.mxu0 0.0
      %325 = vmatpush2.msra.mxu0 0.0
      %326 = vmatprep.subr.mxu0 0.0
      %327 = vmatpush2.msra.mxu0 0.0
      %328 = vmatprep.subr.mxu0 0.0
      %329 = vmatpush2.msra.mxu0 0.0
      %330 = vmatprep.subr.mxu0 0.0
      %331 = vmatpush2.msra.mxu0 0.0
      %332 = vmatprep.subr.mxu0 0.0
      %333 = vmatpush2.msra.mxu0 0.0
      %334 = vmatprep.subr.mxu0 0.0
      %335 = vmatpush2.msra.mxu0 0.0
      %336 = vmatprep.subr.mxu0 0.0
      %337 = vmatpush2.msra.mxu0 0.0
      %338 = vmatprep.subr.mxu0 0.0
      %339 = vmatpush2.msra.mxu0 0.0
      %340 = vmatprep.subr.mxu0 0.0
      %341 = vmatpush2.msra.mxu0 0.0
      %342 = vmatprep.subr.mxu0 0.0
      %343 = vmatpush2.msra.mxu0 0.0
      %344 = vmatprep.subr.mxu0 0.0
      %345 = vmatpush2.msra.mxu0 0.0
      %346 = vmatprep.subr.mxu0 0.0
      %347 = vmatpush2.msra.mxu0 0.0
      %348 = vmatprep.subr.mxu0 0.0
      %349 = vmatpush2.msra.mxu0 0.0
      %350 = vmatprep.subr.mxu0 0.0
      %351 = vmatpush2.msra.mxu0 0.0
      %352 = vmatprep.mubr.f32.mxu0 0.0
      %353 = vmatmul.mubr.f32.gmra.mxu0 %v265
      %v354 = vpop.f32.mrf.mxu0
      %v355 = vadd.f32 0.0, %v354
      %v356 = vpop.f32.mrf.mxu0
      %357 = vmatprep.mubr.f32.mxu0 0.0
      %358 = vmatmul.mubr.f32.gmra.mxu0 %v268
      %v359 = vpop.f32.mrf.mxu0
      %v360 = vadd.f32 0.0, %v359
      %v361 = vpop.f32.mrf.mxu0
      %362 = vmatprep.mubr.f32.mxu0 0.0
      %363 = vmatmul.mubr.f32.gmra.mxu0 %v271
      %v364 = vpop.f32.mrf.mxu0
      %v365 = vadd.f32 0.0, %v364
      %v366 = vpop.f32.mrf.mxu0
      %367 = vmatprep.mubr.f32.mxu0 0.0
      %368 = vmatmul.mubr.f32.gmra.mxu0 %v274
      %v369 = vpop.f32.mrf.mxu0
      %v370 = vadd.f32 0.0, %v369
      %v371 = vpop.f32.mrf.mxu0
      %372 = vmatprep.mubr.f32.mxu0 0.0
      %373 = vmatmul.mubr.f32.gmra.mxu0 %v277
      %v374 = vpop.f32.mrf.mxu0
      %v375 = vadd.f32 0.0, %v374
      %v376 = vpop.f32.mrf.mxu0
      %377 = vmatprep.mubr.f32.mxu0 0.0
      %378 = vmatmul.mubr.f32.gmra.mxu0 %v280
      %v379 = vpop.f32.mrf.mxu0
      %v380 = vadd.f32 0.0, %v379
      %v381 = vpop.f32.mrf.mxu0
      %382 = vmatprep.mubr.f32.mxu0 0.0
      %383 = vmatmul.mubr.f32.gmra.mxu0 %v283
      %v384 = vpop.f32.mrf.mxu0
      %v385 = vadd.f32 0.0, %v384
      %v386 = vpop.f32.mrf.mxu0
      %387 = vmatprep.mubr.f32.mxu0 0.0
      %388 = vmatmul.mubr.f32.gmra.mxu0 %v286
      %v389 = vpop.f32.mrf.mxu0
      %v390 = vadd.f32 0.0, %v389
      %v391 = vpop.f32.mrf.mxu0
      %392 = vdwg.mxu0
      %s393 = scalar_lea.vmem %s1, 128
      %v394 = vld [vmem:[%s393] sm:$0xff]
      %v395 = vld [vmem:[%s393 + $0x8] sm:$0xff]
      %v396 = vld [vmem:[%s393 + $0x10] sm:$0xff]
      %v397 = vld [vmem:[%s393 + $0x18] sm:$0xff]
      %v398 = vld [vmem:[%s393 + $0x20] sm:$0xff]
      %v399 = vld [vmem:[%s393 + $0x28] sm:$0xff]
      %v400 = vld [vmem:[%s393 + $0x30] sm:$0xff]
      %v401 = vld [vmem:[%s393 + $0x38] sm:$0xff]
      %v403 = vsel %vm263, %v394, 0
      %v406 = vsel %vm263, %v395, 0
      %v409 = vsel %vm263, %v396, 0
      %v412 = vsel %vm263, %v397, 0
      %v415 = vsel %vm263, %v398, 0
      %v418 = vsel %vm263, %v399, 0
      %v421 = vsel %vm263, %v400, 0
      %v424 = vsel %vm263, %v401, 0
      %426 = vmatprep.subr.mxu0 0.0
      %427 = vmatpush1.msra.mxu0 0.0
      %428 = vmatprep.subr.mxu0 0.0
      %429 = vmatpush1.msra.mxu0 0.0
      %430 = vmatprep.subr.mxu0 0.0
      %431 = vmatpush1.msra.mxu0 0.0
      %432 = vmatprep.subr.mxu0 0.0
      %433 = vmatpush1.msra.mxu0 0.0
      %434 = vmatprep.subr.mxu0 0.0
      %435 = vmatpush1.msra.mxu0 0.0
      %436 = vmatprep.subr.mxu0 0.0
      %437 = vmatpush1.msra.mxu0 0.0
      %438 = vmatprep.subr.mxu0 0.0
      %439 = vmatpush1.msra.mxu0 0.0
      %440 = vmatprep.subr.mxu0 0.0
      %441 = vmatpush1.msra.mxu0 0.0
      %442 = vmatprep.subr.mxu0 0.0
      %443 = vmatpush1.msra.mxu0 %v252
      %444 = vmatprep.subr.mxu0 0.0
      %445 = vmatpush1.msra.mxu0 %v251
      %446 = vmatprep.subr.mxu0 0.0
      %447 = vmatpush1.msra.mxu0 %v250
      %448 = vmatprep.subr.mxu0 0.0
      %449 = vmatpush1.msra.mxu0 %v249
      %450 = vmatprep.subr.mxu0 0.0
      %451 = vmatpush1.msra.mxu0 %v248
      %452 = vmatprep.subr.mxu0 0.0
      %453 = vmatpush1.msra.mxu0 %v247
      %454 = vmatprep.subr.mxu0 0.0
      %455 = vmatpush1.msra.mxu0 %v246
      %456 = vmatprep.subr.mxu0 0.0
      %457 = vmatpush1.msra.mxu0 %v245
      %458 = vmatprep.subr.mxu0 0.0
      %459 = vmatpush2.msra.mxu0 0.0
      %460 = vmatprep.subr.mxu0 0.0
      %461 = vmatpush2.msra.mxu0 0.0
      %462 = vmatprep.subr.mxu0 0.0
      %463 = vmatpush2.msra.mxu0 0.0
      %464 = vmatprep.subr.mxu0 0.0
      %465 = vmatpush2.msra.mxu0 0.0
      %466 = vmatprep.subr.mxu0 0.0
      %467 = vmatpush2.msra.mxu0 0.0
      %468 = vmatprep.subr.mxu0 0.0
      %469 = vmatpush2.msra.mxu0 0.0
      %470 = vmatprep.subr.mxu0 0.0
      %471 = vmatpush2.msra.mxu0 0.0
      %472 = vmatprep.subr.mxu0 0.0
      %473 = vmatpush2.msra.mxu0 0.0
      %474 = vmatprep.subr.mxu0 0.0
      %475 = vmatpush2.msra.mxu0 0.0
      %476 = vmatprep.subr.mxu0 0.0
      %477 = vmatpush2.msra.mxu0 0.0
      %478 = vmatprep.subr.mxu0 0.0
      %479 = vmatpush2.msra.mxu0 0.0
      %480 = vmatprep.subr.mxu0 0.0
      %481 = vmatpush2.msra.mxu0 0.0
      %482 = vmatprep.subr.mxu0 0.0
      %483 = vmatpush2.msra.mxu0 0.0
      %484 = vmatprep.subr.mxu0 0.0
      %485 = vmatpush2.msra.mxu0 0.0
      %486 = vmatprep.subr.mxu0 0.0
      %487 = vmatpush2.msra.mxu0 0.0
      %488 = vmatprep.subr.mxu0 0.0
      %489 = vmatpush2.msra.mxu0 0.0
      %490 = vmatprep.mubr.f32.mxu0 0.0
      %491 = vmatmul.mubr.f32.gmra.mxu0 %v403
      %v492 = vpop.f32.mrf.mxu0
      %v493 = vadd.f32 0.0, %v492
      %v494 = vpop.f32.mrf.mxu0
      %495 = vmatprep.mubr.f32.mxu0 0.0
      %496 = vmatmul.mubr.f32.gmra.mxu0 %v406
      %v497 = vpop.f32.mrf.mxu0
      %v498 = vadd.f32 0.0, %v497
      %v499 = vpop.f32.mrf.mxu0
      %500 = vmatprep.mubr.f32.mxu0 0.0
      %501 = vmatmul.mubr.f32.gmra.mxu0 %v409
      %v502 = vpop.f32.mrf.mxu0
      %v503 = vadd.f32 0.0, %v502
      %v504 = vpop.f32.mrf.mxu0
      %505 = vmatprep.mubr.f32.mxu0 0.0
      %506 = vmatmul.mubr.f32.gmra.mxu0 %v412
      %v507 = vpop.f32.mrf.mxu0
      %v508 = vadd.f32 0.0, %v507
      %v509 = vpop.f32.mrf.mxu0
      %510 = vmatprep.mubr.f32.mxu0 0.0
      %511 = vmatmul.mubr.f32.gmra.mxu0 %v415
      %v512 = vpop.f32.mrf.mxu0
      %v513 = vadd.f32 0.0, %v512
      %v514 = vpop.f32.mrf.mxu0
      %515 = vmatprep.mubr.f32.mxu0 0.0
      %516 = vmatmul.mubr.f32.gmra.mxu0 %v418
      %v517 = vpop.f32.mrf.mxu0
      %v518 = vadd.f32 0.0, %v517
      %v519 = vpop.f32.mrf.mxu0
      %520 = vmatprep.mubr.f32.mxu0 0.0
      %521 = vmatmul.mubr.f32.gmra.mxu0 %v421
      %v522 = vpop.f32.mrf.mxu0
      %v523 = vadd.f32 0.0, %v522
      %v524 = vpop.f32.mrf.mxu0
      %525 = vmatprep.mubr.f32.mxu0 0.0
      %526 = vmatmul.mubr.f32.gmra.mxu0 %v424
      %v527 = vpop.f32.mrf.mxu0
      %v528 = vadd.f32 0.0, %v527
      %v529 = vpop.f32.mrf.mxu0
      %530 = vdwg.mxu0
      %s531 = scalar_lea.vmem %s1, 192
      %v532 = vld [vmem:[%s531] sm:$0xff]
      %v533 = vld [vmem:[%s531 + $0x8] sm:$0xff]
      %v534 = vld [vmem:[%s531 + $0x10] sm:$0xff]
      %v535 = vld [vmem:[%s531 + $0x18] sm:$0xff]
      %v536 = vld [vmem:[%s531 + $0x20] sm:$0xff]
      %v537 = vld [vmem:[%s531 + $0x28] sm:$0xff]
      %v538 = vld [vmem:[%s531 + $0x30] sm:$0xff]
      %v539 = vld [vmem:[%s531 + $0x38] sm:$0xff]
      %v541 = vsel %vm263, %v532, 0
      %v544 = vsel %vm263, %v533, 0
      %v547 = vsel %vm263, %v534, 0
      %v550 = vsel %vm263, %v535, 0
      %v553 = vsel %vm263, %v536, 0
      %v556 = vsel %vm263, %v537, 0
      %v559 = vsel %vm263, %v538, 0
      %v562 = vsel %vm263, %v539, 0
      %564 = vmatprep.subr.mxu0 0.0
      %565 = vmatpush1.msra.mxu0 0.0
      %566 = vmatprep.subr.mxu0 0.0
      %567 = vmatpush1.msra.mxu0 0.0
      %568 = vmatprep.subr.mxu0 0.0
      %569 = vmatpush1.msra.mxu0 0.0
      %570 = vmatprep.subr.mxu0 0.0
      %571 = vmatpush1.msra.mxu0 0.0
      %572 = vmatprep.subr.mxu0 0.0
      %573 = vmatpush1.msra.mxu0 0.0
      %574 = vmatprep.subr.mxu0 0.0
      %575 = vmatpush1.msra.mxu0 0.0
      %576 = vmatprep.subr.mxu0 0.0
      %577 = vmatpush1.msra.mxu0 0.0
      %578 = vmatprep.subr.mxu0 0.0
      %579 = vmatpush1.msra.mxu0 0.0
      %580 = vmatprep.subr.mxu0 0.0
      %581 = vmatpush1.msra.mxu0 %v252
      %582 = vmatprep.subr.mxu0 0.0
      %583 = vmatpush1.msra.mxu0 %v251
      %584 = vmatprep.subr.mxu0 0.0
      %585 = vmatpush1.msra.mxu0 %v250
      %586 = vmatprep.subr.mxu0 0.0
      %587 = vmatpush1.msra.mxu0 %v249
      %588 = vmatprep.subr.mxu0 0.0
      %589 = vmatpush1.msra.mxu0 %v248
      %590 = vmatprep.subr.mxu0 0.0
      %591 = vmatpush1.msra.mxu0 %v247
      %592 = vmatprep.subr.mxu0 0.0
      %593 = vmatpush1.msra.mxu0 %v246
      %594 = vmatprep.subr.mxu0 0.0
      %595 = vmatpush1.msra.mxu0 %v245
      %596 = vmatprep.subr.mxu0 0.0
      %597 = vmatpush2.msra.mxu0 0.0
      %598 = vmatprep.subr.mxu0 0.0
      %599 = vmatpush2.msra.mxu0 0.0
      %600 = vmatprep.subr.mxu0 0.0
      %601 = vmatpush2.msra.mxu0 0.0
      %602 = vmatprep.subr.mxu0 0.0
      %603 = vmatpush2.msra.mxu0 0.0
      %604 = vmatprep.subr.mxu0 0.0
      %605 = vmatpush2.msra.mxu0 0.0
      %606 = vmatprep.subr.mxu0 0.0
      %607 = vmatpush2.msra.mxu0 0.0
      %608 = vmatprep.subr.mxu0 0.0
      %609 = vmatpush2.msra.mxu0 0.0
      %610 = vmatprep.subr.mxu0 0.0
      %611 = vmatpush2.msra.mxu0 0.0
      %612 = vmatprep.subr.mxu0 0.0
      %613 = vmatpush2.msra.mxu0 0.0
      %614 = vmatprep.subr.mxu0 0.0
      %615 = vmatpush2.msra.mxu0 0.0
      %616 = vmatprep.subr.mxu0 0.0
      %617 = vmatpush2.msra.mxu0 0.0
      %618 = vmatprep.subr.mxu0 0.0
      %619 = vmatpush2.msra.mxu0 0.0
      %620 = vmatprep.subr.mxu0 0.0
      %621 = vmatpush2.msra.mxu0 0.0
      %622 = vmatprep.subr.mxu0 0.0
      %623 = vmatpush2.msra.mxu0 0.0
      %624 = vmatprep.subr.mxu0 0.0
      %625 = vmatpush2.msra.mxu0 0.0
      %626 = vmatprep.subr.mxu0 0.0
      %627 = vmatpush2.msra.mxu0 0.0
      %628 = vmatprep.mubr.f32.mxu0 0.0
      %629 = vmatmul.mubr.f32.gmra.mxu0 %v541
      %v630 = vpop.f32.mrf.mxu0
      %v631 = vadd.f32 0.0, %v630
      %v632 = vpop.f32.mrf.mxu0
      %633 = vmatprep.mubr.f32.mxu0 0.0
      %634 = vmatmul.mubr.f32.gmra.mxu0 %v544
      %v635 = vpop.f32.mrf.mxu0
      %v636 = vadd.f32 0.0, %v635
      %v637 = vpop.f32.mrf.mxu0
      %638 = vmatprep.mubr.f32.mxu0 0.0
      %639 = vmatmul.mubr.f32.gmra.mxu0 %v547
      %v640 = vpop.f32.mrf.mxu0
      %v641 = vadd.f32 0.0, %v640
      %v642 = vpop.f32.mrf.mxu0
      %643 = vmatprep.mubr.f32.mxu0 0.0
      %644 = vmatmul.mubr.f32.gmra.mxu0 %v550
      %v645 = vpop.f32.mrf.mxu0
      %v646 = vadd.f32 0.0, %v645
      %v647 = vpop.f32.mrf.mxu0
      %648 = vmatprep.mubr.f32.mxu0 0.0
      %649 = vmatmul.mubr.f32.gmra.mxu0 %v553
      %v650 = vpop.f32.mrf.mxu0
      %v651 = vadd.f32 0.0, %v650
      %v652 = vpop.f32.mrf.mxu0
      %653 = vmatprep.mubr.f32.mxu0 0.0
      %654 = vmatmul.mubr.f32.gmra.mxu0 %v556
      %v655 = vpop.f32.mrf.mxu0
      %v656 = vadd.f32 0.0, %v655
      %v657 = vpop.f32.mrf.mxu0
      %658 = vmatprep.mubr.f32.mxu0 0.0
      %659 = vmatmul.mubr.f32.gmra.mxu0 %v559
      %v660 = vpop.f32.mrf.mxu0
      %v661 = vadd.f32 0.0, %v660
      %v662 = vpop.f32.mrf.mxu0
      %663 = vmatprep.mubr.f32.mxu0 0.0
      %664 = vmatmul.mubr.f32.gmra.mxu0 %v562
      %v665 = vpop.f32.mrf.mxu0
      %v666 = vadd.f32 0.0, %v665
      %v667 = vpop.f32.mrf.mxu0
      %668 = vdwg.mxu0
      %s669 = scalar_lea.vmem %s2, 128
      %v670 = vld [vmem:[%s669] sm:$0xff]
      %v671 = vld [vmem:[%s669 + $0x8] sm:$0xff]
      %v672 = vld [vmem:[%s669 + $0x10] sm:$0xff]
      %v673 = vld [vmem:[%s669 + $0x18] sm:$0xff]
      %v675 = vlaneseq
      %v676 = vshrl.u32 %v675, 7
      %v677 = vsub.s32 0, %v676
      %v678 = vrot.slane %v253, %v677
      %vm680 = vcmask 261120
      %v682 = vsel %vm680, %v245, 0
      %v685 = vsel %vm680, %v246, 0
      %v688 = vsel %vm680, %v247, 0
      %v691 = vsel %vm680, %v248, 0
      %v694 = vsel %vm680, %v249, 0
      %v697 = vsel %vm680, %v250, 0
      %v700 = vsel %vm680, %v251, 0
      %v703 = vsel %vm680, %v252, 0
      %705 = vmatprep.subr.mxu0 0.0
      %706 = vmatpush1.msra.mxu0 0.0
      %707 = vmatprep.subr.mxu0 0.0
      %708 = vmatpush1.msra.mxu0 0.0
      %709 = vmatprep.subr.mxu0 0.0
      %710 = vmatpush1.msra.mxu0 0.0
      %711 = vmatprep.subr.mxu0 0.0
      %712 = vmatpush1.msra.mxu0 0.0
      %713 = vmatprep.subr.mxu0 0.0
      %714 = vmatpush1.msra.mxu0 0.0
      %715 = vmatprep.subr.mxu0 0.0
      %716 = vmatpush1.msra.mxu0 0.0
      %717 = vmatprep.subr.mxu0 0.0
      %718 = vmatpush1.msra.mxu0 0.0
      %719 = vmatprep.subr.mxu0 0.0
      %720 = vmatpush1.msra.mxu0 0.0
      %721 = vmatprep.subr.mxu0 0.0
      %722 = vmatpush1.msra.mxu0 0.0
      %723 = vmatprep.subr.mxu0 0.0
      %724 = vmatpush1.msra.mxu0 0.0
      %725 = vmatprep.subr.mxu0 0.0
      %726 = vmatpush1.msra.mxu0 0.0
      %727 = vmatprep.subr.mxu0 0.0
      %728 = vmatpush1.msra.mxu0 0.0
      %729 = vmatprep.subr.mxu0 0.0
      %730 = vmatpush1.msra.mxu0 %v673
      %731 = vmatprep.subr.mxu0 0.0
      %732 = vmatpush1.msra.mxu0 %v672
      %733 = vmatprep.subr.mxu0 0.0
      %734 = vmatpush1.msra.mxu0 %v671
      %735 = vmatprep.subr.mxu0 0.0
      %736 = vmatpush1.msra.mxu0 %v670
      %737 = vmatprep.subr.mxu0 0.0
      %738 = vmatpush2.msra.mxu0 0.0
      %739 = vmatprep.subr.mxu0 0.0
      %740 = vmatpush2.msra.mxu0 0.0
      %741 = vmatprep.subr.mxu0 0.0
      %742 = vmatpush2.msra.mxu0 0.0
      %743 = vmatprep.subr.mxu0 0.0
      %744 = vmatpush2.msra.mxu0 0.0
      %745 = vmatprep.subr.mxu0 0.0
      %746 = vmatpush2.msra.mxu0 0.0
      %747 = vmatprep.subr.mxu0 0.0
      %748 = vmatpush2.msra.mxu0 0.0
      %749 = vmatprep.subr.mxu0 0.0
      %750 = vmatpush2.msra.mxu0 0.0
      %751 = vmatprep.subr.mxu0 0.0
      %752 = vmatpush2.msra.mxu0 0.0
      %753 = vmatprep.subr.mxu0 0.0
      %754 = vmatpush2.msra.mxu0 0.0
      %755 = vmatprep.subr.mxu0 0.0
      %756 = vmatpush2.msra.mxu0 0.0
      %757 = vmatprep.subr.mxu0 0.0
      %758 = vmatpush2.msra.mxu0 0.0
      %759 = vmatprep.subr.mxu0 0.0
      %760 = vmatpush2.msra.mxu0 0.0
      %761 = vmatprep.subr.mxu0 0.0
      %762 = vmatpush2.msra.mxu0 0.0
      %763 = vmatprep.subr.mxu0 0.0
      %764 = vmatpush2.msra.mxu0 0.0
      %765 = vmatprep.subr.mxu0 0.0
      %766 = vmatpush2.msra.mxu0 0.0
      %767 = vmatprep.subr.mxu0 0.0
      %768 = vmatpush2.msra.mxu0 0.0
      %769 = vmatprep.mubr.f32.mxu0 0.0
      %770 = vmatmul.mubr.f32.gmra.mxu0 %v682
      %v771 = vpop.f32.mrf.mxu0
      %v772 = vadd.f32 %v678, %v771
      %v773 = vpop.f32.mrf.mxu0
      %774 = vmatprep.mubr.f32.mxu0 0.0
      %775 = vmatmul.mubr.f32.gmra.mxu0 %v685
      %v776 = vpop.f32.mrf.mxu0
      %v777 = vadd.f32 %v678, %v776
      %v778 = vpop.f32.mrf.mxu0
      %779 = vmatprep.mubr.f32.mxu0 0.0
      %780 = vmatmul.mubr.f32.gmra.mxu0 %v688
      %v781 = vpop.f32.mrf.mxu0
      %v782 = vadd.f32 %v678, %v781
      %v783 = vpop.f32.mrf.mxu0
      %784 = vmatprep.mubr.f32.mxu0 0.0
      %785 = vmatmul.mubr.f32.gmra.mxu0 %v691
      %v786 = vpop.f32.mrf.mxu0
      %v787 = vadd.f32 %v678, %v786
      %v788 = vpop.f32.mrf.mxu0
      %789 = vmatprep.mubr.f32.mxu0 0.0
      %790 = vmatmul.mubr.f32.gmra.mxu0 %v694
      %v791 = vpop.f32.mrf.mxu0
      %v792 = vadd.f32 %v678, %v791
      %v793 = vpop.f32.mrf.mxu0
      %794 = vmatprep.mubr.f32.mxu0 0.0
      %795 = vmatmul.mubr.f32.gmra.mxu0 %v697
      %v796 = vpop.f32.mrf.mxu0
      %v797 = vadd.f32 %v678, %v796
      %v798 = vpop.f32.mrf.mxu0
      %799 = vmatprep.mubr.f32.mxu0 0.0
      %800 = vmatmul.mubr.f32.gmra.mxu0 %v700
      %v801 = vpop.f32.mrf.mxu0
      %v802 = vadd.f32 %v678, %v801
      %v803 = vpop.f32.mrf.mxu0
      %804 = vmatprep.mubr.f32.mxu0 0.0
      %805 = vmatmul.mubr.f32.gmra.mxu0 %v703
      %v806 = vpop.f32.mrf.mxu0
      %v807 = vadd.f32 %v678, %v806
      %v808 = vpop.f32.mrf.mxu0
      %809 = vdwg.mxu0
      %v810 = vmul.f32 %v772, 0.5
      %v811 = vmul.f32 %v777, 0.5
      %v812 = vmul.f32 %v782, 0.5
      %v813 = vmul.f32 %v787, 0.5
      %v814 = vmul.f32 %v792, 0.5
      %v815 = vmul.f32 %v797, 0.5
      %v816 = vmul.f32 %v802, 0.5
      %v817 = vmul.f32 %v807, 0.5
      %v818 = vmul.f32 %v772, 0.70710677
      %v819 = vmul.f32 %v777, 0.70710677
      %v820 = vmul.f32 %v782, 0.70710677
      %v821 = vmul.f32 %v787, 0.70710677
      %v822 = vmul.f32 %v792, 0.70710677
      %v823 = vmul.f32 %v797, 0.70710677
      %v824 = vmul.f32 %v802, 0.70710677
      %v825 = vmul.f32 %v807, 0.70710677
      %v826 = verf.f32.pop %v818
      %v827 = verf.f32.pop %v819
      %v828 = verf.f32.pop %v820
      %v829 = verf.f32.pop %v821
      %v830 = verf.f32.pop %v822
      %v831 = verf.f32.pop %v823
      %v832 = verf.f32.pop %v824
      %v833 = verf.f32.pop %v825
      %v834 = vadd.f32 %v826, 1.0
      %v835 = vadd.f32 %v827, 1.0
      %v836 = vadd.f32 %v828, 1.0
      %v837 = vadd.f32 %v829, 1.0
      %v838 = vadd.f32 %v830, 1.0
      %v839 = vadd.f32 %v831, 1.0
      %v840 = vadd.f32 %v832, 1.0
      %v841 = vadd.f32 %v833, 1.0
      %v842 = vmul.f32 %v810, %v834
      %v843 = vmul.f32 %v811, %v835
      %v844 = vmul.f32 %v812, %v836
      %v845 = vmul.f32 %v813, %v837
      %v846 = vmul.f32 %v814, %v838
      %v847 = vmul.f32 %v815, %v839
      %v848 = vmul.f32 %v816, %v840
      %v849 = vmul.f32 %v817, %v841
      %v850 = vld [vmem:[%s239] sm:$0xff]
      %v851 = vld [vmem:[%s239 + $0x8] sm:$0xff]
      %v852 = vld [vmem:[%s239 + $0x10] sm:$0xff]
      %v853 = vld [vmem:[%s239 + $0x18] sm:$0xff]
      %v854 = vld [vmem:[%s239 + $0x20] sm:$0xff]
      %v855 = vld [vmem:[%s239 + $0x28] sm:$0xff]
      %v856 = vld [vmem:[%s239 + $0x30] sm:$0xff]
      %v857 = vld [vmem:[%s239 + $0x38] sm:$0xff]
      %v858 = vadd.f32 %v842, %v850
      %v859 = vadd.f32 %v843, %v851
      %v860 = vadd.f32 %v844, %v852
      %v861 = vadd.f32 %v845, %v853
      %v862 = vadd.f32 %v846, %v854
      %v863 = vadd.f32 %v847, %v855
      %v864 = vadd.f32 %v848, %v856
      %v865 = vadd.f32 %v849, %v857
      %866 = vst.msk [vmem:[%s244] sm:$0xff] %vm680, %v858
      %867 = vst.msk [vmem:[%s244 + $0x8] sm:$0xff] %vm680, %v859
      %868 = vst.msk [vmem:[%s244 + $0x10] sm:$0xff] %vm680, %v860
      %869 = vst.msk [vmem:[%s244 + $0x18] sm:$0xff] %vm680, %v861
      %870 = vst.msk [vmem:[%s244 + $0x20] sm:$0xff] %vm680, %v862
      %871 = vst.msk [vmem:[%s244 + $0x28] sm:$0xff] %vm680, %v863
      %872 = vst.msk [vmem:[%s244 + $0x30] sm:$0xff] %vm680, %v864
      %873 = vst.msk [vmem:[%s244 + $0x38] sm:$0xff] %vm680, %v865
      %s874 = scalar_lea.vmem %s2, 160
      %v875 = vld [vmem:[%s874] sm:$0xff]
      %v876 = vld [vmem:[%s874 + $0x8] sm:$0xff]
      %v877 = vld [vmem:[%s874 + $0x10] sm:$0xff]
      %v878 = vld [vmem:[%s874 + $0x18] sm:$0xff]
      %s879 = scalar_lea.vmem %s2, 96
      %v880 = vld [vmem:[%s879] sm:$0xff]
      %v881 = vld [vmem:[%s879 + $0x8] sm:$0xff]
      %v882 = vld [vmem:[%s879 + $0x10] sm:$0xff]
      %v883 = vld [vmem:[%s879 + $0x18] sm:$0xff]
      %v885 = vsel %vm680, %v355, 0
      %v888 = vsel %vm680, %v360, 0
      %v891 = vsel %vm680, %v365, 0
      %v894 = vsel %vm680, %v370, 0
      %v897 = vsel %vm680, %v375, 0
      %v900 = vsel %vm680, %v380, 0
      %v903 = vsel %vm680, %v385, 0
      %v906 = vsel %vm680, %v390, 0
      %908 = vmatprep.subr.mxu0 0.0
      %909 = vmatpush1.msra.mxu0 0.0
      %910 = vmatprep.subr.mxu0 0.0
      %911 = vmatpush1.msra.mxu0 0.0
      %912 = vmatprep.subr.mxu0 0.0
      %913 = vmatpush1.msra.mxu0 0.0
      %914 = vmatprep.subr.mxu0 0.0
      %915 = vmatpush1.msra.mxu0 0.0
      %916 = vmatprep.subr.mxu0 0.0
      %917 = vmatpush1.msra.mxu0 0.0
      %918 = vmatprep.subr.mxu0 0.0
      %919 = vmatpush1.msra.mxu0 0.0
      %920 = vmatprep.subr.mxu0 0.0
      %921 = vmatpush1.msra.mxu0 0.0
      %922 = vmatprep.subr.mxu0 0.0
      %923 = vmatpush1.msra.mxu0 0.0
      %924 = vmatprep.subr.mxu0 0.0
      %925 = vmatpush1.msra.mxu0 0.0
      %926 = vmatprep.subr.mxu0 0.0
      %927 = vmatpush1.msra.mxu0 0.0
      %928 = vmatprep.subr.mxu0 0.0
      %929 = vmatpush1.msra.mxu0 0.0
      %930 = vmatprep.subr.mxu0 0.0
      %931 = vmatpush1.msra.mxu0 0.0
      %932 = vmatprep.subr.mxu0 0.0
      %933 = vmatpush1.msra.mxu0 %v883
      %934 = vmatprep.subr.mxu0 0.0
      %935 = vmatpush1.msra.mxu0 %v882
      %936 = vmatprep.subr.mxu0 0.0
      %937 = vmatpush1.msra.mxu0 %v881
      %938 = vmatprep.subr.mxu0 0.0
      %939 = vmatpush1.msra.mxu0 %v880
      %940 = vmatprep.subr.mxu0 0.0
      %941 = vmatpush2.msra.mxu0 0.0
      %942 = vmatprep.subr.mxu0 0.0
      %943 = vmatpush2.msra.mxu0 0.0
      %944 = vmatprep.subr.mxu0 0.0
      %945 = vmatpush2.msra.mxu0 0.0
      %946 = vmatprep.subr.mxu0 0.0
      %947 = vmatpush2.msra.mxu0 0.0
      %948 = vmatprep.subr.mxu0 0.0
      %949 = vmatpush2.msra.mxu0 0.0
      %950 = vmatprep.subr.mxu0 0.0
      %951 = vmatpush2.msra.mxu0 0.0
      %952 = vmatprep.subr.mxu0 0.0
      %953 = vmatpush2.msra.mxu0 0.0
      %954 = vmatprep.subr.mxu0 0.0
      %955 = vmatpush2.msra.mxu0 0.0
      %956 = vmatprep.subr.mxu0 0.0
      %957 = vmatpush2.msra.mxu0 0.0
      %958 = vmatprep.subr.mxu0 0.0
      %959 = vmatpush2.msra.mxu0 0.0
      %960 = vmatprep.subr.mxu0 0.0
      %961 = vmatpush2.msra.mxu0 0.0
      %962 = vmatprep.subr.mxu0 0.0
      %963 = vmatpush2.msra.mxu0 0.0
      %964 = vmatprep.subr.mxu0 0.0
      %965 = vmatpush2.msra.mxu0 0.0
      %966 = vmatprep.subr.mxu0 0.0
      %967 = vmatpush2.msra.mxu0 0.0
      %968 = vmatprep.subr.mxu0 0.0
      %969 = vmatpush2.msra.mxu0 0.0
      %970 = vmatprep.subr.mxu0 0.0
      %971 = vmatpush2.msra.mxu0 0.0
      %972 = vmatprep.mubr.f32.mxu0 0.0
      %973 = vmatmul.mubr.f32.gmra.mxu0 %v885
      %v974 = vpop.f32.mrf.mxu0
      %v975 = vadd.f32 0.0, %v974
      %v976 = vpop.f32.mrf.mxu0
      %977 = vmatprep.mubr.f32.mxu0 0.0
      %978 = vmatmul.mubr.f32.gmra.mxu0 %v888
      %v979 = vpop.f32.mrf.mxu0
      %v980 = vadd.f32 0.0, %v979
      %v981 = vpop.f32.mrf.mxu0
      %982 = vmatprep.mubr.f32.mxu0 0.0
      %983 = vmatmul.mubr.f32.gmra.mxu0 %v891
      %v984 = vpop.f32.mrf.mxu0
      %v985 = vadd.f32 0.0, %v984
      %v986 = vpop.f32.mrf.mxu0
      %987 = vmatprep.mubr.f32.mxu0 0.0
      %988 = vmatmul.mubr.f32.gmra.mxu0 %v894
      %v989 = vpop.f32.mrf.mxu0
      %v990 = vadd.f32 0.0, %v989
      %v991 = vpop.f32.mrf.mxu0
      %992 = vmatprep.mubr.f32.mxu0 0.0
      %993 = vmatmul.mubr.f32.gmra.mxu0 %v897
      %v994 = vpop.f32.mrf.mxu0
      %v995 = vadd.f32 0.0, %v994
      %v996 = vpop.f32.mrf.mxu0
      %997 = vmatprep.mubr.f32.mxu0 0.0
      %998 = vmatmul.mubr.f32.gmra.mxu0 %v900
      %v999 = vpop.f32.mrf.mxu0
      %v1000 = vadd.f32 0.0, %v999
      %v1001 = vpop.f32.mrf.mxu0
      %1002 = vmatprep.mubr.f32.mxu0 0.0
      %1003 = vmatmul.mubr.f32.gmra.mxu0 %v903
      %v1004 = vpop.f32.mrf.mxu0
      %v1005 = vadd.f32 0.0, %v1004
      %v1006 = vpop.f32.mrf.mxu0
      %1007 = vmatprep.mubr.f32.mxu0 0.0
      %1008 = vmatmul.mubr.f32.gmra.mxu0 %v906
      %v1009 = vpop.f32.mrf.mxu0
      %v1010 = vadd.f32 0.0, %v1009
      %v1011 = vpop.f32.mrf.mxu0
      %1012 = vdwg.mxu0
      %1013 = vmatprep.subr.mxu0 0.0
      %1014 = vmatpush1.msra.mxu0 0.0
      %1015 = vmatprep.subr.mxu0 0.0
      %1016 = vmatpush1.msra.mxu0 0.0
      %1017 = vmatprep.subr.mxu0 0.0
      %1018 = vmatpush1.msra.mxu0 0.0
      %1019 = vmatprep.subr.mxu0 0.0
      %1020 = vmatpush1.msra.mxu0 0.0
      %1021 = vmatprep.subr.mxu0 0.0
      %1022 = vmatpush1.msra.mxu0 0.0
      %1023 = vmatprep.subr.mxu0 0.0
      %1024 = vmatpush1.msra.mxu0 0.0
      %1025 = vmatprep.subr.mxu0 0.0
      %1026 = vmatpush1.msra.mxu0 0.0
      %1027 = vmatprep.subr.mxu0 0.0
      %1028 = vmatpush1.msra.mxu0 0.0
      %1029 = vmatprep.subr.mxu0 0.0
      %1030 = vmatpush1.msra.mxu0 0.0
      %1031 = vmatprep.subr.mxu0 0.0
      %1032 = vmatpush1.msra.mxu0 0.0
      %1033 = vmatprep.subr.mxu0 0.0
      %1034 = vmatpush1.msra.mxu0 0.0
      %1035 = vmatprep.subr.mxu0 0.0
      %1036 = vmatpush1.msra.mxu0 0.0
      %1037 = vmatprep.subr.mxu0 0.0
      %1038 = vmatpush1.msra.mxu0 %v878
      %1039 = vmatprep.subr.mxu0 0.0
      %1040 = vmatpush1.msra.mxu0 %v877
      %1041 = vmatprep.subr.mxu0 0.0
      %1042 = vmatpush1.msra.mxu0 %v876
      %1043 = vmatprep.subr.mxu0 0.0
      %1044 = vmatpush1.msra.mxu0 %v875
      %1045 = vmatprep.subr.mxu0 0.0
      %1046 = vmatpush2.msra.mxu0 0.0
      %1047 = vmatprep.subr.mxu0 0.0
      %1048 = vmatpush2.msra.mxu0 0.0
      %1049 = vmatprep.subr.mxu0 0.0
      %1050 = vmatpush2.msra.mxu0 0.0
      %1051 = vmatprep.subr.mxu0 0.0
      %1052 = vmatpush2.msra.mxu0 0.0
      %1053 = vmatprep.subr.mxu0 0.0
      %1054 = vmatpush2.msra.mxu0 0.0
      %1055 = vmatprep.subr.mxu0 0.0
      %1056 = vmatpush2.msra.mxu0 0.0
      %1057 = vmatprep.subr.mxu0 0.0
      %1058 = vmatpush2.msra.mxu0 0.0
      %1059 = vmatprep.subr.mxu0 0.0
      %1060 = vmatpush2.msra.mxu0 0.0
      %1061 = vmatprep.subr.mxu0 0.0
      %1062 = vmatpush2.msra.mxu0 0.0
      %1063 = vmatprep.subr.mxu0 0.0
      %1064 = vmatpush2.msra.mxu0 0.0
      %1065 = vmatprep.subr.mxu0 0.0
      %1066 = vmatpush2.msra.mxu0 0.0
      %1067 = vmatprep.subr.mxu0 0.0
      %1068 = vmatpush2.msra.mxu0 0.0
      %1069 = vmatprep.subr.mxu0 0.0
      %1070 = vmatpush2.msra.mxu0 0.0
      %1071 = vmatprep.subr.mxu0 0.0
      %1072 = vmatpush2.msra.mxu0 0.0
      %1073 = vmatprep.subr.mxu0 0.0
      %1074 = vmatpush2.msra.mxu0 0.0
      %1075 = vmatprep.subr.mxu0 0.0
      %1076 = vmatpush2.msra.mxu0 0.0
      %1077 = vmatprep.mubr.f32.mxu0 0.0
      %1078 = vmatmul.mubr.f32.gmra.mxu0 %v682
      %v1079 = vpop.f32.mrf.mxu0
      %v1080 = vadd.f32 %v975, %v1079
      %v1081 = vpop.f32.mrf.mxu0
      %1082 = vmatprep.mubr.f32.mxu0 0.0
      %1083 = vmatmul.mubr.f32.gmra.mxu0 %v685
      %v1084 = vpop.f32.mrf.mxu0
      %v1085 = vadd.f32 %v980, %v1084
      %v1086 = vpop.f32.mrf.mxu0
      %1087 = vmatprep.mubr.f32.mxu0 0.0
      %1088 = vmatmul.mubr.f32.gmra.mxu0 %v688
      %v1089 = vpop.f32.mrf.mxu0
      %v1090 = vadd.f32 %v985, %v1089
      %v1091 = vpop.f32.mrf.mxu0
      %1092 = vmatprep.mubr.f32.mxu0 0.0
      %1093 = vmatmul.mubr.f32.gmra.mxu0 %v691
      %v1094 = vpop.f32.mrf.mxu0
      %v1095 = vadd.f32 %v990, %v1094
      %v1096 = vpop.f32.mrf.mxu0
      %1097 = vmatprep.mubr.f32.mxu0 0.0
      %1098 = vmatmul.mubr.f32.gmra.mxu0 %v694
      %v1099 = vpop.f32.mrf.mxu0
      %v1100 = vadd.f32 %v995, %v1099
      %v1101 = vpop.f32.mrf.mxu0
      %1102 = vmatprep.mubr.f32.mxu0 0.0
      %1103 = vmatmul.mubr.f32.gmra.mxu0 %v697
      %v1104 = vpop.f32.mrf.mxu0
      %v1105 = vadd.f32 %v1000, %v1104
      %v1106 = vpop.f32.mrf.mxu0
      %1107 = vmatprep.mubr.f32.mxu0 0.0
      %1108 = vmatmul.mubr.f32.gmra.mxu0 %v700
      %v1109 = vpop.f32.mrf.mxu0
      %v1110 = vadd.f32 %v1005, %v1109
      %v1111 = vpop.f32.mrf.mxu0
      %1112 = vmatprep.mubr.f32.mxu0 0.0
      %1113 = vmatmul.mubr.f32.gmra.mxu0 %v703
      %v1114 = vpop.f32.mrf.mxu0
      %v1115 = vadd.f32 %v1010, %v1114
      %v1116 = vpop.f32.mrf.mxu0
      %1117 = vdwg.mxu0
      %v1118 = vadd.f32 %v1080, %v678
      %v1119 = vadd.f32 %v1085, %v678
      %v1120 = vadd.f32 %v1090, %v678
      %v1121 = vadd.f32 %v1095, %v678
      %v1122 = vadd.f32 %v1100, %v678
      %v1123 = vadd.f32 %v1105, %v678
      %v1124 = vadd.f32 %v1110, %v678
      %v1125 = vadd.f32 %v1115, %v678
      %v1126 = vmul.f32 %v1118, 0.5
      %v1127 = vmul.f32 %v1119, 0.5
      %v1128 = vmul.f32 %v1120, 0.5
      %v1129 = vmul.f32 %v1121, 0.5
      %v1130 = vmul.f32 %v1122, 0.5
      %v1131 = vmul.f32 %v1123, 0.5
      %v1132 = vmul.f32 %v1124, 0.5
      %v1133 = vmul.f32 %v1125, 0.5
      %v1134 = vmul.f32 %v1118, 0.70710677
      %v1135 = vmul.f32 %v1119, 0.70710677
      %v1136 = vmul.f32 %v1120, 0.70710677
      %v1137 = vmul.f32 %v1121, 0.70710677
      %v1138 = vmul.f32 %v1122, 0.70710677
      %v1139 = vmul.f32 %v1123, 0.70710677
      %v1140 = vmul.f32 %v1124, 0.70710677
      %v1141 = vmul.f32 %v1125, 0.70710677
      %v1142 = verf.f32.pop %v1134
      %v1143 = verf.f32.pop %v1135
      %v1144 = verf.f32.pop %v1136
      %v1145 = verf.f32.pop %v1137
      %v1146 = verf.f32.pop %v1138
      %v1147 = verf.f32.pop %v1139
      %v1148 = verf.f32.pop %v1140
      %v1149 = verf.f32.pop %v1141
      %v1150 = vadd.f32 %v1142, 1.0
      %v1151 = vadd.f32 %v1143, 1.0
      %v1152 = vadd.f32 %v1144, 1.0
      %v1153 = vadd.f32 %v1145, 1.0
      %v1154 = vadd.f32 %v1146, 1.0
      %v1155 = vadd.f32 %v1147, 1.0
      %v1156 = vadd.f32 %v1148, 1.0
      %v1157 = vadd.f32 %v1149, 1.0
      %v1158 = vmul.f32 %v1126, %v1150
      %v1159 = vmul.f32 %v1127, %v1151
      %v1160 = vmul.f32 %v1128, %v1152
      %v1161 = vmul.f32 %v1129, %v1153
      %v1162 = vmul.f32 %v1130, %v1154
      %v1163 = vmul.f32 %v1131, %v1155
      %v1164 = vmul.f32 %v1132, %v1156
      %v1165 = vmul.f32 %v1133, %v1157
      %s1166 = scalar_lea.vmem %s239, 64
      %v1167 = vld [vmem:[%s1166] sm:$0xff]
      %v1168 = vld [vmem:[%s1166 + $0x8] sm:$0xff]
      %v1169 = vld [vmem:[%s1166 + $0x10] sm:$0xff]
      %v1170 = vld [vmem:[%s1166 + $0x18] sm:$0xff]
      %v1171 = vld [vmem:[%s1166 + $0x20] sm:$0xff]
      %v1172 = vld [vmem:[%s1166 + $0x28] sm:$0xff]
      %v1173 = vld [vmem:[%s1166 + $0x30] sm:$0xff]
      %v1174 = vld [vmem:[%s1166 + $0x38] sm:$0xff]
      %v1175 = vadd.f32 %v1158, %v1167
      %v1176 = vadd.f32 %v1159, %v1168
      %v1177 = vadd.f32 %v1160, %v1169
      %v1178 = vadd.f32 %v1161, %v1170
      %v1179 = vadd.f32 %v1162, %v1171
      %v1180 = vadd.f32 %v1163, %v1172
      %v1181 = vadd.f32 %v1164, %v1173
      %v1182 = vadd.f32 %v1165, %v1174
      %s1183 = scalar_lea.vmem %s244, 64
      %1184 = vst.msk [vmem:[%s1183] sm:$0xff] %vm680, %v1175
      %1185 = vst.msk [vmem:[%s1183 + $0x8] sm:$0xff] %vm680, %v1176
      %1186 = vst.msk [vmem:[%s1183 + $0x10] sm:$0xff] %vm680, %v1177
      %1187 = vst.msk [vmem:[%s1183 + $0x18] sm:$0xff] %vm680, %v1178
      %1188 = vst.msk [vmem:[%s1183 + $0x20] sm:$0xff] %vm680, %v1179
      %1189 = vst.msk [vmem:[%s1183 + $0x28] sm:$0xff] %vm680, %v1180
      %1190 = vst.msk [vmem:[%s1183 + $0x30] sm:$0xff] %vm680, %v1181
      %1191 = vst.msk [vmem:[%s1183 + $0x38] sm:$0xff] %vm680, %v1182
      %s1192 = scalar_lea.vmem %s2, 224
      %v1193 = vld [vmem:[%s1192] sm:$0xff]
      %v1194 = vld [vmem:[%s1192 + $0x8] sm:$0xff]
      %v1195 = vld [vmem:[%s1192 + $0x10] sm:$0xff]
      %v1196 = vld [vmem:[%s1192 + $0x18] sm:$0xff]
      %s1197 = scalar_lea.vmem %s2, 32
      %v1198 = vld [vmem:[%s1197] sm:$0xff]
      %v1199 = vld [vmem:[%s1197 + $0x8] sm:$0xff]
      %v1200 = vld [vmem:[%s1197 + $0x10] sm:$0xff]
      %v1201 = vld [vmem:[%s1197 + $0x18] sm:$0xff]
      %v1203 = vsel %vm680, %v493, 0
      %v1206 = vsel %vm680, %v498, 0
      %v1209 = vsel %vm680, %v503, 0
      %v1212 = vsel %vm680, %v508, 0
      %v1215 = vsel %vm680, %v513, 0
      %v1218 = vsel %vm680, %v518, 0
      %v1221 = vsel %vm680, %v523, 0
      %v1224 = vsel %vm680, %v528, 0
      %1226 = vmatprep.subr.mxu0 0.0
      %1227 = vmatpush1.msra.mxu0 0.0
      %1228 = vmatprep.subr.mxu0 0.0
      %1229 = vmatpush1.msra.mxu0 0.0
      %1230 = vmatprep.subr.mxu0 0.0
      %1231 = vmatpush1.msra.mxu0 0.0
      %1232 = vmatprep.subr.mxu0 0.0
      %1233 = vmatpush1.msra.mxu0 0.0
      %1234 = vmatprep.subr.mxu0 0.0
      %1235 = vmatpush1.msra.mxu0 0.0
      %1236 = vmatprep.subr.mxu0 0.0
      %1237 = vmatpush1.msra.mxu0 0.0
      %1238 = vmatprep.subr.mxu0 0.0
      %1239 = vmatpush1.msra.mxu0 0.0
      %1240 = vmatprep.subr.mxu0 0.0
      %1241 = vmatpush1.msra.mxu0 0.0
      %1242 = vmatprep.subr.mxu0 0.0
      %1243 = vmatpush1.msra.mxu0 0.0
      %1244 = vmatprep.subr.mxu0 0.0
      %1245 = vmatpush1.msra.mxu0 0.0
      %1246 = vmatprep.subr.mxu0 0.0
      %1247 = vmatpush1.msra.mxu0 0.0
      %1248 = vmatprep.subr.mxu0 0.0
      %1249 = vmatpush1.msra.mxu0 0.0
      %1250 = vmatprep.subr.mxu0 0.0
      %1251 = vmatpush1.msra.mxu0 %v1201
      %1252 = vmatprep.subr.mxu0 0.0
      %1253 = vmatpush1.msra.mxu0 %v1200
      %1254 = vmatprep.subr.mxu0 0.0
      %1255 = vmatpush1.msra.mxu0 %v1199
      %1256 = vmatprep.subr.mxu0 0.0
      %1257 = vmatpush1.msra.mxu0 %v1198
      %1258 = vmatprep.subr.mxu0 0.0
      %1259 = vmatpush2.msra.mxu0 0.0
      %1260 = vmatprep.subr.mxu0 0.0
      %1261 = vmatpush2.msra.mxu0 0.0
      %1262 = vmatprep.subr.mxu0 0.0
      %1263 = vmatpush2.msra.mxu0 0.0
      %1264 = vmatprep.subr.mxu0 0.0
      %1265 = vmatpush2.msra.mxu0 0.0
      %1266 = vmatprep.subr.mxu0 0.0
      %1267 = vmatpush2.msra.mxu0 0.0
      %1268 = vmatprep.subr.mxu0 0.0
      %1269 = vmatpush2.msra.mxu0 0.0
      %1270 = vmatprep.subr.mxu0 0.0
      %1271 = vmatpush2.msra.mxu0 0.0
      %1272 = vmatprep.subr.mxu0 0.0
      %1273 = vmatpush2.msra.mxu0 0.0
      %1274 = vmatprep.subr.mxu0 0.0
      %1275 = vmatpush2.msra.mxu0 0.0
      %1276 = vmatprep.subr.mxu0 0.0
      %1277 = vmatpush2.msra.mxu0 0.0
      %1278 = vmatprep.subr.mxu0 0.0
      %1279 = vmatpush2.msra.mxu0 0.0
      %1280 = vmatprep.subr.mxu0 0.0
      %1281 = vmatpush2.msra.mxu0 0.0
      %1282 = vmatprep.subr.mxu0 0.0
      %1283 = vmatpush2.msra.mxu0 0.0
      %1284 = vmatprep.subr.mxu0 0.0
      %1285 = vmatpush2.msra.mxu0 0.0
      %1286 = vmatprep.subr.mxu0 0.0
      %1287 = vmatpush2.msra.mxu0 0.0
      %1288 = vmatprep.subr.mxu0 0.0
      %1289 = vmatpush2.msra.mxu0 0.0
      %1290 = vmatprep.mubr.f32.mxu0 0.0
      %1291 = vmatmul.mubr.f32.gmra.mxu0 %v1203
      %v1292 = vpop.f32.mrf.mxu0
      %v1293 = vadd.f32 0.0, %v1292
      %v1294 = vpop.f32.mrf.mxu0
      %1295 = vmatprep.mubr.f32.mxu0 0.0
      %1296 = vmatmul.mubr.f32.gmra.mxu0 %v1206
      %v1297 = vpop.f32.mrf.mxu0
      %v1298 = vadd.f32 0.0, %v1297
      %v1299 = vpop.f32.mrf.mxu0
      %1300 = vmatprep.mubr.f32.mxu0 0.0
      %1301 = vmatmul.mubr.f32.gmra.mxu0 %v1209
      %v1302 = vpop.f32.mrf.mxu0
      %v1303 = vadd.f32 0.0, %v1302
      %v1304 = vpop.f32.mrf.mxu0
      %1305 = vmatprep.mubr.f32.mxu0 0.0
      %1306 = vmatmul.mubr.f32.gmra.mxu0 %v1212
      %v1307 = vpop.f32.mrf.mxu0
      %v1308 = vadd.f32 0.0, %v1307
      %v1309 = vpop.f32.mrf.mxu0
      %1310 = vmatprep.mubr.f32.mxu0 0.0
      %1311 = vmatmul.mubr.f32.gmra.mxu0 %v1215
      %v1312 = vpop.f32.mrf.mxu0
      %v1313 = vadd.f32 0.0, %v1312
      %v1314 = vpop.f32.mrf.mxu0
      %1315 = vmatprep.mubr.f32.mxu0 0.0
      %1316 = vmatmul.mubr.f32.gmra.mxu0 %v1218
      %v1317 = vpop.f32.mrf.mxu0
      %v1318 = vadd.f32 0.0, %v1317
      %v1319 = vpop.f32.mrf.mxu0
      %1320 = vmatprep.mubr.f32.mxu0 0.0
      %1321 = vmatmul.mubr.f32.gmra.mxu0 %v1221
      %v1322 = vpop.f32.mrf.mxu0
      %v1323 = vadd.f32 0.0, %v1322
      %v1324 = vpop.f32.mrf.mxu0
      %1325 = vmatprep.mubr.f32.mxu0 0.0
      %1326 = vmatmul.mubr.f32.gmra.mxu0 %v1224
      %v1327 = vpop.f32.mrf.mxu0
      %v1328 = vadd.f32 0.0, %v1327
      %v1329 = vpop.f32.mrf.mxu0
      %1330 = vdwg.mxu0
      %1331 = vmatprep.subr.mxu0 0.0
      %1332 = vmatpush1.msra.mxu0 0.0
      %1333 = vmatprep.subr.mxu0 0.0
      %1334 = vmatpush1.msra.mxu0 0.0
      %1335 = vmatprep.subr.mxu0 0.0
      %1336 = vmatpush1.msra.mxu0 0.0
      %1337 = vmatprep.subr.mxu0 0.0
      %1338 = vmatpush1.msra.mxu0 0.0
      %1339 = vmatprep.subr.mxu0 0.0
      %1340 = vmatpush1.msra.mxu0 0.0
      %1341 = vmatprep.subr.mxu0 0.0
      %1342 = vmatpush1.msra.mxu0 0.0
      %1343 = vmatprep.subr.mxu0 0.0
      %1344 = vmatpush1.msra.mxu0 0.0
      %1345 = vmatprep.subr.mxu0 0.0
      %1346 = vmatpush1.msra.mxu0 0.0
      %1347 = vmatprep.subr.mxu0 0.0
      %1348 = vmatpush1.msra.mxu0 0.0
      %1349 = vmatprep.subr.mxu0 0.0
      %1350 = vmatpush1.msra.mxu0 0.0
      %1351 = vmatprep.subr.mxu0 0.0
      %1352 = vmatpush1.msra.mxu0 0.0
      %1353 = vmatprep.subr.mxu0 0.0
      %1354 = vmatpush1.msra.mxu0 0.0
      %1355 = vmatprep.subr.mxu0 0.0
      %1356 = vmatpush1.msra.mxu0 %v1196
      %1357 = vmatprep.subr.mxu0 0.0
      %1358 = vmatpush1.msra.mxu0 %v1195
      %1359 = vmatprep.subr.mxu0 0.0
      %1360 = vmatpush1.msra.mxu0 %v1194
      %1361 = vmatprep.subr.mxu0 0.0
      %1362 = vmatpush1.msra.mxu0 %v1193
      %1363 = vmatprep.subr.mxu0 0.0
      %1364 = vmatpush2.msra.mxu0 0.0
      %1365 = vmatprep.subr.mxu0 0.0
      %1366 = vmatpush2.msra.mxu0 0.0
      %1367 = vmatprep.subr.mxu0 0.0
      %1368 = vmatpush2.msra.mxu0 0.0
      %1369 = vmatprep.subr.mxu0 0.0
      %1370 = vmatpush2.msra.mxu0 0.0
      %1371 = vmatprep.subr.mxu0 0.0
      %1372 = vmatpush2.msra.mxu0 0.0
      %1373 = vmatprep.subr.mxu0 0.0
      %1374 = vmatpush2.msra.mxu0 0.0
      %1375 = vmatprep.subr.mxu0 0.0
      %1376 = vmatpush2.msra.mxu0 0.0
      %1377 = vmatprep.subr.mxu0 0.0
      %1378 = vmatpush2.msra.mxu0 0.0
      %1379 = vmatprep.subr.mxu0 0.0
      %1380 = vmatpush2.msra.mxu0 0.0
      %1381 = vmatprep.subr.mxu0 0.0
      %1382 = vmatpush2.msra.mxu0 0.0
      %1383 = vmatprep.subr.mxu0 0.0
      %1384 = vmatpush2.msra.mxu0 0.0
      %1385 = vmatprep.subr.mxu0 0.0
      %1386 = vmatpush2.msra.mxu0 0.0
      %1387 = vmatprep.subr.mxu0 0.0
      %1388 = vmatpush2.msra.mxu0 0.0
      %1389 = vmatprep.subr.mxu0 0.0
      %1390 = vmatpush2.msra.mxu0 0.0
      %1391 = vmatprep.subr.mxu0 0.0
      %1392 = vmatpush2.msra.mxu0 0.0
      %1393 = vmatprep.subr.mxu0 0.0
      %1394 = vmatpush2.msra.mxu0 0.0
      %1395 = vmatprep.mubr.f32.mxu0 0.0
      %1396 = vmatmul.mubr.f32.gmra.mxu0 %v682
      %v1397 = vpop.f32.mrf.mxu0
      %v1398 = vadd.f32 %v1293, %v1397
      %v1399 = vpop.f32.mrf.mxu0
      %1400 = vmatprep.mubr.f32.mxu0 0.0
      %1401 = vmatmul.mubr.f32.gmra.mxu0 %v685
      %v1402 = vpop.f32.mrf.mxu0
      %v1403 = vadd.f32 %v1298, %v1402
      %v1404 = vpop.f32.mrf.mxu0
      %1405 = vmatprep.mubr.f32.mxu0 0.0
      %1406 = vmatmul.mubr.f32.gmra.mxu0 %v688
      %v1407 = vpop.f32.mrf.mxu0
      %v1408 = vadd.f32 %v1303, %v1407
      %v1409 = vpop.f32.mrf.mxu0
      %1410 = vmatprep.mubr.f32.mxu0 0.0
      %1411 = vmatmul.mubr.f32.gmra.mxu0 %v691
      %v1412 = vpop.f32.mrf.mxu0
      %v1413 = vadd.f32 %v1308, %v1412
      %v1414 = vpop.f32.mrf.mxu0
      %1415 = vmatprep.mubr.f32.mxu0 0.0
      %1416 = vmatmul.mubr.f32.gmra.mxu0 %v694
      %v1417 = vpop.f32.mrf.mxu0
      %v1418 = vadd.f32 %v1313, %v1417
      %v1419 = vpop.f32.mrf.mxu0
      %1420 = vmatprep.mubr.f32.mxu0 0.0
      %1421 = vmatmul.mubr.f32.gmra.mxu0 %v697
      %v1422 = vpop.f32.mrf.mxu0
      %v1423 = vadd.f32 %v1318, %v1422
      %v1424 = vpop.f32.mrf.mxu0
      %1425 = vmatprep.mubr.f32.mxu0 0.0
      %1426 = vmatmul.mubr.f32.gmra.mxu0 %v700
      %v1427 = vpop.f32.mrf.mxu0
      %v1428 = vadd.f32 %v1323, %v1427
      %v1429 = vpop.f32.mrf.mxu0
      %1430 = vmatprep.mubr.f32.mxu0 0.0
      %1431 = vmatmul.mubr.f32.gmra.mxu0 %v703
      %v1432 = vpop.f32.mrf.mxu0
      %v1433 = vadd.f32 %v1328, %v1432
      %v1434 = vpop.f32.mrf.mxu0
      %1435 = vdwg.mxu0
      %v1436 = vadd.f32 %v1398, %v678
      %v1437 = vadd.f32 %v1403, %v678
      %v1438 = vadd.f32 %v1408, %v678
      %v1439 = vadd.f32 %v1413, %v678
      %v1440 = vadd.f32 %v1418, %v678
      %v1441 = vadd.f32 %v1423, %v678
      %v1442 = vadd.f32 %v1428, %v678
      %v1443 = vadd.f32 %v1433, %v678
      %v1444 = vmul.f32 %v1436, 0.5
      %v1445 = vmul.f32 %v1437, 0.5
      %v1446 = vmul.f32 %v1438, 0.5
      %v1447 = vmul.f32 %v1439, 0.5
      %v1448 = vmul.f32 %v1440, 0.5
      %v1449 = vmul.f32 %v1441, 0.5
      %v1450 = vmul.f32 %v1442, 0.5
      %v1451 = vmul.f32 %v1443, 0.5
      %v1452 = vmul.f32 %v1436, 0.70710677
      %v1453 = vmul.f32 %v1437, 0.70710677
      %v1454 = vmul.f32 %v1438, 0.70710677
      %v1455 = vmul.f32 %v1439, 0.70710677
      %v1456 = vmul.f32 %v1440, 0.70710677
      %v1457 = vmul.f32 %v1441, 0.70710677
      %v1458 = vmul.f32 %v1442, 0.70710677
      %v1459 = vmul.f32 %v1443, 0.70710677
      %v1460 = verf.f32.pop %v1452
      %v1461 = verf.f32.pop %v1453
      %v1462 = verf.f32.pop %v1454
      %v1463 = verf.f32.pop %v1455
      %v1464 = verf.f32.pop %v1456
      %v1465 = verf.f32.pop %v1457
      %v1466 = verf.f32.pop %v1458
      %v1467 = verf.f32.pop %v1459
      %v1468 = vadd.f32 %v1460, 1.0
      %v1469 = vadd.f32 %v1461, 1.0
      %v1470 = vadd.f32 %v1462, 1.0
      %v1471 = vadd.f32 %v1463, 1.0
      %v1472 = vadd.f32 %v1464, 1.0
      %v1473 = vadd.f32 %v1465, 1.0
      %v1474 = vadd.f32 %v1466, 1.0
      %v1475 = vadd.f32 %v1467, 1.0
      %v1476 = vmul.f32 %v1444, %v1468
      %v1477 = vmul.f32 %v1445, %v1469
      %v1478 = vmul.f32 %v1446, %v1470
      %v1479 = vmul.f32 %v1447, %v1471
      %v1480 = vmul.f32 %v1448, %v1472
      %v1481 = vmul.f32 %v1449, %v1473
      %v1482 = vmul.f32 %v1450, %v1474
      %v1483 = vmul.f32 %v1451, %v1475
      %s1484 = scalar_lea.vmem %s239, 128
      %v1485 = vld [vmem:[%s1484] sm:$0xff]
      %v1486 = vld [vmem:[%s1484 + $0x8] sm:$0xff]
      %v1487 = vld [vmem:[%s1484 + $0x10] sm:$0xff]
      %v1488 = vld [vmem:[%s1484 + $0x18] sm:$0xff]
      %v1489 = vld [vmem:[%s1484 + $0x20] sm:$0xff]
      %v1490 = vld [vmem:[%s1484 + $0x28] sm:$0xff]
      %v1491 = vld [vmem:[%s1484 + $0x30] sm:$0xff]
      %v1492 = vld [vmem:[%s1484 + $0x38] sm:$0xff]
      %v1493 = vadd.f32 %v1476, %v1485
      %v1494 = vadd.f32 %v1477, %v1486
      %v1495 = vadd.f32 %v1478, %v1487
      %v1496 = vadd.f32 %v1479, %v1488
      %v1497 = vadd.f32 %v1480, %v1489
      %v1498 = vadd.f32 %v1481, %v1490
      %v1499 = vadd.f32 %v1482, %v1491
      %v1500 = vadd.f32 %v1483, %v1492
      %s1501 = scalar_lea.vmem %s244, 128
      %1502 = vst.msk [vmem:[%s1501] sm:$0xff] %vm680, %v1493
      %1503 = vst.msk [vmem:[%s1501 + $0x8] sm:$0xff] %vm680, %v1494
      %1504 = vst.msk [vmem:[%s1501 + $0x10] sm:$0xff] %vm680, %v1495
      %1505 = vst.msk [vmem:[%s1501 + $0x18] sm:$0xff] %vm680, %v1496
      %1506 = vst.msk [vmem:[%s1501 + $0x20] sm:$0xff] %vm680, %v1497
      %1507 = vst.msk [vmem:[%s1501 + $0x28] sm:$0xff] %vm680, %v1498
      %1508 = vst.msk [vmem:[%s1501 + $0x30] sm:$0xff] %vm680, %v1499
      %1509 = vst.msk [vmem:[%s1501 + $0x38] sm:$0xff] %vm680, %v1500
      %s1510 = scalar_lea.vmem %s2, 256
      %v1511 = vld [vmem:[%s1510] sm:$0xff]
      %v1512 = vld [vmem:[%s1510 + $0x8] sm:$0xff]
      %v1513 = vld [vmem:[%s1510 + $0x10] sm:$0xff]
      %v1514 = vld [vmem:[%s1510 + $0x18] sm:$0xff]
      %s1515 = scalar_lea.vmem %s2, 192
      %v1516 = vld [vmem:[%s1515] sm:$0xff]
      %v1517 = vld [vmem:[%s1515 + $0x8] sm:$0xff]
      %v1518 = vld [vmem:[%s1515 + $0x10] sm:$0xff]
      %v1519 = vld [vmem:[%s1515 + $0x18] sm:$0xff]
      %1520 = vmatprep.subr.mxu0 0.0
      %1521 = vmatpush1.msra.mxu0 0.0
      %1522 = vmatprep.subr.mxu0 0.0
      %1523 = vmatpush1.msra.mxu0 0.0
      %1524 = vmatprep.subr.mxu0 0.0
      %1525 = vmatpush1.msra.mxu0 0.0
      %1526 = vmatprep.subr.mxu0 0.0
      %1527 = vmatpush1.msra.mxu0 0.0
      %1528 = vmatprep.subr.mxu0 0.0
      %1529 = vmatpush1.msra.mxu0 0.0
      %1530 = vmatprep.subr.mxu0 0.0
      %1531 = vmatpush1.msra.mxu0 0.0
      %1532 = vmatprep.subr.mxu0 0.0
      %1533 = vmatpush1.msra.mxu0 0.0
      %1534 = vmatprep.subr.mxu0 0.0
      %1535 = vmatpush1.msra.mxu0 0.0
      %1536 = vmatprep.subr.mxu0 0.0
      %1537 = vmatpush1.msra.mxu0 0.0
      %1538 = vmatprep.subr.mxu0 0.0
      %1539 = vmatpush1.msra.mxu0 0.0
      %1540 = vmatprep.subr.mxu0 0.0
      %1541 = vmatpush1.msra.mxu0 0.0
      %1542 = vmatprep.subr.mxu0 0.0
      %1543 = vmatpush1.msra.mxu0 0.0
      %1544 = vmatprep.subr.mxu0 0.0
      %1545 = vmatpush1.msra.mxu0 %v1519
      %1546 = vmatprep.subr.mxu0 0.0
      %1547 = vmatpush1.msra.mxu0 %v1518
      %1548 = vmatprep.subr.mxu0 0.0
      %1549 = vmatpush1.msra.mxu0 %v1517
      %1550 = vmatprep.subr.mxu0 0.0
      %1551 = vmatpush1.msra.mxu0 %v1516
      %1552 = vmatprep.subr.mxu0 0.0
      %1553 = vmatpush2.msra.mxu0 0.0
      %1554 = vmatprep.subr.mxu0 0.0
      %1555 = vmatpush2.msra.mxu0 0.0
      %1556 = vmatprep.subr.mxu0 0.0
      %1557 = vmatpush2.msra.mxu0 0.0
      %1558 = vmatprep.subr.mxu0 0.0
      %1559 = vmatpush2.msra.mxu0 0.0
      %1560 = vmatprep.subr.mxu0 0.0
      %1561 = vmatpush2.msra.mxu0 0.0
      %1562 = vmatprep.subr.mxu0 0.0
      %1563 = vmatpush2.msra.mxu0 0.0
      %1564 = vmatprep.subr.mxu0 0.0
      %1565 = vmatpush2.msra.mxu0 0.0
      %1566 = vmatprep.subr.mxu0 0.0
      %1567 = vmatpush2.msra.mxu0 0.0
      %1568 = vmatprep.subr.mxu0 0.0
      %1569 = vmatpush2.msra.mxu0 0.0
      %1570 = vmatprep.subr.mxu0 0.0
      %1571 = vmatpush2.msra.mxu0 0.0
      %1572 = vmatprep.subr.mxu0 0.0
      %1573 = vmatpush2.msra.mxu0 0.0
      %1574 = vmatprep.subr.mxu0 0.0
      %1575 = vmatpush2.msra.mxu0 0.0
      %1576 = vmatprep.subr.mxu0 0.0
      %1577 = vmatpush2.msra.mxu0 0.0
      %1578 = vmatprep.subr.mxu0 0.0
      %1579 = vmatpush2.msra.mxu0 0.0
      %1580 = vmatprep.subr.mxu0 0.0
      %1581 = vmatpush2.msra.mxu0 0.0
      %1582 = vmatprep.subr.mxu0 0.0
      %1583 = vmatpush2.msra.mxu0 0.0
      %1584 = vmatprep.mubr.f32.mxu0 0.0
      %1585 = vmatmul.mubr.f32.gmra.mxu0 %v885
      %v1586 = vpop.f32.mrf.mxu0
      %v1587 = vadd.f32 0.0, %v1586
      %v1588 = vpop.f32.mrf.mxu0
      %1589 = vmatprep.mubr.f32.mxu0 0.0
      %1590 = vmatmul.mubr.f32.gmra.mxu0 %v888
      %v1591 = vpop.f32.mrf.mxu0
      %v1592 = vadd.f32 0.0, %v1591
      %v1593 = vpop.f32.mrf.mxu0
      %1594 = vmatprep.mubr.f32.mxu0 0.0
      %1595 = vmatmul.mubr.f32.gmra.mxu0 %v891
      %v1596 = vpop.f32.mrf.mxu0
      %v1597 = vadd.f32 0.0, %v1596
      %v1598 = vpop.f32.mrf.mxu0
      %1599 = vmatprep.mubr.f32.mxu0 0.0
      %1600 = vmatmul.mubr.f32.gmra.mxu0 %v894
      %v1601 = vpop.f32.mrf.mxu0
      %v1602 = vadd.f32 0.0, %v1601
      %v1603 = vpop.f32.mrf.mxu0
      %1604 = vmatprep.mubr.f32.mxu0 0.0
      %1605 = vmatmul.mubr.f32.gmra.mxu0 %v897
      %v1606 = vpop.f32.mrf.mxu0
      %v1607 = vadd.f32 0.0, %v1606
      %v1608 = vpop.f32.mrf.mxu0
      %1609 = vmatprep.mubr.f32.mxu0 0.0
      %1610 = vmatmul.mubr.f32.gmra.mxu0 %v900
      %v1611 = vpop.f32.mrf.mxu0
      %v1612 = vadd.f32 0.0, %v1611
      %v1613 = vpop.f32.mrf.mxu0
      %1614 = vmatprep.mubr.f32.mxu0 0.0
      %1615 = vmatmul.mubr.f32.gmra.mxu0 %v903
      %v1616 = vpop.f32.mrf.mxu0
      %v1617 = vadd.f32 0.0, %v1616
      %v1618 = vpop.f32.mrf.mxu0
      %1619 = vmatprep.mubr.f32.mxu0 0.0
      %1620 = vmatmul.mubr.f32.gmra.mxu0 %v906
      %v1621 = vpop.f32.mrf.mxu0
      %v1622 = vadd.f32 0.0, %v1621
      %v1623 = vpop.f32.mrf.mxu0
      %1624 = vdwg.mxu0
      %1625 = vmatprep.subr.mxu0 0.0
      %1626 = vmatpush1.msra.mxu0 0.0
      %1627 = vmatprep.subr.mxu0 0.0
      %1628 = vmatpush1.msra.mxu0 0.0
      %1629 = vmatprep.subr.mxu0 0.0
      %1630 = vmatpush1.msra.mxu0 0.0
      %1631 = vmatprep.subr.mxu0 0.0
      %1632 = vmatpush1.msra.mxu0 0.0
      %1633 = vmatprep.subr.mxu0 0.0
      %1634 = vmatpush1.msra.mxu0 0.0
      %1635 = vmatprep.subr.mxu0 0.0
      %1636 = vmatpush1.msra.mxu0 0.0
      %1637 = vmatprep.subr.mxu0 0.0
      %1638 = vmatpush1.msra.mxu0 0.0
      %1639 = vmatprep.subr.mxu0 0.0
      %1640 = vmatpush1.msra.mxu0 0.0
      %1641 = vmatprep.subr.mxu0 0.0
      %1642 = vmatpush1.msra.mxu0 0.0
      %1643 = vmatprep.subr.mxu0 0.0
      %1644 = vmatpush1.msra.mxu0 0.0
      %1645 = vmatprep.subr.mxu0 0.0
      %1646 = vmatpush1.msra.mxu0 0.0
      %1647 = vmatprep.subr.mxu0 0.0
      %1648 = vmatpush1.msra.mxu0 0.0
      %1649 = vmatprep.subr.mxu0 0.0
      %1650 = vmatpush1.msra.mxu0 %v1514
      %1651 = vmatprep.subr.mxu0 0.0
      %1652 = vmatpush1.msra.mxu0 %v1513
      %1653 = vmatprep.subr.mxu0 0.0
      %1654 = vmatpush1.msra.mxu0 %v1512
      %1655 = vmatprep.subr.mxu0 0.0
      %1656 = vmatpush1.msra.mxu0 %v1511
      %1657 = vmatprep.subr.mxu0 0.0
      %1658 = vmatpush2.msra.mxu0 0.0
      %1659 = vmatprep.subr.mxu0 0.0
      %1660 = vmatpush2.msra.mxu0 0.0
      %1661 = vmatprep.subr.mxu0 0.0
      %1662 = vmatpush2.msra.mxu0 0.0
      %1663 = vmatprep.subr.mxu0 0.0
      %1664 = vmatpush2.msra.mxu0 0.0
      %1665 = vmatprep.subr.mxu0 0.0
      %1666 = vmatpush2.msra.mxu0 0.0
      %1667 = vmatprep.subr.mxu0 0.0
      %1668 = vmatpush2.msra.mxu0 0.0
      %1669 = vmatprep.subr.mxu0 0.0
      %1670 = vmatpush2.msra.mxu0 0.0
      %1671 = vmatprep.subr.mxu0 0.0
      %1672 = vmatpush2.msra.mxu0 0.0
      %1673 = vmatprep.subr.mxu0 0.0
      %1674 = vmatpush2.msra.mxu0 0.0
      %1675 = vmatprep.subr.mxu0 0.0
      %1676 = vmatpush2.msra.mxu0 0.0
      %1677 = vmatprep.subr.mxu0 0.0
      %1678 = vmatpush2.msra.mxu0 0.0
      %1679 = vmatprep.subr.mxu0 0.0
      %1680 = vmatpush2.msra.mxu0 0.0
      %1681 = vmatprep.subr.mxu0 0.0
      %1682 = vmatpush2.msra.mxu0 0.0
      %1683 = vmatprep.subr.mxu0 0.0
      %1684 = vmatpush2.msra.mxu0 0.0
      %1685 = vmatprep.subr.mxu0 0.0
      %1686 = vmatpush2.msra.mxu0 0.0
      %1687 = vmatprep.subr.mxu0 0.0
      %1688 = vmatpush2.msra.mxu0 0.0
      %1689 = vmatprep.mubr.f32.mxu0 0.0
      %1690 = vmatmul.mubr.f32.gmra.mxu0 %v682
      %v1691 = vpop.f32.mrf.mxu0
      %v1692 = vadd.f32 %v1587, %v1691
      %v1693 = vpop.f32.mrf.mxu0
      %1694 = vmatprep.mubr.f32.mxu0 0.0
      %1695 = vmatmul.mubr.f32.gmra.mxu0 %v685
      %v1696 = vpop.f32.mrf.mxu0
      %v1697 = vadd.f32 %v1592, %v1696
      %v1698 = vpop.f32.mrf.mxu0
      %1699 = vmatprep.mubr.f32.mxu0 0.0
      %1700 = vmatmul.mubr.f32.gmra.mxu0 %v688
      %v1701 = vpop.f32.mrf.mxu0
      %v1702 = vadd.f32 %v1597, %v1701
      %v1703 = vpop.f32.mrf.mxu0
      %1704 = vmatprep.mubr.f32.mxu0 0.0
      %1705 = vmatmul.mubr.f32.gmra.mxu0 %v691
      %v1706 = vpop.f32.mrf.mxu0
      %v1707 = vadd.f32 %v1602, %v1706
      %v1708 = vpop.f32.mrf.mxu0
      %1709 = vmatprep.mubr.f32.mxu0 0.0
      %1710 = vmatmul.mubr.f32.gmra.mxu0 %v694
      %v1711 = vpop.f32.mrf.mxu0
      %v1712 = vadd.f32 %v1607, %v1711
      %v1713 = vpop.f32.mrf.mxu0
      %1714 = vmatprep.mubr.f32.mxu0 0.0
      %1715 = vmatmul.mubr.f32.gmra.mxu0 %v697
      %v1716 = vpop.f32.mrf.mxu0
      %v1717 = vadd.f32 %v1612, %v1716
      %v1718 = vpop.f32.mrf.mxu0
      %1719 = vmatprep.mubr.f32.mxu0 0.0
      %1720 = vmatmul.mubr.f32.gmra.mxu0 %v700
      %v1721 = vpop.f32.mrf.mxu0
      %v1722 = vadd.f32 %v1617, %v1721
      %v1723 = vpop.f32.mrf.mxu0
      %1724 = vmatprep.mubr.f32.mxu0 0.0
      %1725 = vmatmul.mubr.f32.gmra.mxu0 %v703
      %v1726 = vpop.f32.mrf.mxu0
      %v1727 = vadd.f32 %v1622, %v1726
      %v1728 = vpop.f32.mrf.mxu0
      %1729 = vdwg.mxu0
      %s1730 = scalar_lea.vmem %s2, 64
      %v1731 = vld [vmem:[%s1730] sm:$0xff]
      %v1732 = vld [vmem:[%s1730 + $0x8] sm:$0xff]
      %v1733 = vld [vmem:[%s1730 + $0x10] sm:$0xff]
      %v1734 = vld [vmem:[%s1730 + $0x18] sm:$0xff]
      %1735 = vmatprep.subr.mxu0 0.0
      %1736 = vmatpush1.msra.mxu0 0.0
      %1737 = vmatprep.subr.mxu0 0.0
      %1738 = vmatpush1.msra.mxu0 0.0
      %1739 = vmatprep.subr.mxu0 0.0
      %1740 = vmatpush1.msra.mxu0 0.0
      %1741 = vmatprep.subr.mxu0 0.0
      %1742 = vmatpush1.msra.mxu0 0.0
      %1743 = vmatprep.subr.mxu0 0.0
      %1744 = vmatpush1.msra.mxu0 0.0
      %1745 = vmatprep.subr.mxu0 0.0
      %1746 = vmatpush1.msra.mxu0 0.0
      %1747 = vmatprep.subr.mxu0 0.0
      %1748 = vmatpush1.msra.mxu0 0.0
      %1749 = vmatprep.subr.mxu0 0.0
      %1750 = vmatpush1.msra.mxu0 0.0
      %1751 = vmatprep.subr.mxu0 0.0
      %1752 = vmatpush1.msra.mxu0 0.0
      %1753 = vmatprep.subr.mxu0 0.0
      %1754 = vmatpush1.msra.mxu0 0.0
      %1755 = vmatprep.subr.mxu0 0.0
      %1756 = vmatpush1.msra.mxu0 0.0
      %1757 = vmatprep.subr.mxu0 0.0
      %1758 = vmatpush1.msra.mxu0 0.0
      %1759 = vmatprep.subr.mxu0 0.0
      %1760 = vmatpush1.msra.mxu0 %v1734
      %1761 = vmatprep.subr.mxu0 0.0
      %1762 = vmatpush1.msra.mxu0 %v1733
      %1763 = vmatprep.subr.mxu0 0.0
      %1764 = vmatpush1.msra.mxu0 %v1732
      %1765 = vmatprep.subr.mxu0 0.0
      %1766 = vmatpush1.msra.mxu0 %v1731
      %1767 = vmatprep.subr.mxu0 0.0
      %1768 = vmatpush2.msra.mxu0 0.0
      %1769 = vmatprep.subr.mxu0 0.0
      %1770 = vmatpush2.msra.mxu0 0.0
      %1771 = vmatprep.subr.mxu0 0.0
      %1772 = vmatpush2.msra.mxu0 0.0
      %1773 = vmatprep.subr.mxu0 0.0
      %1774 = vmatpush2.msra.mxu0 0.0
      %1775 = vmatprep.subr.mxu0 0.0
      %1776 = vmatpush2.msra.mxu0 0.0
      %1777 = vmatprep.subr.mxu0 0.0
      %1778 = vmatpush2.msra.mxu0 0.0
      %1779 = vmatprep.subr.mxu0 0.0
      %1780 = vmatpush2.msra.mxu0 0.0
      %1781 = vmatprep.subr.mxu0 0.0
      %1782 = vmatpush2.msra.mxu0 0.0
      %1783 = vmatprep.subr.mxu0 0.0
      %1784 = vmatpush2.msra.mxu0 0.0
      %1785 = vmatprep.subr.mxu0 0.0
      %1786 = vmatpush2.msra.mxu0 0.0
      %1787 = vmatprep.subr.mxu0 0.0
      %1788 = vmatpush2.msra.mxu0 0.0
      %1789 = vmatprep.subr.mxu0 0.0
      %1790 = vmatpush2.msra.mxu0 0.0
      %1791 = vmatprep.subr.mxu0 0.0
      %1792 = vmatpush2.msra.mxu0 0.0
      %1793 = vmatprep.subr.mxu0 0.0
      %1794 = vmatpush2.msra.mxu0 0.0
      %1795 = vmatprep.subr.mxu0 0.0
      %1796 = vmatpush2.msra.mxu0 0.0
      %1797 = vmatprep.subr.mxu0 0.0
      %1798 = vmatpush2.msra.mxu0 0.0
      %1799 = vmatprep.mubr.f32.mxu0 0.0
      %1800 = vmatmul.mubr.f32.gmra.mxu0 %v1203
      %v1801 = vpop.f32.mrf.mxu0
      %v1802 = vadd.f32 0.0, %v1801
      %v1803 = vpop.f32.mrf.mxu0
      %1804 = vmatprep.mubr.f32.mxu0 0.0
      %1805 = vmatmul.mubr.f32.gmra.mxu0 %v1206
      %v1806 = vpop.f32.mrf.mxu0
      %v1807 = vadd.f32 0.0, %v1806
      %v1808 = vpop.f32.mrf.mxu0
      %1809 = vmatprep.mubr.f32.mxu0 0.0
      %1810 = vmatmul.mubr.f32.gmra.mxu0 %v1209
      %v1811 = vpop.f32.mrf.mxu0
      %v1812 = vadd.f32 0.0, %v1811
      %v1813 = vpop.f32.mrf.mxu0
      %1814 = vmatprep.mubr.f32.mxu0 0.0
      %1815 = vmatmul.mubr.f32.gmra.mxu0 %v1212
      %v1816 = vpop.f32.mrf.mxu0
      %v1817 = vadd.f32 0.0, %v1816
      %v1818 = vpop.f32.mrf.mxu0
      %1819 = vmatprep.mubr.f32.mxu0 0.0
      %1820 = vmatmul.mubr.f32.gmra.mxu0 %v1215
      %v1821 = vpop.f32.mrf.mxu0
      %v1822 = vadd.f32 0.0, %v1821
      %v1823 = vpop.f32.mrf.mxu0
      %1824 = vmatprep.mubr.f32.mxu0 0.0
      %1825 = vmatmul.mubr.f32.gmra.mxu0 %v1218
      %v1826 = vpop.f32.mrf.mxu0
      %v1827 = vadd.f32 0.0, %v1826
      %v1828 = vpop.f32.mrf.mxu0
      %1829 = vmatprep.mubr.f32.mxu0 0.0
      %1830 = vmatmul.mubr.f32.gmra.mxu0 %v1221
      %v1831 = vpop.f32.mrf.mxu0
      %v1832 = vadd.f32 0.0, %v1831
      %v1833 = vpop.f32.mrf.mxu0
      %1834 = vmatprep.mubr.f32.mxu0 0.0
      %1835 = vmatmul.mubr.f32.gmra.mxu0 %v1224
      %v1836 = vpop.f32.mrf.mxu0
      %v1837 = vadd.f32 0.0, %v1836
      %v1838 = vpop.f32.mrf.mxu0
      %1839 = vdwg.mxu0
      %v1840 = vadd.f32 %v1692, %v1802
      %v1841 = vadd.f32 %v1697, %v1807
      %v1842 = vadd.f32 %v1702, %v1812
      %v1843 = vadd.f32 %v1707, %v1817
      %v1844 = vadd.f32 %v1712, %v1822
      %v1845 = vadd.f32 %v1717, %v1827
      %v1846 = vadd.f32 %v1722, %v1832
      %v1847 = vadd.f32 %v1727, %v1837
      %v1848 = vld [vmem:[%s2] sm:$0xff]
      %v1849 = vld [vmem:[%s2 + $0x8] sm:$0xff]
      %v1850 = vld [vmem:[%s2 + $0x10] sm:$0xff]
      %v1851 = vld [vmem:[%s2 + $0x18] sm:$0xff]
      %v1853 = vsel %vm680, %v631, 0
      %v1856 = vsel %vm680, %v636, 0
      %v1859 = vsel %vm680, %v641, 0
      %v1862 = vsel %vm680, %v646, 0
      %v1865 = vsel %vm680, %v651, 0
      %v1868 = vsel %vm680, %v656, 0
      %v1871 = vsel %vm680, %v661, 0
      %v1874 = vsel %vm680, %v666, 0
      %1876 = vmatprep.subr.mxu0 0.0
      %1877 = vmatpush1.msra.mxu0 0.0
      %1878 = vmatprep.subr.mxu0 0.0
      %1879 = vmatpush1.msra.mxu0 0.0
      %1880 = vmatprep.subr.mxu0 0.0
      %1881 = vmatpush1.msra.mxu0 0.0
      %1882 = vmatprep.subr.mxu0 0.0
      %1883 = vmatpush1.msra.mxu0 0.0
      %1884 = vmatprep.subr.mxu0 0.0
      %1885 = vmatpush1.msra.mxu0 0.0
      %1886 = vmatprep.subr.mxu0 0.0
      %1887 = vmatpush1.msra.mxu0 0.0
      %1888 = vmatprep.subr.mxu0 0.0
      %1889 = vmatpush1.msra.mxu0 0.0
      %1890 = vmatprep.subr.mxu0 0.0
      %1891 = vmatpush1.msra.mxu0 0.0
      %1892 = vmatprep.subr.mxu0 0.0
      %1893 = vmatpush1.msra.mxu0 0.0
      %1894 = vmatprep.subr.mxu0 0.0
      %1895 = vmatpush1.msra.mxu0 0.0
      %1896 = vmatprep.subr.mxu0 0.0
      %1897 = vmatpush1.msra.mxu0 0.0
      %1898 = vmatprep.subr.mxu0 0.0
      %1899 = vmatpush1.msra.mxu0 0.0
      %1900 = vmatprep.subr.mxu0 0.0
      %1901 = vmatpush1.msra.mxu0 %v1851
      %1902 = vmatprep.subr.mxu0 0.0
      %1903 = vmatpush1.msra.mxu0 %v1850
      %1904 = vmatprep.subr.mxu0 0.0
      %1905 = vmatpush1.msra.mxu0 %v1849
      %1906 = vmatprep.subr.mxu0 0.0
      %1907 = vmatpush1.msra.mxu0 %v1848
      %1908 = vmatprep.subr.mxu0 0.0
      %1909 = vmatpush2.msra.mxu0 0.0
      %1910 = vmatprep.subr.mxu0 0.0
      %1911 = vmatpush2.msra.mxu0 0.0
      %1912 = vmatprep.subr.mxu0 0.0
      %1913 = vmatpush2.msra.mxu0 0.0
      %1914 = vmatprep.subr.mxu0 0.0
      %1915 = vmatpush2.msra.mxu0 0.0
      %1916 = vmatprep.subr.mxu0 0.0
      %1917 = vmatpush2.msra.mxu0 0.0
      %1918 = vmatprep.subr.mxu0 0.0
      %1919 = vmatpush2.msra.mxu0 0.0
      %1920 = vmatprep.subr.mxu0 0.0
      %1921 = vmatpush2.msra.mxu0 0.0
      %1922 = vmatprep.subr.mxu0 0.0
      %1923 = vmatpush2.msra.mxu0 0.0
      %1924 = vmatprep.subr.mxu0 0.0
      %1925 = vmatpush2.msra.mxu0 0.0
      %1926 = vmatprep.subr.mxu0 0.0
      %1927 = vmatpush2.msra.mxu0 0.0
      %1928 = vmatprep.subr.mxu0 0.0
      %1929 = vmatpush2.msra.mxu0 0.0
      %1930 = vmatprep.subr.mxu0 0.0
      %1931 = vmatpush2.msra.mxu0 0.0
      %1932 = vmatprep.subr.mxu0 0.0
      %1933 = vmatpush2.msra.mxu0 0.0
      %1934 = vmatprep.subr.mxu0 0.0
      %1935 = vmatpush2.msra.mxu0 0.0
      %1936 = vmatprep.subr.mxu0 0.0
      %1937 = vmatpush2.msra.mxu0 0.0
      %1938 = vmatprep.subr.mxu0 0.0
      %1939 = vmatpush2.msra.mxu0 0.0
      %1940 = vmatprep.mubr.f32.mxu0 0.0
      %1941 = vmatmul.mubr.f32.gmra.mxu0 %v1853
      %v1942 = vpop.f32.mrf.mxu0
      %v1943 = vadd.f32 0.0, %v1942
      %v1944 = vpop.f32.mrf.mxu0
      %1945 = vmatprep.mubr.f32.mxu0 0.0
      %1946 = vmatmul.mubr.f32.gmra.mxu0 %v1856
      %v1947 = vpop.f32.mrf.mxu0
      %v1948 = vadd.f32 0.0, %v1947
      %v1949 = vpop.f32.mrf.mxu0
      %1950 = vmatprep.mubr.f32.mxu0 0.0
      %1951 = vmatmul.mubr.f32.gmra.mxu0 %v1859
      %v1952 = vpop.f32.mrf.mxu0
      %v1953 = vadd.f32 0.0, %v1952
      %v1954 = vpop.f32.mrf.mxu0
      %1955 = vmatprep.mubr.f32.mxu0 0.0
      %1956 = vmatmul.mubr.f32.gmra.mxu0 %v1862
      %v1957 = vpop.f32.mrf.mxu0
      %v1958 = vadd.f32 0.0, %v1957
      %v1959 = vpop.f32.mrf.mxu0
      %1960 = vmatprep.mubr.f32.mxu0 0.0
      %1961 = vmatmul.mubr.f32.gmra.mxu0 %v1865
      %v1962 = vpop.f32.mrf.mxu0
      %v1963 = vadd.f32 0.0, %v1962
      %v1964 = vpop.f32.mrf.mxu0
      %1965 = vmatprep.mubr.f32.mxu0 0.0
      %1966 = vmatmul.mubr.f32.gmra.mxu0 %v1868
      %v1967 = vpop.f32.mrf.mxu0
      %v1968 = vadd.f32 0.0, %v1967
      %v1969 = vpop.f32.mrf.mxu0
      %1970 = vmatprep.mubr.f32.mxu0 0.0
      %1971 = vmatmul.mubr.f32.gmra.mxu0 %v1871
      %v1972 = vpop.f32.mrf.mxu0
      %v1973 = vadd.f32 0.0, %v1972
      %v1974 = vpop.f32.mrf.mxu0
      %1975 = vmatprep.mubr.f32.mxu0 0.0
      %1976 = vmatmul.mubr.f32.gmra.mxu0 %v1874
      %v1977 = vpop.f32.mrf.mxu0
      %v1978 = vadd.f32 0.0, %v1977
      %v1979 = vpop.f32.mrf.mxu0
      %1980 = vdwg.mxu0
      %v1981 = vadd.f32 %v1840, %v1943
      %v1982 = vadd.f32 %v1841, %v1948
      %v1983 = vadd.f32 %v1842, %v1953
      %v1984 = vadd.f32 %v1843, %v1958
      %v1985 = vadd.f32 %v1844, %v1963
      %v1986 = vadd.f32 %v1845, %v1968
      %v1987 = vadd.f32 %v1846, %v1973
      %v1988 = vadd.f32 %v1847, %v1978
      %v1989 = vadd.f32 %v1981, %v678
      %v1990 = vadd.f32 %v1982, %v678
      %v1991 = vadd.f32 %v1983, %v678
      %v1992 = vadd.f32 %v1984, %v678
      %v1993 = vadd.f32 %v1985, %v678
      %v1994 = vadd.f32 %v1986, %v678
      %v1995 = vadd.f32 %v1987, %v678
      %v1996 = vadd.f32 %v1988, %v678
      %v1997 = vmul.f32 %v1989, 0.5
      %v1998 = vmul.f32 %v1990, 0.5
      %v1999 = vmul.f32 %v1991, 0.5
      %v2000 = vmul.f32 %v1992, 0.5
      %v2001 = vmul.f32 %v1993, 0.5
      %v2002 = vmul.f32 %v1994, 0.5
      %v2003 = vmul.f32 %v1995, 0.5
      %v2004 = vmul.f32 %v1996, 0.5
      %v2005 = vmul.f32 %v1989, 0.70710677
      %v2006 = vmul.f32 %v1990, 0.70710677
      %v2007 = vmul.f32 %v1991, 0.70710677
      %v2008 = vmul.f32 %v1992, 0.70710677
      %v2009 = vmul.f32 %v1993, 0.70710677
      %v2010 = vmul.f32 %v1994, 0.70710677
      %v2011 = vmul.f32 %v1995, 0.70710677
      %v2012 = vmul.f32 %v1996, 0.70710677
      %v2013 = verf.f32.pop %v2005
      %v2014 = verf.f32.pop %v2006
      %v2015 = verf.f32.pop %v2007
      %v2016 = verf.f32.pop %v2008
      %v2017 = verf.f32.pop %v2009
      %v2018 = verf.f32.pop %v2010
      %v2019 = verf.f32.pop %v2011
      %v2020 = verf.f32.pop %v2012
      %v2021 = vadd.f32 %v2013, 1.0
      %v2022 = vadd.f32 %v2014, 1.0
      %v2023 = vadd.f32 %v2015, 1.0
      %v2024 = vadd.f32 %v2016, 1.0
      %v2025 = vadd.f32 %v2017, 1.0
      %v2026 = vadd.f32 %v2018, 1.0
      %v2027 = vadd.f32 %v2019, 1.0
      %v2028 = vadd.f32 %v2020, 1.0
      %v2029 = vmul.f32 %v1997, %v2021
      %v2030 = vmul.f32 %v1998, %v2022
      %v2031 = vmul.f32 %v1999, %v2023
      %v2032 = vmul.f32 %v2000, %v2024
      %v2033 = vmul.f32 %v2001, %v2025
      %v2034 = vmul.f32 %v2002, %v2026
      %v2035 = vmul.f32 %v2003, %v2027
      %v2036 = vmul.f32 %v2004, %v2028
      %s2037 = scalar_lea.vmem %s239, 192
      %v2038 = vld [vmem:[%s2037] sm:$0xff]
      %v2039 = vld [vmem:[%s2037 + $0x8] sm:$0xff]
      %v2040 = vld [vmem:[%s2037 + $0x10] sm:$0xff]
      %v2041 = vld [vmem:[%s2037 + $0x18] sm:$0xff]
      %v2042 = vld [vmem:[%s2037 + $0x20] sm:$0xff]
      %v2043 = vld [vmem:[%s2037 + $0x28] sm:$0xff]
      %v2044 = vld [vmem:[%s2037 + $0x30] sm:$0xff]
      %v2045 = vld [vmem:[%s2037 + $0x38] sm:$0xff]
      %v2046 = vadd.f32 %v2029, %v2038
      %v2047 = vadd.f32 %v2030, %v2039
      %v2048 = vadd.f32 %v2031, %v2040
      %v2049 = vadd.f32 %v2032, %v2041
      %v2050 = vadd.f32 %v2033, %v2042
      %v2051 = vadd.f32 %v2034, %v2043
      %v2052 = vadd.f32 %v2035, %v2044
      %v2053 = vadd.f32 %v2036, %v2045
      %s2054 = scalar_lea.vmem %s244, 192
      %2055 = vst.msk [vmem:[%s2054] sm:$0xff] %vm680, %v2046
      %2056 = vst.msk [vmem:[%s2054 + $0x8] sm:$0xff] %vm680, %v2047
      %2057 = vst.msk [vmem:[%s2054 + $0x10] sm:$0xff] %vm680, %v2048
      %2058 = vst.msk [vmem:[%s2054 + $0x18] sm:$0xff] %vm680, %v2049
      %2059 = vst.msk [vmem:[%s2054 + $0x20] sm:$0xff] %vm680, %v2050
      %2060 = vst.msk [vmem:[%s2054 + $0x28] sm:$0xff] %vm680, %v2051
      %2061 = vst.msk [vmem:[%s2054 + $0x30] sm:$0xff] %vm680, %v2052
      %2062 = vst.msk [vmem:[%s2054 + $0x38] sm:$0xff] %vm680, %v2053
      %p2063 = scmp.lt.s32.totalorder %s16, 1
      %s2064 = scalar_select %p2063, %s16, 1
      %s2065 = smul.addr %s2064, 32
      %s2066 = smul.addr %s2065, 8
      %s2067 = scalar_lea.vmem %s5, %s2066
      // Predicated region
      $region41: #{_lambda_.5} parent=39 // pred_check
        %p2068 = pneg %p149
      $region42: #{_lambda_.5} parent=39 // pred_check_branch
        %2070 = sbr.rel (%p2068) target = $region44
      $region43: #{_lambda_.5} parent=39 // pred_region
        _
      $region44: #{_lambda_.5} parent=39 // pred_fallthru
        _
    $region40: #{_lambda_.5} parent=5 // pred_fallthru
      _
    %p2071 = scmp.le.s32.totalorder 2, %s11
    // Predicated region
    $region45: #{_lambda_.5} parent=5 // pred_check
      %p2072 = pneg %p2071
    $region46: #{_lambda_.5} parent=5 // pred_check_branch
      %2074 = sbr.rel (%p2072) target = $region48
    $region47: #{_lambda_.5} parent=5 // pred_region
      %s2075 = ssub.s32 %s11, 2
      // Predicated region
      $region49: #{_lambda_.5} parent=47 // pred_check
        %p2076 = pneg %p155
      $region50: #{_lambda_.5} parent=47 // pred_check_branch
        %2078 = sbr.rel (%p2076) target = $region52
      $region51: #{_lambda_.5} parent=47 // pred_region
        %p2079 = scmp.lt.s32.totalorder %s17, 1
        %s2080 = scalar_select %p2079, %s17, 1
        %s2081 = smul.addr %s2080, 32
        %s2082 = smul.addr %s2081, 8
        %s2083 = scalar_lea.vmem %s5, %s2082
      $region52: #{_lambda_.5} parent=47 // pred_fallthru
        _
    $region48: #{_lambda_.5} parent=5 // pred_fallthru
      _
  $region6: #{_lambda_.5} parent=0 // loop_footer
    %s15 = sadd.s32 1, %s11
  $region7: #{_lambda_.5} parent=0 // loop_footer_branch
    %10 = sbr.rel target = $region3
  $region8: #{_lambda_.5} parent=0 // loop_exit
    _

// kernel: _lambda_.3
$region0: #{_lambda_.3}
  #allocation0 [shape = 'u32[]', space=smem, size = 0x4, offset = 0x4, fixed_abs, tag = 'smem constant byte address 0x4 - core index']
  #allocation1 [shape = 'u32[144,128]{1,0:T(1,128)}', space=vmem, size = 0x12000, scoped, tag = 'internal scratch']
  %s0 = inlined_call_operand.vmem [shape: f32[2,16,512], index: 0, kind: input, shape index: {}]
  %s1 = inlined_call_operand.vmem [shape: f32[9,16,16], index: 1, kind: input, shape index: {}]
  %s2 = inlined_call_operand.hbm [shape: f32[512,32], index: 2, kind: input, shape index: {}]
  %s3 = inlined_call_operand.vmem [shape: f32[1,32], index: 3, kind: input, shape index: {}]
  %s4 = inlined_call_operand.hbm [shape: f32[54,32,32], index: 4, kind: input, shape index: {}]
  %s5 = inlined_call_operand.vmem [shape: f32[6,1,32], index: 5, kind: input, shape index: {}]
  %s6 = inlined_call_operand.vmem [shape: f32[54,32,32], index: 6, kind: input, shape index: {}]
  %s7 = inlined_call_operand.vmem [shape: f32[6,1,32], index: 7, kind: input, shape index: {}]
  %s8 = inlined_call_operand.vmem [shape: f32[6,2,32], index: 8, kind: input, shape index: {}]
  %s9 = inlined_call_operand.vmem [shape: f32[6,2,32], index: 9, kind: input, shape index: {}]
  %s10 = inlined_call_operand.vmem [shape: f32[2,16,32], index: 10, kind: output, shape index: {}]
  %s11 = sld [smem:[#allocation0]]
  $region88: #{_lambda_.3} parent=0
    _
  %s13 = ssub.s32 1, %s11
  %s14 = scalar_select 0, %s13, %s11
  $region1: #{_lambda_.3} parent=0
    #allocation2 [shape = 'u8[262144]{0}', space=vmem, size = 0x40000, scoped, tag = 'input window, operand 2, single buffered']
    #allocation3 [shape = 's32[2]{0}', space=sflag, size = 0x8, scoped, tag = 'scoped memory for _lambda_.3']
    #allocation4 [shape = 'u8[884736]{0}', space=vmem, size = 0xd8000, scoped, tag = 'input window, operand 4, single buffered']
    #allocation5 [shape = 's32[1]{0}', space=sflag, size = 0x4, scoped, tag = 'scoped memory for _lambda_.3']
    %15 = vsyncpa [#allocation3], 0
    %16 = vsyncpa [#allocation5], 0
    loop: start=0, step=1, limit=4
    $region2: #{_lambda_.3} parent=1 // loop_pre_header
      _
    $region3: #{_lambda_.3} parent=1 // loop_header
      %s18 = sphi 0, %s22
      %p19 = scmp.ge.s32.totalorder %s18, 4
      %s28 = sphi 0, %s30
      %s31 = sphi 0, %s28
      %s32 = sphi 0, %s31
      %s48 = sphi 0, %s32
      %s52 = sphi 0, %s52
      %s54 = sphi 0, %s52
      %s55 = sphi 0, %s54
      %s69 = sphi 0, %s55
      %s73 = sphi 0, %s73
      %s75 = sphi 0, %s73
      %s76 = sphi 0, %s75
      %s90 = sphi 0, %s76
      %s94 = sphi 0, %s94
      %s96 = sphi 0, %s94
      %s97 = sphi 0, %s96
      %s111 = sphi 0, %s97
      %s115 = sphi 0, %s115
      %s117 = sphi 0, %s115
      %s118 = sphi 0, %s117
      %s132 = sphi 0, %s118
      %s136 = sphi 0, %s136
      %s138 = sphi 0, %s136
      %s139 = sphi 0, %s138
      %s153 = sphi 0, %s139
      %s157 = sphi 0, %s157
      %s159 = sphi 0, %s157
      %s160 = sphi 0, %s159
      %s174 = sphi 0, %s160
      %s178 = sphi 0, %s178
      %s180 = sphi 0, %s178
      %s181 = sphi 0, %s180
      %s195 = sphi 0, %s181
      %s199 = sphi 0, %s199
      %s201 = sphi 0, %s199
      %s202 = sphi 0, %s201
      %s216 = sphi 0, %s202
      %s220 = sphi 0, %s220
      %s222 = sphi 0, %s220
      %s223 = sphi 0, %s222
      %s237 = sphi 0, %s223
      %s243 = sphi 0, %s245
      %s246 = sphi 0, %s243
      %s247 = sphi 0, %s246
      %s263 = sphi 0, %s247
    $region4: #{_lambda_.3} parent=1 // loop_header_branch
      %21 = sbr.rel (%p19) target = $region8
    $region5: #{_lambda_.3} parent=1 // loop_body
      %s23 = ssub.s32 %s18, 1
      %s24 = ssub.s32 %s18, 2
      %s25 = sadd.s32 %s18, 1
      %s26 = ssub.s32 %s18, %s25
      %p27 = scmp.eq.s32.totalorder %s26, 0
      %s29 = sadd.s32 %s28, 1
      %s30 = scalar_select %p27, %s28, %s29
      %p33 = pneg %p27
      %p34 = scmp.eq.s32.totalorder %s18, 1
      %p35 = por %p33, %p34
      %p36 = scmp.ne.s32.totalorder %s28, %s31
      %p37 = scmp.eq.s32.totalorder %s18, 0
      %p38 = por %p36, %p37
      %p39 = scmp.ne.s32.totalorder %s28, %s31
      %p40 = scmp.eq.s32.totalorder %s23, 1
      %p41 = por %p39, %p40
      %p42 = scmp.ne.s32.totalorder %s31, %s32
      %p43 = scmp.eq.s32.totalorder %s23, 0
      %p44 = por %p42, %p43
      %p45 = scmp.ne.s32.totalorder %s31, %s32
      %p46 = scmp.eq.s32.totalorder %s24, 1
      %p47 = por %p45, %p46
      %p49 = scmp.ne.s32.totalorder %s32, %s48
      %p50 = scmp.eq.s32.totalorder %s24, 0
      %p51 = por %p49, %p50
      %s53 = sadd.s32 %s52, 1
      %p56 = scmp.eq.s32.totalorder %s18, 1
      %p57 = scmp.ne.s32.totalorder %s52, %s54
      %p58 = scmp.eq.s32.totalorder %s18, 0
      %p59 = por %p57, %p58
      %p60 = scmp.ne.s32.totalorder %s52, %s54
      %p61 = scmp.eq.s32.totalorder %s23, 1
      %p62 = por %p60, %p61
      %p63 = scmp.ne.s32.totalorder %s54, %s55
      %p64 = scmp.eq.s32.totalorder %s23, 0
      %p65 = por %p63, %p64
      %p66 = scmp.ne.s32.totalorder %s54, %s55
      %p67 = scmp.eq.s32.totalorder %s24, 1
      %p68 = por %p66, %p67
      %p70 = scmp.ne.s32.totalorder %s55, %s69
      %p71 = scmp.eq.s32.totalorder %s24, 0
      %p72 = por %p70, %p71
      %s74 = sadd.s32 %s73, 1
      %p77 = scmp.eq.s32.totalorder %s18, 1
      %p78 = scmp.ne.s32.totalorder %s73, %s75
      %p79 = scmp.eq.s32.totalorder %s18, 0
      %p80 = por %p78, %p79
      %p81 = scmp.ne.s32.totalorder %s73, %s75
      %p82 = scmp.eq.s32.totalorder %s23, 1
      %p83 = por %p81, %p82
      %p84 = scmp.ne.s32.totalorder %s75, %s76
      %p85 = scmp.eq.s32.totalorder %s23, 0
      %p86 = por %p84, %p85
      %p87 = scmp.ne.s32.totalorder %s75, %s76
      %p88 = scmp.eq.s32.totalorder %s24, 1
      %p89 = por %p87, %p88
      %p91 = scmp.ne.s32.totalorder %s76, %s90
      %p92 = scmp.eq.s32.totalorder %s24, 0
      %p93 = por %p91, %p92
      %s95 = sadd.s32 %s94, 1
      %p98 = scmp.eq.s32.totalorder %s18, 1
      %p99 = scmp.ne.s32.totalorder %s94, %s96
      %p100 = scmp.eq.s32.totalorder %s18, 0
      %p101 = por %p99, %p100
      %p102 = scmp.ne.s32.totalorder %s94, %s96
      %p103 = scmp.eq.s32.totalorder %s23, 1
      %p104 = por %p102, %p103
      %p105 = scmp.ne.s32.totalorder %s96, %s97
      %p106 = scmp.eq.s32.totalorder %s23, 0
      %p107 = por %p105, %p106
      %p108 = scmp.ne.s32.totalorder %s96, %s97
      %p109 = scmp.eq.s32.totalorder %s24, 1
      %p110 = por %p108, %p109
      %p112 = scmp.ne.s32.totalorder %s97, %s111
      %p113 = scmp.eq.s32.totalorder %s24, 0
      %p114 = por %p112, %p113
      %s116 = sadd.s32 %s115, 1
      %p119 = scmp.eq.s32.totalorder %s18, 1
      %p120 = scmp.ne.s32.totalorder %s115, %s117
      %p121 = scmp.eq.s32.totalorder %s18, 0
      %p122 = por %p120, %p121
      %p123 = scmp.ne.s32.totalorder %s115, %s117
      %p124 = scmp.eq.s32.totalorder %s23, 1
      %p125 = por %p123, %p124
      %p126 = scmp.ne.s32.totalorder %s117, %s118
      %p127 = scmp.eq.s32.totalorder %s23, 0
      %p128 = por %p126, %p127
      %p129 = scmp.ne.s32.totalorder %s117, %s118
      %p130 = scmp.eq.s32.totalorder %s24, 1
      %p131 = por %p129, %p130
      %p133 = scmp.ne.s32.totalorder %s118, %s132
      %p134 = scmp.eq.s32.totalorder %s24, 0
      %p135 = por %p133, %p134
      %s137 = sadd.s32 %s136, 1
      %p140 = scmp.eq.s32.totalorder %s18, 1
      %p141 = scmp.ne.s32.totalorder %s136, %s138
      %p142 = scmp.eq.s32.totalorder %s18, 0
      %p143 = por %p141, %p142
      %p144 = scmp.ne.s32.totalorder %s136, %s138
      %p145 = scmp.eq.s32.totalorder %s23, 1
      %p146 = por %p144, %p145
      %p147 = scmp.ne.s32.totalorder %s138, %s139
      %p148 = scmp.eq.s32.totalorder %s23, 0
      %p149 = por %p147, %p148
      %p150 = scmp.ne.s32.totalorder %s138, %s139
      %p151 = scmp.eq.s32.totalorder %s24, 1
      %p152 = por %p150, %p151
      %p154 = scmp.ne.s32.totalorder %s139, %s153
      %p155 = scmp.eq.s32.totalorder %s24, 0
      %p156 = por %p154, %p155
      %s158 = sadd.s32 %s157, 1
      %p161 = scmp.eq.s32.totalorder %s18, 1
      %p162 = scmp.ne.s32.totalorder %s157, %s159
      %p163 = scmp.eq.s32.totalorder %s18, 0
      %p164 = por %p162, %p163
      %p165 = scmp.ne.s32.totalorder %s157, %s159
      %p166 = scmp.eq.s32.totalorder %s23, 1
      %p167 = por %p165, %p166
      %p168 = scmp.ne.s32.totalorder %s159, %s160
      %p169 = scmp.eq.s32.totalorder %s23, 0
      %p170 = por %p168, %p169
      %p171 = scmp.ne.s32.totalorder %s159, %s160
      %p172 = scmp.eq.s32.totalorder %s24, 1
      %p173 = por %p171, %p172
      %p175 = scmp.ne.s32.totalorder %s160, %s174
      %p176 = scmp.eq.s32.totalorder %s24, 0
      %p177 = por %p175, %p176
      %s179 = sadd.s32 %s178, 1
      %p182 = scmp.eq.s32.totalorder %s18, 1
      %p183 = scmp.ne.s32.totalorder %s178, %s180
      %p184 = scmp.eq.s32.totalorder %s18, 0
      %p185 = por %p183, %p184
      %p186 = scmp.ne.s32.totalorder %s178, %s180
      %p187 = scmp.eq.s32.totalorder %s23, 1
      %p188 = por %p186, %p187
      %p189 = scmp.ne.s32.totalorder %s180, %s181
      %p190 = scmp.eq.s32.totalorder %s23, 0
      %p191 = por %p189, %p190
      %p192 = scmp.ne.s32.totalorder %s180, %s181
      %p193 = scmp.eq.s32.totalorder %s24, 1
      %p194 = por %p192, %p193
      %p196 = scmp.ne.s32.totalorder %s181, %s195
      %p197 = scmp.eq.s32.totalorder %s24, 0
      %p198 = por %p196, %p197
      %s200 = sadd.s32 %s199, 1
      %p203 = scmp.eq.s32.totalorder %s18, 1
      %p204 = scmp.ne.s32.totalorder %s199, %s201
      %p205 = scmp.eq.s32.totalorder %s18, 0
      %p206 = por %p204, %p205
      %p207 = scmp.ne.s32.totalorder %s199, %s201
      %p208 = scmp.eq.s32.totalorder %s23, 1
      %p209 = por %p207, %p208
      %p210 = scmp.ne.s32.totalorder %s201, %s202
      %p211 = scmp.eq.s32.totalorder %s23, 0
      %p212 = por %p210, %p211
      %p213 = scmp.ne.s32.totalorder %s201, %s202
      %p214 = scmp.eq.s32.totalorder %s24, 1
      %p215 = por %p213, %p214
      %p217 = scmp.ne.s32.totalorder %s202, %s216
      %p218 = scmp.eq.s32.totalorder %s24, 0
      %p219 = por %p217, %p218
      %s221 = sadd.s32 %s220, 1
      %p224 = scmp.eq.s32.totalorder %s18, 1
      %p225 = scmp.ne.s32.totalorder %s220, %s222
      %p226 = scmp.eq.s32.totalorder %s18, 0
      %p227 = por %p225, %p226
      %p228 = scmp.ne.s32.totalorder %s220, %s222
      %p229 = scmp.eq.s32.totalorder %s23, 1
      %p230 = por %p228, %p229
      %p231 = scmp.ne.s32.totalorder %s222, %s223
      %p232 = scmp.eq.s32.totalorder %s23, 0
      %p233 = por %p231, %p232
      %p234 = scmp.ne.s32.totalorder %s222, %s223
      %p235 = scmp.eq.s32.totalorder %s24, 1
      %p236 = por %p234, %p235
      %p238 = scmp.ne.s32.totalorder %s223, %s237
      %p239 = scmp.eq.s32.totalorder %s24, 0
      %p240 = por %p238, %p239
      %s241 = ssub.s32 %s18, %s25
      %p242 = scmp.eq.s32.totalorder %s241, 0
      %s244 = sadd.s32 %s243, 1
      %s245 = scalar_select %p242, %s243, %s244
      %p248 = pneg %p242
      %p249 = scmp.eq.s32.totalorder %s18, 1
      %p250 = por %p248, %p249
      %p251 = scmp.ne.s32.totalorder %s243, %s246
      %p252 = scmp.eq.s32.totalorder %s18, 0
      %p253 = por %p251, %p252
      %p254 = scmp.ne.s32.totalorder %s243, %s246
      %p255 = scmp.eq.s32.totalorder %s23, 1
      %p256 = por %p254, %p255
      %p257 = scmp.ne.s32.totalorder %s246, %s247
      %p258 = scmp.eq.s32.totalorder %s23, 0
      %p259 = por %p257, %p258
      %p260 = scmp.ne.s32.totalorder %s246, %s247
      %p261 = scmp.eq.s32.totalorder %s24, 1
      %p262 = por %p260, %p261
      %p264 = scmp.ne.s32.totalorder %s247, %s263
      %p265 = scmp.eq.s32.totalorder %s24, 0
      %p266 = por %p264, %p265
      %p267 = scmp.le.s32.totalorder 1, %s18
      %p268 = scmp.lt.s32.totalorder %s18, 3
      %p269 = pnand %p267, %p268
      %p270 = pneg %p269
      // Predicated region
      $region9: #{_lambda_.3} parent=5 // pred_check
        _
      $region10: #{_lambda_.3} parent=5 // pred_check_branch
        %272 = sbr.rel (%p269) target = $region12
      $region11: #{_lambda_.3} parent=5 // pred_region
        %s273 = ssub.s32 %s18, 1
        // Predicated region
        $region13: #{_lambda_.3} parent=11 // pred_check
          %p274 = pneg %p65
        $region14: #{_lambda_.3} parent=11 // pred_check_branch
          %276 = sbr.rel (%p274) target = $region16
        $region15: #{_lambda_.3} parent=11 // pred_region
          _
        $region16: #{_lambda_.3} parent=11 // pred_fallthru
          _
        // Predicated region
        $region17: #{_lambda_.3} parent=11 // pred_check
          %p277 = pneg %p86
        $region18: #{_lambda_.3} parent=11 // pred_check_branch
          %279 = sbr.rel (%p277) target = $region20
        $region19: #{_lambda_.3} parent=11 // pred_region
          %s281 = ssub.s32 8192, 8192
          %282 = vsyncadd [#allocation3], %s281
          %s283 = sshll.u32 [#allocation2], 4
          %s284 = int_to_ptr.vmem [resolvable:$true] %s283
          %289 = dma.hbm_to_vmem [thread:$0]  %s2, 8192, %s284, [#allocation3], 128, 128, 8
        $region20: #{_lambda_.3} parent=11 // pred_fallthru
          _
        // Predicated region
        $region21: #{_lambda_.3} parent=11 // pred_check
          %p290 = pneg %p107
        $region22: #{_lambda_.3} parent=11 // pred_check_branch
          %292 = sbr.rel (%p290) target = $region24
        $region23: #{_lambda_.3} parent=11 // pred_region
          _
        $region24: #{_lambda_.3} parent=11 // pred_fallthru
          _
        // Predicated region
        $region25: #{_lambda_.3} parent=11 // pred_check
          %p293 = pneg %p128
        $region26: #{_lambda_.3} parent=11 // pred_check_branch
          %295 = sbr.rel (%p293) target = $region28
        $region27: #{_lambda_.3} parent=11 // pred_region
          %s297 = ssub.s32 27648, 27648
          %298 = vsyncadd [#allocation5], %s297
          %s299 = sshll.u32 [#allocation4], 4
          %s300 = int_to_ptr.vmem [resolvable:$true] %s299
          %305 = dma.hbm_to_vmem [thread:$0]  %s4, 27648, %s300, [#allocation5], 128, 128, 8
        $region28: #{_lambda_.3} parent=11 // pred_fallthru
          _
        // Predicated region
        $region29: #{_lambda_.3} parent=11 // pred_check
          %p306 = pneg %p149
        $region30: #{_lambda_.3} parent=11 // pred_check_branch
          %308 = sbr.rel (%p306) target = $region32
        $region31: #{_lambda_.3} parent=11 // pred_region
          _
        $region32: #{_lambda_.3} parent=11 // pred_fallthru
          _
        // Predicated region
        $region33: #{_lambda_.3} parent=11 // pred_check
          %p309 = pneg %p170
        $region34: #{_lambda_.3} parent=11 // pred_check_branch
          %311 = sbr.rel (%p309) target = $region36
        $region35: #{_lambda_.3} parent=11 // pred_region
          _
        $region36: #{_lambda_.3} parent=11 // pred_fallthru
          _
        // Predicated region
        $region37: #{_lambda_.3} parent=11 // pred_check
          %p312 = pneg %p191
        $region38: #{_lambda_.3} parent=11 // pred_check_branch
          %314 = sbr.rel (%p312) target = $region40
        $region39: #{_lambda_.3} parent=11 // pred_region
          _
        $region40: #{_lambda_.3} parent=11 // pred_fallthru
          _
        // Predicated region
        $region41: #{_lambda_.3} parent=11 // pred_check
          %p315 = pneg %p212
        $region42: #{_lambda_.3} parent=11 // pred_check_branch
          %317 = sbr.rel (%p315) target = $region44
        $region43: #{_lambda_.3} parent=11 // pred_region
          _
        $region44: #{_lambda_.3} parent=11 // pred_fallthru
          _
        // Predicated region
        $region45: #{_lambda_.3} parent=11 // pred_check
          %p318 = pneg %p233
        $region46: #{_lambda_.3} parent=11 // pred_check_branch
          %320 = sbr.rel (%p318) target = $region48
        $region47: #{_lambda_.3} parent=11 // pred_region
          _
        $region48: #{_lambda_.3} parent=11 // pred_fallthru
          _
      $region12: #{_lambda_.3} parent=5 // pred_fallthru
        _
      %p321 = scmp.lt.s32.totalorder %s18, 2
      // Predicated region
      $region49: #{_lambda_.3} parent=5 // pred_check
        %p322 = pneg %p321
      $region50: #{_lambda_.3} parent=5 // pred_check_branch
        %324 = sbr.rel (%p322) target = $region52
      $region51: #{_lambda_.3} parent=5 // pred_region
        // Predicated region
        $region53: #{_lambda_.3} parent=51 // pred_check
          %p325 = pneg %p38
        $region54: #{_lambda_.3} parent=51 // pred_check_branch
          %327 = sbr.rel (%p325) target = $region56
        $region55: #{_lambda_.3} parent=51 // pred_region
          %p328 = scmp.lt.s32.totalorder %s18, 1
          %s329 = scalar_select %p328, %s18, 1
          %s330 = smul.addr %s329, 8
          %s331 = smul.addr %s330, 8
          %s332 = scalar_lea.vmem %s0, %s331
        $region56: #{_lambda_.3} parent=51 // pred_fallthru
          _
      $region52: #{_lambda_.3} parent=5 // pred_fallthru
        _
      %p333 = scmp.le.s32.totalorder 1, %s18
      %p334 = scmp.lt.s32.totalorder %s18, 3
      %p335 = pnand %p333, %p334
      %p336 = pneg %p335
      // Predicated region
      $region57: #{_lambda_.3} parent=5 // pred_check
        _
      $region58: #{_lambda_.3} parent=5 // pred_check_branch
        %338 = sbr.rel (%p335) target = $region60
      $region59: #{_lambda_.3} parent=5 // pred_region
        %s339 = ssub.s32 %s18, 1
        // Predicated region
        $region61: #{_lambda_.3} parent=59 // pred_check
          %p340 = pneg %p86
        $region62: #{_lambda_.3} parent=59 // pred_check_branch
          %342 = sbr.rel (%p340) target = $region64
        $region63: #{_lambda_.3} parent=59 // pred_region
          %343 = dma.done [#allocation3], 8192
        $region64: #{_lambda_.3} parent=59 // pred_fallthru
          _
        // Predicated region
        $region65: #{_lambda_.3} parent=59 // pred_check
          %p344 = pneg %p128
        $region66: #{_lambda_.3} parent=59 // pred_check_branch
          %346 = sbr.rel (%p344) target = $region68
        $region67: #{_lambda_.3} parent=59 // pred_region
          %347 = dma.done [#allocation5], 27648
        $region68: #{_lambda_.3} parent=59 // pred_fallthru
          _
        %p348 = scmp.lt.s32.totalorder %s23, 1
        %s349 = scalar_select %p348, %s23, 1
        %s350 = smul.addr %s349, 8
        %s351 = smul.addr %s350, 8
        %s352 = scalar_lea.vmem %s0, %s351
        %p353 = pneg %p44
        %p354 = pneg %p41
        %p355 = pneg %p65
        %p356 = pneg %p62
        %p357 = pneg %p86
        %p358 = pneg %p83
        %p359 = pneg %p107
        %p360 = pneg %p104
        %p361 = pneg %p128
        %p362 = pneg %p125
        %p363 = pneg %p149
        %p364 = pneg %p146
        %p365 = pneg %p170
        %p366 = pneg %p167
        %p367 = pneg %p191
        %p368 = pneg %p188
        %p369 = pneg %p212
        %p370 = pneg %p209
        %p371 = pneg %p233
        %p372 = pneg %p230
        %p373 = pneg %p259
        %p374 = pneg %p256
        %p375 = scmp.lt.s32.totalorder %s23, 1
        %s376 = scalar_select %p375, %s23, 1
        %s377 = smul.addr %s376, 2
        %s378 = smul.addr %s377, 8
        %s379 = scalar_lea.vmem %s10, %s378
        %p380 = scmp.lt.s32.totalorder %s23, 1
        %s381 = scalar_select %p380, %s23, 1
        %s382 = smul.addr %s381, 8
        %s383 = smul.addr %s382, 8
        %s384 = scalar_lea.vmem %s0, %s383
        %p385 = scmp.lt.s32.totalorder %s23, 1
        %s386 = scalar_select %p385, %s23, 1
        %s387 = smul.addr %s386, 2
        %s388 = smul.addr %s387, 8
        %s389 = scalar_lea.vmem %s10, %s388
        %v390 = vld [vmem:[%s384] sm:$0xff]
        %v391 = vld [vmem:[%s384 + $0x8] sm:$0xff]
        %v392 = vld [vmem:[%s384 + $0x10] sm:$0xff]
        %v393 = vld [vmem:[%s384 + $0x18] sm:$0xff]
        %v394 = vld [vmem:[%s384 + $0x20] sm:$0xff]
        %v395 = vld [vmem:[%s384 + $0x28] sm:$0xff]
        %v396 = vld [vmem:[%s384 + $0x30] sm:$0xff]
        %v397 = vld [vmem:[%s384 + $0x38] sm:$0xff]
        %v398 = vld [vmem:[#allocation2] sm:$0xff]
        %v399 = vld [vmem:[#allocation2 + $0x8] sm:$0xff]
        %v400 = vld [vmem:[#allocation2 + $0x10] sm:$0xff]
        %v401 = vld [vmem:[#allocation2 + $0x18] sm:$0xff]
        %v402 = vld [vmem:[#allocation2 + $0x20] sm:$0xff]
        %v403 = vld [vmem:[#allocation2 + $0x28] sm:$0xff]
        %v404 = vld [vmem:[#allocation2 + $0x30] sm:$0xff]
        %v405 = vld [vmem:[#allocation2 + $0x38] sm:$0xff]
        %v406 = vld [vmem:[#allocation2 + $0x40] sm:$0xff]
        %v407 = vld [vmem:[#allocation2 + $0x48] sm:$0xff]
        %v408 = vld [vmem:[#allocation2 + $0x50] sm:$0xff]
        %v409 = vld [vmem:[#allocation2 + $0x58] sm:$0xff]
        %v410 = vld [vmem:[#allocation2 + $0x60] sm:$0xff]
        %v411 = vld [vmem:[#allocation2 + $0x68] sm:$0xff]
        %v412 = vld [vmem:[#allocation2 + $0x70] sm:$0xff]
        %v413 = vld [vmem:[#allocation2 + $0x78] sm:$0xff]
        %v414 = vld [vmem:[#allocation2 + $0x80] sm:$0xff]
        %v415 = vld [vmem:[#allocation2 + $0x88] sm:$0xff]
        %v416 = vld [vmem:[#allocation2 + $0x90] sm:$0xff]
        %v417 = vld [vmem:[#allocation2 + $0x98] sm:$0xff]
        %v418 = vld [vmem:[#allocation2 + $0xa0] sm:$0xff]
        %v419 = vld [vmem:[#allocation2 + $0xa8] sm:$0xff]
        %v420 = vld [vmem:[#allocation2 + $0xb0] sm:$0xff]
        %v421 = vld [vmem:[#allocation2 + $0xb8] sm:$0xff]
        %v422 = vld [vmem:[#allocation2 + $0xc0] sm:$0xff]
        %v423 = vld [vmem:[#allocation2 + $0xc8] sm:$0xff]
        %v424 = vld [vmem:[#allocation2 + $0xd0] sm:$0xff]
        %v425 = vld [vmem:[#allocation2 + $0xd8] sm:$0xff]
        %v426 = vld [vmem:[#allocation2 + $0xe0] sm:$0xff]
        %v427 = vld [vmem:[#allocation2 + $0xe8] sm:$0xff]
        %v428 = vld [vmem:[#allocation2 + $0xf0] sm:$0xff]
        %v429 = vld [vmem:[#allocation2 + $0xf8] sm:$0xff]
        %v430 = vld [vmem:[#allocation2 + $0x100] sm:$0xff]
        %v431 = vld [vmem:[#allocation2 + $0x108] sm:$0xff]
        %v432 = vld [vmem:[#allocation2 + $0x110] sm:$0xff]
        %v433 = vld [vmem:[#allocation2 + $0x118] sm:$0xff]
        %v434 = vld [vmem:[#allocation2 + $0x120] sm:$0xff]
        %v435 = vld [vmem:[#allocation2 + $0x128] sm:$0xff]
        %v436 = vld [vmem:[#allocation2 + $0x130] sm:$0xff]
        %v437 = vld [vmem:[#allocation2 + $0x138] sm:$0xff]
        %v438 = vld [vmem:[#allocation2 + $0x140] sm:$0xff]
        %v439 = vld [vmem:[#allocation2 + $0x148] sm:$0xff]
        %v440 = vld [vmem:[#allocation2 + $0x150] sm:$0xff]
        %v441 = vld [vmem:[#allocation2 + $0x158] sm:$0xff]
        %v442 = vld [vmem:[#allocation2 + $0x160] sm:$0xff]
        %v443 = vld [vmem:[#allocation2 + $0x168] sm:$0xff]
        %v444 = vld [vmem:[#allocation2 + $0x170] sm:$0xff]
        %v445 = vld [vmem:[#allocation2 + $0x178] sm:$0xff]
        %v446 = vld [vmem:[#allocation2 + $0x180] sm:$0xff]
        %v447 = vld [vmem:[#allocation2 + $0x188] sm:$0xff]
        %v448 = vld [vmem:[#allocation2 + $0x190] sm:$0xff]
        %v449 = vld [vmem:[#allocation2 + $0x198] sm:$0xff]
        %v450 = vld [vmem:[#allocation2 + $0x1a0] sm:$0xff]
        %v451 = vld [vmem:[#allocation2 + $0x1a8] sm:$0xff]
        %v452 = vld [vmem:[#allocation2 + $0x1b0] sm:$0xff]
        %v453 = vld [vmem:[#allocation2 + $0x1b8] sm:$0xff]
        %v454 = vld [vmem:[#allocation2 + $0x1c0] sm:$0xff]
        %v455 = vld [vmem:[#allocation2 + $0x1c8] sm:$0xff]
        %v456 = vld [vmem:[#allocation2 + $0x1d0] sm:$0xff]
        %v457 = vld [vmem:[#allocation2 + $0x1d8] sm:$0xff]
        %v458 = vld [vmem:[#allocation2 + $0x1e0] sm:$0xff]
        %v459 = vld [vmem:[#allocation2 + $0x1e8] sm:$0xff]
        %v460 = vld [vmem:[#allocation2 + $0x1f0] sm:$0xff]
        %v461 = vld [vmem:[#allocation2 + $0x1f8] sm:$0xff]
        %v462 = vld [vmem:[%s3] sm:$0x1]
        %v464 = vlaneseq
        %v465 = vshrl.u32 %v464, 7
        %v466 = vsub.s32 0, %v465
        %v467 = vrot.slane %v462, %v466
        %469 = vmatprep.subr.mxu0 0.0
        %470 = vmatpush1.msra.mxu0 %v413
        %471 = vmatprep.subr.mxu0 0.0
        %472 = vmatpush1.msra.mxu0 %v412
        %473 = vmatprep.subr.mxu0 0.0
        %474 = vmatpush1.msra.mxu0 %v411
        %475 = vmatprep.subr.mxu0 0.0
        %476 = vmatpush1.msra.mxu0 %v410
        %477 = vmatprep.subr.mxu0 0.0
        %478 = vmatpush1.msra.mxu0 %v409
        %479 = vmatprep.subr.mxu0 0.0
        %480 = vmatpush1.msra.mxu0 %v408
        %481 = vmatprep.subr.mxu0 0.0
        %482 = vmatpush1.msra.mxu0 %v407
        %483 = vmatprep.subr.mxu0 0.0
        %484 = vmatpush1.msra.mxu0 %v406
        %485 = vmatprep.subr.mxu0 0.0
        %486 = vmatpush1.msra.mxu0 %v405
        %487 = vmatprep.subr.mxu0 0.0
        %488 = vmatpush1.msra.mxu0 %v404
        %489 = vmatprep.subr.mxu0 0.0
        %490 = vmatpush1.msra.mxu0 %v403
        %491 = vmatprep.subr.mxu0 0.0
        %492 = vmatpush1.msra.mxu0 %v402
        %493 = vmatprep.subr.mxu0 0.0
        %494 = vmatpush1.msra.mxu0 %v401
        %495 = vmatprep.subr.mxu0 0.0
        %496 = vmatpush1.msra.mxu0 %v400
        %497 = vmatprep.subr.mxu0 0.0
        %498 = vmatpush1.msra.mxu0 %v399
        %499 = vmatprep.subr.mxu0 0.0
        %500 = vmatpush1.msra.mxu0 %v398
        %501 = vmatprep.subr.mxu0 0.0
        %502 = vmatpush2.msra.mxu0 %v429
        %503 = vmatprep.subr.mxu0 0.0
        %504 = vmatpush2.msra.mxu0 %v428
        %505 = vmatprep.subr.mxu0 0.0
        %506 = vmatpush2.msra.mxu0 %v427
        %507 = vmatprep.subr.mxu0 0.0
        %508 = vmatpush2.msra.mxu0 %v426
        %509 = vmatprep.subr.mxu0 0.0
        %510 = vmatpush2.msra.mxu0 %v425
        %511 = vmatprep.subr.mxu0 0.0
        %512 = vmatpush2.msra.mxu0 %v424
        %513 = vmatprep.subr.mxu0 0.0
        %514 = vmatpush2.msra.mxu0 %v423
        %515 = vmatprep.subr.mxu0 0.0
        %516 = vmatpush2.msra.mxu0 %v422
        %517 = vmatprep.subr.mxu0 0.0
        %518 = vmatpush2.msra.mxu0 %v421
        %519 = vmatprep.subr.mxu0 0.0
        %520 = vmatpush2.msra.mxu0 %v420
        %521 = vmatprep.subr.mxu0 0.0
        %522 = vmatpush2.msra.mxu0 %v419
        %523 = vmatprep.subr.mxu0 0.0
        %524 = vmatpush2.msra.mxu0 %v418
        %525 = vmatprep.subr.mxu0 0.0
        %526 = vmatpush2.msra.mxu0 %v417
        %527 = vmatprep.subr.mxu0 0.0
        %528 = vmatpush2.msra.mxu0 %v416
        %529 = vmatprep.subr.mxu0 0.0
        %530 = vmatpush2.msra.mxu0 %v415
        %531 = vmatprep.subr.mxu0 0.0
        %532 = vmatpush2.msra.mxu0 %v414
        %533 = vmatprep.mubr.f32.mxu0 %v391
        %534 = vmatmul.mubr.f32.gmra.mxu0 %v390
        %v535 = vpop.f32.mrf.mxu0
        %v536 = vadd.f32 %v467, %v535
        %v537 = vpop.f32.mrf.mxu0
        %538 = vmatprep.mubr.f32.mxu0 %v395
        %539 = vmatmul.mubr.f32.gmra.mxu0 %v394
        %v540 = vpop.f32.mrf.mxu0
        %v541 = vadd.f32 %v467, %v540
        %v542 = vpop.f32.mrf.mxu0
        %543 = vdwg.mxu0
        %544 = vmatprep.subr.mxu0 0.0
        %545 = vmatpush1.msra.mxu0 %v445
        %546 = vmatprep.subr.mxu0 0.0
        %547 = vmatpush1.msra.mxu0 %v444
        %548 = vmatprep.subr.mxu0 0.0
        %549 = vmatpush1.msra.mxu0 %v443
        %550 = vmatprep.subr.mxu0 0.0
        %551 = vmatpush1.msra.mxu0 %v442
        %552 = vmatprep.subr.mxu0 0.0
        %553 = vmatpush1.msra.mxu0 %v441
        %554 = vmatprep.subr.mxu0 0.0
        %555 = vmatpush1.msra.mxu0 %v440
        %556 = vmatprep.subr.mxu0 0.0
        %557 = vmatpush1.msra.mxu0 %v439
        %558 = vmatprep.subr.mxu0 0.0
        %559 = vmatpush1.msra.mxu0 %v438
        %560 = vmatprep.subr.mxu0 0.0
        %561 = vmatpush1.msra.mxu0 %v437
        %562 = vmatprep.subr.mxu0 0.0
        %563 = vmatpush1.msra.mxu0 %v436
        %564 = vmatprep.subr.mxu0 0.0
        %565 = vmatpush1.msra.mxu0 %v435
        %566 = vmatprep.subr.mxu0 0.0
        %567 = vmatpush1.msra.mxu0 %v434
        %568 = vmatprep.subr.mxu0 0.0
        %569 = vmatpush1.msra.mxu0 %v433
        %570 = vmatprep.subr.mxu0 0.0
        %571 = vmatpush1.msra.mxu0 %v432
        %572 = vmatprep.subr.mxu0 0.0
        %573 = vmatpush1.msra.mxu0 %v431
        %574 = vmatprep.subr.mxu0 0.0
        %575 = vmatpush1.msra.mxu0 %v430
        %576 = vmatprep.subr.mxu0 0.0
        %577 = vmatpush2.msra.mxu0 %v461
        %578 = vmatprep.subr.mxu0 0.0
        %579 = vmatpush2.msra.mxu0 %v460
        %580 = vmatprep.subr.mxu0 0.0
        %581 = vmatpush2.msra.mxu0 %v459
        %582 = vmatprep.subr.mxu0 0.0
        %583 = vmatpush2.msra.mxu0 %v458
        %584 = vmatprep.subr.mxu0 0.0
        %585 = vmatpush2.msra.mxu0 %v457
        %586 = vmatprep.subr.mxu0 0.0
        %587 = vmatpush2.msra.mxu0 %v456
        %588 = vmatprep.subr.mxu0 0.0
        %589 = vmatpush2.msra.mxu0 %v455
        %590 = vmatprep.subr.mxu0 0.0
        %591 = vmatpush2.msra.mxu0 %v454
        %592 = vmatprep.subr.mxu0 0.0
        %593 = vmatpush2.msra.mxu0 %v453
        %594 = vmatprep.subr.mxu0 0.0
        %595 = vmatpush2.msra.mxu0 %v452
        %596 = vmatprep.subr.mxu0 0.0
        %597 = vmatpush2.msra.mxu0 %v451
        %598 = vmatprep.subr.mxu0 0.0
        %599 = vmatpush2.msra.mxu0 %v450
        %600 = vmatprep.subr.mxu0 0.0
        %601 = vmatpush2.msra.mxu0 %v449
        %602 = vmatprep.subr.mxu0 0.0
        %603 = vmatpush2.msra.mxu0 %v448
        %604 = vmatprep.subr.mxu0 0.0
        %605 = vmatpush2.msra.mxu0 %v447
        %606 = vmatprep.subr.mxu0 0.0
        %607 = vmatpush2.msra.mxu0 %v446
        %608 = vmatprep.mubr.f32.mxu0 %v393
        %609 = vmatmul.mubr.f32.gmra.mxu0 %v392
        %v610 = vpop.f32.mrf.mxu0
        %v611 = vadd.f32 %v536, %v610
        %v612 = vpop.f32.mrf.mxu0
        %613 = vmatprep.mubr.f32.mxu0 %v397
        %614 = vmatmul.mubr.f32.gmra.mxu0 %v396
        %v615 = vpop.f32.mrf.mxu0
        %v616 = vadd.f32 %v541, %v615
        %v617 = vpop.f32.mrf.mxu0
        %618 = vdwg.mxu0
        %v619 = vmul.f32 %v611, 0.5
        %v620 = vmul.f32 %v616, 0.5
        %v621 = vmul.f32 %v611, 0.70710677
        %v622 = vmul.f32 %v616, 0.70710677
        %v623 = verf.f32.pop %v621
        %v624 = verf.f32.pop %v622
        %v625 = vadd.f32 %v623, 1.0
        %v626 = vadd.f32 %v624, 1.0
        %v627 = vmul.f32 %v619, %v625
        %v628 = vmul.f32 %v620, %v626
        loop: start=0, step=1, limit=6
        $region69: #{_lambda_.3} parent=59 // loop_pre_header
          _
        $region70: #{_lambda_.3} parent=59 // loop_header
          %s630 = sphi 0, %s634
          %p631 = scmp.ge.s32.totalorder %s630, 6
          %v635 = vphi %v627, %v3576
          %v636 = vphi %v628, %v3577
        $region71: #{_lambda_.3} parent=59 // loop_header_branch
          %633 = sbr.rel (%p631) target = $region75
        $region72: #{_lambda_.3} parent=59 // loop_body
          %v637 = vld [vmem:[%s1] sm:$0xff]
          %v638 = vld [vmem:[%s1 + $0x8] sm:$0xff]
          %vm639 = vcmask 130048
          %v641 = vsel %vm639, %v637, 0
          %v644 = vsel %vm639, %v638, 0
          %646 = vmatprep.subr.mxu0 0.0
          %647 = vmatpush1.msra.mxu0 0.0
          %648 = vmatprep.subr.mxu0 0.0
          %649 = vmatpush1.msra.mxu0 0.0
          %650 = vmatprep.subr.mxu0 0.0
          %651 = vmatpush1.msra.mxu0 0.0
          %652 = vmatprep.subr.mxu0 0.0
          %653 = vmatpush1.msra.mxu0 0.0
          %654 = vmatprep.subr.mxu0 0.0
          %655 = vmatpush1.msra.mxu0 0.0
          %656 = vmatprep.subr.mxu0 0.0
          %657 = vmatpush1.msra.mxu0 0.0
          %658 = vmatprep.subr.mxu0 0.0
          %659 = vmatpush1.msra.mxu0 0.0
          %660 = vmatprep.subr.mxu0 0.0
          %661 = vmatpush1.msra.mxu0 0.0
          %662 = vmatprep.subr.mxu0 0.0
          %663 = vmatpush1.msra.mxu0 0.0
          %664 = vmatprep.subr.mxu0 0.0
          %665 = vmatpush1.msra.mxu0 0.0
          %666 = vmatprep.subr.mxu0 0.0
          %667 = vmatpush1.msra.mxu0 0.0
          %668 = vmatprep.subr.mxu0 0.0
          %669 = vmatpush1.msra.mxu0 0.0
          %670 = vmatprep.subr.mxu0 0.0
          %671 = vmatpush1.msra.mxu0 0.0
          %672 = vmatprep.subr.mxu0 0.0
          %673 = vmatpush1.msra.mxu0 0.0
          %674 = vmatprep.subr.mxu0 0.0
          %675 = vmatpush1.msra.mxu0 %v636
          %676 = vmatprep.subr.mxu0 0.0
          %677 = vmatpush1.msra.mxu0 %v635
          %678 = vmatprep.subr.mxu0 0.0
          %679 = vmatpush2.msra.mxu0 0.0
          %680 = vmatprep.subr.mxu0 0.0
          %681 = vmatpush2.msra.mxu0 0.0
          %682 = vmatprep.subr.mxu0 0.0
          %683 = vmatpush2.msra.mxu0 0.0
          %684 = vmatprep.subr.mxu0 0.0
          %685 = vmatpush2.msra.mxu0 0.0
          %686 = vmatprep.subr.mxu0 0.0
          %687 = vmatpush2.msra.mxu0 0.0
          %688 = vmatprep.subr.mxu0 0.0
          %689 = vmatpush2.msra.mxu0 0.0
          %690 = vmatprep.subr.mxu0 0.0
          %691 = vmatpush2.msra.mxu0 0.0
          %692 = vmatprep.subr.mxu0 0.0
          %693 = vmatpush2.msra.mxu0 0.0
          %694 = vmatprep.subr.mxu0 0.0
          %695 = vmatpush2.msra.mxu0 0.0
          %696 = vmatprep.subr.mxu0 0.0
          %697 = vmatpush2.msra.mxu0 0.0
          %698 = vmatprep.subr.mxu0 0.0
          %699 = vmatpush2.msra.mxu0 0.0
          %700 = vmatprep.subr.mxu0 0.0
          %701 = vmatpush2.msra.mxu0 0.0
          %702 = vmatprep.subr.mxu0 0.0
          %703 = vmatpush2.msra.mxu0 0.0
          %704 = vmatprep.subr.mxu0 0.0
          %705 = vmatpush2.msra.mxu0 0.0
          %706 = vmatprep.subr.mxu0 0.0
          %707 = vmatpush2.msra.mxu0 0.0
          %708 = vmatprep.subr.mxu0 0.0
          %709 = vmatpush2.msra.mxu0 0.0
          %710 = vmatprep.mubr.f32.mxu0 0.0
          %711 = vmatmul.mubr.f32.gmra.mxu0 %v641
          %v712 = vpop.f32.mrf.mxu0
          %v713 = vadd.f32 0.0, %v712
          %v714 = vpop.f32.mrf.mxu0
          %715 = vmatprep.mubr.f32.mxu0 0.0
          %716 = vmatmul.mubr.f32.gmra.mxu0 %v644
          %v717 = vpop.f32.mrf.mxu0
          %v718 = vadd.f32 0.0, %v717
          %v719 = vpop.f32.mrf.mxu0
          %720 = vdwg.mxu0
          %s721 = smul.u32 %s630, 9
          %s722 = smul.u32 %s721, 32
          %s723 = scalar_lea.vmem [#allocation4], %s722
          %v724 = vld [vmem:[%s723] sm:$0xff]
          %v725 = vld [vmem:[%s723 + $0x8] sm:$0xff]
          %v726 = vld [vmem:[%s723 + $0x10] sm:$0xff]
          %v727 = vld [vmem:[%s723 + $0x18] sm:$0xff]
          %s728 = scalar_lea.vmem %s1, 16
          %v729 = vld [vmem:[%s728] sm:$0xff]
          %v730 = vld [vmem:[%s728 + $0x8] sm:$0xff]
          %v732 = vsel %vm639, %v729, 0
          %v735 = vsel %vm639, %v730, 0
          %737 = vmatprep.subr.mxu0 0.0
          %738 = vmatpush1.msra.mxu0 0.0
          %739 = vmatprep.subr.mxu0 0.0
          %740 = vmatpush1.msra.mxu0 0.0
          %741 = vmatprep.subr.mxu0 0.0
          %742 = vmatpush1.msra.mxu0 0.0
          %743 = vmatprep.subr.mxu0 0.0
          %744 = vmatpush1.msra.mxu0 0.0
          %745 = vmatprep.subr.mxu0 0.0
          %746 = vmatpush1.msra.mxu0 0.0
          %747 = vmatprep.subr.mxu0 0.0
          %748 = vmatpush1.msra.mxu0 0.0
          %749 = vmatprep.subr.mxu0 0.0
          %750 = vmatpush1.msra.mxu0 0.0
          %751 = vmatprep.subr.mxu0 0.0
          %752 = vmatpush1.msra.mxu0 0.0
          %753 = vmatprep.subr.mxu0 0.0
          %754 = vmatpush1.msra.mxu0 0.0
          %755 = vmatprep.subr.mxu0 0.0
          %756 = vmatpush1.msra.mxu0 0.0
          %757 = vmatprep.subr.mxu0 0.0
          %758 = vmatpush1.msra.mxu0 0.0
          %759 = vmatprep.subr.mxu0 0.0
          %760 = vmatpush1.msra.mxu0 0.0
          %761 = vmatprep.subr.mxu0 0.0
          %762 = vmatpush1.msra.mxu0 0.0
          %763 = vmatprep.subr.mxu0 0.0
          %764 = vmatpush1.msra.mxu0 0.0
          %765 = vmatprep.subr.mxu0 0.0
          %766 = vmatpush1.msra.mxu0 %v636
          %767 = vmatprep.subr.mxu0 0.0
          %768 = vmatpush1.msra.mxu0 %v635
          %769 = vmatprep.subr.mxu0 0.0
          %770 = vmatpush2.msra.mxu0 0.0
          %771 = vmatprep.subr.mxu0 0.0
          %772 = vmatpush2.msra.mxu0 0.0
          %773 = vmatprep.subr.mxu0 0.0
          %774 = vmatpush2.msra.mxu0 0.0
          %775 = vmatprep.subr.mxu0 0.0
          %776 = vmatpush2.msra.mxu0 0.0
          %777 = vmatprep.subr.mxu0 0.0
          %778 = vmatpush2.msra.mxu0 0.0
          %779 = vmatprep.subr.mxu0 0.0
          %780 = vmatpush2.msra.mxu0 0.0
          %781 = vmatprep.subr.mxu0 0.0
          %782 = vmatpush2.msra.mxu0 0.0
          %783 = vmatprep.subr.mxu0 0.0
          %784 = vmatpush2.msra.mxu0 0.0
          %785 = vmatprep.subr.mxu0 0.0
          %786 = vmatpush2.msra.mxu0 0.0
          %787 = vmatprep.subr.mxu0 0.0
          %788 = vmatpush2.msra.mxu0 0.0
          %789 = vmatprep.subr.mxu0 0.0
          %790 = vmatpush2.msra.mxu0 0.0
          %791 = vmatprep.subr.mxu0 0.0
          %792 = vmatpush2.msra.mxu0 0.0
          %793 = vmatprep.subr.mxu0 0.0
          %794 = vmatpush2.msra.mxu0 0.0
          %795 = vmatprep.subr.mxu0 0.0
          %796 = vmatpush2.msra.mxu0 0.0
          %797 = vmatprep.subr.mxu0 0.0
          %798 = vmatpush2.msra.mxu0 0.0
          %799 = vmatprep.subr.mxu0 0.0
          %800 = vmatpush2.msra.mxu0 0.0
          %801 = vmatprep.mubr.f32.mxu0 0.0
          %802 = vmatmul.mubr.f32.gmra.mxu0 %v732
          %v803 = vpop.f32.mrf.mxu0
          %v804 = vadd.f32 0.0, %v803
          %v805 = vpop.f32.mrf.mxu0
          %806 = vmatprep.mubr.f32.mxu0 0.0
          %807 = vmatmul.mubr.f32.gmra.mxu0 %v735
          %v808 = vpop.f32.mrf.mxu0
          %v809 = vadd.f32 0.0, %v808
          %v810 = vpop.f32.mrf.mxu0
          %811 = vdwg.mxu0
          %s812 = sadd.s32 %s721, 1
          %s813 = smul.u32 %s812, 32
          %s814 = scalar_lea.vmem [#allocation4], %s813
          %v815 = vld [vmem:[%s814] sm:$0xff]
          %v816 = vld [vmem:[%s814 + $0x8] sm:$0xff]
          %v817 = vld [vmem:[%s814 + $0x10] sm:$0xff]
          %v818 = vld [vmem:[%s814 + $0x18] sm:$0xff]
          %vm819 = vcmask 261120
          %v821 = vsel %vm819, %v804, 0
          %v824 = vsel %vm819, %v809, 0
          %826 = vmatprep.subr.mxu0 0.0
          %827 = vmatpush1.msra.mxu0 0.0
          %828 = vmatprep.subr.mxu0 0.0
          %829 = vmatpush1.msra.mxu0 0.0
          %830 = vmatprep.subr.mxu0 0.0
          %831 = vmatpush1.msra.mxu0 0.0
          %832 = vmatprep.subr.mxu0 0.0
          %833 = vmatpush1.msra.mxu0 0.0
          %834 = vmatprep.subr.mxu0 0.0
          %835 = vmatpush1.msra.mxu0 0.0
          %836 = vmatprep.subr.mxu0 0.0
          %837 = vmatpush1.msra.mxu0 0.0
          %838 = vmatprep.subr.mxu0 0.0
          %839 = vmatpush1.msra.mxu0 0.0
          %840 = vmatprep.subr.mxu0 0.0
          %841 = vmatpush1.msra.mxu0 0.0
          %842 = vmatprep.subr.mxu0 0.0
          %843 = vmatpush1.msra.mxu0 0.0
          %844 = vmatprep.subr.mxu0 0.0
          %845 = vmatpush1.msra.mxu0 0.0
          %846 = vmatprep.subr.mxu0 0.0
          %847 = vmatpush1.msra.mxu0 0.0
          %848 = vmatprep.subr.mxu0 0.0
          %849 = vmatpush1.msra.mxu0 0.0
          %850 = vmatprep.subr.mxu0 0.0
          %851 = vmatpush1.msra.mxu0 %v818
          %852 = vmatprep.subr.mxu0 0.0
          %853 = vmatpush1.msra.mxu0 %v817
          %854 = vmatprep.subr.mxu0 0.0
          %855 = vmatpush1.msra.mxu0 %v816
          %856 = vmatprep.subr.mxu0 0.0
          %857 = vmatpush1.msra.mxu0 %v815
          %858 = vmatprep.subr.mxu0 0.0
          %859 = vmatpush2.msra.mxu0 0.0
          %860 = vmatprep.subr.mxu0 0.0
          %861 = vmatpush2.msra.mxu0 0.0
          %862 = vmatprep.subr.mxu0 0.0
          %863 = vmatpush2.msra.mxu0 0.0
          %864 = vmatprep.subr.mxu0 0.0
          %865 = vmatpush2.msra.mxu0 0.0
          %866 = vmatprep.subr.mxu0 0.0
          %867 = vmatpush2.msra.mxu0 0.0
          %868 = vmatprep.subr.mxu0 0.0
          %869 = vmatpush2.msra.mxu0 0.0
          %870 = vmatprep.subr.mxu0 0.0
          %871 = vmatpush2.msra.mxu0 0.0
          %872 = vmatprep.subr.mxu0 0.0
          %873 = vmatpush2.msra.mxu0 0.0
          %874 = vmatprep.subr.mxu0 0.0
          %875 = vmatpush2.msra.mxu0 0.0
          %876 = vmatprep.subr.mxu0 0.0
          %877 = vmatpush2.msra.mxu0 0.0
          %878 = vmatprep.subr.mxu0 0.0
          %879 = vmatpush2.msra.mxu0 0.0
          %880 = vmatprep.subr.mxu0 0.0
          %881 = vmatpush2.msra.mxu0 0.0
          %882 = vmatprep.subr.mxu0 0.0
          %883 = vmatpush2.msra.mxu0 0.0
          %884 = vmatprep.subr.mxu0 0.0
          %885 = vmatpush2.msra.mxu0 0.0
          %886 = vmatprep.subr.mxu0 0.0
          %887 = vmatpush2.msra.mxu0 0.0
          %888 = vmatprep.subr.mxu0 0.0
          %889 = vmatpush2.msra.mxu0 0.0
          %890 = vmatprep.mubr.f32.mxu0 0.0
          %891 = vmatmul.mubr.f32.gmra.mxu0 %v821
          %v892 = vpop.f32.mrf.mxu0
          %v893 = vadd.f32 0.0, %v892
          %v894 = vpop.f32.mrf.mxu0
          %895 = vmatprep.mubr.f32.mxu0 0.0
          %896 = vmatmul.mubr.f32.gmra.mxu0 %v824
          %v897 = vpop.f32.mrf.mxu0
          %v898 = vadd.f32 0.0, %v897
          %v899 = vpop.f32.mrf.mxu0
          %900 = vdwg.mxu0
          %v902 = vsel %vm819, %v713, 0
          %v905 = vsel %vm819, %v718, 0
          %907 = vmatprep.subr.mxu0 0.0
          %908 = vmatpush1.msra.mxu0 0.0
          %909 = vmatprep.subr.mxu0 0.0
          %910 = vmatpush1.msra.mxu0 0.0
          %911 = vmatprep.subr.mxu0 0.0
          %912 = vmatpush1.msra.mxu0 0.0
          %913 = vmatprep.subr.mxu0 0.0
          %914 = vmatpush1.msra.mxu0 0.0
          %915 = vmatprep.subr.mxu0 0.0
          %916 = vmatpush1.msra.mxu0 0.0
          %917 = vmatprep.subr.mxu0 0.0
          %918 = vmatpush1.msra.mxu0 0.0
          %919 = vmatprep.subr.mxu0 0.0
          %920 = vmatpush1.msra.mxu0 0.0
          %921 = vmatprep.subr.mxu0 0.0
          %922 = vmatpush1.msra.mxu0 0.0
          %923 = vmatprep.subr.mxu0 0.0
          %924 = vmatpush1.msra.mxu0 0.0
          %925 = vmatprep.subr.mxu0 0.0
          %926 = vmatpush1.msra.mxu0 0.0
          %927 = vmatprep.subr.mxu0 0.0
          %928 = vmatpush1.msra.mxu0 0.0
          %929 = vmatprep.subr.mxu0 0.0
          %930 = vmatpush1.msra.mxu0 0.0
          %931 = vmatprep.subr.mxu0 0.0
          %932 = vmatpush1.msra.mxu0 %v727
          %933 = vmatprep.subr.mxu0 0.0
          %934 = vmatpush1.msra.mxu0 %v726
          %935 = vmatprep.subr.mxu0 0.0
          %936 = vmatpush1.msra.mxu0 %v725
          %937 = vmatprep.subr.mxu0 0.0
          %938 = vmatpush1.msra.mxu0 %v724
          %939 = vmatprep.subr.mxu0 0.0
          %940 = vmatpush2.msra.mxu0 0.0
          %941 = vmatprep.subr.mxu0 0.0
          %942 = vmatpush2.msra.mxu0 0.0
          %943 = vmatprep.subr.mxu0 0.0
          %944 = vmatpush2.msra.mxu0 0.0
          %945 = vmatprep.subr.mxu0 0.0
          %946 = vmatpush2.msra.mxu0 0.0
          %947 = vmatprep.subr.mxu0 0.0
          %948 = vmatpush2.msra.mxu0 0.0
          %949 = vmatprep.subr.mxu0 0.0
          %950 = vmatpush2.msra.mxu0 0.0
          %951 = vmatprep.subr.mxu0 0.0
          %952 = vmatpush2.msra.mxu0 0.0
          %953 = vmatprep.subr.mxu0 0.0
          %954 = vmatpush2.msra.mxu0 0.0
          %955 = vmatprep.subr.mxu0 0.0
          %956 = vmatpush2.msra.mxu0 0.0
          %957 = vmatprep.subr.mxu0 0.0
          %958 = vmatpush2.msra.mxu0 0.0
          %959 = vmatprep.subr.mxu0 0.0
          %960 = vmatpush2.msra.mxu0 0.0
          %961 = vmatprep.subr.mxu0 0.0
          %962 = vmatpush2.msra.mxu0 0.0
          %963 = vmatprep.subr.mxu0 0.0
          %964 = vmatpush2.msra.mxu0 0.0
          %965 = vmatprep.subr.mxu0 0.0
          %966 = vmatpush2.msra.mxu0 0.0
          %967 = vmatprep.subr.mxu0 0.0
          %968 = vmatpush2.msra.mxu0 0.0
          %969 = vmatprep.subr.mxu0 0.0
          %970 = vmatpush2.msra.mxu0 0.0
          %971 = vmatprep.mubr.f32.mxu0 0.0
          %972 = vmatmul.mubr.f32.gmra.mxu0 %v902
          %v973 = vpop.f32.mrf.mxu0
          %v974 = vadd.f32 %v893, %v973
          %v975 = vpop.f32.mrf.mxu0
          %976 = vmatprep.mubr.f32.mxu0 0.0
          %977 = vmatmul.mubr.f32.gmra.mxu0 %v905
          %v978 = vpop.f32.mrf.mxu0
          %v979 = vadd.f32 %v898, %v978
          %v980 = vpop.f32.mrf.mxu0
          %981 = vdwg.mxu0
          %s982 = scalar_lea.vmem %s1, 32
          %v983 = vld [vmem:[%s982] sm:$0xff]
          %v984 = vld [vmem:[%s982 + $0x8] sm:$0xff]
          %v986 = vsel %vm639, %v983, 0
          %v989 = vsel %vm639, %v984, 0
          %991 = vmatprep.subr.mxu0 0.0
          %992 = vmatpush1.msra.mxu0 0.0
          %993 = vmatprep.subr.mxu0 0.0
          %994 = vmatpush1.msra.mxu0 0.0
          %995 = vmatprep.subr.mxu0 0.0
          %996 = vmatpush1.msra.mxu0 0.0
          %997 = vmatprep.subr.mxu0 0.0
          %998 = vmatpush1.msra.mxu0 0.0
          %999 = vmatprep.subr.mxu0 0.0
          %1000 = vmatpush1.msra.mxu0 0.0
          %1001 = vmatprep.subr.mxu0 0.0
          %1002 = vmatpush1.msra.mxu0 0.0
          %1003 = vmatprep.subr.mxu0 0.0
          %1004 = vmatpush1.msra.mxu0 0.0
          %1005 = vmatprep.subr.mxu0 0.0
          %1006 = vmatpush1.msra.mxu0 0.0
          %1007 = vmatprep.subr.mxu0 0.0
          %1008 = vmatpush1.msra.mxu0 0.0
          %1009 = vmatprep.subr.mxu0 0.0
          %1010 = vmatpush1.msra.mxu0 0.0
          %1011 = vmatprep.subr.mxu0 0.0
          %1012 = vmatpush1.msra.mxu0 0.0
          %1013 = vmatprep.subr.mxu0 0.0
          %1014 = vmatpush1.msra.mxu0 0.0
          %1015 = vmatprep.subr.mxu0 0.0
          %1016 = vmatpush1.msra.mxu0 0.0
          %1017 = vmatprep.subr.mxu0 0.0
          %1018 = vmatpush1.msra.mxu0 0.0
          %1019 = vmatprep.subr.mxu0 0.0
          %1020 = vmatpush1.msra.mxu0 %v636
          %1021 = vmatprep.subr.mxu0 0.0
          %1022 = vmatpush1.msra.mxu0 %v635
          %1023 = vmatprep.subr.mxu0 0.0
          %1024 = vmatpush2.msra.mxu0 0.0
          %1025 = vmatprep.subr.mxu0 0.0
          %1026 = vmatpush2.msra.mxu0 0.0
          %1027 = vmatprep.subr.mxu0 0.0
          %1028 = vmatpush2.msra.mxu0 0.0
          %1029 = vmatprep.subr.mxu0 0.0
          %1030 = vmatpush2.msra.mxu0 0.0
          %1031 = vmatprep.subr.mxu0 0.0
          %1032 = vmatpush2.msra.mxu0 0.0
          %1033 = vmatprep.subr.mxu0 0.0
          %1034 = vmatpush2.msra.mxu0 0.0
          %1035 = vmatprep.subr.mxu0 0.0
          %1036 = vmatpush2.msra.mxu0 0.0
          %1037 = vmatprep.subr.mxu0 0.0
          %1038 = vmatpush2.msra.mxu0 0.0
          %1039 = vmatprep.subr.mxu0 0.0
          %1040 = vmatpush2.msra.mxu0 0.0
          %1041 = vmatprep.subr.mxu0 0.0
          %1042 = vmatpush2.msra.mxu0 0.0
          %1043 = vmatprep.subr.mxu0 0.0
          %1044 = vmatpush2.msra.mxu0 0.0
          %1045 = vmatprep.subr.mxu0 0.0
          %1046 = vmatpush2.msra.mxu0 0.0
          %1047 = vmatprep.subr.mxu0 0.0
          %1048 = vmatpush2.msra.mxu0 0.0
          %1049 = vmatprep.subr.mxu0 0.0
          %1050 = vmatpush2.msra.mxu0 0.0
          %1051 = vmatprep.subr.mxu0 0.0
          %1052 = vmatpush2.msra.mxu0 0.0
          %1053 = vmatprep.subr.mxu0 0.0
          %1054 = vmatpush2.msra.mxu0 0.0
          %1055 = vmatprep.mubr.f32.mxu0 0.0
          %1056 = vmatmul.mubr.f32.gmra.mxu0 %v986
          %v1057 = vpop.f32.mrf.mxu0
          %v1058 = vadd.f32 0.0, %v1057
          %v1059 = vpop.f32.mrf.mxu0
          %1060 = vmatprep.mubr.f32.mxu0 0.0
          %1061 = vmatmul.mubr.f32.gmra.mxu0 %v989
          %v1062 = vpop.f32.mrf.mxu0
          %v1063 = vadd.f32 0.0, %v1062
          %v1064 = vpop.f32.mrf.mxu0
          %1065 = vdwg.mxu0
          %s1066 = sadd.s32 %s721, 2
          %s1067 = smul.u32 %s1066, 32
          %s1068 = scalar_lea.vmem [#allocation4], %s1067
          %v1069 = vld [vmem:[%s1068] sm:$0xff]
          %v1070 = vld [vmem:[%s1068 + $0x8] sm:$0xff]
          %v1071 = vld [vmem:[%s1068 + $0x10] sm:$0xff]
          %v1072 = vld [vmem:[%s1068 + $0x18] sm:$0xff]
          %v1074 = vsel %vm819, %v1058, 0
          %v1077 = vsel %vm819, %v1063, 0
          %1079 = vmatprep.subr.mxu0 0.0
          %1080 = vmatpush1.msra.mxu0 0.0
          %1081 = vmatprep.subr.mxu0 0.0
          %1082 = vmatpush1.msra.mxu0 0.0
          %1083 = vmatprep.subr.mxu0 0.0
          %1084 = vmatpush1.msra.mxu0 0.0
          %1085 = vmatprep.subr.mxu0 0.0
          %1086 = vmatpush1.msra.mxu0 0.0
          %1087 = vmatprep.subr.mxu0 0.0
          %1088 = vmatpush1.msra.mxu0 0.0
          %1089 = vmatprep.subr.mxu0 0.0
          %1090 = vmatpush1.msra.mxu0 0.0
          %1091 = vmatprep.subr.mxu0 0.0
          %1092 = vmatpush1.msra.mxu0 0.0
          %1093 = vmatprep.subr.mxu0 0.0
          %1094 = vmatpush1.msra.mxu0 0.0
          %1095 = vmatprep.subr.mxu0 0.0
          %1096 = vmatpush1.msra.mxu0 0.0
          %1097 = vmatprep.subr.mxu0 0.0
          %1098 = vmatpush1.msra.mxu0 0.0
          %1099 = vmatprep.subr.mxu0 0.0
          %1100 = vmatpush1.msra.mxu0 0.0
          %1101 = vmatprep.subr.mxu0 0.0
          %1102 = vmatpush1.msra.mxu0 0.0
          %1103 = vmatprep.subr.mxu0 0.0
          %1104 = vmatpush1.msra.mxu0 %v1072
          %1105 = vmatprep.subr.mxu0 0.0
          %1106 = vmatpush1.msra.mxu0 %v1071
          %1107 = vmatprep.subr.mxu0 0.0
          %1108 = vmatpush1.msra.mxu0 %v1070
          %1109 = vmatprep.subr.mxu0 0.0
          %1110 = vmatpush1.msra.mxu0 %v1069
          %1111 = vmatprep.subr.mxu0 0.0
          %1112 = vmatpush2.msra.mxu0 0.0
          %1113 = vmatprep.subr.mxu0 0.0
          %1114 = vmatpush2.msra.mxu0 0.0
          %1115 = vmatprep.subr.mxu0 0.0
          %1116 = vmatpush2.msra.mxu0 0.0
          %1117 = vmatprep.subr.mxu0 0.0
          %1118 = vmatpush2.msra.mxu0 0.0
          %1119 = vmatprep.subr.mxu0 0.0
          %1120 = vmatpush2.msra.mxu0 0.0
          %1121 = vmatprep.subr.mxu0 0.0
          %1122 = vmatpush2.msra.mxu0 0.0
          %1123 = vmatprep.subr.mxu0 0.0
          %1124 = vmatpush2.msra.mxu0 0.0
          %1125 = vmatprep.subr.mxu0 0.0
          %1126 = vmatpush2.msra.mxu0 0.0
          %1127 = vmatprep.subr.mxu0 0.0
          %1128 = vmatpush2.msra.mxu0 0.0
          %1129 = vmatprep.subr.mxu0 0.0
          %1130 = vmatpush2.msra.mxu0 0.0
          %1131 = vmatprep.subr.mxu0 0.0
          %1132 = vmatpush2.msra.mxu0 0.0
          %1133 = vmatprep.subr.mxu0 0.0
          %1134 = vmatpush2.msra.mxu0 0.0
          %1135 = vmatprep.subr.mxu0 0.0
          %1136 = vmatpush2.msra.mxu0 0.0
          %1137 = vmatprep.subr.mxu0 0.0
          %1138 = vmatpush2.msra.mxu0 0.0
          %1139 = vmatprep.subr.mxu0 0.0
          %1140 = vmatpush2.msra.mxu0 0.0
          %1141 = vmatprep.subr.mxu0 0.0
          %1142 = vmatpush2.msra.mxu0 0.0
          %1143 = vmatprep.mubr.f32.mxu0 0.0
          %1144 = vmatmul.mubr.f32.gmra.mxu0 %v1074
          %v1145 = vpop.f32.mrf.mxu0
          %v1146 = vadd.f32 0.0, %v1145
          %v1147 = vpop.f32.mrf.mxu0
          %1148 = vmatprep.mubr.f32.mxu0 0.0
          %1149 = vmatmul.mubr.f32.gmra.mxu0 %v1077
          %v1150 = vpop.f32.mrf.mxu0
          %v1151 = vadd.f32 0.0, %v1150
          %v1152 = vpop.f32.mrf.mxu0
          %1153 = vdwg.mxu0
          %v1154 = vadd.f32 %v974, %v1146
          %v1155 = vadd.f32 %v979, %v1151
          %s1156 = scalar_lea.vmem %s1, 48
          %v1157 = vld [vmem:[%s1156] sm:$0xff]
          %v1158 = vld [vmem:[%s1156 + $0x8] sm:$0xff]
          %v1160 = vsel %vm639, %v1157, 0
          %v1163 = vsel %vm639, %v1158, 0
          %1165 = vmatprep.subr.mxu0 0.0
          %1166 = vmatpush1.msra.mxu0 0.0
          %1167 = vmatprep.subr.mxu0 0.0
          %1168 = vmatpush1.msra.mxu0 0.0
          %1169 = vmatprep.subr.mxu0 0.0
          %1170 = vmatpush1.msra.mxu0 0.0
          %1171 = vmatprep.subr.mxu0 0.0
          %1172 = vmatpush1.msra.mxu0 0.0
          %1173 = vmatprep.subr.mxu0 0.0
          %1174 = vmatpush1.msra.mxu0 0.0
          %1175 = vmatprep.subr.mxu0 0.0
          %1176 = vmatpush1.msra.mxu0 0.0
          %1177 = vmatprep.subr.mxu0 0.0
          %1178 = vmatpush1.msra.mxu0 0.0
          %1179 = vmatprep.subr.mxu0 0.0
          %1180 = vmatpush1.msra.mxu0 0.0
          %1181 = vmatprep.subr.mxu0 0.0
          %1182 = vmatpush1.msra.mxu0 0.0
          %1183 = vmatprep.subr.mxu0 0.0
          %1184 = vmatpush1.msra.mxu0 0.0
          %1185 = vmatprep.subr.mxu0 0.0
          %1186 = vmatpush1.msra.mxu0 0.0
          %1187 = vmatprep.subr.mxu0 0.0
          %1188 = vmatpush1.msra.mxu0 0.0
          %1189 = vmatprep.subr.mxu0 0.0
          %1190 = vmatpush1.msra.mxu0 0.0
          %1191 = vmatprep.subr.mxu0 0.0
          %1192 = vmatpush1.msra.mxu0 0.0
          %1193 = vmatprep.subr.mxu0 0.0
          %1194 = vmatpush1.msra.mxu0 %v636
          %1195 = vmatprep.subr.mxu0 0.0
          %1196 = vmatpush1.msra.mxu0 %v635
          %1197 = vmatprep.subr.mxu0 0.0
          %1198 = vmatpush2.msra.mxu0 0.0
          %1199 = vmatprep.subr.mxu0 0.0
          %1200 = vmatpush2.msra.mxu0 0.0
          %1201 = vmatprep.subr.mxu0 0.0
          %1202 = vmatpush2.msra.mxu0 0.0
          %1203 = vmatprep.subr.mxu0 0.0
          %1204 = vmatpush2.msra.mxu0 0.0
          %1205 = vmatprep.subr.mxu0 0.0
          %1206 = vmatpush2.msra.mxu0 0.0
          %1207 = vmatprep.subr.mxu0 0.0
          %1208 = vmatpush2.msra.mxu0 0.0
          %1209 = vmatprep.subr.mxu0 0.0
          %1210 = vmatpush2.msra.mxu0 0.0
          %1211 = vmatprep.subr.mxu0 0.0
          %1212 = vmatpush2.msra.mxu0 0.0
          %1213 = vmatprep.subr.mxu0 0.0
          %1214 = vmatpush2.msra.mxu0 0.0
          %1215 = vmatprep.subr.mxu0 0.0
          %1216 = vmatpush2.msra.mxu0 0.0
          %1217 = vmatprep.subr.mxu0 0.0
          %1218 = vmatpush2.msra.mxu0 0.0
          %1219 = vmatprep.subr.mxu0 0.0
          %1220 = vmatpush2.msra.mxu0 0.0
          %1221 = vmatprep.subr.mxu0 0.0
          %1222 = vmatpush2.msra.mxu0 0.0
          %1223 = vmatprep.subr.mxu0 0.0
          %1224 = vmatpush2.msra.mxu0 0.0
          %1225 = vmatprep.subr.mxu0 0.0
          %1226 = vmatpush2.msra.mxu0 0.0
          %1227 = vmatprep.subr.mxu0 0.0
          %1228 = vmatpush2.msra.mxu0 0.0
          %1229 = vmatprep.mubr.f32.mxu0 0.0
          %1230 = vmatmul.mubr.f32.gmra.mxu0 %v1160
          %v1231 = vpop.f32.mrf.mxu0
          %v1232 = vadd.f32 0.0, %v1231
          %v1233 = vpop.f32.mrf.mxu0
          %1234 = vmatprep.mubr.f32.mxu0 0.0
          %1235 = vmatmul.mubr.f32.gmra.mxu0 %v1163
          %v1236 = vpop.f32.mrf.mxu0
          %v1237 = vadd.f32 0.0, %v1236
          %v1238 = vpop.f32.mrf.mxu0
          %1239 = vdwg.mxu0
          %s1240 = sadd.s32 %s721, 3
          %s1241 = smul.u32 %s1240, 32
          %s1242 = scalar_lea.vmem [#allocation4], %s1241
          %v1243 = vld [vmem:[%s1242] sm:$0xff]
          %v1244 = vld [vmem:[%s1242 + $0x8] sm:$0xff]
          %v1245 = vld [vmem:[%s1242 + $0x10] sm:$0xff]
          %v1246 = vld [vmem:[%s1242 + $0x18] sm:$0xff]
          %v1248 = vsel %vm819, %v1232, 0
          %v1251 = vsel %vm819, %v1237, 0
          %1253 = vmatprep.subr.mxu0 0.0
          %1254 = vmatpush1.msra.mxu0 0.0
          %1255 = vmatprep.subr.mxu0 0.0
          %1256 = vmatpush1.msra.mxu0 0.0
          %1257 = vmatprep.subr.mxu0 0.0
          %1258 = vmatpush1.msra.mxu0 0.0
          %1259 = vmatprep.subr.mxu0 0.0
          %1260 = vmatpush1.msra.mxu0 0.0
          %1261 = vmatprep.subr.mxu0 0.0
          %1262 = vmatpush1.msra.mxu0 0.0
          %1263 = vmatprep.subr.mxu0 0.0
          %1264 = vmatpush1.msra.mxu0 0.0
          %1265 = vmatprep.subr.mxu0 0.0
          %1266 = vmatpush1.msra.mxu0 0.0
          %1267 = vmatprep.subr.mxu0 0.0
          %1268 = vmatpush1.msra.mxu0 0.0
          %1269 = vmatprep.subr.mxu0 0.0
          %1270 = vmatpush1.msra.mxu0 0.0
          %1271 = vmatprep.subr.mxu0 0.0
          %1272 = vmatpush1.msra.mxu0 0.0
          %1273 = vmatprep.subr.mxu0 0.0
          %1274 = vmatpush1.msra.mxu0 0.0
          %1275 = vmatprep.subr.mxu0 0.0
          %1276 = vmatpush1.msra.mxu0 0.0
          %1277 = vmatprep.subr.mxu0 0.0
          %1278 = vmatpush1.msra.mxu0 %v1246
          %1279 = vmatprep.subr.mxu0 0.0
          %1280 = vmatpush1.msra.mxu0 %v1245
          %1281 = vmatprep.subr.mxu0 0.0
          %1282 = vmatpush1.msra.mxu0 %v1244
          %1283 = vmatprep.subr.mxu0 0.0
          %1284 = vmatpush1.msra.mxu0 %v1243
          %1285 = vmatprep.subr.mxu0 0.0
          %1286 = vmatpush2.msra.mxu0 0.0
          %1287 = vmatprep.subr.mxu0 0.0
          %1288 = vmatpush2.msra.mxu0 0.0
          %1289 = vmatprep.subr.mxu0 0.0
          %1290 = vmatpush2.msra.mxu0 0.0
          %1291 = vmatprep.subr.mxu0 0.0
          %1292 = vmatpush2.msra.mxu0 0.0
          %1293 = vmatprep.subr.mxu0 0.0
          %1294 = vmatpush2.msra.mxu0 0.0
          %1295 = vmatprep.subr.mxu0 0.0
          %1296 = vmatpush2.msra.mxu0 0.0
          %1297 = vmatprep.subr.mxu0 0.0
          %1298 = vmatpush2.msra.mxu0 0.0
          %1299 = vmatprep.subr.mxu0 0.0
          %1300 = vmatpush2.msra.mxu0 0.0
          %1301 = vmatprep.subr.mxu0 0.0
          %1302 = vmatpush2.msra.mxu0 0.0
          %1303 = vmatprep.subr.mxu0 0.0
          %1304 = vmatpush2.msra.mxu0 0.0
          %1305 = vmatprep.subr.mxu0 0.0
          %1306 = vmatpush2.msra.mxu0 0.0
          %1307 = vmatprep.subr.mxu0 0.0
          %1308 = vmatpush2.msra.mxu0 0.0
          %1309 = vmatprep.subr.mxu0 0.0
          %1310 = vmatpush2.msra.mxu0 0.0
          %1311 = vmatprep.subr.mxu0 0.0
          %1312 = vmatpush2.msra.mxu0 0.0
          %1313 = vmatprep.subr.mxu0 0.0
          %1314 = vmatpush2.msra.mxu0 0.0
          %1315 = vmatprep.subr.mxu0 0.0
          %1316 = vmatpush2.msra.mxu0 0.0
          %1317 = vmatprep.mubr.f32.mxu0 0.0
          %1318 = vmatmul.mubr.f32.gmra.mxu0 %v1248
          %v1319 = vpop.f32.mrf.mxu0
          %v1320 = vadd.f32 0.0, %v1319
          %v1321 = vpop.f32.mrf.mxu0
          %1322 = vmatprep.mubr.f32.mxu0 0.0
          %1323 = vmatmul.mubr.f32.gmra.mxu0 %v1251
          %v1324 = vpop.f32.mrf.mxu0
          %v1325 = vadd.f32 0.0, %v1324
          %v1326 = vpop.f32.mrf.mxu0
          %1327 = vdwg.mxu0
          %v1328 = vadd.f32 %v1154, %v1320
          %v1329 = vadd.f32 %v1155, %v1325
          %s1330 = sadd.s32 %s721, 4
          %s1331 = smul.u32 %s1330, 32
          %s1332 = scalar_lea.vmem [#allocation4], %s1331
          %v1333 = vld [vmem:[%s1332] sm:$0xff]
          %v1334 = vld [vmem:[%s1332 + $0x8] sm:$0xff]
          %v1335 = vld [vmem:[%s1332 + $0x10] sm:$0xff]
          %v1336 = vld [vmem:[%s1332 + $0x18] sm:$0xff]
          %v1338 = vsel %vm819, %v635, 0
          %v1341 = vsel %vm819, %v636, 0
          %1343 = vmatprep.subr.mxu0 0.0
          %1344 = vmatpush1.msra.mxu0 0.0
          %1345 = vmatprep.subr.mxu0 0.0
          %1346 = vmatpush1.msra.mxu0 0.0
          %1347 = vmatprep.subr.mxu0 0.0
          %1348 = vmatpush1.msra.mxu0 0.0
          %1349 = vmatprep.subr.mxu0 0.0
          %1350 = vmatpush1.msra.mxu0 0.0
          %1351 = vmatprep.subr.mxu0 0.0
          %1352 = vmatpush1.msra.mxu0 0.0
          %1353 = vmatprep.subr.mxu0 0.0
          %1354 = vmatpush1.msra.mxu0 0.0
          %1355 = vmatprep.subr.mxu0 0.0
          %1356 = vmatpush1.msra.mxu0 0.0
          %1357 = vmatprep.subr.mxu0 0.0
          %1358 = vmatpush1.msra.mxu0 0.0
          %1359 = vmatprep.subr.mxu0 0.0
          %1360 = vmatpush1.msra.mxu0 0.0
          %1361 = vmatprep.subr.mxu0 0.0
          %1362 = vmatpush1.msra.mxu0 0.0
          %1363 = vmatprep.subr.mxu0 0.0
          %1364 = vmatpush1.msra.mxu0 0.0
          %1365 = vmatprep.subr.mxu0 0.0
          %1366 = vmatpush1.msra.mxu0 0.0
          %1367 = vmatprep.subr.mxu0 0.0
          %1368 = vmatpush1.msra.mxu0 %v1336
          %1369 = vmatprep.subr.mxu0 0.0
          %1370 = vmatpush1.msra.mxu0 %v1335
          %1371 = vmatprep.subr.mxu0 0.0
          %1372 = vmatpush1.msra.mxu0 %v1334
          %1373 = vmatprep.subr.mxu0 0.0
          %1374 = vmatpush1.msra.mxu0 %v1333
          %1375 = vmatprep.subr.mxu0 0.0
          %1376 = vmatpush2.msra.mxu0 0.0
          %1377 = vmatprep.subr.mxu0 0.0
          %1378 = vmatpush2.msra.mxu0 0.0
          %1379 = vmatprep.subr.mxu0 0.0
          %1380 = vmatpush2.msra.mxu0 0.0
          %1381 = vmatprep.subr.mxu0 0.0
          %1382 = vmatpush2.msra.mxu0 0.0
          %1383 = vmatprep.subr.mxu0 0.0
          %1384 = vmatpush2.msra.mxu0 0.0
          %1385 = vmatprep.subr.mxu0 0.0
          %1386 = vmatpush2.msra.mxu0 0.0
          %1387 = vmatprep.subr.mxu0 0.0
          %1388 = vmatpush2.msra.mxu0 0.0
          %1389 = vmatprep.subr.mxu0 0.0
          %1390 = vmatpush2.msra.mxu0 0.0
          %1391 = vmatprep.subr.mxu0 0.0
          %1392 = vmatpush2.msra.mxu0 0.0
          %1393 = vmatprep.subr.mxu0 0.0
          %1394 = vmatpush2.msra.mxu0 0.0
          %1395 = vmatprep.subr.mxu0 0.0
          %1396 = vmatpush2.msra.mxu0 0.0
          %1397 = vmatprep.subr.mxu0 0.0
          %1398 = vmatpush2.msra.mxu0 0.0
          %1399 = vmatprep.subr.mxu0 0.0
          %1400 = vmatpush2.msra.mxu0 0.0
          %1401 = vmatprep.subr.mxu0 0.0
          %1402 = vmatpush2.msra.mxu0 0.0
          %1403 = vmatprep.subr.mxu0 0.0
          %1404 = vmatpush2.msra.mxu0 0.0
          %1405 = vmatprep.subr.mxu0 0.0
          %1406 = vmatpush2.msra.mxu0 0.0
          %1407 = vmatprep.mubr.f32.mxu0 0.0
          %1408 = vmatmul.mubr.f32.gmra.mxu0 %v1338
          %v1409 = vpop.f32.mrf.mxu0
          %v1410 = vadd.f32 0.0, %v1409
          %v1411 = vpop.f32.mrf.mxu0
          %1412 = vmatprep.mubr.f32.mxu0 0.0
          %1413 = vmatmul.mubr.f32.gmra.mxu0 %v1341
          %v1414 = vpop.f32.mrf.mxu0
          %v1415 = vadd.f32 0.0, %v1414
          %v1416 = vpop.f32.mrf.mxu0
          %1417 = vdwg.mxu0
          %v1418 = vadd.f32 %v1328, %v1410
          %v1419 = vadd.f32 %v1329, %v1415
          %s1420 = scalar_lea.vmem %s1, 80
          %v1421 = vld [vmem:[%s1420] sm:$0xff]
          %v1422 = vld [vmem:[%s1420 + $0x8] sm:$0xff]
          %v1424 = vsel %vm639, %v1421, 0
          %v1427 = vsel %vm639, %v1422, 0
          %1429 = vmatprep.subr.mxu0 0.0
          %1430 = vmatpush1.msra.mxu0 0.0
          %1431 = vmatprep.subr.mxu0 0.0
          %1432 = vmatpush1.msra.mxu0 0.0
          %1433 = vmatprep.subr.mxu0 0.0
          %1434 = vmatpush1.msra.mxu0 0.0
          %1435 = vmatprep.subr.mxu0 0.0
          %1436 = vmatpush1.msra.mxu0 0.0
          %1437 = vmatprep.subr.mxu0 0.0
          %1438 = vmatpush1.msra.mxu0 0.0
          %1439 = vmatprep.subr.mxu0 0.0
          %1440 = vmatpush1.msra.mxu0 0.0
          %1441 = vmatprep.subr.mxu0 0.0
          %1442 = vmatpush1.msra.mxu0 0.0
          %1443 = vmatprep.subr.mxu0 0.0
          %1444 = vmatpush1.msra.mxu0 0.0
          %1445 = vmatprep.subr.mxu0 0.0
          %1446 = vmatpush1.msra.mxu0 0.0
          %1447 = vmatprep.subr.mxu0 0.0
          %1448 = vmatpush1.msra.mxu0 0.0
          %1449 = vmatprep.subr.mxu0 0.0
          %1450 = vmatpush1.msra.mxu0 0.0
          %1451 = vmatprep.subr.mxu0 0.0
          %1452 = vmatpush1.msra.mxu0 0.0
          %1453 = vmatprep.subr.mxu0 0.0
          %1454 = vmatpush1.msra.mxu0 0.0
          %1455 = vmatprep.subr.mxu0 0.0
          %1456 = vmatpush1.msra.mxu0 0.0
          %1457 = vmatprep.subr.mxu0 0.0
          %1458 = vmatpush1.msra.mxu0 %v636
          %1459 = vmatprep.subr.mxu0 0.0
          %1460 = vmatpush1.msra.mxu0 %v635
          %1461 = vmatprep.subr.mxu0 0.0
          %1462 = vmatpush2.msra.mxu0 0.0
          %1463 = vmatprep.subr.mxu0 0.0
          %1464 = vmatpush2.msra.mxu0 0.0
          %1465 = vmatprep.subr.mxu0 0.0
          %1466 = vmatpush2.msra.mxu0 0.0
          %1467 = vmatprep.subr.mxu0 0.0
          %1468 = vmatpush2.msra.mxu0 0.0
          %1469 = vmatprep.subr.mxu0 0.0
          %1470 = vmatpush2.msra.mxu0 0.0
          %1471 = vmatprep.subr.mxu0 0.0
          %1472 = vmatpush2.msra.mxu0 0.0
          %1473 = vmatprep.subr.mxu0 0.0
          %1474 = vmatpush2.msra.mxu0 0.0
          %1475 = vmatprep.subr.mxu0 0.0
          %1476 = vmatpush2.msra.mxu0 0.0
          %1477 = vmatprep.subr.mxu0 0.0
          %1478 = vmatpush2.msra.mxu0 0.0
          %1479 = vmatprep.subr.mxu0 0.0
          %1480 = vmatpush2.msra.mxu0 0.0
          %1481 = vmatprep.subr.mxu0 0.0
          %1482 = vmatpush2.msra.mxu0 0.0
          %1483 = vmatprep.subr.mxu0 0.0
          %1484 = vmatpush2.msra.mxu0 0.0
          %1485 = vmatprep.subr.mxu0 0.0
          %1486 = vmatpush2.msra.mxu0 0.0
          %1487 = vmatprep.subr.mxu0 0.0
          %1488 = vmatpush2.msra.mxu0 0.0
          %1489 = vmatprep.subr.mxu0 0.0
          %1490 = vmatpush2.msra.mxu0 0.0
          %1491 = vmatprep.subr.mxu0 0.0
          %1492 = vmatpush2.msra.mxu0 0.0
          %1493 = vmatprep.mubr.f32.mxu0 0.0
          %1494 = vmatmul.mubr.f32.gmra.mxu0 %v1424
          %v1495 = vpop.f32.mrf.mxu0
          %v1496 = vadd.f32 0.0, %v1495
          %v1497 = vpop.f32.mrf.mxu0
          %1498 = vmatprep.mubr.f32.mxu0 0.0
          %1499 = vmatmul.mubr.f32.gmra.mxu0 %v1427
          %v1500 = vpop.f32.mrf.mxu0
          %v1501 = vadd.f32 0.0, %v1500
          %v1502 = vpop.f32.mrf.mxu0
          %1503 = vdwg.mxu0
          %s1504 = sadd.s32 %s721, 5
          %s1505 = smul.u32 %s1504, 32
          %s1506 = scalar_lea.vmem [#allocation4], %s1505
          %v1507 = vld [vmem:[%s1506] sm:$0xff]
          %v1508 = vld [vmem:[%s1506 + $0x8] sm:$0xff]
          %v1509 = vld [vmem:[%s1506 + $0x10] sm:$0xff]
          %v1510 = vld [vmem:[%s1506 + $0x18] sm:$0xff]
          %v1512 = vsel %vm819, %v1496, 0
          %v1515 = vsel %vm819, %v1501, 0
          %1517 = vmatprep.subr.mxu0 0.0
          %1518 = vmatpush1.msra.mxu0 0.0
          %1519 = vmatprep.subr.mxu0 0.0
          %1520 = vmatpush1.msra.mxu0 0.0
          %1521 = vmatprep.subr.mxu0 0.0
          %1522 = vmatpush1.msra.mxu0 0.0
          %1523 = vmatprep.subr.mxu0 0.0
          %1524 = vmatpush1.msra.mxu0 0.0
          %1525 = vmatprep.subr.mxu0 0.0
          %1526 = vmatpush1.msra.mxu0 0.0
          %1527 = vmatprep.subr.mxu0 0.0
          %1528 = vmatpush1.msra.mxu0 0.0
          %1529 = vmatprep.subr.mxu0 0.0
          %1530 = vmatpush1.msra.mxu0 0.0
          %1531 = vmatprep.subr.mxu0 0.0
          %1532 = vmatpush1.msra.mxu0 0.0
          %1533 = vmatprep.subr.mxu0 0.0
          %1534 = vmatpush1.msra.mxu0 0.0
          %1535 = vmatprep.subr.mxu0 0.0
          %1536 = vmatpush1.msra.mxu0 0.0
          %1537 = vmatprep.subr.mxu0 0.0
          %1538 = vmatpush1.msra.mxu0 0.0
          %1539 = vmatprep.subr.mxu0 0.0
          %1540 = vmatpush1.msra.mxu0 0.0
          %1541 = vmatprep.subr.mxu0 0.0
          %1542 = vmatpush1.msra.mxu0 %v1510
          %1543 = vmatprep.subr.mxu0 0.0
          %1544 = vmatpush1.msra.mxu0 %v1509
          %1545 = vmatprep.subr.mxu0 0.0
          %1546 = vmatpush1.msra.mxu0 %v1508
          %1547 = vmatprep.subr.mxu0 0.0
          %1548 = vmatpush1.msra.mxu0 %v1507
          %1549 = vmatprep.subr.mxu0 0.0
          %1550 = vmatpush2.msra.mxu0 0.0
          %1551 = vmatprep.subr.mxu0 0.0
          %1552 = vmatpush2.msra.mxu0 0.0
          %1553 = vmatprep.subr.mxu0 0.0
          %1554 = vmatpush2.msra.mxu0 0.0
          %1555 = vmatprep.subr.mxu0 0.0
          %1556 = vmatpush2.msra.mxu0 0.0
          %1557 = vmatprep.subr.mxu0 0.0
          %1558 = vmatpush2.msra.mxu0 0.0
          %1559 = vmatprep.subr.mxu0 0.0
          %1560 = vmatpush2.msra.mxu0 0.0
          %1561 = vmatprep.subr.mxu0 0.0
          %1562 = vmatpush2.msra.mxu0 0.0
          %1563 = vmatprep.subr.mxu0 0.0
          %1564 = vmatpush2.msra.mxu0 0.0
          %1565 = vmatprep.subr.mxu0 0.0
          %1566 = vmatpush2.msra.mxu0 0.0
          %1567 = vmatprep.subr.mxu0 0.0
          %1568 = vmatpush2.msra.mxu0 0.0
          %1569 = vmatprep.subr.mxu0 0.0
          %1570 = vmatpush2.msra.mxu0 0.0
          %1571 = vmatprep.subr.mxu0 0.0
          %1572 = vmatpush2.msra.mxu0 0.0
          %1573 = vmatprep.subr.mxu0 0.0
          %1574 = vmatpush2.msra.mxu0 0.0
          %1575 = vmatprep.subr.mxu0 0.0
          %1576 = vmatpush2.msra.mxu0 0.0
          %1577 = vmatprep.subr.mxu0 0.0
          %1578 = vmatpush2.msra.mxu0 0.0
          %1579 = vmatprep.subr.mxu0 0.0
          %1580 = vmatpush2.msra.mxu0 0.0
          %1581 = vmatprep.mubr.f32.mxu0 0.0
          %1582 = vmatmul.mubr.f32.gmra.mxu0 %v1512
          %v1583 = vpop.f32.mrf.mxu0
          %v1584 = vadd.f32 0.0, %v1583
          %v1585 = vpop.f32.mrf.mxu0
          %1586 = vmatprep.mubr.f32.mxu0 0.0
          %1587 = vmatmul.mubr.f32.gmra.mxu0 %v1515
          %v1588 = vpop.f32.mrf.mxu0
          %v1589 = vadd.f32 0.0, %v1588
          %v1590 = vpop.f32.mrf.mxu0
          %1591 = vdwg.mxu0
          %v1592 = vadd.f32 %v1418, %v1584
          %v1593 = vadd.f32 %v1419, %v1589
          %s1594 = scalar_lea.vmem %s1, 96
          %v1595 = vld [vmem:[%s1594] sm:$0xff]
          %v1596 = vld [vmem:[%s1594 + $0x8] sm:$0xff]
          %v1598 = vsel %vm639, %v1595, 0
          %v1601 = vsel %vm639, %v1596, 0
          %1603 = vmatprep.subr.mxu0 0.0
          %1604 = vmatpush1.msra.mxu0 0.0
          %1605 = vmatprep.subr.mxu0 0.0
          %1606 = vmatpush1.msra.mxu0 0.0
          %1607 = vmatprep.subr.mxu0 0.0
          %1608 = vmatpush1.msra.mxu0 0.0
          %1609 = vmatprep.subr.mxu0 0.0
          %1610 = vmatpush1.msra.mxu0 0.0
          %1611 = vmatprep.subr.mxu0 0.0
          %1612 = vmatpush1.msra.mxu0 0.0
          %1613 = vmatprep.subr.mxu0 0.0
          %1614 = vmatpush1.msra.mxu0 0.0
          %1615 = vmatprep.subr.mxu0 0.0
          %1616 = vmatpush1.msra.mxu0 0.0
          %1617 = vmatprep.subr.mxu0 0.0
          %1618 = vmatpush1.msra.mxu0 0.0
          %1619 = vmatprep.subr.mxu0 0.0
          %1620 = vmatpush1.msra.mxu0 0.0
          %1621 = vmatprep.subr.mxu0 0.0
          %1622 = vmatpush1.msra.mxu0 0.0
          %1623 = vmatprep.subr.mxu0 0.0
          %1624 = vmatpush1.msra.mxu0 0.0
          %1625 = vmatprep.subr.mxu0 0.0
          %1626 = vmatpush1.msra.mxu0 0.0
          %1627 = vmatprep.subr.mxu0 0.0
          %1628 = vmatpush1.msra.mxu0 0.0
          %1629 = vmatprep.subr.mxu0 0.0
          %1630 = vmatpush1.msra.mxu0 0.0
          %1631 = vmatprep.subr.mxu0 0.0
          %1632 = vmatpush1.msra.mxu0 %v636
          %1633 = vmatprep.subr.mxu0 0.0
          %1634 = vmatpush1.msra.mxu0 %v635
          %1635 = vmatprep.subr.mxu0 0.0
          %1636 = vmatpush2.msra.mxu0 0.0
          %1637 = vmatprep.subr.mxu0 0.0
          %1638 = vmatpush2.msra.mxu0 0.0
          %1639 = vmatprep.subr.mxu0 0.0
          %1640 = vmatpush2.msra.mxu0 0.0
          %1641 = vmatprep.subr.mxu0 0.0
          %1642 = vmatpush2.msra.mxu0 0.0
          %1643 = vmatprep.subr.mxu0 0.0
          %1644 = vmatpush2.msra.mxu0 0.0
          %1645 = vmatprep.subr.mxu0 0.0
          %1646 = vmatpush2.msra.mxu0 0.0
          %1647 = vmatprep.subr.mxu0 0.0
          %1648 = vmatpush2.msra.mxu0 0.0
          %1649 = vmatprep.subr.mxu0 0.0
          %1650 = vmatpush2.msra.mxu0 0.0
          %1651 = vmatprep.subr.mxu0 0.0
          %1652 = vmatpush2.msra.mxu0 0.0
          %1653 = vmatprep.subr.mxu0 0.0
          %1654 = vmatpush2.msra.mxu0 0.0
          %1655 = vmatprep.subr.mxu0 0.0
          %1656 = vmatpush2.msra.mxu0 0.0
          %1657 = vmatprep.subr.mxu0 0.0
          %1658 = vmatpush2.msra.mxu0 0.0
          %1659 = vmatprep.subr.mxu0 0.0
          %1660 = vmatpush2.msra.mxu0 0.0
          %1661 = vmatprep.subr.mxu0 0.0
          %1662 = vmatpush2.msra.mxu0 0.0
          %1663 = vmatprep.subr.mxu0 0.0
          %1664 = vmatpush2.msra.mxu0 0.0
          %1665 = vmatprep.subr.mxu0 0.0
          %1666 = vmatpush2.msra.mxu0 0.0
          %1667 = vmatprep.mubr.f32.mxu0 0.0
          %1668 = vmatmul.mubr.f32.gmra.mxu0 %v1598
          %v1669 = vpop.f32.mrf.mxu0
          %v1670 = vadd.f32 0.0, %v1669
          %v1671 = vpop.f32.mrf.mxu0
          %1672 = vmatprep.mubr.f32.mxu0 0.0
          %1673 = vmatmul.mubr.f32.gmra.mxu0 %v1601
          %v1674 = vpop.f32.mrf.mxu0
          %v1675 = vadd.f32 0.0, %v1674
          %v1676 = vpop.f32.mrf.mxu0
          %1677 = vdwg.mxu0
          %s1678 = sadd.s32 %s721, 6
          %s1679 = smul.u32 %s1678, 32
          %s1680 = scalar_lea.vmem [#allocation4], %s1679
          %v1681 = vld [vmem:[%s1680] sm:$0xff]
          %v1682 = vld [vmem:[%s1680 + $0x8] sm:$0xff]
          %v1683 = vld [vmem:[%s1680 + $0x10] sm:$0xff]
          %v1684 = vld [vmem:[%s1680 + $0x18] sm:$0xff]
          %v1686 = vsel %vm819, %v1670, 0
          %v1689 = vsel %vm819, %v1675, 0
          %1691 = vmatprep.subr.mxu0 0.0
          %1692 = vmatpush1.msra.mxu0 0.0
          %1693 = vmatprep.subr.mxu0 0.0
          %1694 = vmatpush1.msra.mxu0 0.0
          %1695 = vmatprep.subr.mxu0 0.0
          %1696 = vmatpush1.msra.mxu0 0.0
          %1697 = vmatprep.subr.mxu0 0.0
          %1698 = vmatpush1.msra.mxu0 0.0
          %1699 = vmatprep.subr.mxu0 0.0
          %1700 = vmatpush1.msra.mxu0 0.0
          %1701 = vmatprep.subr.mxu0 0.0
          %1702 = vmatpush1.msra.mxu0 0.0
          %1703 = vmatprep.subr.mxu0 0.0
          %1704 = vmatpush1.msra.mxu0 0.0
          %1705 = vmatprep.subr.mxu0 0.0
          %1706 = vmatpush1.msra.mxu0 0.0
          %1707 = vmatprep.subr.mxu0 0.0
          %1708 = vmatpush1.msra.mxu0 0.0
          %1709 = vmatprep.subr.mxu0 0.0
          %1710 = vmatpush1.msra.mxu0 0.0
          %1711 = vmatprep.subr.mxu0 0.0
          %1712 = vmatpush1.msra.mxu0 0.0
          %1713 = vmatprep.subr.mxu0 0.0
          %1714 = vmatpush1.msra.mxu0 0.0
          %1715 = vmatprep.subr.mxu0 0.0
          %1716 = vmatpush1.msra.mxu0 %v1684
          %1717 = vmatprep.subr.mxu0 0.0
          %1718 = vmatpush1.msra.mxu0 %v1683
          %1719 = vmatprep.subr.mxu0 0.0
          %1720 = vmatpush1.msra.mxu0 %v1682
          %1721 = vmatprep.subr.mxu0 0.0
          %1722 = vmatpush1.msra.mxu0 %v1681
          %1723 = vmatprep.subr.mxu0 0.0
          %1724 = vmatpush2.msra.mxu0 0.0
          %1725 = vmatprep.subr.mxu0 0.0
          %1726 = vmatpush2.msra.mxu0 0.0
          %1727 = vmatprep.subr.mxu0 0.0
          %1728 = vmatpush2.msra.mxu0 0.0
          %1729 = vmatprep.subr.mxu0 0.0
          %1730 = vmatpush2.msra.mxu0 0.0
          %1731 = vmatprep.subr.mxu0 0.0
          %1732 = vmatpush2.msra.mxu0 0.0
          %1733 = vmatprep.subr.mxu0 0.0
          %1734 = vmatpush2.msra.mxu0 0.0
          %1735 = vmatprep.subr.mxu0 0.0
          %1736 = vmatpush2.msra.mxu0 0.0
          %1737 = vmatprep.subr.mxu0 0.0
          %1738 = vmatpush2.msra.mxu0 0.0
          %1739 = vmatprep.subr.mxu0 0.0
          %1740 = vmatpush2.msra.mxu0 0.0
          %1741 = vmatprep.subr.mxu0 0.0
          %1742 = vmatpush2.msra.mxu0 0.0
          %1743 = vmatprep.subr.mxu0 0.0
          %1744 = vmatpush2.msra.mxu0 0.0
          %1745 = vmatprep.subr.mxu0 0.0
          %1746 = vmatpush2.msra.mxu0 0.0
          %1747 = vmatprep.subr.mxu0 0.0
          %1748 = vmatpush2.msra.mxu0 0.0
          %1749 = vmatprep.subr.mxu0 0.0
          %1750 = vmatpush2.msra.mxu0 0.0
          %1751 = vmatprep.subr.mxu0 0.0
          %1752 = vmatpush2.msra.mxu0 0.0
          %1753 = vmatprep.subr.mxu0 0.0
          %1754 = vmatpush2.msra.mxu0 0.0
          %1755 = vmatprep.mubr.f32.mxu0 0.0
          %1756 = vmatmul.mubr.f32.gmra.mxu0 %v1686
          %v1757 = vpop.f32.mrf.mxu0
          %v1758 = vadd.f32 0.0, %v1757
          %v1759 = vpop.f32.mrf.mxu0
          %1760 = vmatprep.mubr.f32.mxu0 0.0
          %1761 = vmatmul.mubr.f32.gmra.mxu0 %v1689
          %v1762 = vpop.f32.mrf.mxu0
          %v1763 = vadd.f32 0.0, %v1762
          %v1764 = vpop.f32.mrf.mxu0
          %1765 = vdwg.mxu0
          %v1766 = vadd.f32 %v1592, %v1758
          %v1767 = vadd.f32 %v1593, %v1763
          %s1768 = scalar_lea.vmem %s1, 112
          %v1769 = vld [vmem:[%s1768] sm:$0xff]
          %v1770 = vld [vmem:[%s1768 + $0x8] sm:$0xff]
          %v1772 = vsel %vm639, %v1769, 0
          %v1775 = vsel %vm639, %v1770, 0
          %1777 = vmatprep.subr.mxu0 0.0
          %1778 = vmatpush1.msra.mxu0 0.0
          %1779 = vmatprep.subr.mxu0 0.0
          %1780 = vmatpush1.msra.mxu0 0.0
          %1781 = vmatprep.subr.mxu0 0.0
          %1782 = vmatpush1.msra.mxu0 0.0
          %1783 = vmatprep.subr.mxu0 0.0
          %1784 = vmatpush1.msra.mxu0 0.0
          %1785 = vmatprep.subr.mxu0 0.0
          %1786 = vmatpush1.msra.mxu0 0.0
          %1787 = vmatprep.subr.mxu0 0.0
          %1788 = vmatpush1.msra.mxu0 0.0
          %1789 = vmatprep.subr.mxu0 0.0
          %1790 = vmatpush1.msra.mxu0 0.0
          %1791 = vmatprep.subr.mxu0 0.0
          %1792 = vmatpush1.msra.mxu0 0.0
          %1793 = vmatprep.subr.mxu0 0.0
          %1794 = vmatpush1.msra.mxu0 0.0
          %1795 = vmatprep.subr.mxu0 0.0
          %1796 = vmatpush1.msra.mxu0 0.0
          %1797 = vmatprep.subr.mxu0 0.0
          %1798 = vmatpush1.msra.mxu0 0.0
          %1799 = vmatprep.subr.mxu0 0.0
          %1800 = vmatpush1.msra.mxu0 0.0
          %1801 = vmatprep.subr.mxu0 0.0
          %1802 = vmatpush1.msra.mxu0 0.0
          %1803 = vmatprep.subr.mxu0 0.0
          %1804 = vmatpush1.msra.mxu0 0.0
          %1805 = vmatprep.subr.mxu0 0.0
          %1806 = vmatpush1.msra.mxu0 %v636
          %1807 = vmatprep.subr.mxu0 0.0
          %1808 = vmatpush1.msra.mxu0 %v635
          %1809 = vmatprep.subr.mxu0 0.0
          %1810 = vmatpush2.msra.mxu0 0.0
          %1811 = vmatprep.subr.mxu0 0.0
          %1812 = vmatpush2.msra.mxu0 0.0
          %1813 = vmatprep.subr.mxu0 0.0
          %1814 = vmatpush2.msra.mxu0 0.0
          %1815 = vmatprep.subr.mxu0 0.0
          %1816 = vmatpush2.msra.mxu0 0.0
          %1817 = vmatprep.subr.mxu0 0.0
          %1818 = vmatpush2.msra.mxu0 0.0
          %1819 = vmatprep.subr.mxu0 0.0
          %1820 = vmatpush2.msra.mxu0 0.0
          %1821 = vmatprep.subr.mxu0 0.0
          %1822 = vmatpush2.msra.mxu0 0.0
          %1823 = vmatprep.subr.mxu0 0.0
          %1824 = vmatpush2.msra.mxu0 0.0
          %1825 = vmatprep.subr.mxu0 0.0
          %1826 = vmatpush2.msra.mxu0 0.0
          %1827 = vmatprep.subr.mxu0 0.0
          %1828 = vmatpush2.msra.mxu0 0.0
          %1829 = vmatprep.subr.mxu0 0.0
          %1830 = vmatpush2.msra.mxu0 0.0
          %1831 = vmatprep.subr.mxu0 0.0
          %1832 = vmatpush2.msra.mxu0 0.0
          %1833 = vmatprep.subr.mxu0 0.0
          %1834 = vmatpush2.msra.mxu0 0.0
          %1835 = vmatprep.subr.mxu0 0.0
          %1836 = vmatpush2.msra.mxu0 0.0
          %1837 = vmatprep.subr.mxu0 0.0
          %1838 = vmatpush2.msra.mxu0 0.0
          %1839 = vmatprep.subr.mxu0 0.0
          %1840 = vmatpush2.msra.mxu0 0.0
          %1841 = vmatprep.mubr.f32.mxu0 0.0
          %1842 = vmatmul.mubr.f32.gmra.mxu0 %v1772
          %v1843 = vpop.f32.mrf.mxu0
          %v1844 = vadd.f32 0.0, %v1843
          %v1845 = vpop.f32.mrf.mxu0
          %1846 = vmatprep.mubr.f32.mxu0 0.0
          %1847 = vmatmul.mubr.f32.gmra.mxu0 %v1775
          %v1848 = vpop.f32.mrf.mxu0
          %v1849 = vadd.f32 0.0, %v1848
          %v1850 = vpop.f32.mrf.mxu0
          %1851 = vdwg.mxu0
          %s1852 = sadd.s32 %s721, 7
          %s1853 = smul.u32 %s1852, 32
          %s1854 = scalar_lea.vmem [#allocation4], %s1853
          %v1855 = vld [vmem:[%s1854] sm:$0xff]
          %v1856 = vld [vmem:[%s1854 + $0x8] sm:$0xff]
          %v1857 = vld [vmem:[%s1854 + $0x10] sm:$0xff]
          %v1858 = vld [vmem:[%s1854 + $0x18] sm:$0xff]
          %v1860 = vsel %vm819, %v1844, 0
          %v1863 = vsel %vm819, %v1849, 0
          %1865 = vmatprep.subr.mxu0 0.0
          %1866 = vmatpush1.msra.mxu0 0.0
          %1867 = vmatprep.subr.mxu0 0.0
          %1868 = vmatpush1.msra.mxu0 0.0
          %1869 = vmatprep.subr.mxu0 0.0
          %1870 = vmatpush1.msra.mxu0 0.0
          %1871 = vmatprep.subr.mxu0 0.0
          %1872 = vmatpush1.msra.mxu0 0.0
          %1873 = vmatprep.subr.mxu0 0.0
          %1874 = vmatpush1.msra.mxu0 0.0
          %1875 = vmatprep.subr.mxu0 0.0
          %1876 = vmatpush1.msra.mxu0 0.0
          %1877 = vmatprep.subr.mxu0 0.0
          %1878 = vmatpush1.msra.mxu0 0.0
          %1879 = vmatprep.subr.mxu0 0.0
          %1880 = vmatpush1.msra.mxu0 0.0
          %1881 = vmatprep.subr.mxu0 0.0
          %1882 = vmatpush1.msra.mxu0 0.0
          %1883 = vmatprep.subr.mxu0 0.0
          %1884 = vmatpush1.msra.mxu0 0.0
          %1885 = vmatprep.subr.mxu0 0.0
          %1886 = vmatpush1.msra.mxu0 0.0
          %1887 = vmatprep.subr.mxu0 0.0
          %1888 = vmatpush1.msra.mxu0 0.0
          %1889 = vmatprep.subr.mxu0 0.0
          %1890 = vmatpush1.msra.mxu0 %v1858
          %1891 = vmatprep.subr.mxu0 0.0
          %1892 = vmatpush1.msra.mxu0 %v1857
          %1893 = vmatprep.subr.mxu0 0.0
          %1894 = vmatpush1.msra.mxu0 %v1856
          %1895 = vmatprep.subr.mxu0 0.0
          %1896 = vmatpush1.msra.mxu0 %v1855
          %1897 = vmatprep.subr.mxu0 0.0
          %1898 = vmatpush2.msra.mxu0 0.0
          %1899 = vmatprep.subr.mxu0 0.0
          %1900 = vmatpush2.msra.mxu0 0.0
          %1901 = vmatprep.subr.mxu0 0.0
          %1902 = vmatpush2.msra.mxu0 0.0
          %1903 = vmatprep.subr.mxu0 0.0
          %1904 = vmatpush2.msra.mxu0 0.0
          %1905 = vmatprep.subr.mxu0 0.0
          %1906 = vmatpush2.msra.mxu0 0.0
          %1907 = vmatprep.subr.mxu0 0.0
          %1908 = vmatpush2.msra.mxu0 0.0
          %1909 = vmatprep.subr.mxu0 0.0
          %1910 = vmatpush2.msra.mxu0 0.0
          %1911 = vmatprep.subr.mxu0 0.0
          %1912 = vmatpush2.msra.mxu0 0.0
          %1913 = vmatprep.subr.mxu0 0.0
          %1914 = vmatpush2.msra.mxu0 0.0
          %1915 = vmatprep.subr.mxu0 0.0
          %1916 = vmatpush2.msra.mxu0 0.0
          %1917 = vmatprep.subr.mxu0 0.0
          %1918 = vmatpush2.msra.mxu0 0.0
          %1919 = vmatprep.subr.mxu0 0.0
          %1920 = vmatpush2.msra.mxu0 0.0
          %1921 = vmatprep.subr.mxu0 0.0
          %1922 = vmatpush2.msra.mxu0 0.0
          %1923 = vmatprep.subr.mxu0 0.0
          %1924 = vmatpush2.msra.mxu0 0.0
          %1925 = vmatprep.subr.mxu0 0.0
          %1926 = vmatpush2.msra.mxu0 0.0
          %1927 = vmatprep.subr.mxu0 0.0
          %1928 = vmatpush2.msra.mxu0 0.0
          %1929 = vmatprep.mubr.f32.mxu0 0.0
          %1930 = vmatmul.mubr.f32.gmra.mxu0 %v1860
          %v1931 = vpop.f32.mrf.mxu0
          %v1932 = vadd.f32 0.0, %v1931
          %v1933 = vpop.f32.mrf.mxu0
          %1934 = vmatprep.mubr.f32.mxu0 0.0
          %1935 = vmatmul.mubr.f32.gmra.mxu0 %v1863
          %v1936 = vpop.f32.mrf.mxu0
          %v1937 = vadd.f32 0.0, %v1936
          %v1938 = vpop.f32.mrf.mxu0
          %1939 = vdwg.mxu0
          %v1940 = vadd.f32 %v1766, %v1932
          %v1941 = vadd.f32 %v1767, %v1937
          %s1942 = scalar_lea.vmem %s1, 128
          %v1943 = vld [vmem:[%s1942] sm:$0xff]
          %v1944 = vld [vmem:[%s1942 + $0x8] sm:$0xff]
          %v1946 = vsel %vm639, %v1943, 0
          %v1949 = vsel %vm639, %v1944, 0
          %1951 = vmatprep.subr.mxu0 0.0
          %1952 = vmatpush1.msra.mxu0 0.0
          %1953 = vmatprep.subr.mxu0 0.0
          %1954 = vmatpush1.msra.mxu0 0.0
          %1955 = vmatprep.subr.mxu0 0.0
          %1956 = vmatpush1.msra.mxu0 0.0
          %1957 = vmatprep.subr.mxu0 0.0
          %1958 = vmatpush1.msra.mxu0 0.0
          %1959 = vmatprep.subr.mxu0 0.0
          %1960 = vmatpush1.msra.mxu0 0.0
          %1961 = vmatprep.subr.mxu0 0.0
          %1962 = vmatpush1.msra.mxu0 0.0
          %1963 = vmatprep.subr.mxu0 0.0
          %1964 = vmatpush1.msra.mxu0 0.0
          %1965 = vmatprep.subr.mxu0 0.0
          %1966 = vmatpush1.msra.mxu0 0.0
          %1967 = vmatprep.subr.mxu0 0.0
          %1968 = vmatpush1.msra.mxu0 0.0
          %1969 = vmatprep.subr.mxu0 0.0
          %1970 = vmatpush1.msra.mxu0 0.0
          %1971 = vmatprep.subr.mxu0 0.0
          %1972 = vmatpush1.msra.mxu0 0.0
          %1973 = vmatprep.subr.mxu0 0.0
          %1974 = vmatpush1.msra.mxu0 0.0
          %1975 = vmatprep.subr.mxu0 0.0
          %1976 = vmatpush1.msra.mxu0 0.0
          %1977 = vmatprep.subr.mxu0 0.0
          %1978 = vmatpush1.msra.mxu0 0.0
          %1979 = vmatprep.subr.mxu0 0.0
          %1980 = vmatpush1.msra.mxu0 %v636
          %1981 = vmatprep.subr.mxu0 0.0
          %1982 = vmatpush1.msra.mxu0 %v635
          %1983 = vmatprep.subr.mxu0 0.0
          %1984 = vmatpush2.msra.mxu0 0.0
          %1985 = vmatprep.subr.mxu0 0.0
          %1986 = vmatpush2.msra.mxu0 0.0
          %1987 = vmatprep.subr.mxu0 0.0
          %1988 = vmatpush2.msra.mxu0 0.0
          %1989 = vmatprep.subr.mxu0 0.0
          %1990 = vmatpush2.msra.mxu0 0.0
          %1991 = vmatprep.subr.mxu0 0.0
          %1992 = vmatpush2.msra.mxu0 0.0
          %1993 = vmatprep.subr.mxu0 0.0
          %1994 = vmatpush2.msra.mxu0 0.0
          %1995 = vmatprep.subr.mxu0 0.0
          %1996 = vmatpush2.msra.mxu0 0.0
          %1997 = vmatprep.subr.mxu0 0.0
          %1998 = vmatpush2.msra.mxu0 0.0
          %1999 = vmatprep.subr.mxu0 0.0
          %2000 = vmatpush2.msra.mxu0 0.0
          %2001 = vmatprep.subr.mxu0 0.0
          %2002 = vmatpush2.msra.mxu0 0.0
          %2003 = vmatprep.subr.mxu0 0.0
          %2004 = vmatpush2.msra.mxu0 0.0
          %2005 = vmatprep.subr.mxu0 0.0
          %2006 = vmatpush2.msra.mxu0 0.0
          %2007 = vmatprep.subr.mxu0 0.0
          %2008 = vmatpush2.msra.mxu0 0.0
          %2009 = vmatprep.subr.mxu0 0.0
          %2010 = vmatpush2.msra.mxu0 0.0
          %2011 = vmatprep.subr.mxu0 0.0
          %2012 = vmatpush2.msra.mxu0 0.0
          %2013 = vmatprep.subr.mxu0 0.0
          %2014 = vmatpush2.msra.mxu0 0.0
          %2015 = vmatprep.mubr.f32.mxu0 0.0
          %2016 = vmatmul.mubr.f32.gmra.mxu0 %v1946
          %v2017 = vpop.f32.mrf.mxu0
          %v2018 = vadd.f32 0.0, %v2017
          %v2019 = vpop.f32.mrf.mxu0
          %2020 = vmatprep.mubr.f32.mxu0 0.0
          %2021 = vmatmul.mubr.f32.gmra.mxu0 %v1949
          %v2022 = vpop.f32.mrf.mxu0
          %v2023 = vadd.f32 0.0, %v2022
          %v2024 = vpop.f32.mrf.mxu0
          %2025 = vdwg.mxu0
          %s2026 = sadd.s32 %s721, 8
          %s2027 = smul.u32 %s2026, 32
          %s2028 = scalar_lea.vmem [#allocation4], %s2027
          %v2029 = vld [vmem:[%s2028] sm:$0xff]
          %v2030 = vld [vmem:[%s2028 + $0x8] sm:$0xff]
          %v2031 = vld [vmem:[%s2028 + $0x10] sm:$0xff]
          %v2032 = vld [vmem:[%s2028 + $0x18] sm:$0xff]
          %v2034 = vsel %vm819, %v2018, 0
          %v2037 = vsel %vm819, %v2023, 0
          %2039 = vmatprep.subr.mxu0 0.0
          %2040 = vmatpush1.msra.mxu0 0.0
          %2041 = vmatprep.subr.mxu0 0.0
          %2042 = vmatpush1.msra.mxu0 0.0
          %2043 = vmatprep.subr.mxu0 0.0
          %2044 = vmatpush1.msra.mxu0 0.0
          %2045 = vmatprep.subr.mxu0 0.0
          %2046 = vmatpush1.msra.mxu0 0.0
          %2047 = vmatprep.subr.mxu0 0.0
          %2048 = vmatpush1.msra.mxu0 0.0
          %2049 = vmatprep.subr.mxu0 0.0
          %2050 = vmatpush1.msra.mxu0 0.0
          %2051 = vmatprep.subr.mxu0 0.0
          %2052 = vmatpush1.msra.mxu0 0.0
          %2053 = vmatprep.subr.mxu0 0.0
          %2054 = vmatpush1.msra.mxu0 0.0
          %2055 = vmatprep.subr.mxu0 0.0
          %2056 = vmatpush1.msra.mxu0 0.0
          %2057 = vmatprep.subr.mxu0 0.0
          %2058 = vmatpush1.msra.mxu0 0.0
          %2059 = vmatprep.subr.mxu0 0.0
          %2060 = vmatpush1.msra.mxu0 0.0
          %2061 = vmatprep.subr.mxu0 0.0
          %2062 = vmatpush1.msra.mxu0 0.0
          %2063 = vmatprep.subr.mxu0 0.0
          %2064 = vmatpush1.msra.mxu0 %v2032
          %2065 = vmatprep.subr.mxu0 0.0
          %2066 = vmatpush1.msra.mxu0 %v2031
          %2067 = vmatprep.subr.mxu0 0.0
          %2068 = vmatpush1.msra.mxu0 %v2030
          %2069 = vmatprep.subr.mxu0 0.0
          %2070 = vmatpush1.msra.mxu0 %v2029
          %2071 = vmatprep.subr.mxu0 0.0
          %2072 = vmatpush2.msra.mxu0 0.0
          %2073 = vmatprep.subr.mxu0 0.0
          %2074 = vmatpush2.msra.mxu0 0.0
          %2075 = vmatprep.subr.mxu0 0.0
          %2076 = vmatpush2.msra.mxu0 0.0
          %2077 = vmatprep.subr.mxu0 0.0
          %2078 = vmatpush2.msra.mxu0 0.0
          %2079 = vmatprep.subr.mxu0 0.0
          %2080 = vmatpush2.msra.mxu0 0.0
          %2081 = vmatprep.subr.mxu0 0.0
          %2082 = vmatpush2.msra.mxu0 0.0
          %2083 = vmatprep.subr.mxu0 0.0
          %2084 = vmatpush2.msra.mxu0 0.0
          %2085 = vmatprep.subr.mxu0 0.0
          %2086 = vmatpush2.msra.mxu0 0.0
          %2087 = vmatprep.subr.mxu0 0.0
          %2088 = vmatpush2.msra.mxu0 0.0
          %2089 = vmatprep.subr.mxu0 0.0
          %2090 = vmatpush2.msra.mxu0 0.0
          %2091 = vmatprep.subr.mxu0 0.0
          %2092 = vmatpush2.msra.mxu0 0.0
          %2093 = vmatprep.subr.mxu0 0.0
          %2094 = vmatpush2.msra.mxu0 0.0
          %2095 = vmatprep.subr.mxu0 0.0
          %2096 = vmatpush2.msra.mxu0 0.0
          %2097 = vmatprep.subr.mxu0 0.0
          %2098 = vmatpush2.msra.mxu0 0.0
          %2099 = vmatprep.subr.mxu0 0.0
          %2100 = vmatpush2.msra.mxu0 0.0
          %2101 = vmatprep.subr.mxu0 0.0
          %2102 = vmatpush2.msra.mxu0 0.0
          %2103 = vmatprep.mubr.f32.mxu0 0.0
          %2104 = vmatmul.mubr.f32.gmra.mxu0 %v2034
          %v2105 = vpop.f32.mrf.mxu0
          %v2106 = vadd.f32 0.0, %v2105
          %v2107 = vpop.f32.mrf.mxu0
          %2108 = vmatprep.mubr.f32.mxu0 0.0
          %2109 = vmatmul.mubr.f32.gmra.mxu0 %v2037
          %v2110 = vpop.f32.mrf.mxu0
          %v2111 = vadd.f32 0.0, %v2110
          %v2112 = vpop.f32.mrf.mxu0
          %2113 = vdwg.mxu0
          %v2114 = vadd.f32 %v1940, %v2106
          %v2115 = vadd.f32 %v1941, %v2111
          %s2116 = scalar_lea.vmem %s5, %s630
          %v2117 = vld [vmem:[%s2116] sm:$0x1]
          %v2119 = vlaneseq
          %v2120 = vshrl.u32 %v2119, 7
          %v2121 = vsub.s32 0, %v2120
          %v2122 = vrot.slane %v2117, %v2121
          %v2124 = vadd.f32 %v2114, %v2122
          %v2125 = vadd.f32 %v2115, %v2122
          %v2126 = vmul.f32 %v2124, 0.5
          %v2127 = vmul.f32 %v2125, 0.5
          %v2128 = vmul.f32 %v2124, 0.70710677
          %v2129 = vmul.f32 %v2125, 0.70710677
          %v2130 = verf.f32.pop %v2128
          %v2131 = verf.f32.pop %v2129
          %v2132 = vadd.f32 %v2130, 1.0
          %v2133 = vadd.f32 %v2131, 1.0
          %v2134 = vmul.f32 %v2126, %v2132
          %v2135 = vmul.f32 %v2127, %v2133
          %2136 = vmatprep.subr.mxu0 0.0
          %2137 = vmatpush1.msra.mxu0 0.0
          %2138 = vmatprep.subr.mxu0 0.0
          %2139 = vmatpush1.msra.mxu0 0.0
          %2140 = vmatprep.subr.mxu0 0.0
          %2141 = vmatpush1.msra.mxu0 0.0
          %2142 = vmatprep.subr.mxu0 0.0
          %2143 = vmatpush1.msra.mxu0 0.0
          %2144 = vmatprep.subr.mxu0 0.0
          %2145 = vmatpush1.msra.mxu0 0.0
          %2146 = vmatprep.subr.mxu0 0.0
          %2147 = vmatpush1.msra.mxu0 0.0
          %2148 = vmatprep.subr.mxu0 0.0
          %2149 = vmatpush1.msra.mxu0 0.0
          %2150 = vmatprep.subr.mxu0 0.0
          %2151 = vmatpush1.msra.mxu0 0.0
          %2152 = vmatprep.subr.mxu0 0.0
          %2153 = vmatpush1.msra.mxu0 0.0
          %2154 = vmatprep.subr.mxu0 0.0
          %2155 = vmatpush1.msra.mxu0 0.0
          %2156 = vmatprep.subr.mxu0 0.0
          %2157 = vmatpush1.msra.mxu0 0.0
          %2158 = vmatprep.subr.mxu0 0.0
          %2159 = vmatpush1.msra.mxu0 0.0
          %2160 = vmatprep.subr.mxu0 0.0
          %2161 = vmatpush1.msra.mxu0 0.0
          %2162 = vmatprep.subr.mxu0 0.0
          %2163 = vmatpush1.msra.mxu0 0.0
          %2164 = vmatprep.subr.mxu0 0.0
          %2165 = vmatpush1.msra.mxu0 %v2135
          %2166 = vmatprep.subr.mxu0 0.0
          %2167 = vmatpush1.msra.mxu0 %v2134
          %2168 = vmatprep.subr.mxu0 0.0
          %2169 = vmatpush2.msra.mxu0 0.0
          %2170 = vmatprep.subr.mxu0 0.0
          %2171 = vmatpush2.msra.mxu0 0.0
          %2172 = vmatprep.subr.mxu0 0.0
          %2173 = vmatpush2.msra.mxu0 0.0
          %2174 = vmatprep.subr.mxu0 0.0
          %2175 = vmatpush2.msra.mxu0 0.0
          %2176 = vmatprep.subr.mxu0 0.0
          %2177 = vmatpush2.msra.mxu0 0.0
          %2178 = vmatprep.subr.mxu0 0.0
          %2179 = vmatpush2.msra.mxu0 0.0
          %2180 = vmatprep.subr.mxu0 0.0
          %2181 = vmatpush2.msra.mxu0 0.0
          %2182 = vmatprep.subr.mxu0 0.0
          %2183 = vmatpush2.msra.mxu0 0.0
          %2184 = vmatprep.subr.mxu0 0.0
          %2185 = vmatpush2.msra.mxu0 0.0
          %2186 = vmatprep.subr.mxu0 0.0
          %2187 = vmatpush2.msra.mxu0 0.0
          %2188 = vmatprep.subr.mxu0 0.0
          %2189 = vmatpush2.msra.mxu0 0.0
          %2190 = vmatprep.subr.mxu0 0.0
          %2191 = vmatpush2.msra.mxu0 0.0
          %2192 = vmatprep.subr.mxu0 0.0
          %2193 = vmatpush2.msra.mxu0 0.0
          %2194 = vmatprep.subr.mxu0 0.0
          %2195 = vmatpush2.msra.mxu0 0.0
          %2196 = vmatprep.subr.mxu0 0.0
          %2197 = vmatpush2.msra.mxu0 0.0
          %2198 = vmatprep.subr.mxu0 0.0
          %2199 = vmatpush2.msra.mxu0 0.0
          %2200 = vmatprep.mubr.f32.mxu0 0.0
          %2201 = vmatmul.mubr.f32.gmra.mxu0 %v641
          %v2202 = vpop.f32.mrf.mxu0
          %v2203 = vadd.f32 0.0, %v2202
          %v2204 = vpop.f32.mrf.mxu0
          %2205 = vmatprep.mubr.f32.mxu0 0.0
          %2206 = vmatmul.mubr.f32.gmra.mxu0 %v644
          %v2207 = vpop.f32.mrf.mxu0
          %v2208 = vadd.f32 0.0, %v2207
          %v2209 = vpop.f32.mrf.mxu0
          %2210 = vdwg.mxu0
          %s2211 = scalar_lea.vmem %s6, %s722
          %v2212 = vld [vmem:[%s2211] sm:$0xff]
          %v2213 = vld [vmem:[%s2211 + $0x8] sm:$0xff]
          %v2214 = vld [vmem:[%s2211 + $0x10] sm:$0xff]
          %v2215 = vld [vmem:[%s2211 + $0x18] sm:$0xff]
          %2216 = vmatprep.subr.mxu0 0.0
          %2217 = vmatpush1.msra.mxu0 0.0
          %2218 = vmatprep.subr.mxu0 0.0
          %2219 = vmatpush1.msra.mxu0 0.0
          %2220 = vmatprep.subr.mxu0 0.0
          %2221 = vmatpush1.msra.mxu0 0.0
          %2222 = vmatprep.subr.mxu0 0.0
          %2223 = vmatpush1.msra.mxu0 0.0
          %2224 = vmatprep.subr.mxu0 0.0
          %2225 = vmatpush1.msra.mxu0 0.0
          %2226 = vmatprep.subr.mxu0 0.0
          %2227 = vmatpush1.msra.mxu0 0.0
          %2228 = vmatprep.subr.mxu0 0.0
          %2229 = vmatpush1.msra.mxu0 0.0
          %2230 = vmatprep.subr.mxu0 0.0
          %2231 = vmatpush1.msra.mxu0 0.0
          %2232 = vmatprep.subr.mxu0 0.0
          %2233 = vmatpush1.msra.mxu0 0.0
          %2234 = vmatprep.subr.mxu0 0.0
          %2235 = vmatpush1.msra.mxu0 0.0
          %2236 = vmatprep.subr.mxu0 0.0
          %2237 = vmatpush1.msra.mxu0 0.0
          %2238 = vmatprep.subr.mxu0 0.0
          %2239 = vmatpush1.msra.mxu0 0.0
          %2240 = vmatprep.subr.mxu0 0.0
          %2241 = vmatpush1.msra.mxu0 0.0
          %2242 = vmatprep.subr.mxu0 0.0
          %2243 = vmatpush1.msra.mxu0 0.0
          %2244 = vmatprep.subr.mxu0 0.0
          %2245 = vmatpush1.msra.mxu0 %v2135
          %2246 = vmatprep.subr.mxu0 0.0
          %2247 = vmatpush1.msra.mxu0 %v2134
          %2248 = vmatprep.subr.mxu0 0.0
          %2249 = vmatpush2.msra.mxu0 0.0
          %2250 = vmatprep.subr.mxu0 0.0
          %2251 = vmatpush2.msra.mxu0 0.0
          %2252 = vmatprep.subr.mxu0 0.0
          %2253 = vmatpush2.msra.mxu0 0.0
          %2254 = vmatprep.subr.mxu0 0.0
          %2255 = vmatpush2.msra.mxu0 0.0
          %2256 = vmatprep.subr.mxu0 0.0
          %2257 = vmatpush2.msra.mxu0 0.0
          %2258 = vmatprep.subr.mxu0 0.0
          %2259 = vmatpush2.msra.mxu0 0.0
          %2260 = vmatprep.subr.mxu0 0.0
          %2261 = vmatpush2.msra.mxu0 0.0
          %2262 = vmatprep.subr.mxu0 0.0
          %2263 = vmatpush2.msra.mxu0 0.0
          %2264 = vmatprep.subr.mxu0 0.0
          %2265 = vmatpush2.msra.mxu0 0.0
          %2266 = vmatprep.subr.mxu0 0.0
          %2267 = vmatpush2.msra.mxu0 0.0
          %2268 = vmatprep.subr.mxu0 0.0
          %2269 = vmatpush2.msra.mxu0 0.0
          %2270 = vmatprep.subr.mxu0 0.0
          %2271 = vmatpush2.msra.mxu0 0.0
          %2272 = vmatprep.subr.mxu0 0.0
          %2273 = vmatpush2.msra.mxu0 0.0
          %2274 = vmatprep.subr.mxu0 0.0
          %2275 = vmatpush2.msra.mxu0 0.0
          %2276 = vmatprep.subr.mxu0 0.0
          %2277 = vmatpush2.msra.mxu0 0.0
          %2278 = vmatprep.subr.mxu0 0.0
          %2279 = vmatpush2.msra.mxu0 0.0
          %2280 = vmatprep.mubr.f32.mxu0 0.0
          %2281 = vmatmul.mubr.f32.gmra.mxu0 %v732
          %v2282 = vpop.f32.mrf.mxu0
          %v2283 = vadd.f32 0.0, %v2282
          %v2284 = vpop.f32.mrf.mxu0
          %2285 = vmatprep.mubr.f32.mxu0 0.0
          %2286 = vmatmul.mubr.f32.gmra.mxu0 %v735
          %v2287 = vpop.f32.mrf.mxu0
          %v2288 = vadd.f32 0.0, %v2287
          %v2289 = vpop.f32.mrf.mxu0
          %2290 = vdwg.mxu0
          %s2291 = scalar_lea.vmem %s6, %s813
          %v2292 = vld [vmem:[%s2291] sm:$0xff]
          %v2293 = vld [vmem:[%s2291 + $0x8] sm:$0xff]
          %v2294 = vld [vmem:[%s2291 + $0x10] sm:$0xff]
          %v2295 = vld [vmem:[%s2291 + $0x18] sm:$0xff]
          %v2297 = vsel %vm819, %v2283, 0
          %v2300 = vsel %vm819, %v2288, 0
          %2302 = vmatprep.subr.mxu0 0.0
          %2303 = vmatpush1.msra.mxu0 0.0
          %2304 = vmatprep.subr.mxu0 0.0
          %2305 = vmatpush1.msra.mxu0 0.0
          %2306 = vmatprep.subr.mxu0 0.0
          %2307 = vmatpush1.msra.mxu0 0.0
          %2308 = vmatprep.subr.mxu0 0.0
          %2309 = vmatpush1.msra.mxu0 0.0
          %2310 = vmatprep.subr.mxu0 0.0
          %2311 = vmatpush1.msra.mxu0 0.0
          %2312 = vmatprep.subr.mxu0 0.0
          %2313 = vmatpush1.msra.mxu0 0.0
          %2314 = vmatprep.subr.mxu0 0.0
          %2315 = vmatpush1.msra.mxu0 0.0
          %2316 = vmatprep.subr.mxu0 0.0
          %2317 = vmatpush1.msra.mxu0 0.0
          %2318 = vmatprep.subr.mxu0 0.0
          %2319 = vmatpush1.msra.mxu0 0.0
          %2320 = vmatprep.subr.mxu0 0.0
          %2321 = vmatpush1.msra.mxu0 0.0
          %2322 = vmatprep.subr.mxu0 0.0
          %2323 = vmatpush1.msra.mxu0 0.0
          %2324 = vmatprep.subr.mxu0 0.0
          %2325 = vmatpush1.msra.mxu0 0.0
          %2326 = vmatprep.subr.mxu0 0.0
          %2327 = vmatpush1.msra.mxu0 %v2295
          %2328 = vmatprep.subr.mxu0 0.0
          %2329 = vmatpush1.msra.mxu0 %v2294
          %2330 = vmatprep.subr.mxu0 0.0
          %2331 = vmatpush1.msra.mxu0 %v2293
          %2332 = vmatprep.subr.mxu0 0.0
          %2333 = vmatpush1.msra.mxu0 %v2292
          %2334 = vmatprep.subr.mxu0 0.0
          %2335 = vmatpush2.msra.mxu0 0.0
          %2336 = vmatprep.subr.mxu0 0.0
          %2337 = vmatpush2.msra.mxu0 0.0
          %2338 = vmatprep.subr.mxu0 0.0
          %2339 = vmatpush2.msra.mxu0 0.0
          %2340 = vmatprep.subr.mxu0 0.0
          %2341 = vmatpush2.msra.mxu0 0.0
          %2342 = vmatprep.subr.mxu0 0.0
          %2343 = vmatpush2.msra.mxu0 0.0
          %2344 = vmatprep.subr.mxu0 0.0
          %2345 = vmatpush2.msra.mxu0 0.0
          %2346 = vmatprep.subr.mxu0 0.0
          %2347 = vmatpush2.msra.mxu0 0.0
          %2348 = vmatprep.subr.mxu0 0.0
          %2349 = vmatpush2.msra.mxu0 0.0
          %2350 = vmatprep.subr.mxu0 0.0
          %2351 = vmatpush2.msra.mxu0 0.0
          %2352 = vmatprep.subr.mxu0 0.0
          %2353 = vmatpush2.msra.mxu0 0.0
          %2354 = vmatprep.subr.mxu0 0.0
          %2355 = vmatpush2.msra.mxu0 0.0
          %2356 = vmatprep.subr.mxu0 0.0
          %2357 = vmatpush2.msra.mxu0 0.0
          %2358 = vmatprep.subr.mxu0 0.0
          %2359 = vmatpush2.msra.mxu0 0.0
          %2360 = vmatprep.subr.mxu0 0.0
          %2361 = vmatpush2.msra.mxu0 0.0
          %2362 = vmatprep.subr.mxu0 0.0
          %2363 = vmatpush2.msra.mxu0 0.0
          %2364 = vmatprep.subr.mxu0 0.0
          %2365 = vmatpush2.msra.mxu0 0.0
          %2366 = vmatprep.mubr.f32.mxu0 0.0
          %2367 = vmatmul.mubr.f32.gmra.mxu0 %v2297
          %v2368 = vpop.f32.mrf.mxu0
          %v2369 = vadd.f32 0.0, %v2368
          %v2370 = vpop.f32.mrf.mxu0
          %2371 = vmatprep.mubr.f32.mxu0 0.0
          %2372 = vmatmul.mubr.f32.gmra.mxu0 %v2300
          %v2373 = vpop.f32.mrf.mxu0
          %v2374 = vadd.f32 0.0, %v2373
          %v2375 = vpop.f32.mrf.mxu0
          %2376 = vdwg.mxu0
          %v2378 = vsel %vm819, %v2203, 0
          %v2381 = vsel %vm819, %v2208, 0
          %2383 = vmatprep.subr.mxu0 0.0
          %2384 = vmatpush1.msra.mxu0 0.0
          %2385 = vmatprep.subr.mxu0 0.0
          %2386 = vmatpush1.msra.mxu0 0.0
          %2387 = vmatprep.subr.mxu0 0.0
          %2388 = vmatpush1.msra.mxu0 0.0
          %2389 = vmatprep.subr.mxu0 0.0
          %2390 = vmatpush1.msra.mxu0 0.0
          %2391 = vmatprep.subr.mxu0 0.0
          %2392 = vmatpush1.msra.mxu0 0.0
          %2393 = vmatprep.subr.mxu0 0.0
          %2394 = vmatpush1.msra.mxu0 0.0
          %2395 = vmatprep.subr.mxu0 0.0
          %2396 = vmatpush1.msra.mxu0 0.0
          %2397 = vmatprep.subr.mxu0 0.0
          %2398 = vmatpush1.msra.mxu0 0.0
          %2399 = vmatprep.subr.mxu0 0.0
          %2400 = vmatpush1.msra.mxu0 0.0
          %2401 = vmatprep.subr.mxu0 0.0
          %2402 = vmatpush1.msra.mxu0 0.0
          %2403 = vmatprep.subr.mxu0 0.0
          %2404 = vmatpush1.msra.mxu0 0.0
          %2405 = vmatprep.subr.mxu0 0.0
          %2406 = vmatpush1.msra.mxu0 0.0
          %2407 = vmatprep.subr.mxu0 0.0
          %2408 = vmatpush1.msra.mxu0 %v2215
          %2409 = vmatprep.subr.mxu0 0.0
          %2410 = vmatpush1.msra.mxu0 %v2214
          %2411 = vmatprep.subr.mxu0 0.0
          %2412 = vmatpush1.msra.mxu0 %v2213
          %2413 = vmatprep.subr.mxu0 0.0
          %2414 = vmatpush1.msra.mxu0 %v2212
          %2415 = vmatprep.subr.mxu0 0.0
          %2416 = vmatpush2.msra.mxu0 0.0
          %2417 = vmatprep.subr.mxu0 0.0
          %2418 = vmatpush2.msra.mxu0 0.0
          %2419 = vmatprep.subr.mxu0 0.0
          %2420 = vmatpush2.msra.mxu0 0.0
          %2421 = vmatprep.subr.mxu0 0.0
          %2422 = vmatpush2.msra.mxu0 0.0
          %2423 = vmatprep.subr.mxu0 0.0
          %2424 = vmatpush2.msra.mxu0 0.0
          %2425 = vmatprep.subr.mxu0 0.0
          %2426 = vmatpush2.msra.mxu0 0.0
          %2427 = vmatprep.subr.mxu0 0.0
          %2428 = vmatpush2.msra.mxu0 0.0
          %2429 = vmatprep.subr.mxu0 0.0
          %2430 = vmatpush2.msra.mxu0 0.0
          %2431 = vmatprep.subr.mxu0 0.0
          %2432 = vmatpush2.msra.mxu0 0.0
          %2433 = vmatprep.subr.mxu0 0.0
          %2434 = vmatpush2.msra.mxu0 0.0
          %2435 = vmatprep.subr.mxu0 0.0
          %2436 = vmatpush2.msra.mxu0 0.0
          %2437 = vmatprep.subr.mxu0 0.0
          %2438 = vmatpush2.msra.mxu0 0.0
          %2439 = vmatprep.subr.mxu0 0.0
          %2440 = vmatpush2.msra.mxu0 0.0
          %2441 = vmatprep.subr.mxu0 0.0
          %2442 = vmatpush2.msra.mxu0 0.0
          %2443 = vmatprep.subr.mxu0 0.0
          %2444 = vmatpush2.msra.mxu0 0.0
          %2445 = vmatprep.subr.mxu0 0.0
          %2446 = vmatpush2.msra.mxu0 0.0
          %2447 = vmatprep.mubr.f32.mxu0 0.0
          %2448 = vmatmul.mubr.f32.gmra.mxu0 %v2378
          %v2449 = vpop.f32.mrf.mxu0
          %v2450 = vadd.f32 %v2369, %v2449
          %v2451 = vpop.f32.mrf.mxu0
          %2452 = vmatprep.mubr.f32.mxu0 0.0
          %2453 = vmatmul.mubr.f32.gmra.mxu0 %v2381
          %v2454 = vpop.f32.mrf.mxu0
          %v2455 = vadd.f32 %v2374, %v2454
          %v2456 = vpop.f32.mrf.mxu0
          %2457 = vdwg.mxu0
          %2458 = vmatprep.subr.mxu0 0.0
          %2459 = vmatpush1.msra.mxu0 0.0
          %2460 = vmatprep.subr.mxu0 0.0
          %2461 = vmatpush1.msra.mxu0 0.0
          %2462 = vmatprep.subr.mxu0 0.0
          %2463 = vmatpush1.msra.mxu0 0.0
          %2464 = vmatprep.subr.mxu0 0.0
          %2465 = vmatpush1.msra.mxu0 0.0
          %2466 = vmatprep.subr.mxu0 0.0
          %2467 = vmatpush1.msra.mxu0 0.0
          %2468 = vmatprep.subr.mxu0 0.0
          %2469 = vmatpush1.msra.mxu0 0.0
          %2470 = vmatprep.subr.mxu0 0.0
          %2471 = vmatpush1.msra.mxu0 0.0
          %2472 = vmatprep.subr.mxu0 0.0
          %2473 = vmatpush1.msra.mxu0 0.0
          %2474 = vmatprep.subr.mxu0 0.0
          %2475 = vmatpush1.msra.mxu0 0.0
          %2476 = vmatprep.subr.mxu0 0.0
          %2477 = vmatpush1.msra.mxu0 0.0
          %2478 = vmatprep.subr.mxu0 0.0
          %2479 = vmatpush1.msra.mxu0 0.0
          %2480 = vmatprep.subr.mxu0 0.0
          %2481 = vmatpush1.msra.mxu0 0.0
          %2482 = vmatprep.subr.mxu0 0.0
          %2483 = vmatpush1.msra.mxu0 0.0
          %2484 = vmatprep.subr.mxu0 0.0
          %2485 = vmatpush1.msra.mxu0 0.0
          %2486 = vmatprep.subr.mxu0 0.0
          %2487 = vmatpush1.msra.mxu0 %v2135
          %2488 = vmatprep.subr.mxu0 0.0
          %2489 = vmatpush1.msra.mxu0 %v2134
          %2490 = vmatprep.subr.mxu0 0.0
          %2491 = vmatpush2.msra.mxu0 0.0
          %2492 = vmatprep.subr.mxu0 0.0
          %2493 = vmatpush2.msra.mxu0 0.0
          %2494 = vmatprep.subr.mxu0 0.0
          %2495 = vmatpush2.msra.mxu0 0.0
          %2496 = vmatprep.subr.mxu0 0.0
          %2497 = vmatpush2.msra.mxu0 0.0
          %2498 = vmatprep.subr.mxu0 0.0
          %2499 = vmatpush2.msra.mxu0 0.0
          %2500 = vmatprep.subr.mxu0 0.0
          %2501 = vmatpush2.msra.mxu0 0.0
          %2502 = vmatprep.subr.mxu0 0.0
          %2503 = vmatpush2.msra.mxu0 0.0
          %2504 = vmatprep.subr.mxu0 0.0
          %2505 = vmatpush2.msra.mxu0 0.0
          %2506 = vmatprep.subr.mxu0 0.0
          %2507 = vmatpush2.msra.mxu0 0.0
          %2508 = vmatprep.subr.mxu0 0.0
          %2509 = vmatpush2.msra.mxu0 0.0
          %2510 = vmatprep.subr.mxu0 0.0
          %2511 = vmatpush2.msra.mxu0 0.0
          %2512 = vmatprep.subr.mxu0 0.0
          %2513 = vmatpush2.msra.mxu0 0.0
          %2514 = vmatprep.subr.mxu0 0.0
          %2515 = vmatpush2.msra.mxu0 0.0
          %2516 = vmatprep.subr.mxu0 0.0
          %2517 = vmatpush2.msra.mxu0 0.0
          %2518 = vmatprep.subr.mxu0 0.0
          %2519 = vmatpush2.msra.mxu0 0.0
          %2520 = vmatprep.subr.mxu0 0.0
          %2521 = vmatpush2.msra.mxu0 0.0
          %2522 = vmatprep.mubr.f32.mxu0 0.0
          %2523 = vmatmul.mubr.f32.gmra.mxu0 %v986
          %v2524 = vpop.f32.mrf.mxu0
          %v2525 = vadd.f32 0.0, %v2524
          %v2526 = vpop.f32.mrf.mxu0
          %2527 = vmatprep.mubr.f32.mxu0 0.0
          %2528 = vmatmul.mubr.f32.gmra.mxu0 %v989
          %v2529 = vpop.f32.mrf.mxu0
          %v2530 = vadd.f32 0.0, %v2529
          %v2531 = vpop.f32.mrf.mxu0
          %2532 = vdwg.mxu0
          %s2533 = scalar_lea.vmem %s6, %s1067
          %v2534 = vld [vmem:[%s2533] sm:$0xff]
          %v2535 = vld [vmem:[%s2533 + $0x8] sm:$0xff]
          %v2536 = vld [vmem:[%s2533 + $0x10] sm:$0xff]
          %v2537 = vld [vmem:[%s2533 + $0x18] sm:$0xff]
          %v2539 = vsel %vm819, %v2525, 0
          %v2542 = vsel %vm819, %v2530, 0
          %2544 = vmatprep.subr.mxu0 0.0
          %2545 = vmatpush1.msra.mxu0 0.0
          %2546 = vmatprep.subr.mxu0 0.0
          %2547 = vmatpush1.msra.mxu0 0.0
          %2548 = vmatprep.subr.mxu0 0.0
          %2549 = vmatpush1.msra.mxu0 0.0
          %2550 = vmatprep.subr.mxu0 0.0
          %2551 = vmatpush1.msra.mxu0 0.0
          %2552 = vmatprep.subr.mxu0 0.0
          %2553 = vmatpush1.msra.mxu0 0.0
          %2554 = vmatprep.subr.mxu0 0.0
          %2555 = vmatpush1.msra.mxu0 0.0
          %2556 = vmatprep.subr.mxu0 0.0
          %2557 = vmatpush1.msra.mxu0 0.0
          %2558 = vmatprep.subr.mxu0 0.0
          %2559 = vmatpush1.msra.mxu0 0.0
          %2560 = vmatprep.subr.mxu0 0.0
          %2561 = vmatpush1.msra.mxu0 0.0
          %2562 = vmatprep.subr.mxu0 0.0
          %2563 = vmatpush1.msra.mxu0 0.0
          %2564 = vmatprep.subr.mxu0 0.0
          %2565 = vmatpush1.msra.mxu0 0.0
          %2566 = vmatprep.subr.mxu0 0.0
          %2567 = vmatpush1.msra.mxu0 0.0
          %2568 = vmatprep.subr.mxu0 0.0
          %2569 = vmatpush1.msra.mxu0 %v2537
          %2570 = vmatprep.subr.mxu0 0.0
          %2571 = vmatpush1.msra.mxu0 %v2536
          %2572 = vmatprep.subr.mxu0 0.0
          %2573 = vmatpush1.msra.mxu0 %v2535
          %2574 = vmatprep.subr.mxu0 0.0
          %2575 = vmatpush1.msra.mxu0 %v2534
          %2576 = vmatprep.subr.mxu0 0.0
          %2577 = vmatpush2.msra.mxu0 0.0
          %2578 = vmatprep.subr.mxu0 0.0
          %2579 = vmatpush2.msra.mxu0 0.0
          %2580 = vmatprep.subr.mxu0 0.0
          %2581 = vmatpush2.msra.mxu0 0.0
          %2582 = vmatprep.subr.mxu0 0.0
          %2583 = vmatpush2.msra.mxu0 0.0
          %2584 = vmatprep.subr.mxu0 0.0
          %2585 = vmatpush2.msra.mxu0 0.0
          %2586 = vmatprep.subr.mxu0 0.0
          %2587 = vmatpush2.msra.mxu0 0.0
          %2588 = vmatprep.subr.mxu0 0.0
          %2589 = vmatpush2.msra.mxu0 0.0
          %2590 = vmatprep.subr.mxu0 0.0
          %2591 = vmatpush2.msra.mxu0 0.0
          %2592 = vmatprep.subr.mxu0 0.0
          %2593 = vmatpush2.msra.mxu0 0.0
          %2594 = vmatprep.subr.mxu0 0.0
          %2595 = vmatpush2.msra.mxu0 0.0
          %2596 = vmatprep.subr.mxu0 0.0
          %2597 = vmatpush2.msra.mxu0 0.0
          %2598 = vmatprep.subr.mxu0 0.0
          %2599 = vmatpush2.msra.mxu0 0.0
          %2600 = vmatprep.subr.mxu0 0.0
          %2601 = vmatpush2.msra.mxu0 0.0
          %2602 = vmatprep.subr.mxu0 0.0
          %2603 = vmatpush2.msra.mxu0 0.0
          %2604 = vmatprep.subr.mxu0 0.0
          %2605 = vmatpush2.msra.mxu0 0.0
          %2606 = vmatprep.subr.mxu0 0.0
          %2607 = vmatpush2.msra.mxu0 0.0
          %2608 = vmatprep.mubr.f32.mxu0 0.0
          %2609 = vmatmul.mubr.f32.gmra.mxu0 %v2539
          %v2610 = vpop.f32.mrf.mxu0
          %v2611 = vadd.f32 0.0, %v2610
          %v2612 = vpop.f32.mrf.mxu0
          %2613 = vmatprep.mubr.f32.mxu0 0.0
          %2614 = vmatmul.mubr.f32.gmra.mxu0 %v2542
          %v2615 = vpop.f32.mrf.mxu0
          %v2616 = vadd.f32 0.0, %v2615
          %v2617 = vpop.f32.mrf.mxu0
          %2618 = vdwg.mxu0
          %v2619 = vadd.f32 %v2450, %v2611
          %v2620 = vadd.f32 %v2455, %v2616
          %2621 = vmatprep.subr.mxu0 0.0
          %2622 = vmatpush1.msra.mxu0 0.0
          %2623 = vmatprep.subr.mxu0 0.0
          %2624 = vmatpush1.msra.mxu0 0.0
          %2625 = vmatprep.subr.mxu0 0.0
          %2626 = vmatpush1.msra.mxu0 0.0
          %2627 = vmatprep.subr.mxu0 0.0
          %2628 = vmatpush1.msra.mxu0 0.0
          %2629 = vmatprep.subr.mxu0 0.0
          %2630 = vmatpush1.msra.mxu0 0.0
          %2631 = vmatprep.subr.mxu0 0.0
          %2632 = vmatpush1.msra.mxu0 0.0
          %2633 = vmatprep.subr.mxu0 0.0
          %2634 = vmatpush1.msra.mxu0 0.0
          %2635 = vmatprep.subr.mxu0 0.0
          %2636 = vmatpush1.msra.mxu0 0.0
          %2637 = vmatprep.subr.mxu0 0.0
          %2638 = vmatpush1.msra.mxu0 0.0
          %2639 = vmatprep.subr.mxu0 0.0
          %2640 = vmatpush1.msra.mxu0 0.0
          %2641 = vmatprep.subr.mxu0 0.0
          %2642 = vmatpush1.msra.mxu0 0.0
          %2643 = vmatprep.subr.mxu0 0.0
          %2644 = vmatpush1.msra.mxu0 0.0
          %2645 = vmatprep.subr.mxu0 0.0
          %2646 = vmatpush1.msra.mxu0 0.0
          %2647 = vmatprep.subr.mxu0 0.0
          %2648 = vmatpush1.msra.mxu0 0.0
          %2649 = vmatprep.subr.mxu0 0.0
          %2650 = vmatpush1.msra.mxu0 %v2135
          %2651 = vmatprep.subr.mxu0 0.0
          %2652 = vmatpush1.msra.mxu0 %v2134
          %2653 = vmatprep.subr.mxu0 0.0
          %2654 = vmatpush2.msra.mxu0 0.0
          %2655 = vmatprep.subr.mxu0 0.0
          %2656 = vmatpush2.msra.mxu0 0.0
          %2657 = vmatprep.subr.mxu0 0.0
          %2658 = vmatpush2.msra.mxu0 0.0
          %2659 = vmatprep.subr.mxu0 0.0
          %2660 = vmatpush2.msra.mxu0 0.0
          %2661 = vmatprep.subr.mxu0 0.0
          %2662 = vmatpush2.msra.mxu0 0.0
          %2663 = vmatprep.subr.mxu0 0.0
          %2664 = vmatpush2.msra.mxu0 0.0
          %2665 = vmatprep.subr.mxu0 0.0
          %2666 = vmatpush2.msra.mxu0 0.0
          %2667 = vmatprep.subr.mxu0 0.0
          %2668 = vmatpush2.msra.mxu0 0.0
          %2669 = vmatprep.subr.mxu0 0.0
          %2670 = vmatpush2.msra.mxu0 0.0
          %2671 = vmatprep.subr.mxu0 0.0
          %2672 = vmatpush2.msra.mxu0 0.0
          %2673 = vmatprep.subr.mxu0 0.0
          %2674 = vmatpush2.msra.mxu0 0.0
          %2675 = vmatprep.subr.mxu0 0.0
          %2676 = vmatpush2.msra.mxu0 0.0
          %2677 = vmatprep.subr.mxu0 0.0
          %2678 = vmatpush2.msra.mxu0 0.0
          %2679 = vmatprep.subr.mxu0 0.0
          %2680 = vmatpush2.msra.mxu0 0.0
          %2681 = vmatprep.subr.mxu0 0.0
          %2682 = vmatpush2.msra.mxu0 0.0
          %2683 = vmatprep.subr.mxu0 0.0
          %2684 = vmatpush2.msra.mxu0 0.0
          %2685 = vmatprep.mubr.f32.mxu0 0.0
          %2686 = vmatmul.mubr.f32.gmra.mxu0 %v1160
          %v2687 = vpop.f32.mrf.mxu0
          %v2688 = vadd.f32 0.0, %v2687
          %v2689 = vpop.f32.mrf.mxu0
          %2690 = vmatprep.mubr.f32.mxu0 0.0
          %2691 = vmatmul.mubr.f32.gmra.mxu0 %v1163
          %v2692 = vpop.f32.mrf.mxu0
          %v2693 = vadd.f32 0.0, %v2692
          %v2694 = vpop.f32.mrf.mxu0
          %2695 = vdwg.mxu0
          %s2696 = scalar_lea.vmem %s6, %s1241
          %v2697 = vld [vmem:[%s2696] sm:$0xff]
          %v2698 = vld [vmem:[%s2696 + $0x8] sm:$0xff]
          %v2699 = vld [vmem:[%s2696 + $0x10] sm:$0xff]
          %v2700 = vld [vmem:[%s2696 + $0x18] sm:$0xff]
          %v2702 = vsel %vm819, %v2688, 0
          %v2705 = vsel %vm819, %v2693, 0
          %2707 = vmatprep.subr.mxu0 0.0
          %2708 = vmatpush1.msra.mxu0 0.0
          %2709 = vmatprep.subr.mxu0 0.0
          %2710 = vmatpush1.msra.mxu0 0.0
          %2711 = vmatprep.subr.mxu0 0.0
          %2712 = vmatpush1.msra.mxu0 0.0
          %2713 = vmatprep.subr.mxu0 0.0
          %2714 = vmatpush1.msra.mxu0 0.0
          %2715 = vmatprep.subr.mxu0 0.0
          %2716 = vmatpush1.msra.mxu0 0.0
          %2717 = vmatprep.subr.mxu0 0.0
          %2718 = vmatpush1.msra.mxu0 0.0
          %2719 = vmatprep.subr.mxu0 0.0
          %2720 = vmatpush1.msra.mxu0 0.0
          %2721 = vmatprep.subr.mxu0 0.0
          %2722 = vmatpush1.msra.mxu0 0.0
          %2723 = vmatprep.subr.mxu0 0.0
          %2724 = vmatpush1.msra.mxu0 0.0
          %2725 = vmatprep.subr.mxu0 0.0
          %2726 = vmatpush1.msra.mxu0 0.0
          %2727 = vmatprep.subr.mxu0 0.0
          %2728 = vmatpush1.msra.mxu0 0.0
          %2729 = vmatprep.subr.mxu0 0.0
          %2730 = vmatpush1.msra.mxu0 0.0
          %2731 = vmatprep.subr.mxu0 0.0
          %2732 = vmatpush1.msra.mxu0 %v2700
          %2733 = vmatprep.subr.mxu0 0.0
          %2734 = vmatpush1.msra.mxu0 %v2699
          %2735 = vmatprep.subr.mxu0 0.0
          %2736 = vmatpush1.msra.mxu0 %v2698
          %2737 = vmatprep.subr.mxu0 0.0
          %2738 = vmatpush1.msra.mxu0 %v2697
          %2739 = vmatprep.subr.mxu0 0.0
          %2740 = vmatpush2.msra.mxu0 0.0
          %2741 = vmatprep.subr.mxu0 0.0
          %2742 = vmatpush2.msra.mxu0 0.0
          %2743 = vmatprep.subr.mxu0 0.0
          %2744 = vmatpush2.msra.mxu0 0.0
          %2745 = vmatprep.subr.mxu0 0.0
          %2746 = vmatpush2.msra.mxu0 0.0
          %2747 = vmatprep.subr.mxu0 0.0
          %2748 = vmatpush2.msra.mxu0 0.0
          %2749 = vmatprep.subr.mxu0 0.0
          %2750 = vmatpush2.msra.mxu0 0.0
          %2751 = vmatprep.subr.mxu0 0.0
          %2752 = vmatpush2.msra.mxu0 0.0
          %2753 = vmatprep.subr.mxu0 0.0
          %2754 = vmatpush2.msra.mxu0 0.0
          %2755 = vmatprep.subr.mxu0 0.0
          %2756 = vmatpush2.msra.mxu0 0.0
          %2757 = vmatprep.subr.mxu0 0.0
          %2758 = vmatpush2.msra.mxu0 0.0
          %2759 = vmatprep.subr.mxu0 0.0
          %2760 = vmatpush2.msra.mxu0 0.0
          %2761 = vmatprep.subr.mxu0 0.0
          %2762 = vmatpush2.msra.mxu0 0.0
          %2763 = vmatprep.subr.mxu0 0.0
          %2764 = vmatpush2.msra.mxu0 0.0
          %2765 = vmatprep.subr.mxu0 0.0
          %2766 = vmatpush2.msra.mxu0 0.0
          %2767 = vmatprep.subr.mxu0 0.0
          %2768 = vmatpush2.msra.mxu0 0.0
          %2769 = vmatprep.subr.mxu0 0.0
          %2770 = vmatpush2.msra.mxu0 0.0
          %2771 = vmatprep.mubr.f32.mxu0 0.0
          %2772 = vmatmul.mubr.f32.gmra.mxu0 %v2702
          %v2773 = vpop.f32.mrf.mxu0
          %v2774 = vadd.f32 0.0, %v2773
          %v2775 = vpop.f32.mrf.mxu0
          %2776 = vmatprep.mubr.f32.mxu0 0.0
          %2777 = vmatmul.mubr.f32.gmra.mxu0 %v2705
          %v2778 = vpop.f32.mrf.mxu0
          %v2779 = vadd.f32 0.0, %v2778
          %v2780 = vpop.f32.mrf.mxu0
          %2781 = vdwg.mxu0
          %v2782 = vadd.f32 %v2619, %v2774
          %v2783 = vadd.f32 %v2620, %v2779
          %s2784 = scalar_lea.vmem %s6, %s1331
          %v2785 = vld [vmem:[%s2784] sm:$0xff]
          %v2786 = vld [vmem:[%s2784 + $0x8] sm:$0xff]
          %v2787 = vld [vmem:[%s2784 + $0x10] sm:$0xff]
          %v2788 = vld [vmem:[%s2784 + $0x18] sm:$0xff]
          %v2790 = vsel %vm819, %v2134, 0
          %v2793 = vsel %vm819, %v2135, 0
          %2795 = vmatprep.subr.mxu0 0.0
          %2796 = vmatpush1.msra.mxu0 0.0
          %2797 = vmatprep.subr.mxu0 0.0
          %2798 = vmatpush1.msra.mxu0 0.0
          %2799 = vmatprep.subr.mxu0 0.0
          %2800 = vmatpush1.msra.mxu0 0.0
          %2801 = vmatprep.subr.mxu0 0.0
          %2802 = vmatpush1.msra.mxu0 0.0
          %2803 = vmatprep.subr.mxu0 0.0
          %2804 = vmatpush1.msra.mxu0 0.0
          %2805 = vmatprep.subr.mxu0 0.0
          %2806 = vmatpush1.msra.mxu0 0.0
          %2807 = vmatprep.subr.mxu0 0.0
          %2808 = vmatpush1.msra.mxu0 0.0
          %2809 = vmatprep.subr.mxu0 0.0
          %2810 = vmatpush1.msra.mxu0 0.0
          %2811 = vmatprep.subr.mxu0 0.0
          %2812 = vmatpush1.msra.mxu0 0.0
          %2813 = vmatprep.subr.mxu0 0.0
          %2814 = vmatpush1.msra.mxu0 0.0
          %2815 = vmatprep.subr.mxu0 0.0
          %2816 = vmatpush1.msra.mxu0 0.0
          %2817 = vmatprep.subr.mxu0 0.0
          %2818 = vmatpush1.msra.mxu0 0.0
          %2819 = vmatprep.subr.mxu0 0.0
          %2820 = vmatpush1.msra.mxu0 %v2788
          %2821 = vmatprep.subr.mxu0 0.0
          %2822 = vmatpush1.msra.mxu0 %v2787
          %2823 = vmatprep.subr.mxu0 0.0
          %2824 = vmatpush1.msra.mxu0 %v2786
          %2825 = vmatprep.subr.mxu0 0.0
          %2826 = vmatpush1.msra.mxu0 %v2785
          %2827 = vmatprep.subr.mxu0 0.0
          %2828 = vmatpush2.msra.mxu0 0.0
          %2829 = vmatprep.subr.mxu0 0.0
          %2830 = vmatpush2.msra.mxu0 0.0
          %2831 = vmatprep.subr.mxu0 0.0
          %2832 = vmatpush2.msra.mxu0 0.0
          %2833 = vmatprep.subr.mxu0 0.0
          %2834 = vmatpush2.msra.mxu0 0.0
          %2835 = vmatprep.subr.mxu0 0.0
          %2836 = vmatpush2.msra.mxu0 0.0
          %2837 = vmatprep.subr.mxu0 0.0
          %2838 = vmatpush2.msra.mxu0 0.0
          %2839 = vmatprep.subr.mxu0 0.0
          %2840 = vmatpush2.msra.mxu0 0.0
          %2841 = vmatprep.subr.mxu0 0.0
          %2842 = vmatpush2.msra.mxu0 0.0
          %2843 = vmatprep.subr.mxu0 0.0
          %2844 = vmatpush2.msra.mxu0 0.0
          %2845 = vmatprep.subr.mxu0 0.0
          %2846 = vmatpush2.msra.mxu0 0.0
          %2847 = vmatprep.subr.mxu0 0.0
          %2848 = vmatpush2.msra.mxu0 0.0
          %2849 = vmatprep.subr.mxu0 0.0
          %2850 = vmatpush2.msra.mxu0 0.0
          %2851 = vmatprep.subr.mxu0 0.0
          %2852 = vmatpush2.msra.mxu0 0.0
          %2853 = vmatprep.subr.mxu0 0.0
          %2854 = vmatpush2.msra.mxu0 0.0
          %2855 = vmatprep.subr.mxu0 0.0
          %2856 = vmatpush2.msra.mxu0 0.0
          %2857 = vmatprep.subr.mxu0 0.0
          %2858 = vmatpush2.msra.mxu0 0.0
          %2859 = vmatprep.mubr.f32.mxu0 0.0
          %2860 = vmatmul.mubr.f32.gmra.mxu0 %v2790
          %v2861 = vpop.f32.mrf.mxu0
          %v2862 = vadd.f32 0.0, %v2861
          %v2863 = vpop.f32.mrf.mxu0
          %2864 = vmatprep.mubr.f32.mxu0 0.0
          %2865 = vmatmul.mubr.f32.gmra.mxu0 %v2793
          %v2866 = vpop.f32.mrf.mxu0
          %v2867 = vadd.f32 0.0, %v2866
          %v2868 = vpop.f32.mrf.mxu0
          %2869 = vdwg.mxu0
          %v2870 = vadd.f32 %v2782, %v2862
          %v2871 = vadd.f32 %v2783, %v2867
          %2872 = vmatprep.subr.mxu0 0.0
          %2873 = vmatpush1.msra.mxu0 0.0
          %2874 = vmatprep.subr.mxu0 0.0
          %2875 = vmatpush1.msra.mxu0 0.0
          %2876 = vmatprep.subr.mxu0 0.0
          %2877 = vmatpush1.msra.mxu0 0.0
          %2878 = vmatprep.subr.mxu0 0.0
          %2879 = vmatpush1.msra.mxu0 0.0
          %2880 = vmatprep.subr.mxu0 0.0
          %2881 = vmatpush1.msra.mxu0 0.0
          %2882 = vmatprep.subr.mxu0 0.0
          %2883 = vmatpush1.msra.mxu0 0.0
          %2884 = vmatprep.subr.mxu0 0.0
          %2885 = vmatpush1.msra.mxu0 0.0
          %2886 = vmatprep.subr.mxu0 0.0
          %2887 = vmatpush1.msra.mxu0 0.0
          %2888 = vmatprep.subr.mxu0 0.0
          %2889 = vmatpush1.msra.mxu0 0.0
          %2890 = vmatprep.subr.mxu0 0.0
          %2891 = vmatpush1.msra.mxu0 0.0
          %2892 = vmatprep.subr.mxu0 0.0
          %2893 = vmatpush1.msra.mxu0 0.0
          %2894 = vmatprep.subr.mxu0 0.0
          %2895 = vmatpush1.msra.mxu0 0.0
          %2896 = vmatprep.subr.mxu0 0.0
          %2897 = vmatpush1.msra.mxu0 0.0
          %2898 = vmatprep.subr.mxu0 0.0
          %2899 = vmatpush1.msra.mxu0 0.0
          %2900 = vmatprep.subr.mxu0 0.0
          %2901 = vmatpush1.msra.mxu0 %v2135
          %2902 = vmatprep.subr.mxu0 0.0
          %2903 = vmatpush1.msra.mxu0 %v2134
          %2904 = vmatprep.subr.mxu0 0.0
          %2905 = vmatpush2.msra.mxu0 0.0
          %2906 = vmatprep.subr.mxu0 0.0
          %2907 = vmatpush2.msra.mxu0 0.0
          %2908 = vmatprep.subr.mxu0 0.0
          %2909 = vmatpush2.msra.mxu0 0.0
          %2910 = vmatprep.subr.mxu0 0.0
          %2911 = vmatpush2.msra.mxu0 0.0
          %2912 = vmatprep.subr.mxu0 0.0
          %2913 = vmatpush2.msra.mxu0 0.0
          %2914 = vmatprep.subr.mxu0 0.0
          %2915 = vmatpush2.msra.mxu0 0.0
          %2916 = vmatprep.subr.mxu0 0.0
          %2917 = vmatpush2.msra.mxu0 0.0
          %2918 = vmatprep.subr.mxu0 0.0
          %2919 = vmatpush2.msra.mxu0 0.0
          %2920 = vmatprep.subr.mxu0 0.0
          %2921 = vmatpush2.msra.mxu0 0.0
          %2922 = vmatprep.subr.mxu0 0.0
          %2923 = vmatpush2.msra.mxu0 0.0
          %2924 = vmatprep.subr.mxu0 0.0
          %2925 = vmatpush2.msra.mxu0 0.0
          %2926 = vmatprep.subr.mxu0 0.0
          %2927 = vmatpush2.msra.mxu0 0.0
          %2928 = vmatprep.subr.mxu0 0.0
          %2929 = vmatpush2.msra.mxu0 0.0
          %2930 = vmatprep.subr.mxu0 0.0
          %2931 = vmatpush2.msra.mxu0 0.0
          %2932 = vmatprep.subr.mxu0 0.0
          %2933 = vmatpush2.msra.mxu0 0.0
          %2934 = vmatprep.subr.mxu0 0.0
          %2935 = vmatpush2.msra.mxu0 0.0
          %2936 = vmatprep.mubr.f32.mxu0 0.0
          %2937 = vmatmul.mubr.f32.gmra.mxu0 %v1424
          %v2938 = vpop.f32.mrf.mxu0
          %v2939 = vadd.f32 0.0, %v2938
          %v2940 = vpop.f32.mrf.mxu0
          %2941 = vmatprep.mubr.f32.mxu0 0.0
          %2942 = vmatmul.mubr.f32.gmra.mxu0 %v1427
          %v2943 = vpop.f32.mrf.mxu0
          %v2944 = vadd.f32 0.0, %v2943
          %v2945 = vpop.f32.mrf.mxu0
          %2946 = vdwg.mxu0
          %s2947 = scalar_lea.vmem %s6, %s1505
          %v2948 = vld [vmem:[%s2947] sm:$0xff]
          %v2949 = vld [vmem:[%s2947 + $0x8] sm:$0xff]
          %v2950 = vld [vmem:[%s2947 + $0x10] sm:$0xff]
          %v2951 = vld [vmem:[%s2947 + $0x18] sm:$0xff]
          %v2953 = vsel %vm819, %v2939, 0
          %v2956 = vsel %vm819, %v2944, 0
          %2958 = vmatprep.subr.mxu0 0.0
          %2959 = vmatpush1.msra.mxu0 0.0
          %2960 = vmatprep.subr.mxu0 0.0
          %2961 = vmatpush1.msra.mxu0 0.0
          %2962 = vmatprep.subr.mxu0 0.0
          %2963 = vmatpush1.msra.mxu0 0.0
          %2964 = vmatprep.subr.mxu0 0.0
          %2965 = vmatpush1.msra.mxu0 0.0
          %2966 = vmatprep.subr.mxu0 0.0
          %2967 = vmatpush1.msra.mxu0 0.0
          %2968 = vmatprep.subr.mxu0 0.0
          %2969 = vmatpush1.msra.mxu0 0.0
          %2970 = vmatprep.subr.mxu0 0.0
          %2971 = vmatpush1.msra.mxu0 0.0
          %2972 = vmatprep.subr.mxu0 0.0
          %2973 = vmatpush1.msra.mxu0 0.0
          %2974 = vmatprep.subr.mxu0 0.0
          %2975 = vmatpush1.msra.mxu0 0.0
          %2976 = vmatprep.subr.mxu0 0.0
          %2977 = vmatpush1.msra.mxu0 0.0
          %2978 = vmatprep.subr.mxu0 0.0
          %2979 = vmatpush1.msra.mxu0 0.0
          %2980 = vmatprep.subr.mxu0 0.0
          %2981 = vmatpush1.msra.mxu0 0.0
          %2982 = vmatprep.subr.mxu0 0.0
          %2983 = vmatpush1.msra.mxu0 %v2951
          %2984 = vmatprep.subr.mxu0 0.0
          %2985 = vmatpush1.msra.mxu0 %v2950
          %2986 = vmatprep.subr.mxu0 0.0
          %2987 = vmatpush1.msra.mxu0 %v2949
          %2988 = vmatprep.subr.mxu0 0.0
          %2989 = vmatpush1.msra.mxu0 %v2948
          %2990 = vmatprep.subr.mxu0 0.0
          %2991 = vmatpush2.msra.mxu0 0.0
          %2992 = vmatprep.subr.mxu0 0.0
          %2993 = vmatpush2.msra.mxu0 0.0
          %2994 = vmatprep.subr.mxu0 0.0
          %2995 = vmatpush2.msra.mxu0 0.0
          %2996 = vmatprep.subr.mxu0 0.0
          %2997 = vmatpush2.msra.mxu0 0.0
          %2998 = vmatprep.subr.mxu0 0.0
          %2999 = vmatpush2.msra.mxu0 0.0
          %3000 = vmatprep.subr.mxu0 0.0
          %3001 = vmatpush2.msra.mxu0 0.0
          %3002 = vmatprep.subr.mxu0 0.0
          %3003 = vmatpush2.msra.mxu0 0.0
          %3004 = vmatprep.subr.mxu0 0.0
          %3005 = vmatpush2.msra.mxu0 0.0
          %3006 = vmatprep.subr.mxu0 0.0
          %3007 = vmatpush2.msra.mxu0 0.0
          %3008 = vmatprep.subr.mxu0 0.0
          %3009 = vmatpush2.msra.mxu0 0.0
          %3010 = vmatprep.subr.mxu0 0.0
          %3011 = vmatpush2.msra.mxu0 0.0
          %3012 = vmatprep.subr.mxu0 0.0
          %3013 = vmatpush2.msra.mxu0 0.0
          %3014 = vmatprep.subr.mxu0 0.0
          %3015 = vmatpush2.msra.mxu0 0.0
          %3016 = vmatprep.subr.mxu0 0.0
          %3017 = vmatpush2.msra.mxu0 0.0
          %3018 = vmatprep.subr.mxu0 0.0
          %3019 = vmatpush2.msra.mxu0 0.0
          %3020 = vmatprep.subr.mxu0 0.0
          %3021 = vmatpush2.msra.mxu0 0.0
          %3022 = vmatprep.mubr.f32.mxu0 0.0
          %3023 = vmatmul.mubr.f32.gmra.mxu0 %v2953
          %v3024 = vpop.f32.mrf.mxu0
          %v3025 = vadd.f32 0.0, %v3024
          %v3026 = vpop.f32.mrf.mxu0
          %3027 = vmatprep.mubr.f32.mxu0 0.0
          %3028 = vmatmul.mubr.f32.gmra.mxu0 %v2956
          %v3029 = vpop.f32.mrf.mxu0
          %v3030 = vadd.f32 0.0, %v3029
          %v3031 = vpop.f32.mrf.mxu0
          %3032 = vdwg.mxu0
          %v3033 = vadd.f32 %v2870, %v3025
          %v3034 = vadd.f32 %v2871, %v3030
          %3035 = vmatprep.subr.mxu0 0.0
          %3036 = vmatpush1.msra.mxu0 0.0
          %3037 = vmatprep.subr.mxu0 0.0
          %3038 = vmatpush1.msra.mxu0 0.0
          %3039 = vmatprep.subr.mxu0 0.0
          %3040 = vmatpush1.msra.mxu0 0.0
          %3041 = vmatprep.subr.mxu0 0.0
          %3042 = vmatpush1.msra.mxu0 0.0
          %3043 = vmatprep.subr.mxu0 0.0
          %3044 = vmatpush1.msra.mxu0 0.0
          %3045 = vmatprep.subr.mxu0 0.0
          %3046 = vmatpush1.msra.mxu0 0.0
          %3047 = vmatprep.subr.mxu0 0.0
          %3048 = vmatpush1.msra.mxu0 0.0
          %3049 = vmatprep.subr.mxu0 0.0
          %3050 = vmatpush1.msra.mxu0 0.0
          %3051 = vmatprep.subr.mxu0 0.0
          %3052 = vmatpush1.msra.mxu0 0.0
          %3053 = vmatprep.subr.mxu0 0.0
          %3054 = vmatpush1.msra.mxu0 0.0
          %3055 = vmatprep.subr.mxu0 0.0
          %3056 = vmatpush1.msra.mxu0 0.0
          %3057 = vmatprep.subr.mxu0 0.0
          %3058 = vmatpush1.msra.mxu0 0.0
          %3059 = vmatprep.subr.mxu0 0.0
          %3060 = vmatpush1.msra.mxu0 0.0
          %3061 = vmatprep.subr.mxu0 0.0
          %3062 = vmatpush1.msra.mxu0 0.0
          %3063 = vmatprep.subr.mxu0 0.0
          %3064 = vmatpush1.msra.mxu0 %v2135
          %3065 = vmatprep.subr.mxu0 0.0
          %3066 = vmatpush1.msra.mxu0 %v2134
          %3067 = vmatprep.subr.mxu0 0.0
          %3068 = vmatpush2.msra.mxu0 0.0
          %3069 = vmatprep.subr.mxu0 0.0
          %3070 = vmatpush2.msra.mxu0 0.0
          %3071 = vmatprep.subr.mxu0 0.0
          %3072 = vmatpush2.msra.mxu0 0.0
          %3073 = vmatprep.subr.mxu0 0.0
          %3074 = vmatpush2.msra.mxu0 0.0
          %3075 = vmatprep.subr.mxu0 0.0
          %3076 = vmatpush2.msra.mxu0 0.0
          %3077 = vmatprep.subr.mxu0 0.0
          %3078 = vmatpush2.msra.mxu0 0.0
          %3079 = vmatprep.subr.mxu0 0.0
          %3080 = vmatpush2.msra.mxu0 0.0
          %3081 = vmatprep.subr.mxu0 0.0
          %3082 = vmatpush2.msra.mxu0 0.0
          %3083 = vmatprep.subr.mxu0 0.0
          %3084 = vmatpush2.msra.mxu0 0.0
          %3085 = vmatprep.subr.mxu0 0.0
          %3086 = vmatpush2.msra.mxu0 0.0
          %3087 = vmatprep.subr.mxu0 0.0
          %3088 = vmatpush2.msra.mxu0 0.0
          %3089 = vmatprep.subr.mxu0 0.0
          %3090 = vmatpush2.msra.mxu0 0.0
          %3091 = vmatprep.subr.mxu0 0.0
          %3092 = vmatpush2.msra.mxu0 0.0
          %3093 = vmatprep.subr.mxu0 0.0
          %3094 = vmatpush2.msra.mxu0 0.0
          %3095 = vmatprep.subr.mxu0 0.0
          %3096 = vmatpush2.msra.mxu0 0.0
          %3097 = vmatprep.subr.mxu0 0.0
          %3098 = vmatpush2.msra.mxu0 0.0
          %3099 = vmatprep.mubr.f32.mxu0 0.0
          %3100 = vmatmul.mubr.f32.gmra.mxu0 %v1598
          %v3101 = vpop.f32.mrf.mxu0
          %v3102 = vadd.f32 0.0, %v3101
          %v3103 = vpop.f32.mrf.mxu0
          %3104 = vmatprep.mubr.f32.mxu0 0.0
          %3105 = vmatmul.mubr.f32.gmra.mxu0 %v1601
          %v3106 = vpop.f32.mrf.mxu0
          %v3107 = vadd.f32 0.0, %v3106
          %v3108 = vpop.f32.mrf.mxu0
          %3109 = vdwg.mxu0
          %s3110 = scalar_lea.vmem %s6, %s1679
          %v3111 = vld [vmem:[%s3110] sm:$0xff]
          %v3112 = vld [vmem:[%s3110 + $0x8] sm:$0xff]
          %v3113 = vld [vmem:[%s3110 + $0x10] sm:$0xff]
          %v3114 = vld [vmem:[%s3110 + $0x18] sm:$0xff]
          %v3116 = vsel %vm819, %v3102, 0
          %v3119 = vsel %vm819, %v3107, 0
          %3121 = vmatprep.subr.mxu0 0.0
          %3122 = vmatpush1.msra.mxu0 0.0
          %3123 = vmatprep.subr.mxu0 0.0
          %3124 = vmatpush1.msra.mxu0 0.0
          %3125 = vmatprep.subr.mxu0 0.0
          %3126 = vmatpush1.msra.mxu0 0.0
          %3127 = vmatprep.subr.mxu0 0.0
          %3128 = vmatpush1.msra.mxu0 0.0
          %3129 = vmatprep.subr.mxu0 0.0
          %3130 = vmatpush1.msra.mxu0 0.0
          %3131 = vmatprep.subr.mxu0 0.0
          %3132 = vmatpush1.msra.mxu0 0.0
          %3133 = vmatprep.subr.mxu0 0.0
          %3134 = vmatpush1.msra.mxu0 0.0
          %3135 = vmatprep.subr.mxu0 0.0
          %3136 = vmatpush1.msra.mxu0 0.0
          %3137 = vmatprep.subr.mxu0 0.0
          %3138 = vmatpush1.msra.mxu0 0.0
          %3139 = vmatprep.subr.mxu0 0.0
          %3140 = vmatpush1.msra.mxu0 0.0
          %3141 = vmatprep.subr.mxu0 0.0
          %3142 = vmatpush1.msra.mxu0 0.0
          %3143 = vmatprep.subr.mxu0 0.0
          %3144 = vmatpush1.msra.mxu0 0.0
          %3145 = vmatprep.subr.mxu0 0.0
          %3146 = vmatpush1.msra.mxu0 %v3114
          %3147 = vmatprep.subr.mxu0 0.0
          %3148 = vmatpush1.msra.mxu0 %v3113
          %3149 = vmatprep.subr.mxu0 0.0
          %3150 = vmatpush1.msra.mxu0 %v3112
          %3151 = vmatprep.subr.mxu0 0.0
          %3152 = vmatpush1.msra.mxu0 %v3111
          %3153 = vmatprep.subr.mxu0 0.0
          %3154 = vmatpush2.msra.mxu0 0.0
          %3155 = vmatprep.subr.mxu0 0.0
          %3156 = vmatpush2.msra.mxu0 0.0
          %3157 = vmatprep.subr.mxu0 0.0
          %3158 = vmatpush2.msra.mxu0 0.0
          %3159 = vmatprep.subr.mxu0 0.0
          %3160 = vmatpush2.msra.mxu0 0.0
          %3161 = vmatprep.subr.mxu0 0.0
          %3162 = vmatpush2.msra.mxu0 0.0
          %3163 = vmatprep.subr.mxu0 0.0
          %3164 = vmatpush2.msra.mxu0 0.0
          %3165 = vmatprep.subr.mxu0 0.0
          %3166 = vmatpush2.msra.mxu0 0.0
          %3167 = vmatprep.subr.mxu0 0.0
          %3168 = vmatpush2.msra.mxu0 0.0
          %3169 = vmatprep.subr.mxu0 0.0
          %3170 = vmatpush2.msra.mxu0 0.0
          %3171 = vmatprep.subr.mxu0 0.0
          %3172 = vmatpush2.msra.mxu0 0.0
          %3173 = vmatprep.subr.mxu0 0.0
          %3174 = vmatpush2.msra.mxu0 0.0
          %3175 = vmatprep.subr.mxu0 0.0
          %3176 = vmatpush2.msra.mxu0 0.0
          %3177 = vmatprep.subr.mxu0 0.0
          %3178 = vmatpush2.msra.mxu0 0.0
          %3179 = vmatprep.subr.mxu0 0.0
          %3180 = vmatpush2.msra.mxu0 0.0
          %3181 = vmatprep.subr.mxu0 0.0
          %3182 = vmatpush2.msra.mxu0 0.0
          %3183 = vmatprep.subr.mxu0 0.0
          %3184 = vmatpush2.msra.mxu0 0.0
          %3185 = vmatprep.mubr.f32.mxu0 0.0
          %3186 = vmatmul.mubr.f32.gmra.mxu0 %v3116
          %v3187 = vpop.f32.mrf.mxu0
          %v3188 = vadd.f32 0.0, %v3187
          %v3189 = vpop.f32.mrf.mxu0
          %3190 = vmatprep.mubr.f32.mxu0 0.0
          %3191 = vmatmul.mubr.f32.gmra.mxu0 %v3119
          %v3192 = vpop.f32.mrf.mxu0
          %v3193 = vadd.f32 0.0, %v3192
          %v3194 = vpop.f32.mrf.mxu0
          %3195 = vdwg.mxu0
          %v3196 = vadd.f32 %v3033, %v3188
          %v3197 = vadd.f32 %v3034, %v3193
          %3198 = vmatprep.subr.mxu0 0.0
          %3199 = vmatpush1.msra.mxu0 0.0
          %3200 = vmatprep.subr.mxu0 0.0
          %3201 = vmatpush1.msra.mxu0 0.0
          %3202 = vmatprep.subr.mxu0 0.0
          %3203 = vmatpush1.msra.mxu0 0.0
          %3204 = vmatprep.subr.mxu0 0.0
          %3205 = vmatpush1.msra.mxu0 0.0
          %3206 = vmatprep.subr.mxu0 0.0
          %3207 = vmatpush1.msra.mxu0 0.0
          %3208 = vmatprep.subr.mxu0 0.0
          %3209 = vmatpush1.msra.mxu0 0.0
          %3210 = vmatprep.subr.mxu0 0.0
          %3211 = vmatpush1.msra.mxu0 0.0
          %3212 = vmatprep.subr.mxu0 0.0
          %3213 = vmatpush1.msra.mxu0 0.0
          %3214 = vmatprep.subr.mxu0 0.0
          %3215 = vmatpush1.msra.mxu0 0.0
          %3216 = vmatprep.subr.mxu0 0.0
          %3217 = vmatpush1.msra.mxu0 0.0
          %3218 = vmatprep.subr.mxu0 0.0
          %3219 = vmatpush1.msra.mxu0 0.0
          %3220 = vmatprep.subr.mxu0 0.0
          %3221 = vmatpush1.msra.mxu0 0.0
          %3222 = vmatprep.subr.mxu0 0.0
          %3223 = vmatpush1.msra.mxu0 0.0
          %3224 = vmatprep.subr.mxu0 0.0
          %3225 = vmatpush1.msra.mxu0 0.0
          %3226 = vmatprep.subr.mxu0 0.0
          %3227 = vmatpush1.msra.mxu0 %v2135
          %3228 = vmatprep.subr.mxu0 0.0
          %3229 = vmatpush1.msra.mxu0 %v2134
          %3230 = vmatprep.subr.mxu0 0.0
          %3231 = vmatpush2.msra.mxu0 0.0
          %3232 = vmatprep.subr.mxu0 0.0
          %3233 = vmatpush2.msra.mxu0 0.0
          %3234 = vmatprep.subr.mxu0 0.0
          %3235 = vmatpush2.msra.mxu0 0.0
          %3236 = vmatprep.subr.mxu0 0.0
          %3237 = vmatpush2.msra.mxu0 0.0
          %3238 = vmatprep.subr.mxu0 0.0
          %3239 = vmatpush2.msra.mxu0 0.0
          %3240 = vmatprep.subr.mxu0 0.0
          %3241 = vmatpush2.msra.mxu0 0.0
          %3242 = vmatprep.subr.mxu0 0.0
          %3243 = vmatpush2.msra.mxu0 0.0
          %3244 = vmatprep.subr.mxu0 0.0
          %3245 = vmatpush2.msra.mxu0 0.0
          %3246 = vmatprep.subr.mxu0 0.0
          %3247 = vmatpush2.msra.mxu0 0.0
          %3248 = vmatprep.subr.mxu0 0.0
          %3249 = vmatpush2.msra.mxu0 0.0
          %3250 = vmatprep.subr.mxu0 0.0
          %3251 = vmatpush2.msra.mxu0 0.0
          %3252 = vmatprep.subr.mxu0 0.0
          %3253 = vmatpush2.msra.mxu0 0.0
          %3254 = vmatprep.subr.mxu0 0.0
          %3255 = vmatpush2.msra.mxu0 0.0
          %3256 = vmatprep.subr.mxu0 0.0
          %3257 = vmatpush2.msra.mxu0 0.0
          %3258 = vmatprep.subr.mxu0 0.0
          %3259 = vmatpush2.msra.mxu0 0.0
          %3260 = vmatprep.subr.mxu0 0.0
          %3261 = vmatpush2.msra.mxu0 0.0
          %3262 = vmatprep.mubr.f32.mxu0 0.0
          %3263 = vmatmul.mubr.f32.gmra.mxu0 %v1772
          %v3264 = vpop.f32.mrf.mxu0
          %v3265 = vadd.f32 0.0, %v3264
          %v3266 = vpop.f32.mrf.mxu0
          %3267 = vmatprep.mubr.f32.mxu0 0.0
          %3268 = vmatmul.mubr.f32.gmra.mxu0 %v1775
          %v3269 = vpop.f32.mrf.mxu0
          %v3270 = vadd.f32 0.0, %v3269
          %v3271 = vpop.f32.mrf.mxu0
          %3272 = vdwg.mxu0
          %s3273 = scalar_lea.vmem %s6, %s1853
          %v3274 = vld [vmem:[%s3273] sm:$0xff]
          %v3275 = vld [vmem:[%s3273 + $0x8] sm:$0xff]
          %v3276 = vld [vmem:[%s3273 + $0x10] sm:$0xff]
          %v3277 = vld [vmem:[%s3273 + $0x18] sm:$0xff]
          %v3279 = vsel %vm819, %v3265, 0
          %v3282 = vsel %vm819, %v3270, 0
          %3284 = vmatprep.subr.mxu0 0.0
          %3285 = vmatpush1.msra.mxu0 0.0
          %3286 = vmatprep.subr.mxu0 0.0
          %3287 = vmatpush1.msra.mxu0 0.0
          %3288 = vmatprep.subr.mxu0 0.0
          %3289 = vmatpush1.msra.mxu0 0.0
          %3290 = vmatprep.subr.mxu0 0.0
          %3291 = vmatpush1.msra.mxu0 0.0
          %3292 = vmatprep.subr.mxu0 0.0
          %3293 = vmatpush1.msra.mxu0 0.0
          %3294 = vmatprep.subr.mxu0 0.0
          %3295 = vmatpush1.msra.mxu0 0.0
          %3296 = vmatprep.subr.mxu0 0.0
          %3297 = vmatpush1.msra.mxu0 0.0
          %3298 = vmatprep.subr.mxu0 0.0
          %3299 = vmatpush1.msra.mxu0 0.0
          %3300 = vmatprep.subr.mxu0 0.0
          %3301 = vmatpush1.msra.mxu0 0.0
          %3302 = vmatprep.subr.mxu0 0.0
          %3303 = vmatpush1.msra.mxu0 0.0
          %3304 = vmatprep.subr.mxu0 0.0
          %3305 = vmatpush1.msra.mxu0 0.0
          %3306 = vmatprep.subr.mxu0 0.0
          %3307 = vmatpush1.msra.mxu0 0.0
          %3308 = vmatprep.subr.mxu0 0.0
          %3309 = vmatpush1.msra.mxu0 %v3277
          %3310 = vmatprep.subr.mxu0 0.0
          %3311 = vmatpush1.msra.mxu0 %v3276
          %3312 = vmatprep.subr.mxu0 0.0
          %3313 = vmatpush1.msra.mxu0 %v3275
          %3314 = vmatprep.subr.mxu0 0.0
          %3315 = vmatpush1.msra.mxu0 %v3274
          %3316 = vmatprep.subr.mxu0 0.0
          %3317 = vmatpush2.msra.mxu0 0.0
          %3318 = vmatprep.subr.mxu0 0.0
          %3319 = vmatpush2.msra.mxu0 0.0
          %3320 = vmatprep.subr.mxu0 0.0
          %3321 = vmatpush2.msra.mxu0 0.0
          %3322 = vmatprep.subr.mxu0 0.0
          %3323 = vmatpush2.msra.mxu0 0.0
          %3324 = vmatprep.subr.mxu0 0.0
          %3325 = vmatpush2.msra.mxu0 0.0
          %3326 = vmatprep.subr.mxu0 0.0
          %3327 = vmatpush2.msra.mxu0 0.0
          %3328 = vmatprep.subr.mxu0 0.0
          %3329 = vmatpush2.msra.mxu0 0.0
          %3330 = vmatprep.subr.mxu0 0.0
          %3331 = vmatpush2.msra.mxu0 0.0
          %3332 = vmatprep.subr.mxu0 0.0
          %3333 = vmatpush2.msra.mxu0 0.0
          %3334 = vmatprep.subr.mxu0 0.0
          %3335 = vmatpush2.msra.mxu0 0.0
          %3336 = vmatprep.subr.mxu0 0.0
          %3337 = vmatpush2.msra.mxu0 0.0
          %3338 = vmatprep.subr.mxu0 0.0
          %3339 = vmatpush2.msra.mxu0 0.0
          %3340 = vmatprep.subr.mxu0 0.0
          %3341 = vmatpush2.msra.mxu0 0.0
          %3342 = vmatprep.subr.mxu0 0.0
          %3343 = vmatpush2.msra.mxu0 0.0
          %3344 = vmatprep.subr.mxu0 0.0
          %3345 = vmatpush2.msra.mxu0 0.0
          %3346 = vmatprep.subr.mxu0 0.0
          %3347 = vmatpush2.msra.mxu0 0.0
          %3348 = vmatprep.mubr.f32.mxu0 0.0
          %3349 = vmatmul.mubr.f32.gmra.mxu0 %v3279
          %v3350 = vpop.f32.mrf.mxu0
          %v3351 = vadd.f32 0.0, %v3350
          %v3352 = vpop.f32.mrf.mxu0
          %3353 = vmatprep.mubr.f32.mxu0 0.0
          %3354 = vmatmul.mubr.f32.gmra.mxu0 %v3282
          %v3355 = vpop.f32.mrf.mxu0
          %v3356 = vadd.f32 0.0, %v3355
          %v3357 = vpop.f32.mrf.mxu0
          %3358 = vdwg.mxu0
          %v3359 = vadd.f32 %v3196, %v3351
          %v3360 = vadd.f32 %v3197, %v3356
          %3361 = vmatprep.subr.mxu0 0.0
          %3362 = vmatpush1.msra.mxu0 0.0
          %3363 = vmatprep.subr.mxu0 0.0
          %3364 = vmatpush1.msra.mxu0 0.0
          %3365 = vmatprep.subr.mxu0 0.0
          %3366 = vmatpush1.msra.mxu0 0.0
          %3367 = vmatprep.subr.mxu0 0.0
          %3368 = vmatpush1.msra.mxu0 0.0
          %3369 = vmatprep.subr.mxu0 0.0
          %3370 = vmatpush1.msra.mxu0 0.0
          %3371 = vmatprep.subr.mxu0 0.0
          %3372 = vmatpush1.msra.mxu0 0.0
          %3373 = vmatprep.subr.mxu0 0.0
          %3374 = vmatpush1.msra.mxu0 0.0
          %3375 = vmatprep.subr.mxu0 0.0
          %3376 = vmatpush1.msra.mxu0 0.0
          %3377 = vmatprep.subr.mxu0 0.0
          %3378 = vmatpush1.msra.mxu0 0.0
          %3379 = vmatprep.subr.mxu0 0.0
          %3380 = vmatpush1.msra.mxu0 0.0
          %3381 = vmatprep.subr.mxu0 0.0
          %3382 = vmatpush1.msra.mxu0 0.0
          %3383 = vmatprep.subr.mxu0 0.0
          %3384 = vmatpush1.msra.mxu0 0.0
          %3385 = vmatprep.subr.mxu0 0.0
          %3386 = vmatpush1.msra.mxu0 0.0
          %3387 = vmatprep.subr.mxu0 0.0
          %3388 = vmatpush1.msra.mxu0 0.0
          %3389 = vmatprep.subr.mxu0 0.0
          %3390 = vmatpush1.msra.mxu0 %v2135
          %3391 = vmatprep.subr.mxu0 0.0
          %3392 = vmatpush1.msra.mxu0 %v2134
          %3393 = vmatprep.subr.mxu0 0.0
          %3394 = vmatpush2.msra.mxu0 0.0
          %3395 = vmatprep.subr.mxu0 0.0
          %3396 = vmatpush2.msra.mxu0 0.0
          %3397 = vmatprep.subr.mxu0 0.0
          %3398 = vmatpush2.msra.mxu0 0.0
          %3399 = vmatprep.subr.mxu0 0.0
          %3400 = vmatpush2.msra.mxu0 0.0
          %3401 = vmatprep.subr.mxu0 0.0
          %3402 = vmatpush2.msra.mxu0 0.0
          %3403 = vmatprep.subr.mxu0 0.0
          %3404 = vmatpush2.msra.mxu0 0.0
          %3405 = vmatprep.subr.mxu0 0.0
          %3406 = vmatpush2.msra.mxu0 0.0
          %3407 = vmatprep.subr.mxu0 0.0
          %3408 = vmatpush2.msra.mxu0 0.0
          %3409 = vmatprep.subr.mxu0 0.0
          %3410 = vmatpush2.msra.mxu0 0.0
          %3411 = vmatprep.subr.mxu0 0.0
          %3412 = vmatpush2.msra.mxu0 0.0
          %3413 = vmatprep.subr.mxu0 0.0
          %3414 = vmatpush2.msra.mxu0 0.0
          %3415 = vmatprep.subr.mxu0 0.0
          %3416 = vmatpush2.msra.mxu0 0.0
          %3417 = vmatprep.subr.mxu0 0.0
          %3418 = vmatpush2.msra.mxu0 0.0
          %3419 = vmatprep.subr.mxu0 0.0
          %3420 = vmatpush2.msra.mxu0 0.0
          %3421 = vmatprep.subr.mxu0 0.0
          %3422 = vmatpush2.msra.mxu0 0.0
          %3423 = vmatprep.subr.mxu0 0.0
          %3424 = vmatpush2.msra.mxu0 0.0
          %3425 = vmatprep.mubr.f32.mxu0 0.0
          %3426 = vmatmul.mubr.f32.gmra.mxu0 %v1946
          %v3427 = vpop.f32.mrf.mxu0
          %v3428 = vadd.f32 0.0, %v3427
          %v3429 = vpop.f32.mrf.mxu0
          %3430 = vmatprep.mubr.f32.mxu0 0.0
          %3431 = vmatmul.mubr.f32.gmra.mxu0 %v1949
          %v3432 = vpop.f32.mrf.mxu0
          %v3433 = vadd.f32 0.0, %v3432
          %v3434 = vpop.f32.mrf.mxu0
          %3435 = vdwg.mxu0
          %s3436 = scalar_lea.vmem %s6, %s2027
          %v3437 = vld [vmem:[%s3436] sm:$0xff]
          %v3438 = vld [vmem:[%s3436 + $0x8] sm:$0xff]
          %v3439 = vld [vmem:[%s3436 + $0x10] sm:$0xff]
          %v3440 = vld [vmem:[%s3436 + $0x18] sm:$0xff]
          %v3442 = vsel %vm819, %v3428, 0
          %v3445 = vsel %vm819, %v3433, 0
          %3447 = vmatprep.subr.mxu0 0.0
          %3448 = vmatpush1.msra.mxu0 0.0
          %3449 = vmatprep.subr.mxu0 0.0
          %3450 = vmatpush1.msra.mxu0 0.0
          %3451 = vmatprep.subr.mxu0 0.0
          %3452 = vmatpush1.msra.mxu0 0.0
          %3453 = vmatprep.subr.mxu0 0.0
          %3454 = vmatpush1.msra.mxu0 0.0
          %3455 = vmatprep.subr.mxu0 0.0
          %3456 = vmatpush1.msra.mxu0 0.0
          %3457 = vmatprep.subr.mxu0 0.0
          %3458 = vmatpush1.msra.mxu0 0.0
          %3459 = vmatprep.subr.mxu0 0.0
          %3460 = vmatpush1.msra.mxu0 0.0
          %3461 = vmatprep.subr.mxu0 0.0
          %3462 = vmatpush1.msra.mxu0 0.0
          %3463 = vmatprep.subr.mxu0 0.0
          %3464 = vmatpush1.msra.mxu0 0.0
          %3465 = vmatprep.subr.mxu0 0.0
          %3466 = vmatpush1.msra.mxu0 0.0
          %3467 = vmatprep.subr.mxu0 0.0
          %3468 = vmatpush1.msra.mxu0 0.0
          %3469 = vmatprep.subr.mxu0 0.0
          %3470 = vmatpush1.msra.mxu0 0.0
          %3471 = vmatprep.subr.mxu0 0.0
          %3472 = vmatpush1.msra.mxu0 %v3440
          %3473 = vmatprep.subr.mxu0 0.0
          %3474 = vmatpush1.msra.mxu0 %v3439
          %3475 = vmatprep.subr.mxu0 0.0
          %3476 = vmatpush1.msra.mxu0 %v3438
          %3477 = vmatprep.subr.mxu0 0.0
          %3478 = vmatpush1.msra.mxu0 %v3437
          %3479 = vmatprep.subr.mxu0 0.0
          %3480 = vmatpush2.msra.mxu0 0.0
          %3481 = vmatprep.subr.mxu0 0.0
          %3482 = vmatpush2.msra.mxu0 0.0
          %3483 = vmatprep.subr.mxu0 0.0
          %3484 = vmatpush2.msra.mxu0 0.0
          %3485 = vmatprep.subr.mxu0 0.0
          %3486 = vmatpush2.msra.mxu0 0.0
          %3487 = vmatprep.subr.mxu0 0.0
          %3488 = vmatpush2.msra.mxu0 0.0
          %3489 = vmatprep.subr.mxu0 0.0
          %3490 = vmatpush2.msra.mxu0 0.0
          %3491 = vmatprep.subr.mxu0 0.0
          %3492 = vmatpush2.msra.mxu0 0.0
          %3493 = vmatprep.subr.mxu0 0.0
          %3494 = vmatpush2.msra.mxu0 0.0
          %3495 = vmatprep.subr.mxu0 0.0
          %3496 = vmatpush2.msra.mxu0 0.0
          %3497 = vmatprep.subr.mxu0 0.0
          %3498 = vmatpush2.msra.mxu0 0.0
          %3499 = vmatprep.subr.mxu0 0.0
          %3500 = vmatpush2.msra.mxu0 0.0
          %3501 = vmatprep.subr.mxu0 0.0
          %3502 = vmatpush2.msra.mxu0 0.0
          %3503 = vmatprep.subr.mxu0 0.0
          %3504 = vmatpush2.msra.mxu0 0.0
          %3505 = vmatprep.subr.mxu0 0.0
          %3506 = vmatpush2.msra.mxu0 0.0
          %3507 = vmatprep.subr.mxu0 0.0
          %3508 = vmatpush2.msra.mxu0 0.0
          %3509 = vmatprep.subr.mxu0 0.0
          %3510 = vmatpush2.msra.mxu0 0.0
          %3511 = vmatprep.mubr.f32.mxu0 0.0
          %3512 = vmatmul.mubr.f32.gmra.mxu0 %v3442
          %v3513 = vpop.f32.mrf.mxu0
          %v3514 = vadd.f32 0.0, %v3513
          %v3515 = vpop.f32.mrf.mxu0
          %3516 = vmatprep.mubr.f32.mxu0 0.0
          %3517 = vmatmul.mubr.f32.gmra.mxu0 %v3445
          %v3518 = vpop.f32.mrf.mxu0
          %v3519 = vadd.f32 0.0, %v3518
          %v3520 = vpop.f32.mrf.mxu0
          %3521 = vdwg.mxu0
          %v3522 = vadd.f32 %v3359, %v3514
          %v3523 = vadd.f32 %v3360, %v3519
          %s3524 = scalar_lea.vmem %s7, %s630
          %v3525 = vld [vmem:[%s3524] sm:$0x1]
          %v3527 = vlaneseq
          %v3528 = vshrl.u32 %v3527, 7
          %v3529 = vsub.s32 0, %v3528
          %v3530 = vrot.slane %v3525, %v3529
          %v3532 = vadd.f32 %v3522, %v3530
          %v3533 = vadd.f32 %v3523, %v3530
          %v3534 = vsel %vm819, %v3532, 0.0
          %v3535 = vsel %vm819, %v3533, 0.0
          %v3536 = vadd.f32 %v3534, %v3535
          %v3537 = vrot.slane %v3536, 4
          %v3538 = vadd.f32 %v3536, %v3537
          %v3539 = vrot.slane %v3538, 2
          %v3540 = vadd.f32 %v3538, %v3539
          %v3541 = vrot.slane %v3540, 1
          %v3542 = vadd.f32 %v3540, %v3541
          %v3543 = vrcp.pop 16.0
          %v3544 = vmul.f32 %v3542, %v3543
          %s3545 = smul.u32 %s630, 2
          %s3546 = scalar_lea.vmem %s8, %s3545
          %v3547 = vld [vmem:[%s3546] sm:$0x3]
          %s3548 = scalar_lea.vmem %s9, %s3545
          %v3549 = vld [vmem:[%s3548] sm:$0x3]
          %v3550 = vmul.f32 %v3544, %v3547
          %vm3551 = vcmask 254976
          %v3552 = vsel %vm3551, %v3550, 0.0
          %3553 = vadd.xlane.f32.xlu0 %v3552
          %v3554 = vpop.xlane.xlu0 %3553
          %v3555 = vmul.f32 %v3554, 0.5
          %v3556 = vmul.f32 %v3554, 0.70710677
          %v3557 = verf.f32.pop %v3556
          %v3558 = vadd.f32 %v3557, 1.0
          %v3559 = vmul.f32 %v3555, %v3558
          %v3560 = vmul.f32 %v3559, %v3549
          %v3561 = vsel %vm3551, %v3560, 0.0
          %v3562 = vrot.slane %v3561, 4
          %v3563 = vadd.f32 %v3561, %v3562
          %v3564 = vrot.slane %v3563, 2
          %v3565 = vadd.f32 %v3563, %v3564
          %v3566 = vrot.slane %v3565, 1
          %v3567 = vadd.f32 %v3565, %v3566
          %v3568 = vxor.u32 %v3567, 2147483648
          %v3569 = vmul.f32 %v3568, 1.442695
          %v3570 = vpow.pop %v3569
          %v3571 = vadd.f32 %v3570, 1.0
          %v3572 = vrcp.pop %v3571
          %v3573 = vmul.f32 1.0, %v3572
          %v3574 = vmul.f32 %v3532, %v3573
          %v3575 = vmul.f32 %v3533, %v3573
          %v3576 = vadd.f32 %v3574, %v635
          %v3577 = vadd.f32 %v3575, %v636
        $region73: #{_lambda_.3} parent=59 // loop_footer
          %s634 = sadd.s32 1, %s630
        $region74: #{_lambda_.3} parent=59 // loop_footer_branch
          %629 = sbr.rel target = $region70
        $region75: #{_lambda_.3} parent=59 // loop_exit
          _
        %vm3578 = vcmask 261120
        %3579 = vst.msk [vmem:[%s389] sm:$0xff] %vm3578, %v635
        %3580 = vst.msk [vmem:[%s389 + $0x8] sm:$0xff] %vm3578, %v636
        %p3581 = scmp.lt.s32.totalorder %s23, 1
        %s3582 = scalar_select %p3581, %s23, 1
        %s3583 = smul.addr %s3582, 2
        %s3584 = smul.addr %s3583, 8
        %s3585 = scalar_lea.vmem %s10, %s3584
        // Predicated region
        $region76: #{_lambda_.3} parent=59 // pred_check
          %p3586 = pneg %p256
        $region77: #{_lambda_.3} parent=59 // pred_check_branch
          %3588 = sbr.rel (%p3586) target = $region79
        $region78: #{_lambda_.3} parent=59 // pred_region
          _
        $region79: #{_lambda_.3} parent=59 // pred_fallthru
          _
      $region60: #{_lambda_.3} parent=5 // pred_fallthru
        _
      %p3589 = scmp.le.s32.totalorder 2, %s18
      // Predicated region
      $region80: #{_lambda_.3} parent=5 // pred_check
        %p3590 = pneg %p3589
      $region81: #{_lambda_.3} parent=5 // pred_check_branch
        %3592 = sbr.rel (%p3590) target = $region83
      $region82: #{_lambda_.3} parent=5 // pred_region
        %s3593 = ssub.s32 %s18, 2
        // Predicated region
        $region84: #{_lambda_.3} parent=82 // pred_check
          %p3594 = pneg %p262
        $region85: #{_lambda_.3} parent=82 // pred_check_branch
          %3596 = sbr.rel (%p3594) target = $region87
        $region86: #{_lambda_.3} parent=82 // pred_region
          %p3597 = scmp.lt.s32.totalorder %s24, 1
          %s3598 = scalar_select %p3597, %s24, 1
          %s3599 = smul.addr %s3598, 2
          %s3600 = smul.addr %s3599, 8
          %s3601 = scalar_lea.vmem %s10, %s3600
        $region87: #{_lambda_.3} parent=82 // pred_fallthru
          _
      $region83: #{_lambda_.3} parent=5 // pred_fallthru
        _
    $region6: #{_lambda_.3} parent=1 // loop_footer
      %s22 = sadd.s32 1, %s18
    $region7: #{_lambda_.3} parent=1 // loop_footer_branch
      %17 = sbr.rel target = $region3
    $region8: #{_lambda_.3} parent=1 // loop_exit
      _
    %3602 = vsyncpa [#allocation3], 1
    %s3603 = scalar_lea.sflag [#allocation3], 1
    %3604 = vsyncpa %s3603, 1
    %3605 = vsyncpa [#allocation5], 1

</llo_original>
